<compile_context>
chip_gen: v6e
topology: v6e:2x2x1
jax: 0.10.0
libtpu: 0.0.40
codegen_flags: <defaults>
</compile_context>

<pallas_src>
import functools

import jax
import jax.numpy as jnp
from jax import lax
from jax.experimental import pallas as pl
from jax.experimental.pallas import tpu as pltpu

PAD = 0  # constants.PAD


def _vmem_capacity_bytes(default=128 * 1024 * 1024):
    try:
        info = pltpu.get_tpu_info()
        cap = getattr(info, "vmem_capacity_bytes", None)
        return int(cap) if cap else default
    except Exception:
        return default


_VMEM_CAP = _vmem_capacity_bytes()
_BIG_VMEM = _VMEM_CAP >= 96 * 1024 * 1024                   # v5e/v6e (128 MiB) vs v7x (64 MiB/TC)
VMEM_LIMIT = min(48 * 1024 * 1024, (_VMEM_CAP * 5) // 8)    # 48 MiB on v5e/v6e, 40 MiB on v7x
LINEAR_M_CAP = 512 if _BIG_VMEM else 256
LSTM_T_CAP = 128 if _BIG_VMEM else 32
BIATT_TQ_CAP = 512 if _BIG_VMEM else 256
POOL_B_CAP = 16 if _BIG_VMEM else 8
HEAD_B_CAP = 128


def _pick_tile(n, cap, align=8):
    """Largest tile <= cap that evenly divides n and is either the whole axis or a
    multiple of `align` (TPU second-minor alignment)."""
    if n <= cap:
        return n
    for t in range(cap - (cap % align), 0, -align):
        if n % t == 0:
            return t
    return n


def _sigmoid(x):
    # Exact sigmoid expressed via tanh (EUP op); the pure-JAX oracle uses the identical
    # formula so kernel and oracle agree to float rounding.
    return 0.5 * (jnp.tanh(0.5 * x) + 1.0)


# ----------------------------- Pallas kernels -----------------------------

def _linear_kernel(x_ref, w_ref, b_ref, o_ref, *, relu):
    y = jnp.dot(x_ref[...], w_ref[...], preferred_element_type=jnp.float32) + b_ref[...]
    if relu:
        y = jnp.maximum(y, 0.0)
    o_ref[...] = y


def pallas_linear(x, w, b, relu=False):
    """Row-tiled dense layer: grid over M, weights stay VMEM-resident, M axis is parallel."""
    M, K = x.shape
    N = w.shape[1]
    m_blk = _pick_tile(M, LINEAR_M_CAP)
    nM = M // m_blk
    return pl.pallas_call(
        functools.partial(_linear_kernel, relu=relu),
        out_shape=jax.ShapeDtypeStruct((M, N), jnp.float32),
        grid=(nM,),
        in_specs=[pl.BlockSpec((m_blk, K), lambda i: (i, 0)),
                  pl.BlockSpec((K, N), lambda i: (0, 0)),
                  pl.BlockSpec((1, N), lambda i: (0, 0))],
        out_specs=pl.BlockSpec((m_blk, N), lambda i: (i, 0)),
        compiler_params=pltpu.CompilerParams(
            dimension_semantics=("parallel",),
            vmem_limit_bytes=VMEM_LIMIT),
    )(x, w, b.reshape(1, N))


def _bilstm_kernel(x_ref, wih_ref, whh_ref, b_ref, o_ref, g_scr, h_scr, c_scr,
                   *, hidden, t_blk, batch):
    # x_ref:  (t_blk*B, Din)   time-major rows of this (direction, time tile); the reverse
    #                          direction's tile order is handled by the BlockSpec index_map
    # wih_ref:(1, Din, 4H)     this direction's input weights (pre-transposed)
    # whh_ref:(1, H, 4H)       this direction's recurrent weights
    # b_ref:  (1, 1, 4H)       b_ih + b_hh
    # o_ref:  (1, t_blk*B, H)  hidden outputs for this (direction, tile), written per step
    # g_scr:  (t_blk*B, 4H)    tile input-side gates
    # h_scr/c_scr: (B, H)      recurrent state carried in VMEM across time tiles
    H, B = hidden, batch
    d = pl.program_id(0)

    @pl.when(pl.program_id(1) == 0)
    def _():
        h_scr[...] = jnp.zeros_like(h_scr)
        c_scr[...] = jnp.zeros_like(c_scr)

    # Input-side gates for the whole tile in one MXU matmul: W_ih is pushed once per tile and
    # amortised over M = t_blk*B LHS rows (far better MXU economics than a per-step GEMM).
    g_scr[...] = jnp.dot(x_ref[...], wih_ref[0],
                         preferred_element_type=jnp.float32) + b_ref[0]

    # TODO(synk): keep W_hh resident in the MXU across the scan (pltpu.matmul_push_rhs /
    # matmul_acc_lhs / matmul_pop) instead of a fresh jnp.dot per step once verified in a
    # bundle dump; gate lane-slices are aligned for the default config (H = 256 // 2 = 128).
    @pl.loop(0, t_blk)
    def _(s):
        # local time index: forward order for d==0, reversed for d==1
        lt = s + d * (t_blk - 1 - 2 * s)
        row = lt * B
        if batch % 8 == 0:                       # sublane-aligned slice hint
            row = pl.multiple_of(row, 8)
        gates = g_scr[pl.ds(row, B), :] + jnp.dot(
            h_scr[...], whh_ref[0], preferred_element_type=jnp.float32)   # [B, 4H]
        i_g = _sigmoid(gates[:, 0:H])
        f_g = _sigmoid(gates[:, H:2 * H])
        g_g = jnp.tanh(gates[:, 2 * H:3 * H])
        o_g = _sigmoid(gates[:, 3 * H:4 * H])
        c = f_g * c_scr[...] + i_g * g_g
        h = o_g * jnp.tanh(c)
        c_scr[...] = c
        h_scr[...] = h
        o_ref[0, pl.ds(row, B), :] = h           # store directly; no tile-output scratch copy


def bilstm_tmajor(x_tm, p):
    """Fused bidirectional single-layer LSTM (zero init state).

    x_tm: [T, B, Din] time-major.  Returns [2, T, B, H] (dir 0 = forward, dir 1 = backward,
    already un-reversed, i.e. out[1, t] is the reverse-direction state at position t)."""
    T, B, Din = x_tm.shape
    H = p['w_hh'].shape[1]
    t_blk = _pick_tile(T, LSTM_T_CAP)
    nT = T // t_blk
    x2 = x_tm.reshape(T * B, Din)                       # free reshape (time-major rows)
    out = pl.pallas_call(
        functools.partial(_bilstm_kernel, hidden=H, t_blk=t_blk, batch=B),
        out_shape=jax.ShapeDtypeStruct((2, T * B, H), jnp.float32),
        grid=(2, nT),
        in_specs=[
            # reversal of the reverse direction handled purely by the index_map
            pl.BlockSpec((t_blk * B, Din), lambda d, j: (j + d * (nT - 1 - 2 * j), 0)),
            pl.BlockSpec((1, Din, 4 * H), lambda d, j: (d, 0, 0)),
            pl.BlockSpec((1, H, 4 * H), lambda d, j: (d, 0, 0)),
            pl.BlockSpec((1, 1, 4 * H), lambda d, j: (d, 0, 0)),
        ],
        out_specs=pl.BlockSpec((1, t_blk * B, H),
                               lambda d, j: (d, j + d * (nT - 1 - 2 * j), 0)),
        scratch_shapes=[pltpu.VMEM((t_blk * B, 4 * H), jnp.float32),   # tile input gates
                        pltpu.VMEM((B, H), jnp.float32),               # h carry
                        pltpu.VMEM((B, H), jnp.float32)],              # c carry
        compiler_params=pltpu.CompilerParams(
            dimension_semantics=("parallel", "arbitrary"),
            vmem_limit_bytes=VMEM_LIMIT),
    )(x2, p['w_ih'], p['w_hh'], p['b'])
    return out.reshape(2, T, B, H)


def _biatt_kernel(y_ref, o_ref, cy_scr, *, tq, nq):
    # Per-batch biattention, tiled over query rows (flash-style accumulation of Cy).
    # S = Y Y^T is exactly symmetric, so the reference's permuted softmax equals the row
    # (lane-axis) softmax of S, and Cy = Ay^T @ Y is accumulated over query-row tiles as
    # (rowsoftmax(masked S_rows) * mask2_rows)^T @ Y_rows.
    q = pl.program_id(1)

    @pl.when(q == 0)
    def _():
        cy_scr[...] = jnp.zeros_like(cy_scr)

    y = y_ref[0]                                                         # [T, D] (resident)
    if nq == 1:
        yq = y
    else:
        yq = y_ref[0, pl.ds(pl.multiple_of(q * tq, 8), tq), :]           # [tq, D] in-kernel slice
    s = lax.dot_general(yq, y, (((1,), (1,)), ((), ())),
                        preferred_element_type=jnp.float32)              # [tq, T]
    masked = s + (-1e32) * (s <= 1e-7).astype(jnp.float32)
    e = jnp.exp(masked - jnp.max(masked, axis=-1, keepdims=True))        # lane-axis reduce
    p = e / jnp.sum(e, axis=-1, keepdims=True)
    pm = p * (s >= 1e-7).astype(jnp.float32)
    # Cy contribution: pm^T @ yq   (MXU takes the transposed contraction directly)
    cy_scr[...] += lax.dot_general(pm, yq, (((0,), (0,)), ((), ())),
                                   preferred_element_type=jnp.float32)

    @pl.when(q == pl.num_programs(1) - 1)
    def _():
        cy = cy_scr[...]
        o_ref[0] = jnp.concatenate([y, y - cy, y * cy], axis=-1)


def biattention(y):
    B, T, D = y.shape
    tq = _pick_tile(T, BIATT_TQ_CAP)
    nq = T // tq
    return pl.pallas_call(
        functools.partial(_biatt_kernel, tq=tq, nq=nq),
        out_shape=jax.ShapeDtypeStruct((B, T, 3 * D), jnp.float32),
        grid=(B, nq),
        in_specs=[pl.BlockSpec((1, T, D), lambda b, q: (b, 0, 0))],      # Y read once per batch
        out_specs=pl.BlockSpec((1, T, 3 * D), lambda b, q: (b, 0, 0)),
        scratch_shapes=[pltpu.VMEM((T, D), jnp.float32)],
        compiler_params=pltpu.CompilerParams(
            dimension_semantics=("parallel", "arbitrary"),
            vmem_limit_bytes=VMEM_LIMIT),
    )(y)


def _pool_kernel(x_ref, m_ref, w_ref, b_ref, o_ref, *, hidden):
    # x_ref: (2, T, b_blk, H) time-major integrator outputs (dir, time, batch, hidden)
    # m_ref: (T, b_blk, 1)    pad mask (1 = real token)
    # w_ref: (1, 1, D), b_ref: (1, 1, 1)  attentive-pooling projection (D = 2H)
    # Each direction half is reduced separately; only small [b, H] results are concatenated.
    H = hidden
    m3 = m_ref[...]
    pos = 1e7 * (1.0 - m3)
    neg_inf = (-1e32) * (1.0 - m3)
    cnt = jnp.sum(m3, axis=0)                                            # [b, 1]
    x0 = x_ref[0]                                                        # [T, b, H] forward
    x1 = x_ref[1]                                                        # [T, b, H] backward
    w = w_ref[...]
    w0 = w[:, :, 0:H]
    w1 = w[:, :, H:2 * H]

    logits = (jnp.sum(x0 * w0, axis=-1, keepdims=True)
              + jnp.sum(x1 * w1, axis=-1, keepdims=True)
              + b_ref[...])                                              # [T, b, 1]
    logits = logits + neg_inf
    e = jnp.exp(logits - jnp.max(logits, axis=0, keepdims=True))
    wts = e / jnp.sum(e, axis=0, keepdims=True)

    max0 = jnp.max(x0 - pos, axis=0)
    max1 = jnp.max(x1 - pos, axis=0)
    min0 = jnp.min(x0 + pos, axis=0)
    min1 = jnp.min(x1 + pos, axis=0)
    mean0 = jnp.sum(x0, axis=0) / cnt                                    # unmasked numerator,
    mean1 = jnp.sum(x1, axis=0) / cnt                                    # token-count denominator
    sa0 = jnp.sum(wts * x0, axis=0)
    sa1 = jnp.sum(wts * x1, axis=0)
    o_ref[...] = jnp.concatenate(
        [max0, max1, min0, min1, mean0, mean1, sa0, sa1], axis=-1)       # [b, 4*D]


def pooling(outs_tm, mask_tb1, attn_w, attn_b):
    _, T, B, H = outs_tm.shape
    D = 2 * H
    b_blk = _pick_tile(B, POOL_B_CAP)
    nB = B // b_blk
    return pl.pallas_call(
        functools.partial(_pool_kernel, hidden=H),
        out_shape=jax.ShapeDtypeStruct((B, 4 * D), jnp.float32),
        grid=(nB,),
        in_specs=[pl.BlockSpec((2, T, b_blk, H), lambda i: (0, 0, i, 0)),
                  pl.BlockSpec((T, b_blk, 1), lambda i: (0, i, 0)),
                  pl.BlockSpec((1, 1, D), lambda i: (0, 0, 0)),
                  pl.BlockSpec((1, 1, 1), lambda i: (0, 0, 0))],
        out_specs=pl.BlockSpec((b_blk, 4 * D), lambda i: (i, 0)),
        compiler_params=pltpu.CompilerParams(
            dimension_semantics=("parallel",),
            vmem_limit_bytes=VMEM_LIMIT),
    )(outs_tm, mask_tb1, attn_w, attn_b)


def _head_kernel(x_ref, w1_ref, b1_ref, w2_ref, b2_ref, wc_ref, bc_ref,
                 logits_ref, probs_ref, *, d1, d2, pool):
    # BatchNorm (eval) affines are pre-folded into (w1, b1) / (w2, b2).
    x = x_ref[...]
    h1 = jnp.dot(x, w1_ref[...], preferred_element_type=jnp.float32) + b1_ref[...]
    m1 = h1[:, 0:d1]
    for k in range(1, pool):
        m1 = jnp.maximum(m1, h1[:, k * d1:(k + 1) * d1])
    h2 = jnp.dot(m1, w2_ref[...], preferred_element_type=jnp.float32) + b2_ref[...]
    m2 = h2[:, 0:d2]
    for k in range(1, pool):
        m2 = jnp.maximum(m2, h2[:, k * d2:(k + 1) * d2])
    logits = jnp.dot(m2, wc_ref[...], preferred_element_type=jnp.float32) + bc_ref[...]
    e = jnp.exp(logits - jnp.max(logits, axis=-1, keepdims=True))
    logits_ref[...] = logits
    probs_ref[...] = e / jnp.sum(e, axis=-1, keepdims=True)


def head(pooled, hp, num_labels):
    B, D4 = pooled.shape
    d1 = D4 // 4
    d2 = d1 // 4
    pool = hp['pool_size']
    w1, b1 = hp['maxout1']
    w2, b2 = hp['maxout2']
    wc, bc = hp['classifier']
    b_blk = _pick_tile(B, HEAD_B_CAP)
    nB = B // b_blk
    return pl.pallas_call(
        functools.partial(_head_kernel, d1=d1, d2=d2, pool=pool),
        out_shape=(jax.ShapeDtypeStruct((B, num_labels), jnp.float32),
                   jax.ShapeDtypeStruct((B, num_labels), jnp.float32)),
        grid=(nB,),
        in_specs=[pl.BlockSpec((b_blk, D4), lambda i: (i, 0)),
                  pl.BlockSpec((D4, d1 * pool), lambda i: (0, 0)),
                  pl.BlockSpec((1, d1 * pool), lambda i: (0, 0)),
                  pl.BlockSpec((d1, d2 * pool), lambda i: (0, 0)),
                  pl.BlockSpec((1, d2 * pool), lambda i: (0, 0)),
                  pl.BlockSpec((d2, num_labels), lambda i: (0, 0)),
                  pl.BlockSpec((1, num_labels), lambda i: (0, 0))],
        out_specs=(pl.BlockSpec((b_blk, num_labels), lambda i: (i, 0)),
                   pl.BlockSpec((b_blk, num_labels), lambda i: (i, 0))),
        compiler_params=pltpu.CompilerParams(
            dimension_semantics=("parallel",),
            vmem_limit_bytes=VMEM_LIMIT),
    )(pooled, w1, b1.reshape(1, -1), w2, b2.reshape(1, -1), wc, bc.reshape(1, -1))


# ----------------------------- JAX glue -----------------------------

def bcn_forward(token_ids, params, num_labels):
    B, T = token_ids.shape
    tok_t = token_ids.T                                                  # [T, B]
    encoded_t = params['embedding'][tok_t]                               # [T, B, E] (time-major)
    E = encoded_t.shape[-1]
    F_ = params['fc_w'].shape[1]
    # task-specific reps: relu(fc(encoded)), produced directly in time-major order
    reps_t = pallas_linear(encoded_t.reshape(T * B, E), params['fc_w'],
                           params['fc_b'], relu=True).reshape(T, B, F_)
    H_enc = params['enc_lstm']['w_hh'].shape[1]
    enc = bilstm_tmajor(reps_t, params['enc_lstm'])                      # [2, T, B, H_enc]
    # TODO(synk): the two transposes below are HBM round trips; folding them into the
    # biattention kernel needs (·,·,1,H)/(T,1,3D) blocks that violate the (8,128) rule
    # for general B, so they stay as XLA transposes for now.
    enc_bt = jnp.transpose(enc, (2, 1, 0, 3)).reshape(B, T, 2 * H_enc)   # [B, T, enc_size]
    integ_in = biattention(enc_bt)                                       # [B, T, 3*enc_size]
    integ_in_t = jnp.transpose(integ_in, (1, 0, 2))                      # [T, B, 3*enc_size]
    outs = bilstm_tmajor(integ_in_t, params['int_lstm'])                 # [2, T, B, H_int]
    mask_tb1 = (tok_t != PAD).astype(jnp.float32)[:, :, None]            # [T, B, 1]
    pooled = pooling(outs, mask_tb1, params['attn_w'], params['attn_b'])  # [B, 4*int_size]
    return head(pooled, params['head'], num_labels)


def permute_maxout(w, b, d_out, pool):
    # torch Maxout: Linear -> view(d_out, pool).max(-1).  Permute columns so piece k of every
    # unit sits in contiguous chunk k (lets the kernel use static lane slices).
    c = jnp.arange(d_out * pool)
    orig = (c % d_out) * pool + (c // d_out)
    return w[:, orig], b[orig]


def fold_bn(gamma, beta, mean, var, w, b, eps=1e-5):
    """Fold an eval-mode BatchNorm1d applied BEFORE Linear(w, b) into (w, b)."""
    scale = gamma / jnp.sqrt(var + eps)
    shift = beta - mean * scale
    return w * scale[:, None], b + shift @ w


def init_params(key, *, dict_length, encoded_size, fc_hidden, enc_size, int_size,
                pool_size, num_labels):
    keys = iter(jax.random.split(key, 64))

    def u(shape, s=0.25):
        return jax.random.uniform(next(keys), shape, jnp.float32, -s, s)

    def lstm_params(in_dim, H):
        # stacked per-direction weights: dir 0 = forward, dir 1 = backward
        return {'w_ih': u((2, in_dim, 4 * H)),                 # [2, Din, 4H] (pre-transposed)
                'w_hh': u((2, H, 4 * H)),                      # [2, H, 4H]
                'b': u((2, 1, 4 * H)) + u((2, 1, 4 * H))}      # b_ih + b_hh

    H_enc = enc_size // 2
    H_int = int_size // 2
    emb = u((dict_length, encoded_size), 0.5).at[PAD].set(0.0)           # padding_idx=PAD

    D4 = int_size * 4
    d1 = D4 // 4
    d2 = d1 // 4
    w1_raw, b1_raw = u((D4, d1 * pool_size)), u((d1 * pool_size,))
    w2_raw, b2_raw = u((d1, d2 * pool_size)), u((d2 * pool_size,))
    wc, bc = u((d2, num_labels)), u((num_labels,))

    # eval-mode BatchNorm1d running stats (gamma=1, beta=0, mean=0, var=1), folded exactly
    # into the maxout linears at init time (zero runtime cost).
    def bn_eval(c):
        return (jnp.ones((c,), jnp.float32), jnp.zeros((c,), jnp.float32),
                jnp.zeros((c,), jnp.float32), jnp.ones((c,), jnp.float32))

    w1, b1 = permute_maxout(w1_raw, b1_raw, d1, pool_size)
    w1, b1 = fold_bn(*bn_eval(D4), w1, b1)
    w2, b2 = permute_maxout(w2_raw, b2_raw, d2, pool_size)
    w2, b2 = fold_bn(*bn_eval(d1), w2, b2)

    return {
        'embedding': emb,
        'fc_w': u((encoded_size, fc_hidden)),
        'fc_b': u((fc_hidden,)),
        'enc_lstm': lstm_params(fc_hidden, H_enc),
        'int_lstm': lstm_params(enc_size * 3, H_int),
        'attn_w': u((1, 1, int_size)),
        'attn_b': u((1, 1, 1)),
        'head': {
            'pool_size': pool_size,
            'maxout1': (w1, b1),
            'maxout2': (w2, b2),
            'classifier': (wc, bc),
        },
        'head_raw': {  # un-permuted, un-folded weights for the pure-JAX oracle
            'pool_size': pool_size,
            'maxout1': (w1_raw, b1_raw),
            'maxout2': (w2_raw, b2_raw),
            'classifier': (wc, bc),
        },
    }


# ----------------------------- Pure-JAX oracle (reference forward) -----------------------------

def _lstm_dir_ref(x_tm, w_ih, w_hh, b, reverse):
    _, B, _ = x_tm.shape
    H = w_hh.shape[0]

    def step(carry, x_t):
        h, c = carry
        gates = x_t @ w_ih + h @ w_hh + b
        i = _sigmoid(gates[:, 0:H])
        f = _sigmoid(gates[:, H:2 * H])
        g = jnp.tanh(gates[:, 2 * H:3 * H])
        o = _sigmoid(gates[:, 3 * H:4 * H])
        c = f * c + i * g
        h = o * jnp.tanh(c)
        return (h, c), h

    xs = x_tm[::-1] if reverse else x_tm
    init = (jnp.zeros((B, H), jnp.float32), jnp.zeros((B, H), jnp.float32))
    _, hs = lax.scan(step, init, xs)
    return hs[::-1] if reverse else hs


def _bilstm_ref(x_tm, p):
    h_f = _lstm_dir_ref(x_tm, p['w_ih'][0], p['w_hh'][0], p['b'][0], False)
    h_b = _lstm_dir_ref(x_tm, p['w_ih'][1], p['w_hh'][1], p['b'][1], True)
    return jnp.concatenate([h_f, h_b], axis=-1)                          # [T, B, 2H]


def bcn_reference(token_ids, params, num_labels):
    """Verbatim pure-JAX transcription of the PyTorch forward (eval mode)."""
    del num_labels
    encoded = params['embedding'][token_ids]                             # [B, T, E]
    reps = jax.nn.relu(encoded @ params['fc_w'] + params['fc_b'])
    y_t = _bilstm_ref(jnp.transpose(reps, (1, 0, 2)), params['enc_lstm'])
    Y = jnp.transpose(y_t, (1, 0, 2))                                    # [B, T, enc]
    A = jnp.einsum('bid,bjd->bij', Y, Y)
    M = A + (-1e32) * (A <= 1e-7).astype(jnp.float32)
    masked_Ay = jax.nn.softmax(jnp.transpose(M, (0, 2, 1)), axis=-1)
    mask2 = (A >= 1e-7).astype(jnp.float32)
    Ay = masked_Ay * mask2
    Cy = jnp.einsum('bij,bid->bjd', Ay, Y)                               # bmm(Ay^T, Y)
    integ = jnp.concatenate([Y, Y - Cy, Y * Cy], axis=-1)
    outs_t = _bilstm_ref(jnp.transpose(integ, (1, 0, 2)), params['int_lstm'])
    outs = jnp.transpose(outs_t, (1, 0, 2))                              # [B, T, int]
    pad = (token_ids != PAD).astype(jnp.float32)
    pad3 = pad[:, :, None]
    max_pool = jnp.max(outs + (-1e7) * (1.0 - pad3), axis=1)
    min_pool = jnp.min(outs + 1e7 * (1.0 - pad3), axis=1)
    mean_pool = jnp.sum(outs, axis=1) / jnp.sum(pad, axis=1, keepdims=True)
    sa_logits = jnp.einsum('btd,d->bt', outs, params['attn_w'].reshape(-1)) \
        + params['attn_b'].reshape(())
    sa_logits = sa_logits + (-1e32) * (1.0 - pad)
    sw = jax.nn.softmax(sa_logits, axis=-1)
    sa_pool = jnp.einsum('bt,btd->bd', sw, outs)
    pooled = jnp.concatenate([max_pool, min_pool, mean_pool, sa_pool], axis=-1)

    hr = params['head_raw']
    pool = hr['pool_size']

    def bn(x):
        return x / jnp.sqrt(1.0 + 1e-5)   # eval BatchNorm1d: gamma=1, beta=0, mean=0, var=1

    def maxout(x, w, b, d_out):
        h = x @ w + b
        return jnp.max(h.reshape(x.shape[0], d_out, pool), axis=-1)

    d1 = pooled.shape[1] // 4
    d2 = d1 // 4
    m1 = maxout(bn(pooled), hr['maxout1'][0], hr['maxout1'][1], d1)
    m2 = maxout(bn(m1), hr['maxout2'][0], hr['maxout2'][1], d2)
    logits = m2 @ hr['classifier'][0] + hr['classifier'][1]
    return logits, jax.nn.softmax(logits, axis=-1)


# TODO(synk): 'cove'/'glove' encoder branches (pretrained converter modules) are not
# reproduced; only the 'random' nn.Embedding branch is implemented.

if __name__ == "__main__":
    # Highest matmul precision so the Pallas kernels (MXU) and the pure-JAX oracle (XLA)
    # agree tightly; the 1e-7 biattention mask thresholds also require full f32 scores.
    jax.config.update("jax_default_matmul_precision", "highest")

    key = jax.random.PRNGKey(0)
    B, T = 2, 8
    dict_length, num_labels = 50, 3
    cfg = dict(encoded_size=32, fc_hidden=32, enc_size=32, int_size=32, pool_size=4)

    pkey, dkey = jax.random.split(key)
    params = init_params(pkey, dict_length=dict_length, num_labels=num_labels, **cfg)

    tokens = jax.random.randint(dkey, (B, T), 1, dict_length)
    tokens = tokens.at[1, 6:].set(PAD)  # some padding to exercise the masks

    fwd = jax.jit(functools.partial(bcn_forward, params=params, num_labels=num_labels))
    logits, probs = jax.block_until_ready(fwd(tokens))

    ref = jax.jit(functools.partial(bcn_reference, params=params, num_labels=num_labels))
    ref_logits, ref_probs = jax.block_until_ready(ref(tokens))

    assert logits.shape == (B, num_labels) and probs.shape == (B, num_labels)
    assert bool(jnp.all(jnp.isfinite(logits))) and bool(jnp.all(jnp.isfinite(probs)))
    assert bool(jnp.allclose(jnp.sum(probs, axis=-1), 1.0, atol=1e-5))
    assert bool(jnp.allclose(logits, ref_logits, atol=2e-3, rtol=2e-3)), \
        f"logits mismatch: max|diff|={float(jnp.max(jnp.abs(logits - ref_logits)))}"
    assert bool(jnp.allclose(probs, ref_probs, atol=2e-3, rtol=2e-3)), \
        f"probs mismatch: max|diff|={float(jnp.max(jnp.abs(probs - ref_probs)))}"
    print("KERNEL_OK")
</pallas_src>

<mosaic_0001>
module attributes {stable_mosaic.version = 11 : i64} {
  func.func @_linear_kernel(%arg0: i32, %arg1: memref<16x32xf32, #tpu.memory_space<vmem>>, %arg2: memref<32x32xf32, #tpu.memory_space<vmem>>, %arg3: memref<1x32xf32, #tpu.memory_space<vmem>>, %arg4: memref<16x32xf32, #tpu.memory_space<vmem>>) attributes {dimension_semantics = [#tpu.dimension_semantics<parallel>], iteration_bounds = array<i64: 1>, scalar_prefetch = 0 : i64, scratch_operands = 0 : i64, tpu.core_type = #tpu.core_type<tc>, window_params = [{transform_indices = @transform_0, window_bounds = array<i64: 16, 32>}, {pipeline_mode = #tpu.pipeline_mode<synchronous>, transform_indices = @transform_1, window_bounds = array<i64: 32, 32>}, {pipeline_mode = #tpu.pipeline_mode<synchronous>, transform_indices = @transform_2, window_bounds = array<i64: 1, 32>}, {transform_indices = @transform_3, window_bounds = array<i64: 16, 32>}]} {
    %c0 = arith.constant 0 : index
    %c0_0 = arith.constant 0 : index
    %0 = vector.load %arg1[%c0, %c0_0] : memref<16x32xf32, #tpu.memory_space<vmem>>, vector<16x32xf32>
    %c0_1 = arith.constant 0 : index
    %c0_2 = arith.constant 0 : index
    %1 = vector.load %arg2[%c0_1, %c0_2] : memref<32x32xf32, #tpu.memory_space<vmem>>, vector<32x32xf32>
    %cst = arith.constant dense<0.000000e+00> : vector<16x32xf32>
    %2 = tpu.matmul %0, %1, %cst {dimension_numbers = #tpu.dot_dimension_numbers<[1], [0], [0], [1], [0, 0, 1, 1], [], []>, precision = #tpu.contract_precision<fp32>} : vector<16x32xf32>, vector<32x32xf32>, vector<16x32xf32> -> vector<16x32xf32>
    %c0_3 = arith.constant 0 : index
    %c0_4 = arith.constant 0 : index
    %3 = vector.load %arg3[%c0_3, %c0_4] : memref<1x32xf32, #tpu.memory_space<vmem>>, vector<1x32xf32>
    %4 = vector.broadcast %3 : vector<1x32xf32> to vector<16x32xf32>
    %5 = arith.addf %2, %4 : vector<16x32xf32>
    %cst_5 = arith.constant 0.000000e+00 : f32
    %6 = vector.broadcast %cst_5 : f32 to vector<16x32xf32>
    %7 = arith.maximumf %5, %6 : vector<16x32xf32>
    %c0_6 = arith.constant 0 : index
    %c0_7 = arith.constant 0 : index
    %8 = vector.load %arg4[%c0_6, %c0_7] : memref<16x32xf32, #tpu.memory_space<vmem>>, vector<16x32xf32>
    tpu.vector_store %arg4[%c0_6, %c0_7], %7 {strides = array<i32>} : memref<16x32xf32, #tpu.memory_space<vmem>>, vector<16x32xf32>,
    return
  }
  func.func @transform_0(%arg0: i32) -> (i32, i32) {
    %c0_i32 = arith.constant 0 : i32
    %c0_i32_0 = arith.constant 0 : i32
    return %arg0, %c0_i32 : i32, i32
  }
  func.func @transform_1(%arg0: i32) -> (i32, i32) {
    %c0_i32 = arith.constant 0 : i32
    %c0_i32_0 = arith.constant 0 : i32
    %c0_i32_1 = arith.constant 0 : i32
    return %c0_i32, %c0_i32_0 : i32, i32
  }
  func.func @transform_2(%arg0: i32) -> (i32, i32) {
    %c0_i32 = arith.constant 0 : i32
    %c0_i32_0 = arith.constant 0 : i32
    %c0_i32_1 = arith.constant 0 : i32
    return %c0_i32, %c0_i32_0 : i32, i32
  }
  func.func @transform_3(%arg0: i32) -> (i32, i32) {
    %c0_i32 = arith.constant 0 : i32
    %c0_i32_0 = arith.constant 0 : i32
    return %arg0, %c0_i32 : i32, i32
  }
}

module attributes {stable_mosaic.version = 11 : i64} {
  func.func @_bilstm_kernel(%arg0: i32, %arg1: i32, %arg2: memref<16x32xf32, #tpu.memory_space<vmem>>, %arg3: memref<1x32x64xf32, #tpu.memory_space<vmem>>, %arg4: memref<1x16x64xf32, #tpu.memory_space<vmem>>, %arg5: memref<1x1x64xf32, #tpu.memory_space<vmem>>, %arg6: memref<1x16x16xf32, #tpu.memory_space<vmem>>, %arg7: memref<16x64xf32, #tpu.memory_space<vmem>>, %arg8: memref<2x16xf32, #tpu.memory_space<vmem>>, %arg9: memref<2x16xf32, #tpu.memory_space<vmem>>) attributes {dimension_semantics = [#tpu.dimension_semantics<parallel>, #tpu.dimension_semantics<arbitrary>], iteration_bounds = array<i64: 2, 1>, scalar_prefetch = 0 : i64, scratch_operands = 3 : i64, tpu.core_type = #tpu.core_type<tc>, window_params = [{transform_indices = @transform_0, window_bounds = array<i64: 16, 32>}, {transform_indices = @transform_1, window_bounds = array<i64: 1, 32, 64>}, {transform_indices = @transform_2, window_bounds = array<i64: 1, 16, 64>}, {transform_indices = @transform_3, window_bounds = array<i64: 1, 1, 64>}, {transform_indices = @transform_4, window_bounds = array<i64: 1, 16, 16>}]} {
    %c0_i32 = arith.constant 0 : i32
    %0 = arith.cmpi eq, %arg1, %c0_i32 : i32
    %1 = arith.extui %0 : i1 to i32
    %c0_i32_0 = arith.constant 0 : i32
    %2 = arith.cmpi ne, %1, %c0_i32_0 : i32
    scf.if %2 {
      %cst_12 = arith.constant 0.000000e+00 : f32
      %13 = vector.broadcast %cst_12 : f32 to vector<2x16xf32>
      %c0_13 = arith.constant 0 : index
      %c0_14 = arith.constant 0 : index
      %14 = vector.load %arg8[%c0_13, %c0_14] : memref<2x16xf32, #tpu.memory_space<vmem>>, vector<2x16xf32>
      tpu.vector_store %arg8[%c0_13, %c0_14], %13 {strides = array<i32>} : memref<2x16xf32, #tpu.memory_space<vmem>>, vector<2x16xf32>,
      %cst_15 = arith.constant 0.000000e+00 : f32
      %15 = vector.broadcast %cst_15 : f32 to vector<2x16xf32>
      %c0_16 = arith.constant 0 : index
      %c0_17 = arith.constant 0 : index
      %16 = vector.load %arg9[%c0_16, %c0_17] : memref<2x16xf32, #tpu.memory_space<vmem>>, vector<2x16xf32>
      tpu.vector_store %arg9[%c0_16, %c0_17], %15 {strides = array<i32>} : memref<2x16xf32, #tpu.memory_space<vmem>>, vector<2x16xf32>,
    } else {
    }
    %c0 = arith.constant 0 : index
    %c0_1 = arith.constant 0 : index
    %3 = vector.load %arg2[%c0, %c0_1] : memref<16x32xf32, #tpu.memory_space<vmem>>, vector<16x32xf32>
    %c0_2 = arith.constant 0 : index
    %c0_3 = arith.constant 0 : index
    %c0_4 = arith.constant 0 : index
    %4 = vector.load %arg3[%c0_2, %c0_3, %c0_4] : memref<1x32x64xf32, #tpu.memory_space<vmem>>, vector<1x32x64xf32>
    %5 = vector.shape_cast %4 : vector<1x32x64xf32> to vector<32x64xf32>
    %cst = arith.constant dense<0.000000e+00> : vector<16x64xf32>
    %6 = tpu.matmul %3, %5, %cst {dimension_numbers = #tpu.dot_dimension_numbers<[1], [0], [0], [1], [0, 0, 1, 1], [], []>, precision = #tpu.contract_precision<fp32>} : vector<16x32xf32>, vector<32x64xf32>, vector<16x64xf32> -> vector<16x64xf32>
    %c0_5 = arith.constant 0 : index
    %c0_6 = arith.constant 0 : index
    %c0_7 = arith.constant 0 : index
    %7 = vector.load %arg5[%c0_5, %c0_6, %c0_7] : memref<1x1x64xf32, #tpu.memory_space<vmem>>, vector<1x1x64xf32>
    %8 = vector.shape_cast %7 : vector<1x1x64xf32> to vector<1x64xf32>
    %9 = vector.broadcast %8 : vector<1x64xf32> to vector<16x64xf32>
    %10 = arith.addf %6, %9 : vector<16x64xf32>
    %c0_8 = arith.constant 0 : index
    %c0_9 = arith.constant 0 : index
    %11 = vector.load %arg7[%c0_8, %c0_9] : memref<16x64xf32, #tpu.memory_space<vmem>>, vector<16x64xf32>
    tpu.vector_store %arg7[%c0_8, %c0_9], %10 {strides = array<i32>} : memref<16x64xf32, #tpu.memory_space<vmem>>, vector<16x64xf32>,
    %c0_i32_10 = arith.constant 0 : i32
    %c8_i32 = arith.constant 8 : i32
    %12 = arith.addi %c0_i32_10, %c8_i32 : i32
    %c1_i32 = arith.constant 1 : i32
    scf.for %arg10 = %c0_i32_10 to %12 step %c1_i32  : i32 {
      %c1_i32_12 = arith.constant 1 : i32
      %13 = arith.muli %arg10, %c1_i32_12 : i32
      %c0_i32_13 = arith.constant 0 : i32
      %14 = arith.addi %c0_i32_13, %13 : i32
      %c2_i32 = arith.constant 2 : i32
      %15 = arith.muli %c2_i32, %14 : i32
      %c7_i32 = arith.constant 7 : i32
      %16 = arith.subi %c7_i32, %15 : i32
      %17 = arith.muli %arg0, %16 : i32
      %18 = arith.addi %14, %17 : i32
      %c2_i32_14 = arith.constant 2 : i32
      %19 = arith.muli %18, %c2_i32_14 : i32
      %20 = arith.index_cast %19 : i32 to index
      %c0_15 = arith.constant 0 : index
      %21 = vector.load %arg7[%20, %c0_15] : memref<16x64xf32, #tpu.memory_space<vmem>>, vector<2x64xf32>
      %c0_16 = arith.constant 0 : index
      %c0_17 = arith.constant 0 : index
      %22 = vector.load %arg8[%c0_16, %c0_17] : memref<2x16xf32, #tpu.memory_space<vmem>>, vector<2x16xf32>
      %c0_18 = arith.constant 0 : index
      %c0_19 = arith.constant 0 : index
      %c0_20 = arith.constant 0 : index
      %23 = vector.load %arg4[%c0_18, %c0_19, %c0_20] : memref<1x16x64xf32, #tpu.memory_space<vmem>>, vector<1x16x64xf32>
      %24 = vector.shape_cast %23 : vector<1x16x64xf32> to vector<16x64xf32>
      %cst_21 = arith.constant dense<0.000000e+00> : vector<2x64xf32>
      %25 = tpu.matmul %22, %24, %cst_21 {dimension_numbers = #tpu.dot_dimension_numbers<[1], [0], [0], [1], [0, 0, 1, 1], [], []>, precision = #tpu.contract_precision<fp32>} : vector<2x16xf32>, vector<16x64xf32>, vector<2x64xf32> -> vector<2x64xf32>
      %26 = arith.addf %21, %25 : vector<2x64xf32>
      %27 = vector.extract_strided_slice %26 {offsets = [0, 0], sizes = [2, 16], strides = [1, 1]} : vector<2x64xf32> to vector<2x16xf32>
      %cst_22 = arith.constant 5.000000e-01 : f32
      %28 = vector.broadcast %cst_22 : f32 to vector<2x16xf32>
      %29 = arith.mulf %28, %27 : vector<2x16xf32>
      %30 = math.tanh %29 : vector<2x16xf32>
      %cst_23 = arith.constant 1.000000e+00 : f32
      %31 = vector.broadcast %cst_23 : f32 to vector<2x16xf32>
      %32 = arith.addf %30, %31 : vector<2x16xf32>
      %cst_24 = arith.constant 5.000000e-01 : f32
      %33 = vector.broadcast %cst_24 : f32 to vector<2x16xf32>
      %34 = arith.mulf %33, %32 : vector<2x16xf32>
      %35 = vector.extract_strided_slice %26 {offsets = [0, 16], sizes = [2, 16], strides = [1, 1]} : vector<2x64xf32> to vector<2x16xf32>
      %cst_25 = arith.constant 5.000000e-01 : f32
      %36 = vector.broadcast %cst_25 : f32 to vector<2x16xf32>
      %37 = arith.mulf %36, %35 : vector<2x16xf32>
      %38 = math.tanh %37 : vector<2x16xf32>
      %cst_26 = arith.constant 1.000000e+00 : f32
      %39 = vector.broadcast %cst_26 : f32 to vector<2x16xf32>
      %40 = arith.addf %38, %39 : vector<2x16xf32>
      %cst_27 = arith.constant 5.000000e-01 : f32
      %41 = vector.broadcast %cst_27 : f32 to vector<2x16xf32>
      %42 = arith.mulf %41, %40 : vector<2x16xf32>
      %43 = vector.extract_strided_slice %26 {offsets = [0, 32], sizes = [2, 16], strides = [1, 1]} : vector<2x64xf32> to vector<2x16xf32>
      %44 = math.tanh %43 : vector<2x16xf32>
      %45 = vector.extract_strided_slice %26 {offsets = [0, 48], sizes = [2, 16], strides = [1, 1]} : vector<2x64xf32> to vector<2x16xf32>
      %cst_28 = arith.constant 5.000000e-01 : f32
      %46 = vector.broadcast %cst_28 : f32 to vector<2x16xf32>
      %47 = arith.mulf %46, %45 : vector<2x16xf32>
      %48 = math.tanh %47 : vector<2x16xf32>
      %cst_29 = arith.constant 1.000000e+00 : f32
      %49 = vector.broadcast %cst_29 : f32 to vector<2x16xf32>
      %50 = arith.addf %48, %49 : vector<2x16xf32>
      %cst_30 = arith.constant 5.000000e-01 : f32
      %51 = vector.broadcast %cst_30 : f32 to vector<2x16xf32>
      %52 = arith.mulf %51, %50 : vector<2x16xf32>
      %c0_31 = arith.constant 0 : index
      %c0_32 = arith.constant 0 : index
      %53 = vector.load %arg9[%c0_31, %c0_32] : memref<2x16xf32, #tpu.memory_space<vmem>>, vector<2x16xf32>
      %54 = arith.mulf %42, %53 : vector<2x16xf32>
      %55 = arith.mulf %34, %44 : vector<2x16xf32>
      %56 = arith.addf %54, %55 : vector<2x16xf32>
      %57 = math.tanh %56 : vector<2x16xf32>
      %58 = arith.mulf %52, %57 : vector<2x16xf32>
      %c0_33 = arith.constant 0 : index
      %c0_34 = arith.constant 0 : index
      %59 = vector.load %arg9[%c0_33, %c0_34] : memref<2x16xf32, #tpu.memory_space<vmem>>, vector<2x16xf32>
      tpu.vector_store %arg9[%c0_33, %c0_34], %56 {strides = array<i32>} : memref<2x16xf32, #tpu.memory_space<vmem>>, vector<2x16xf32>,
      %c0_35 = arith.constant 0 : index
      %c0_36 = arith.constant 0 : index
      %60 = vector.load %arg8[%c0_35, %c0_36] : memref<2x16xf32, #tpu.memory_space<vmem>>, vector<2x16xf32>
      tpu.vector_store %arg8[%c0_35, %c0_36], %58 {strides = array<i32>} : memref<2x16xf32, #tpu.memory_space<vmem>>, vector<2x16xf32>,
      %c0_37 = arith.constant 0 : index
      %61 = arith.index_cast %19 : i32 to index
      %c0_38 = arith.constant 0 : index
      %62 = vector.load %arg6[%c0_37, %61, %c0_38] : memref<1x16x16xf32, #tpu.memory_space<vmem>>, vector<1x2x16xf32>
      %63 = vector.shape_cast %62 : vector<1x2x16xf32> to vector<2x16xf32>
      %64 = vector.shape_cast %58 : vector<2x16xf32> to vector<1x2x16xf32>
      tpu.vector_store %arg6[%c0_37, %61, %c0_38], %64 {strides = array<i32>} : memref<1x16x16xf32, #tpu.memory_space<vmem>>, vector<1x2x16xf32>,
    }
    %c8_i32_11 = arith.constant 8 : i32
    return
  }
  func.func @transform_0(%arg0: i32, %arg1: i32) -> (i32, i32) {
    %c2_i32 = arith.constant 2 : i32
    %0 = arith.muli %c2_i32, %arg1 : i32
    %c0_i32 = arith.constant 0 : i32
    %1 = arith.subi %c0_i32, %0 : i32
    %2 = arith.muli %arg0, %1 : i32
    %3 = arith.addi %arg1, %2 : i32
    %c0_i32_0 = arith.constant 0 : i32
    %c0_i32_1 = arith.constant 0 : i32
    return %3, %c0_i32_0 : i32, i32
  }
  func.func @transform_1(%arg0: i32, %arg1: i32) -> (i32, i32, i32) {
    %c0_i32 = arith.constant 0 : i32
    %c0_i32_0 = arith.constant 0 : i32
    %c0_i32_1 = arith.constant 0 : i32
    return %arg0, %c0_i32, %c0_i32_0 : i32, i32, i32
  }
  func.func @transform_2(%arg0: i32, %arg1: i32) -> (i32, i32, i32) {
    %c0_i32 = arith.constant 0 : i32
    %c0_i32_0 = arith.constant 0 : i32
    %c0_i32_1 = arith.constant 0 : i32
    return %arg0, %c0_i32, %c0_i32_0 : i32, i32, i32
  }
  func.func @transform_3(%arg0: i32, %arg1: i32) -> (i32, i32, i32) {
    %c0_i32 = arith.constant 0 : i32
    %c0_i32_0 = arith.constant 0 : i32
    %c0_i32_1 = arith.constant 0 : i32
    return %arg0, %c0_i32, %c0_i32_0 : i32, i32, i32
  }
  func.func @transform_4(%arg0: i32, %arg1: i32) -> (i32, i32, i32) {
    %c2_i32 = arith.constant 2 : i32
    %0 = arith.muli %c2_i32, %arg1 : i32
    %c0_i32 = arith.constant 0 : i32
    %1 = arith.subi %c0_i32, %0 : i32
    %2 = arith.muli %arg0, %1 : i32
    %3 = arith.addi %arg1, %2 : i32
    %c0_i32_0 = arith.constant 0 : i32
    %c0_i32_1 = arith.constant 0 : i32
    return %arg0, %3, %c0_i32_0 : i32, i32, i32
  }
}

module attributes {stable_mosaic.version = 11 : i64} {
  func.func @_biatt_kernel(%arg0: i32, %arg1: i32, %arg2: memref<1x8x32xf32, #tpu.memory_space<vmem>>, %arg3: memref<1x8x96xf32, #tpu.memory_space<vmem>>, %arg4: memref<8x32xf32, #tpu.memory_space<vmem>>) attributes {dimension_semantics = [#tpu.dimension_semantics<parallel>, #tpu.dimension_semantics<arbitrary>], iteration_bounds = array<i64: 2, 1>, scalar_prefetch = 0 : i64, scratch_operands = 1 : i64, tpu.core_type = #tpu.core_type<tc>, window_params = [{transform_indices = @transform_0, window_bounds = array<i64: 1, 8, 32>}, {transform_indices = @transform_1, window_bounds = array<i64: 1, 8, 96>}]} {
    %c0_i32 = arith.constant 0 : i32
    %0 = arith.cmpi eq, %arg1, %c0_i32 : i32
    %1 = arith.extui %0 : i1 to i32
    %c0_i32_0 = arith.constant 0 : i32
    %2 = arith.cmpi ne, %1, %c0_i32_0 : i32
    scf.if %2 {
      %cst_15 = arith.constant 0.000000e+00 : f32
      %34 = vector.broadcast %cst_15 : f32 to vector<8x32xf32>
      %c0_16 = arith.constant 0 : index
      %c0_17 = arith.constant 0 : index
      %35 = vector.load %arg4[%c0_16, %c0_17] : memref<8x32xf32, #tpu.memory_space<vmem>>, vector<8x32xf32>
      tpu.vector_store %arg4[%c0_16, %c0_17], %34 {strides = array<i32>} : memref<8x32xf32, #tpu.memory_space<vmem>>, vector<8x32xf32>,
    } else {
    }
    %c0 = arith.constant 0 : index
    %c0_1 = arith.constant 0 : index
    %c0_2 = arith.constant 0 : index
    %3 = vector.load %arg2[%c0, %c0_1, %c0_2] : memref<1x8x32xf32, #tpu.memory_space<vmem>>, vector<1x8x32xf32>
    %4 = vector.shape_cast %3 : vector<1x8x32xf32> to vector<8x32xf32>
    %cst = arith.constant dense<0.000000e+00> : vector<8x8xf32>
    %5 = tpu.matmul %4, %4, %cst {dimension_numbers = #tpu.dot_dimension_numbers<[1], [1], [0], [0], [0, 0, 1, 0], [], []>, precision = #tpu.contract_precision<fp32>} : vector<8x32xf32>, vector<8x32xf32>, vector<8x8xf32> -> vector<8x8xf32>
    %cst_3 = arith.constant 1.000000e-07 : f32
    %6 = vector.broadcast %cst_3 : f32 to vector<8x8xf32>
    %7 = arith.cmpf ole, %5, %6 : vector<8x8xf32>
    %8 = arith.extui %7 : vector<8x8xi1> to vector<8x8xi32>
    %9 = arith.sitofp %8 : vector<8x8xi32> to vector<8x8xf32>
    %cst_4 = arith.constant -1.000000e+32 : f32
    %10 = vector.broadcast %cst_4 : f32 to vector<8x8xf32>
    %11 = arith.mulf %10, %9 : vector<8x8xf32>
    %12 = arith.addf %5, %11 : vector<8x8xf32>
    %cst_5 = arith.constant dense<0xFF800000> : vector<8xf32>
    %13 = vector.multi_reduction <maximumf>, %12, %cst_5 [1] : vector<8x8xf32> to vector<8xf32>
    %14 = vector.shape_cast %13 : vector<8xf32> to vector<8x1xf32>
    %15 = vector.broadcast %14 : vector<8x1xf32> to vector<8x8xf32>
    %16 = arith.subf %12, %15 : vector<8x8xf32>
    %17 = math.exp %16 : vector<8x8xf32>
    %cst_6 = arith.constant dense<0.000000e+00> : vector<8xf32>
    %18 = vector.multi_reduction <add>, %17, %cst_6 [1] : vector<8x8xf32> to vector<8xf32>
    %19 = vector.shape_cast %18 : vector<8xf32> to vector<8x1xf32>
    %20 = vector.broadcast %19 : vector<8x1xf32> to vector<8x8xf32>
    %21 = arith.divf %17, %20 : vector<8x8xf32>
    %cst_7 = arith.constant 1.000000e-07 : f32
    %22 = vector.broadcast %cst_7 : f32 to vector<8x8xf32>
    %23 = arith.cmpf oge, %5, %22 : vector<8x8xf32>
    %24 = arith.extui %23 : vector<8x8xi1> to vector<8x8xi32>
    %25 = arith.sitofp %24 : vector<8x8xi32> to vector<8x8xf32>
    %26 = arith.mulf %21, %25 : vector<8x8xf32>
    %c0_8 = arith.constant 0 : index
    %c0_9 = arith.constant 0 : index
    %27 = vector.load %arg4[%c0_8, %c0_9] : memref<8x32xf32, #tpu.memory_space<vmem>>, vector<8x32xf32>
    %cst_10 = arith.constant dense<0.000000e+00> : vector<8x32xf32>
    %28 = tpu.matmul %26, %4, %cst_10 {dimension_numbers = #tpu.dot_dimension_numbers<[0], [0], [1], [1], [0, 1, 1, 1], [], []>, precision = #tpu.contract_precision<fp32>} : vector<8x8xf32>, vector<8x32xf32>, vector<8x32xf32> -> vector<8x32xf32>
    %29 = arith.addf %27, %28 : vector<8x32xf32>
    %c0_11 = arith.constant 0 : index
    %c0_12 = arith.constant 0 : index
    %30 = vector.load %arg4[%c0_11, %c0_12] : memref<8x32xf32, #tpu.memory_space<vmem>>, vector<8x32xf32>
    tpu.vector_store %arg4[%c0_11, %c0_12], %29 {strides = array<i32>} : memref<8x32xf32, #tpu.memory_space<vmem>>, vector<8x32xf32>,
    %c0_i32_13 = arith.constant 0 : i32
    %31 = arith.cmpi eq, %arg1, %c0_i32_13 : i32
    %32 = arith.extui %31 : i1 to i32
    %c0_i32_14 = arith.constant 0 : i32
    %33 = arith.cmpi ne, %32, %c0_i32_14 : i32
    scf.if %33 {
      %c0_15 = arith.constant 0 : index
      %c0_16 = arith.constant 0 : index
      %34 = vector.load %arg4[%c0_15, %c0_16] : memref<8x32xf32, #tpu.memory_space<vmem>>, vector<8x32xf32>
      %35 = arith.subf %4, %34 : vector<8x32xf32>
      %36 = arith.mulf %4, %34 : vector<8x32xf32>
      %37 = tpu.concatenate %4, %35, %36 in 1 : vector<8x32xf32>, vector<8x32xf32>, vector<8x32xf32> -> vector<8x96xf32>
      %c0_17 = arith.constant 0 : index
      %c0_18 = arith.constant 0 : index
      %c0_19 = arith.constant 0 : index
      %38 = vector.load %arg3[%c0_17, %c0_18, %c0_19] : memref<1x8x96xf32, #tpu.memory_space<vmem>>, vector<1x8x96xf32>
      %39 = vector.shape_cast %38 : vector<1x8x96xf32> to vector<8x96xf32>
      %40 = vector.shape_cast %37 : vector<8x96xf32> to vector<1x8x96xf32>
      tpu.vector_store %arg3[%c0_17, %c0_18, %c0_19], %40 {strides = array<i32>} : memref<1x8x96xf32, #tpu.memory_space<vmem>>, vector<1x8x96xf32>,
    } else {
    }
    return
  }
  func.func @transform_0(%arg0: i32, %arg1: i32) -> (i32, i32, i32) {
    %c0_i32 = arith.constant 0 : i32
    %c0_i32_0 = arith.constant 0 : i32
    %c0_i32_1 = arith.constant 0 : i32
    return %arg0, %c0_i32, %c0_i32_0 : i32, i32, i32
  }
  func.func @transform_1(%arg0: i32, %arg1: i32) -> (i32, i32, i32) {
    %c0_i32 = arith.constant 0 : i32
    %c0_i32_0 = arith.constant 0 : i32
    %c0_i32_1 = arith.constant 0 : i32
    return %arg0, %c0_i32, %c0_i32_0 : i32, i32, i32
  }
}

module attributes {stable_mosaic.version = 11 : i64} {
  func.func @_bilstm_kernel(%arg0: i32, %arg1: i32, %arg2: memref<16x96xf32, #tpu.memory_space<vmem>>, %arg3: memref<1x96x64xf32, #tpu.memory_space<vmem>>, %arg4: memref<1x16x64xf32, #tpu.memory_space<vmem>>, %arg5: memref<1x1x64xf32, #tpu.memory_space<vmem>>, %arg6: memref<1x16x16xf32, #tpu.memory_space<vmem>>, %arg7: memref<16x64xf32, #tpu.memory_space<vmem>>, %arg8: memref<2x16xf32, #tpu.memory_space<vmem>>, %arg9: memref<2x16xf32, #tpu.memory_space<vmem>>) attributes {dimension_semantics = [#tpu.dimension_semantics<parallel>, #tpu.dimension_semantics<arbitrary>], iteration_bounds = array<i64: 2, 1>, scalar_prefetch = 0 : i64, scratch_operands = 3 : i64, tpu.core_type = #tpu.core_type<tc>, window_params = [{transform_indices = @transform_0, window_bounds = array<i64: 16, 96>}, {transform_indices = @transform_1, window_bounds = array<i64: 1, 96, 64>}, {transform_indices = @transform_2, window_bounds = array<i64: 1, 16, 64>}, {transform_indices = @transform_3, window_bounds = array<i64: 1, 1, 64>}, {transform_indices = @transform_4, window_bounds = array<i64: 1, 16, 16>}]} {
    %c0_i32 = arith.constant 0 : i32
    %0 = arith.cmpi eq, %arg1, %c0_i32 : i32
    %1 = arith.extui %0 : i1 to i32
    %c0_i32_0 = arith.constant 0 : i32
    %2 = arith.cmpi ne, %1, %c0_i32_0 : i32
    scf.if %2 {
      %cst_12 = arith.constant 0.000000e+00 : f32
      %13 = vector.broadcast %cst_12 : f32 to vector<2x16xf32>
      %c0_13 = arith.constant 0 : index
      %c0_14 = arith.constant 0 : index
      %14 = vector.load %arg8[%c0_13, %c0_14] : memref<2x16xf32, #tpu.memory_space<vmem>>, vector<2x16xf32>
      tpu.vector_store %arg8[%c0_13, %c0_14], %13 {strides = array<i32>} : memref<2x16xf32, #tpu.memory_space<vmem>>, vector<2x16xf32>,
      %cst_15 = arith.constant 0.000000e+00 : f32
      %15 = vector.broadcast %cst_15 : f32 to vector<2x16xf32>
      %c0_16 = arith.constant 0 : index
      %c0_17 = arith.constant 0 : index
      %16 = vector.load %arg9[%c0_16, %c0_17] : memref<2x16xf32, #tpu.memory_space<vmem>>, vector<2x16xf32>
      tpu.vector_store %arg9[%c0_16, %c0_17], %15 {strides = array<i32>} : memref<2x16xf32, #tpu.memory_space<vmem>>, vector<2x16xf32>,
    } else {
    }
    %c0 = arith.constant 0 : index
    %c0_1 = arith.constant 0 : index
    %3 = vector.load %arg2[%c0, %c0_1] : memref<16x96xf32, #tpu.memory_space<vmem>>, vector<16x96xf32>
    %c0_2 = arith.constant 0 : index
    %c0_3 = arith.constant 0 : index
    %c0_4 = arith.constant 0 : index
    %4 = vector.load %arg3[%c0_2, %c0_3, %c0_4] : memref<1x96x64xf32, #tpu.memory_space<vmem>>, vector<1x96x64xf32>
    %5 = vector.shape_cast %4 : vector<1x96x64xf32> to vector<96x64xf32>
    %cst = arith.constant dense<0.000000e+00> : vector<16x64xf32>
    %6 = tpu.matmul %3, %5, %cst {dimension_numbers = #tpu.dot_dimension_numbers<[1], [0], [0], [1], [0, 0, 1, 1], [], []>, precision = #tpu.contract_precision<fp32>} : vector<16x96xf32>, vector<96x64xf32>, vector<16x64xf32> -> vector<16x64xf32>
    %c0_5 = arith.constant 0 : index
    %c0_6 = arith.constant 0 : index
    %c0_7 = arith.constant 0 : index
    %7 = vector.load %arg5[%c0_5, %c0_6, %c0_7] : memref<1x1x64xf32, #tpu.memory_space<vmem>>, vector<1x1x64xf32>
    %8 = vector.shape_cast %7 : vector<1x1x64xf32> to vector<1x64xf32>
    %9 = vector.broadcast %8 : vector<1x64xf32> to vector<16x64xf32>
    %10 = arith.addf %6, %9 : vector<16x64xf32>
    %c0_8 = arith.constant 0 : index
    %c0_9 = arith.constant 0 : index
    %11 = vector.load %arg7[%c0_8, %c0_9] : memref<16x64xf32, #tpu.memory_space<vmem>>, vector<16x64xf32>
    tpu.vector_store %arg7[%c0_8, %c0_9], %10 {strides = array<i32>} : memref<16x64xf32, #tpu.memory_space<vmem>>, vector<16x64xf32>,
    %c0_i32_10 = arith.constant 0 : i32
    %c8_i32 = arith.constant 8 : i32
    %12 = arith.addi %c0_i32_10, %c8_i32 : i32
    %c1_i32 = arith.constant 1 : i32
    scf.for %arg10 = %c0_i32_10 to %12 step %c1_i32  : i32 {
      %c1_i32_12 = arith.constant 1 : i32
      %13 = arith.muli %arg10, %c1_i32_12 : i32
      %c0_i32_13 = arith.constant 0 : i32
      %14 = arith.addi %c0_i32_13, %13 : i32
      %c2_i32 = arith.constant 2 : i32
      %15 = arith.muli %c2_i32, %14 : i32
      %c7_i32 = arith.constant 7 : i32
      %16 = arith.subi %c7_i32, %15 : i32
      %17 = arith.muli %arg0, %16 : i32
      %18 = arith.addi %14, %17 : i32
      %c2_i32_14 = arith.constant 2 : i32
      %19 = arith.muli %18, %c2_i32_14 : i32
      %20 = arith.index_cast %19 : i32 to index
      %c0_15 = arith.constant 0 : index
      %21 = vector.load %arg7[%20, %c0_15] : memref<16x64xf32, #tpu.memory_space<vmem>>, vector<2x64xf32>
      %c0_16 = arith.constant 0 : index
      %c0_17 = arith.constant 0 : index
      %22 = vector.load %arg8[%c0_16, %c0_17] : memref<2x16xf32, #tpu.memory_space<vmem>>, vector<2x16xf32>
      %c0_18 = arith.constant 0 : index
      %c0_19 = arith.constant 0 : index
      %c0_20 = arith.constant 0 : index
      %23 = vector.load %arg4[%c0_18, %c0_19, %c0_20] : memref<1x16x64xf32, #tpu.memory_space<vmem>>, vector<1x16x64xf32>
      %24 = vector.shape_cast %23 : vector<1x16x64xf32> to vector<16x64xf32>
      %cst_21 = arith.constant dense<0.000000e+00> : vector<2x64xf32>
      %25 = tpu.matmul %22, %24, %cst_21 {dimension_numbers = #tpu.dot_dimension_numbers<[1], [0], [0], [1], [0, 0, 1, 1], [], []>, precision = #tpu.contract_precision<fp32>} : vector<2x16xf32>, vector<16x64xf32>, vector<2x64xf32> -> vector<2x64xf32>
      %26 = arith.addf %21, %25 : vector<2x64xf32>
      %27 = vector.extract_strided_slice %26 {offsets = [0, 0], sizes = [2, 16], strides = [1, 1]} : vector<2x64xf32> to vector<2x16xf32>
      %cst_22 = arith.constant 5.000000e-01 : f32
      %28 = vector.broadcast %cst_22 : f32 to vector<2x16xf32>
      %29 = arith.mulf %28, %27 : vector<2x16xf32>
      %30 = math.tanh %29 : vector<2x16xf32>
      %cst_23 = arith.constant 1.000000e+00 : f32
      %31 = vector.broadcast %cst_23 : f32 to vector<2x16xf32>
      %32 = arith.addf %30, %31 : vector<2x16xf32>
      %cst_24 = arith.constant 5.000000e-01 : f32
      %33 = vector.broadcast %cst_24 : f32 to vector<2x16xf32>
      %34 = arith.mulf %33, %32 : vector<2x16xf32>
      %35 = vector.extract_strided_slice %26 {offsets = [0, 16], sizes = [2, 16], strides = [1, 1]} : vector<2x64xf32> to vector<2x16xf32>
      %cst_25 = arith.constant 5.000000e-01 : f32
      %36 = vector.broadcast %cst_25 : f32 to vector<2x16xf32>
      %37 = arith.mulf %36, %35 : vector<2x16xf32>
      %38 = math.tanh %37 : vector<2x16xf32>
      %cst_26 = arith.constant 1.000000e+00 : f32
      %39 = vector.broadcast %cst_26 : f32 to vector<2x16xf32>
      %40 = arith.addf %38, %39 : vector<2x16xf32>
      %cst_27 = arith.constant 5.000000e-01 : f32
      %41 = vector.broadcast %cst_27 : f32 to vector<2x16xf32>
      %42 = arith.mulf %41, %40 : vector<2x16xf32>
      %43 = vector.extract_strided_slice %26 {offsets = [0, 32], sizes = [2, 16], strides = [1, 1]} : vector<2x64xf32> to vector<2x16xf32>
      %44 = math.tanh %43 : vector<2x16xf32>
      %45 = vector.extract_strided_slice %26 {offsets = [0, 48], sizes = [2, 16], strides = [1, 1]} : vector<2x64xf32> to vector<2x16xf32>
      %cst_28 = arith.constant 5.000000e-01 : f32
      %46 = vector.broadcast %cst_28 : f32 to vector<2x16xf32>
      %47 = arith.mulf %46, %45 : vector<2x16xf32>
      %48 = math.tanh %47 : vector<2x16xf32>
      %cst_29 = arith.constant 1.000000e+00 : f32
      %49 = vector.broadcast %cst_29 : f32 to vector<2x16xf32>
      %50 = arith.addf %48, %49 : vector<2x16xf32>
      %cst_30 = arith.constant 5.000000e-01 : f32
      %51 = vector.broadcast %cst_30 : f32 to vector<2x16xf32>
      %52 = arith.mulf %51, %50 : vector<2x16xf32>
      %c0_31 = arith.constant 0 : index
      %c0_32 = arith.constant 0 : index
      %53 = vector.load %arg9[%c0_31, %c0_32] : memref<2x16xf32, #tpu.memory_space<vmem>>, vector<2x16xf32>
      %54 = arith.mulf %42, %53 : vector<2x16xf32>
      %55 = arith.mulf %34, %44 : vector<2x16xf32>
      %56 = arith.addf %54, %55 : vector<2x16xf32>
      %57 = math.tanh %56 : vector<2x16xf32>
      %58 = arith.mulf %52, %57 : vector<2x16xf32>
      %c0_33 = arith.constant 0 : index
      %c0_34 = arith.constant 0 : index
      %59 = vector.load %arg9[%c0_33, %c0_34] : memref<2x16xf32, #tpu.memory_space<vmem>>, vector<2x16xf32>
      tpu.vector_store %arg9[%c0_33, %c0_34], %56 {strides = array<i32>} : memref<2x16xf32, #tpu.memory_space<vmem>>, vector<2x16xf32>,
      %c0_35 = arith.constant 0 : index
      %c0_36 = arith.constant 0 : index
      %60 = vector.load %arg8[%c0_35, %c0_36] : memref<2x16xf32, #tpu.memory_space<vmem>>, vector<2x16xf32>
      tpu.vector_store %arg8[%c0_35, %c0_36], %58 {strides = array<i32>} : memref<2x16xf32, #tpu.memory_space<vmem>>, vector<2x16xf32>,
      %c0_37 = arith.constant 0 : index
      %61 = arith.index_cast %19 : i32 to index
      %c0_38 = arith.constant 0 : index
      %62 = vector.load %arg6[%c0_37, %61, %c0_38] : memref<1x16x16xf32, #tpu.memory_space<vmem>>, vector<1x2x16xf32>
      %63 = vector.shape_cast %62 : vector<1x2x16xf32> to vector<2x16xf32>
      %64 = vector.shape_cast %58 : vector<2x16xf32> to vector<1x2x16xf32>
      tpu.vector_store %arg6[%c0_37, %61, %c0_38], %64 {strides = array<i32>} : memref<1x16x16xf32, #tpu.memory_space<vmem>>, vector<1x2x16xf32>,
    }
    %c8_i32_11 = arith.constant 8 : i32
    return
  }
  func.func @transform_0(%arg0: i32, %arg1: i32) -> (i32, i32) {
    %c2_i32 = arith.constant 2 : i32
    %0 = arith.muli %c2_i32, %arg1 : i32
    %c0_i32 = arith.constant 0 : i32
    %1 = arith.subi %c0_i32, %0 : i32
    %2 = arith.muli %arg0, %1 : i32
    %3 = arith.addi %arg1, %2 : i32
    %c0_i32_0 = arith.constant 0 : i32
    %c0_i32_1 = arith.constant 0 : i32
    return %3, %c0_i32_0 : i32, i32
  }
  func.func @transform_1(%arg0: i32, %arg1: i32) -> (i32, i32, i32) {
    %c0_i32 = arith.constant 0 : i32
    %c0_i32_0 = arith.constant 0 : i32
    %c0_i32_1 = arith.constant 0 : i32
    return %arg0, %c0_i32, %c0_i32_0 : i32, i32, i32
  }
  func.func @transform_2(%arg0: i32, %arg1: i32) -> (i32, i32, i32) {
    %c0_i32 = arith.constant 0 : i32
    %c0_i32_0 = arith.constant 0 : i32
    %c0_i32_1 = arith.constant 0 : i32
    return %arg0, %c0_i32, %c0_i32_0 : i32, i32, i32
  }
  func.func @transform_3(%arg0: i32, %arg1: i32) -> (i32, i32, i32) {
    %c0_i32 = arith.constant 0 : i32
    %c0_i32_0 = arith.constant 0 : i32
    %c0_i32_1 = arith.constant 0 : i32
    return %arg0, %c0_i32, %c0_i32_0 : i32, i32, i32
  }
  func.func @transform_4(%arg0: i32, %arg1: i32) -> (i32, i32, i32) {
    %c2_i32 = arith.constant 2 : i32
    %0 = arith.muli %c2_i32, %arg1 : i32
    %c0_i32 = arith.constant 0 : i32
    %1 = arith.subi %c0_i32, %0 : i32
    %2 = arith.muli %arg0, %1 : i32
    %3 = arith.addi %arg1, %2 : i32
    %c0_i32_0 = arith.constant 0 : i32
    %c0_i32_1 = arith.constant 0 : i32
    return %arg0, %3, %c0_i32_0 : i32, i32, i32
  }
}

module attributes {stable_mosaic.version = 11 : i64} {
  func.func @_head_kernel(%arg0: i32, %arg1: memref<2x128xf32, #tpu.memory_space<vmem>>, %arg2: memref<128x128xf32, #tpu.memory_space<vmem>>, %arg3: memref<1x128xf32, #tpu.memory_space<vmem>>, %arg4: memref<32x32xf32, #tpu.memory_space<vmem>>, %arg5: memref<1x32xf32, #tpu.memory_space<vmem>>, %arg6: memref<8x3xf32, #tpu.memory_space<vmem>>, %arg7: memref<1x3xf32, #tpu.memory_space<vmem>>, %arg8: memref<2x3xf32, #tpu.memory_space<vmem>>, %arg9: memref<2x3xf32, #tpu.memory_space<vmem>>) attributes {dimension_semantics = [#tpu.dimension_semantics<parallel>], iteration_bounds = array<i64: 1>, scalar_prefetch = 0 : i64, scratch_operands = 0 : i64, tpu.core_type = #tpu.core_type<tc>, window_params = [{transform_indices = @transform_0, window_bounds = array<i64: 2, 128>}, {pipeline_mode = #tpu.pipeline_mode<synchronous>, transform_indices = @transform_1, window_bounds = array<i64: 128, 128>}, {pipeline_mode = #tpu.pipeline_mode<synchronous>, transform_indices = @transform_2, window_bounds = array<i64: 1, 128>}, {pipeline_mode = #tpu.pipeline_mode<synchronous>, transform_indices = @transform_3, window_bounds = array<i64: 32, 32>}, {pipeline_mode = #tpu.pipeline_mode<synchronous>, transform_indices = @transform_4, window_bounds = array<i64: 1, 32>}, {pipeline_mode = #tpu.pipeline_mode<synchronous>, transform_indices = @transform_5, window_bounds = array<i64: 8, 3>}, {pipeline_mode = #tpu.pipeline_mode<synchronous>, transform_indices = @transform_6, window_bounds = array<i64: 1, 3>}, {transform_indices = @transform_7, window_bounds = array<i64: 2, 3>}, {transform_indices = @transform_8, window_bounds = array<i64: 2, 3>}]} {
    %c0 = arith.constant 0 : index
    %c0_0 = arith.constant 0 : index
    %0 = vector.load %arg1[%c0, %c0_0] : memref<2x128xf32, #tpu.memory_space<vmem>>, vector<2x128xf32>
    %c0_1 = arith.constant 0 : index
    %c0_2 = arith.constant 0 : index
    %1 = vector.load %arg2[%c0_1, %c0_2] : memref<128x128xf32, #tpu.memory_space<vmem>>, vector<128x128xf32>
    %cst = arith.constant dense<0.000000e+00> : vector<2x128xf32>
    %2 = tpu.matmul %0, %1, %cst {dimension_numbers = #tpu.dot_dimension_numbers<[1], [0], [0], [1], [0, 0, 1, 1], [], []>, precision = #tpu.contract_precision<fp32>} : vector<2x128xf32>, vector<128x128xf32>, vector<2x128xf32> -> vector<2x128xf32>
    %c0_3 = arith.constant 0 : index
    %c0_4 = arith.constant 0 : index
    %3 = vector.load %arg3[%c0_3, %c0_4] : memref<1x128xf32, #tpu.memory_space<vmem>>, vector<1x128xf32>
    %4 = vector.broadcast %3 : vector<1x128xf32> to vector<2x128xf32>
    %5 = arith.addf %2, %4 : vector<2x128xf32>
    %6 = vector.extract_strided_slice %5 {offsets = [0, 0], sizes = [2, 32], strides = [1, 1]} : vector<2x128xf32> to vector<2x32xf32>
    %7 = vector.extract_strided_slice %5 {offsets = [0, 32], sizes = [2, 32], strides = [1, 1]} : vector<2x128xf32> to vector<2x32xf32>
    %8 = arith.maximumf %6, %7 : vector<2x32xf32>
    %9 = vector.extract_strided_slice %5 {offsets = [0, 64], sizes = [2, 32], strides = [1, 1]} : vector<2x128xf32> to vector<2x32xf32>
    %10 = arith.maximumf %8, %9 : vector<2x32xf32>
    %11 = vector.extract_strided_slice %5 {offsets = [0, 96], sizes = [2, 32], strides = [1, 1]} : vector<2x128xf32> to vector<2x32xf32>
    %12 = arith.maximumf %10, %11 : vector<2x32xf32>
    %c0_5 = arith.constant 0 : index
    %c0_6 = arith.constant 0 : index
    %13 = vector.load %arg4[%c0_5, %c0_6] : memref<32x32xf32, #tpu.memory_space<vmem>>, vector<32x32xf32>
    %cst_7 = arith.constant dense<0.000000e+00> : vector<2x32xf32>
    %14 = tpu.matmul %12, %13, %cst_7 {dimension_numbers = #tpu.dot_dimension_numbers<[1], [0], [0], [1], [0, 0, 1, 1], [], []>, precision = #tpu.contract_precision<fp32>} : vector<2x32xf32>, vector<32x32xf32>, vector<2x32xf32> -> vector<2x32xf32>
    %c0_8 = arith.constant 0 : index
    %c0_9 = arith.constant 0 : index
    %15 = vector.load %arg5[%c0_8, %c0_9] : memref<1x32xf32, #tpu.memory_space<vmem>>, vector<1x32xf32>
    %16 = vector.broadcast %15 : vector<1x32xf32> to vector<2x32xf32>
    %17 = arith.addf %14, %16 : vector<2x32xf32>
    %18 = vector.extract_strided_slice %17 {offsets = [0, 0], sizes = [2, 8], strides = [1, 1]} : vector<2x32xf32> to vector<2x8xf32>
    %19 = vector.extract_strided_slice %17 {offsets = [0, 8], sizes = [2, 8], strides = [1, 1]} : vector<2x32xf32> to vector<2x8xf32>
    %20 = arith.maximumf %18, %19 : vector<2x8xf32>
    %21 = vector.extract_strided_slice %17 {offsets = [0, 16], sizes = [2, 8], strides = [1, 1]} : vector<2x32xf32> to vector<2x8xf32>
    %22 = arith.maximumf %20, %21 : vector<2x8xf32>
    %23 = vector.extract_strided_slice %17 {offsets = [0, 24], sizes = [2, 8], strides = [1, 1]} : vector<2x32xf32> to vector<2x8xf32>
    %24 = arith.maximumf %22, %23 : vector<2x8xf32>
    %c0_10 = arith.constant 0 : index
    %c0_11 = arith.constant 0 : index
    %25 = vector.load %arg6[%c0_10, %c0_11] : memref<8x3xf32, #tpu.memory_space<vmem>>, vector<8x3xf32>
    %cst_12 = arith.constant dense<0.000000e+00> : vector<2x3xf32>
    %26 = tpu.matmul %24, %25, %cst_12 {dimension_numbers = #tpu.dot_dimension_numbers<[1], [0], [0], [1], [0, 0, 1, 1], [], []>, precision = #tpu.contract_precision<fp32>} : vector<2x8xf32>, vector<8x3xf32>, vector<2x3xf32> -> vector<2x3xf32>
    %c0_13 = arith.constant 0 : index
    %c0_14 = arith.constant 0 : index
    %27 = vector.load %arg7[%c0_13, %c0_14] : memref<1x3xf32, #tpu.memory_space<vmem>>, vector<1x3xf32>
    %28 = vector.broadcast %27 : vector<1x3xf32> to vector<2x3xf32>
    %29 = arith.addf %26, %28 : vector<2x3xf32>
    %cst_15 = arith.constant dense<0xFF800000> : vector<2xf32>
    %30 = vector.multi_reduction <maximumf>, %29, %cst_15 [1] : vector<2x3xf32> to vector<2xf32>
    %31 = vector.shape_cast %30 : vector<2xf32> to vector<2x1xf32>
    %32 = vector.broadcast %31 : vector<2x1xf32> to vector<2x3xf32>
    %33 = arith.subf %29, %32 : vector<2x3xf32>
    %34 = math.exp %33 : vector<2x3xf32>
    %c0_16 = arith.constant 0 : index
    %c0_17 = arith.constant 0 : index
    %35 = vector.load %arg8[%c0_16, %c0_17] : memref<2x3xf32, #tpu.memory_space<vmem>>, vector<2x3xf32>
    tpu.vector_store %arg8[%c0_16, %c0_17], %29 {strides = array<i32>} : memref<2x3xf32, #tpu.memory_space<vmem>>, vector<2x3xf32>,
    %cst_18 = arith.constant dense<0.000000e+00> : vector<2xf32>
    %36 = vector.multi_reduction <add>, %34, %cst_18 [1] : vector<2x3xf32> to vector<2xf32>
    %37 = vector.shape_cast %36 : vector<2xf32> to vector<2x1xf32>
    %38 = vector.broadcast %37 : vector<2x1xf32> to vector<2x3xf32>
    %39 = arith.divf %34, %38 : vector<2x3xf32>
    %c0_19 = arith.constant 0 : index
    %c0_20 = arith.constant 0 : index
    %40 = vector.load %arg9[%c0_19, %c0_20] : memref<2x3xf32, #tpu.memory_space<vmem>>, vector<2x3xf32>
    tpu.vector_store %arg9[%c0_19, %c0_20], %39 {strides = array<i32>} : memref<2x3xf32, #tpu.memory_space<vmem>>, vector<2x3xf32>,
    return
  }
  func.func @transform_0(%arg0: i32) -> (i32, i32) {
    %c0_i32 = arith.constant 0 : i32
    %c0_i32_0 = arith.constant 0 : i32
    return %arg0, %c0_i32 : i32, i32
  }
  func.func @transform_1(%arg0: i32) -> (i32, i32) {
    %c0_i32 = arith.constant 0 : i32
    %c0_i32_0 = arith.constant 0 : i32
    %c0_i32_1 = arith.constant 0 : i32
    return %c0_i32, %c0_i32_0 : i32, i32
  }
  func.func @transform_2(%arg0: i32) -> (i32, i32) {
    %c0_i32 = arith.constant 0 : i32
    %c0_i32_0 = arith.constant 0 : i32
    %c0_i32_1 = arith.constant 0 : i32
    return %c0_i32, %c0_i32_0 : i32, i32
  }
  func.func @transform_3(%arg0: i32) -> (i32, i32) {
    %c0_i32 = arith.constant 0 : i32
    %c0_i32_0 = arith.constant 0 : i32
    %c0_i32_1 = arith.constant 0 : i32
    return %c0_i32, %c0_i32_0 : i32, i32
  }
  func.func @transform_4(%arg0: i32) -> (i32, i32) {
    %c0_i32 = arith.constant 0 : i32
    %c0_i32_0 = arith.constant 0 : i32
    %c0_i32_1 = arith.constant 0 : i32
    return %c0_i32, %c0_i32_0 : i32, i32
  }
  func.func @transform_5(%arg0: i32) -> (i32, i32) {
    %c0_i32 = arith.constant 0 : i32
    %c0_i32_0 = arith.constant 0 : i32
    %c0_i32_1 = arith.constant 0 : i32
    return %c0_i32, %c0_i32_0 : i32, i32
  }
  func.func @transform_6(%arg0: i32) -> (i32, i32) {
    %c0_i32 = arith.constant 0 : i32
    %c0_i32_0 = arith.constant 0 : i32
    %c0_i32_1 = arith.constant 0 : i32
    return %c0_i32, %c0_i32_0 : i32, i32
  }
  func.func @transform_7(%arg0: i32) -> (i32, i32) {
    %c0_i32 = arith.constant 0 : i32
    %c0_i32_0 = arith.constant 0 : i32
    return %arg0, %c0_i32 : i32, i32
  }
  func.func @transform_8(%arg0: i32) -> (i32, i32) {
    %c0_i32 = arith.constant 0 : i32
    %c0_i32_0 = arith.constant 0 : i32
    return %arg0, %c0_i32 : i32, i32
  }
}

module attributes {stable_mosaic.version = 11 : i64} {
  func.func @_pool_kernel(%arg0: i32, %arg1: memref<2x8x2x16xf32, #tpu.memory_space<vmem>>, %arg2: memref<8x2x1xf32, #tpu.memory_space<vmem>>, %arg3: memref<1x1x32xf32, #tpu.memory_space<vmem>>, %arg4: memref<1x1x1xf32, #tpu.memory_space<vmem>>, %arg5: memref<2x128xf32, #tpu.memory_space<vmem>>) attributes {dimension_semantics = [#tpu.dimension_semantics<parallel>], iteration_bounds = array<i64: 1>, scalar_prefetch = 0 : i64, scratch_operands = 0 : i64, tpu.core_type = #tpu.core_type<tc>, window_params = [{transform_indices = @transform_0, window_bounds = array<i64: 2, 8, 2, 16>}, {transform_indices = @transform_1, window_bounds = array<i64: 8, 2, 1>}, {pipeline_mode = #tpu.pipeline_mode<synchronous>, transform_indices = @transform_2, window_bounds = array<i64: 1, 1, 32>}, {pipeline_mode = #tpu.pipeline_mode<synchronous>, transform_indices = @transform_3, window_bounds = array<i64: 1, 1, 1>}, {transform_indices = @transform_4, window_bounds = array<i64: 2, 128>}]} {
    %c0 = arith.constant 0 : index
    %c0_0 = arith.constant 0 : index
    %c0_1 = arith.constant 0 : index
    %0 = vector.load %arg2[%c0, %c0_0, %c0_1] : memref<8x2x1xf32, #tpu.memory_space<vmem>>, vector<8x2x1xf32>
    %cst = arith.constant 1.000000e+00 : f32
    %1 = vector.broadcast %cst : f32 to vector<8x2x1xf32>
    %2 = arith.subf %1, %0 : vector<8x2x1xf32>
    %cst_2 = arith.constant 1.000000e+07 : f32
    %3 = vector.broadcast %cst_2 : f32 to vector<8x2x1xf32>
    %4 = arith.mulf %3, %2 : vector<8x2x1xf32>
    %cst_3 = arith.constant 1.000000e+00 : f32
    %5 = vector.broadcast %cst_3 : f32 to vector<8x2x1xf32>
    %6 = arith.subf %5, %0 : vector<8x2x1xf32>
    %cst_4 = arith.constant -1.000000e+32 : f32
    %7 = vector.broadcast %cst_4 : f32 to vector<8x2x1xf32>
    %8 = arith.mulf %7, %6 : vector<8x2x1xf32>
    %cst_5 = arith.constant dense<0.000000e+00> : vector<2x1xf32>
    %9 = vector.multi_reduction <add>, %0, %cst_5 [0] : vector<8x2x1xf32> to vector<2x1xf32>
    %c0_6 = arith.constant 0 : index
    %c0_7 = arith.constant 0 : index
    %c0_8 = arith.constant 0 : index
    %c0_9 = arith.constant 0 : index
    %10 = vector.load %arg1[%c0_6, %c0_7, %c0_8, %c0_9] : memref<2x8x2x16xf32, #tpu.memory_space<vmem>>, vector<1x8x2x16xf32>
    %11 = vector.shape_cast %10 : vector<1x8x2x16xf32> to vector<8x2x16xf32>
    %c1 = arith.constant 1 : index
    %c0_10 = arith.constant 0 : index
    %c0_11 = arith.constant 0 : index
    %c0_12 = arith.constant 0 : index
    %12 = vector.load %arg1[%c1, %c0_10, %c0_11, %c0_12] : memref<2x8x2x16xf32, #tpu.memory_space<vmem>>, vector<1x8x2x16xf32>
    %13 = vector.shape_cast %12 : vector<1x8x2x16xf32> to vector<8x2x16xf32>
    %c0_13 = arith.constant 0 : index
    %c0_14 = arith.constant 0 : index
    %c0_15 = arith.constant 0 : index
    %14 = vector.load %arg3[%c0_13, %c0_14, %c0_15] : memref<1x1x32xf32, #tpu.memory_space<vmem>>, vector<1x1x32xf32>
    %15 = vector.extract_strided_slice %14 {offsets = [0, 0, 0], sizes = [1, 1, 16], strides = [1, 1, 1]} : vector<1x1x32xf32> to vector<1x1x16xf32>
    %16 = vector.extract_strided_slice %14 {offsets = [0, 0, 16], sizes = [1, 1, 16], strides = [1, 1, 1]} : vector<1x1x32xf32> to vector<1x1x16xf32>
    %17 = vector.broadcast %15 : vector<1x1x16xf32> to vector<8x2x16xf32>
    %18 = arith.mulf %11, %17 : vector<8x2x16xf32>
    %cst_16 = arith.constant dense<0.000000e+00> : vector<8x2xf32>
    %19 = vector.multi_reduction <add>, %18, %cst_16 [2] : vector<8x2x16xf32> to vector<8x2xf32>
    %20 = vector.shape_cast %19 : vector<8x2xf32> to vector<8x2x1xf32>
    %21 = vector.broadcast %16 : vector<1x1x16xf32> to vector<8x2x16xf32>
    %22 = arith.mulf %13, %21 : vector<8x2x16xf32>
    %cst_17 = arith.constant dense<0.000000e+00> : vector<8x2xf32>
    %23 = vector.multi_reduction <add>, %22, %cst_17 [2] : vector<8x2x16xf32> to vector<8x2xf32>
    %24 = vector.shape_cast %23 : vector<8x2xf32> to vector<8x2x1xf32>
    %25 = arith.addf %20, %24 : vector<8x2x1xf32>
    %c0_18 = arith.constant 0 : index
    %c0_19 = arith.constant 0 : index
    %c0_20 = arith.constant 0 : index
    %26 = vector.load %arg4[%c0_18, %c0_19, %c0_20] : memref<1x1x1xf32, #tpu.memory_space<vmem>>, vector<1x1x1xf32>
    %27 = vector.broadcast %26 : vector<1x1x1xf32> to vector<8x2x1xf32>
    %28 = arith.addf %25, %27 : vector<8x2x1xf32>
    %29 = arith.addf %28, %8 : vector<8x2x1xf32>
    %cst_21 = arith.constant dense<0xFF800000> : vector<2x1xf32>
    %30 = vector.multi_reduction <maximumf>, %29, %cst_21 [0] : vector<8x2x1xf32> to vector<2x1xf32>
    %31 = vector.shape_cast %30 : vector<2x1xf32> to vector<1x2x1xf32>
    %32 = vector.broadcast %31 : vector<1x2x1xf32> to vector<8x2x1xf32>
    %33 = arith.subf %29, %32 : vector<8x2x1xf32>
    %34 = math.exp %33 : vector<8x2x1xf32>
    %cst_22 = arith.constant dense<0.000000e+00> : vector<2x1xf32>
    %35 = vector.multi_reduction <add>, %34, %cst_22 [0] : vector<8x2x1xf32> to vector<2x1xf32>
    %36 = vector.shape_cast %35 : vector<2x1xf32> to vector<1x2x1xf32>
    %37 = vector.broadcast %36 : vector<1x2x1xf32> to vector<8x2x1xf32>
    %38 = arith.divf %34, %37 : vector<8x2x1xf32>
    %39 = vector.broadcast %4 : vector<8x2x1xf32> to vector<8x2x16xf32>
    %40 = arith.subf %11, %39 : vector<8x2x16xf32>
    %cst_23 = arith.constant dense<0xFF800000> : vector<2x16xf32>
    %41 = vector.multi_reduction <maximumf>, %40, %cst_23 [0] : vector<8x2x16xf32> to vector<2x16xf32>
    %42 = vector.broadcast %4 : vector<8x2x1xf32> to vector<8x2x16xf32>
    %43 = arith.subf %13, %42 : vector<8x2x16xf32>
    %cst_24 = arith.constant dense<0xFF800000> : vector<2x16xf32>
    %44 = vector.multi_reduction <maximumf>, %43, %cst_24 [0] : vector<8x2x16xf32> to vector<2x16xf32>
    %45 = vector.broadcast %4 : vector<8x2x1xf32> to vector<8x2x16xf32>
    %46 = arith.addf %11, %45 : vector<8x2x16xf32>
    %cst_25 = arith.constant dense<0x7F800000> : vector<2x16xf32>
    %47 = vector.multi_reduction <minimumf>, %46, %cst_25 [0] : vector<8x2x16xf32> to vector<2x16xf32>
    %48 = vector.broadcast %4 : vector<8x2x1xf32> to vector<8x2x16xf32>
    %49 = arith.addf %13, %48 : vector<8x2x16xf32>
    %cst_26 = arith.constant dense<0x7F800000> : vector<2x16xf32>
    %50 = vector.multi_reduction <minimumf>, %49, %cst_26 [0] : vector<8x2x16xf32> to vector<2x16xf32>
    %cst_27 = arith.constant dense<0.000000e+00> : vector<2x16xf32>
    %51 = vector.multi_reduction <add>, %11, %cst_27 [0] : vector<8x2x16xf32> to vector<2x16xf32>
    %52 = vector.broadcast %9 : vector<2x1xf32> to vector<2x16xf32>
    %53 = arith.divf %51, %52 : vector<2x16xf32>
    %cst_28 = arith.constant dense<0.000000e+00> : vector<2x16xf32>
    %54 = vector.multi_reduction <add>, %13, %cst_28 [0] : vector<8x2x16xf32> to vector<2x16xf32>
    %55 = vector.broadcast %9 : vector<2x1xf32> to vector<2x16xf32>
    %56 = arith.divf %54, %55 : vector<2x16xf32>
    %57 = vector.broadcast %38 : vector<8x2x1xf32> to vector<8x2x16xf32>
    %58 = arith.mulf %57, %11 : vector<8x2x16xf32>
    %cst_29 = arith.constant dense<0.000000e+00> : vector<2x16xf32>
    %59 = vector.multi_reduction <add>, %58, %cst_29 [0] : vector<8x2x16xf32> to vector<2x16xf32>
    %60 = vector.broadcast %38 : vector<8x2x1xf32> to vector<8x2x16xf32>
    %61 = arith.mulf %60, %13 : vector<8x2x16xf32>
    %cst_30 = arith.constant dense<0.000000e+00> : vector<2x16xf32>
    %62 = vector.multi_reduction <add>, %61, %cst_30 [0] : vector<8x2x16xf32> to vector<2x16xf32>
    %63 = tpu.concatenate %41, %44, %47, %50, %53, %56, %59, %62 in 1 : vector<2x16xf32>, vector<2x16xf32>, vector<2x16xf32>, vector<2x16xf32>, vector<2x16xf32>, vector<2x16xf32>, vector<2x16xf32>, vector<2x16xf32> -> vector<2x128xf32>
    %c0_31 = arith.constant 0 : index
    %c0_32 = arith.constant 0 : index
    %64 = vector.load %arg5[%c0_31, %c0_32] : memref<2x128xf32, #tpu.memory_space<vmem>>, vector<2x128xf32>
    tpu.vector_store %arg5[%c0_31, %c0_32], %63 {strides = array<i32>} : memref<2x128xf32, #tpu.memory_space<vmem>>, vector<2x128xf32>,
    return
  }
  func.func @transform_0(%arg0: i32) -> (i32, i32, i32, i32) {
    %c0_i32 = arith.constant 0 : i32
    %c0_i32_0 = arith.constant 0 : i32
    %c0_i32_1 = arith.constant 0 : i32
    %c0_i32_2 = arith.constant 0 : i32
    return %c0_i32, %c0_i32_0, %arg0, %c0_i32_1 : i32, i32, i32, i32
  }
  func.func @transform_1(%arg0: i32) -> (i32, i32, i32) {
    %c0_i32 = arith.constant 0 : i32
    %c0_i32_0 = arith.constant 0 : i32
    %c0_i32_1 = arith.constant 0 : i32
    return %c0_i32, %arg0, %c0_i32_0 : i32, i32, i32
  }
  func.func @transform_2(%arg0: i32) -> (i32, i32, i32) {
    %c0_i32 = arith.constant 0 : i32
    %c0_i32_0 = arith.constant 0 : i32
    %c0_i32_1 = arith.constant 0 : i32
    %c0_i32_2 = arith.constant 0 : i32
    return %c0_i32, %c0_i32_0, %c0_i32_1 : i32, i32, i32
  }
  func.func @transform_3(%arg0: i32) -> (i32, i32, i32) {
    %c0_i32 = arith.constant 0 : i32
    %c0_i32_0 = arith.constant 0 : i32
    %c0_i32_1 = arith.constant 0 : i32
    %c0_i32_2 = arith.constant 0 : i32
    return %c0_i32, %c0_i32_0, %c0_i32_1 : i32, i32, i32
  }
  func.func @transform_4(%arg0: i32) -> (i32, i32) {
    %c0_i32 = arith.constant 0 : i32
    %c0_i32_0 = arith.constant 0 : i32
    return %arg0, %c0_i32 : i32, i32
  }
}

</mosaic_0001>

<llo_original>
// kernel: bcn_forward.6
$region0: #{bcn_forward.6}
  #allocation0 [shape = 'u32[]', space=smem, size = 0x4, offset = 0x4, fixed_abs, tag = 'smem constant byte address 0x4 - core index']
  #allocation1 [shape = 'u32[144,128]{1,0:T(1,128)}', space=vmem, size = 0x12000, scoped, tag = 'internal scratch']
  %s0 = inlined_call_operand.vmem [shape: f32[16,32], index: 0, kind: input, shape index: {}]
  %s1 = inlined_call_operand.vmem [shape: f32[32,32], index: 1, kind: input, shape index: {}]
  %s2 = inlined_call_operand.vmem [shape: f32[1,32], index: 2, kind: input, shape index: {}]
  %s3 = inlined_call_operand.vmem [shape: f32[16,32], index: 3, kind: output, shape index: {}]
  %s4 = sld [smem:[#allocation0]]
  $region22: #{bcn_forward.6} parent=0
    _
  %s6 = ssub.s32 1, %s4
  %s7 = scalar_select 0, %s6, %s4
  // Predicated region
  $region2: #{bcn_forward.6} parent=0 // pred_check
    _
  $region3: #{bcn_forward.6} parent=0 // pred_check_branch
    %9 = sbr.rel (0) target = $region5
  $region4: #{bcn_forward.6} parent=0 // pred_region
    _
  $region5: #{bcn_forward.6} parent=0 // pred_fallthru
    _
  // Predicated region
  $region6: #{bcn_forward.6} parent=0 // pred_check
    _
  $region7: #{bcn_forward.6} parent=0 // pred_check_branch
    %11 = sbr.rel (0) target = $region9
  $region8: #{bcn_forward.6} parent=0 // pred_region
    _
  $region9: #{bcn_forward.6} parent=0 // pred_fallthru
    _
  // Predicated region
  $region10: #{bcn_forward.6} parent=0 // pred_check
    _
  $region11: #{bcn_forward.6} parent=0 // pred_check_branch
    %13 = sbr.rel (0) target = $region13
  $region12: #{bcn_forward.6} parent=0 // pred_region
    _
  $region13: #{bcn_forward.6} parent=0 // pred_fallthru
    _
  %v14 = vld [vmem:[%s0] sm:$0xff]
  %v15 = vld [vmem:[%s0 + $0x8] sm:$0xff]
  %v16 = vld [vmem:[%s1] sm:$0xff]
  %v17 = vld [vmem:[%s1 + $0x8] sm:$0xff]
  %v18 = vld [vmem:[%s1 + $0x10] sm:$0xff]
  %v19 = vld [vmem:[%s1 + $0x18] sm:$0xff]
  %v20 = vld [vmem:[%s2] sm:$0x1]
  %v22 = vlaneseq
  %v23 = vshrl.u32 %v22, 7
  %v24 = vsub.s32 0, %v23
  %v25 = vrot.slane %v20, %v24
  %vm27 = vcmask 261120
  %v29 = vsel %vm27, %v14, 0
  %v32 = vsel %vm27, %v15, 0
  %34 = vmatprep.subr.mxu0 0.0
  %35 = vmatpush1.msra.mxu0 0.0
  %36 = vmatprep.subr.mxu0 0.0
  %37 = vmatpush1.msra.mxu0 0.0
  %38 = vmatprep.subr.mxu0 0.0
  %39 = vmatpush1.msra.mxu0 0.0
  %40 = vmatprep.subr.mxu0 0.0
  %41 = vmatpush1.msra.mxu0 0.0
  %42 = vmatprep.subr.mxu0 0.0
  %43 = vmatpush1.msra.mxu0 0.0
  %44 = vmatprep.subr.mxu0 0.0
  %45 = vmatpush1.msra.mxu0 0.0
  %46 = vmatprep.subr.mxu0 0.0
  %47 = vmatpush1.msra.mxu0 0.0
  %48 = vmatprep.subr.mxu0 0.0
  %49 = vmatpush1.msra.mxu0 0.0
  %50 = vmatprep.subr.mxu0 0.0
  %51 = vmatpush1.msra.mxu0 0.0
  %52 = vmatprep.subr.mxu0 0.0
  %53 = vmatpush1.msra.mxu0 0.0
  %54 = vmatprep.subr.mxu0 0.0
  %55 = vmatpush1.msra.mxu0 0.0
  %56 = vmatprep.subr.mxu0 0.0
  %57 = vmatpush1.msra.mxu0 0.0
  %58 = vmatprep.subr.mxu0 0.0
  %v59 = vand.u32 %v19, 4294901760
  %60 = vmatpush1.msra.mxu0 %v59
  %61 = vmatprep.subr.mxu0 0.0
  %v62 = vand.u32 %v18, 4294901760
  %63 = vmatpush1.msra.mxu0 %v62
  %64 = vmatprep.subr.mxu0 0.0
  %v65 = vand.u32 %v17, 4294901760
  %66 = vmatpush1.msra.mxu0 %v65
  %67 = vmatprep.subr.mxu0 0.0
  %v68 = vand.u32 %v16, 4294901760
  %69 = vmatpush1.msra.mxu0 %v68
  %70 = vmatprep.subr.mxu0 0.0
  %71 = vmatpush2.msra.mxu0 0.0
  %72 = vmatprep.subr.mxu0 0.0
  %73 = vmatpush2.msra.mxu0 0.0
  %74 = vmatprep.subr.mxu0 0.0
  %75 = vmatpush2.msra.mxu0 0.0
  %76 = vmatprep.subr.mxu0 0.0
  %77 = vmatpush2.msra.mxu0 0.0
  %78 = vmatprep.subr.mxu0 0.0
  %79 = vmatpush2.msra.mxu0 0.0
  %80 = vmatprep.subr.mxu0 0.0
  %81 = vmatpush2.msra.mxu0 0.0
  %82 = vmatprep.subr.mxu0 0.0
  %83 = vmatpush2.msra.mxu0 0.0
  %84 = vmatprep.subr.mxu0 0.0
  %85 = vmatpush2.msra.mxu0 0.0
  %86 = vmatprep.subr.mxu0 0.0
  %87 = vmatpush2.msra.mxu0 0.0
  %88 = vmatprep.subr.mxu0 0.0
  %89 = vmatpush2.msra.mxu0 0.0
  %90 = vmatprep.subr.mxu0 0.0
  %91 = vmatpush2.msra.mxu0 0.0
  %92 = vmatprep.subr.mxu0 0.0
  %93 = vmatpush2.msra.mxu0 0.0
  %94 = vmatprep.subr.mxu0 0.0
  %95 = vmatpush2.msra.mxu0 0.0
  %96 = vmatprep.subr.mxu0 0.0
  %97 = vmatpush2.msra.mxu0 0.0
  %98 = vmatprep.subr.mxu0 0.0
  %99 = vmatpush2.msra.mxu0 0.0
  %100 = vmatprep.subr.mxu0 0.0
  %101 = vmatpush2.msra.mxu0 0.0
  %102 = vmatprep.mubr.f32.mxu0 0.0
  %v103 = vand.u32 %v29, 4294901760
  %v104 = vsub.f32 %v29, %v103
  %v105 = vand.u32 %v104, 4294901760
  %v106 = vsub.f32 %v104, %v105
  %v107 = vand.u32 %v106, 4294901760
  %108 = vmatmul.mubr.f32.gmra.mxu0 %v107
  %v109 = vpop.f32.mrf.mxu0
  %v110 = vadd.f32 %v25, %v109
  %v111 = vpop.f32.mrf.mxu0
  %112 = vmatprep.mubr.f32.mxu0 0.0
  %v113 = vand.u32 %v32, 4294901760
  %v114 = vsub.f32 %v32, %v113
  %v115 = vand.u32 %v114, 4294901760
  %v116 = vsub.f32 %v114, %v115
  %v117 = vand.u32 %v116, 4294901760
  %118 = vmatmul.mubr.f32.gmra.mxu0 %v117
  %v119 = vpop.f32.mrf.mxu0
  %v120 = vadd.f32 %v25, %v119
  %v121 = vpop.f32.mrf.mxu0
  %122 = vdwg.mxu0
  %123 = vmatprep.subr.mxu0 0.0
  %124 = vmatpush1.msra.mxu0 0.0
  %125 = vmatprep.subr.mxu0 0.0
  %126 = vmatpush1.msra.mxu0 0.0
  %127 = vmatprep.subr.mxu0 0.0
  %128 = vmatpush1.msra.mxu0 0.0
  %129 = vmatprep.subr.mxu0 0.0
  %130 = vmatpush1.msra.mxu0 0.0
  %131 = vmatprep.subr.mxu0 0.0
  %132 = vmatpush1.msra.mxu0 0.0
  %133 = vmatprep.subr.mxu0 0.0
  %134 = vmatpush1.msra.mxu0 0.0
  %135 = vmatprep.subr.mxu0 0.0
  %136 = vmatpush1.msra.mxu0 0.0
  %137 = vmatprep.subr.mxu0 0.0
  %138 = vmatpush1.msra.mxu0 0.0
  %139 = vmatprep.subr.mxu0 0.0
  %140 = vmatpush1.msra.mxu0 0.0
  %141 = vmatprep.subr.mxu0 0.0
  %142 = vmatpush1.msra.mxu0 0.0
  %143 = vmatprep.subr.mxu0 0.0
  %144 = vmatpush1.msra.mxu0 0.0
  %145 = vmatprep.subr.mxu0 0.0
  %146 = vmatpush1.msra.mxu0 0.0
  %147 = vmatprep.subr.mxu0 0.0
  %v148 = vand.u32 %v19, 4294901760
  %v149 = vsub.f32 %v19, %v148
  %v150 = vand.u32 %v149, 4294901760
  %v151 = vsub.f32 %v149, %v150
  %v152 = vand.u32 %v151, 4294901760
  %153 = vmatpush1.msra.mxu0 %v152
  %154 = vmatprep.subr.mxu0 0.0
  %v155 = vand.u32 %v18, 4294901760
  %v156 = vsub.f32 %v18, %v155
  %v157 = vand.u32 %v156, 4294901760
  %v158 = vsub.f32 %v156, %v157
  %v159 = vand.u32 %v158, 4294901760
  %160 = vmatpush1.msra.mxu0 %v159
  %161 = vmatprep.subr.mxu0 0.0
  %v162 = vand.u32 %v17, 4294901760
  %v163 = vsub.f32 %v17, %v162
  %v164 = vand.u32 %v163, 4294901760
  %v165 = vsub.f32 %v163, %v164
  %v166 = vand.u32 %v165, 4294901760
  %167 = vmatpush1.msra.mxu0 %v166
  %168 = vmatprep.subr.mxu0 0.0
  %v169 = vand.u32 %v16, 4294901760
  %v170 = vsub.f32 %v16, %v169
  %v171 = vand.u32 %v170, 4294901760
  %v172 = vsub.f32 %v170, %v171
  %v173 = vand.u32 %v172, 4294901760
  %174 = vmatpush1.msra.mxu0 %v173
  %175 = vmatprep.subr.mxu0 0.0
  %176 = vmatpush2.msra.mxu0 0.0
  %177 = vmatprep.subr.mxu0 0.0
  %178 = vmatpush2.msra.mxu0 0.0
  %179 = vmatprep.subr.mxu0 0.0
  %180 = vmatpush2.msra.mxu0 0.0
  %181 = vmatprep.subr.mxu0 0.0
  %182 = vmatpush2.msra.mxu0 0.0
  %183 = vmatprep.subr.mxu0 0.0
  %184 = vmatpush2.msra.mxu0 0.0
  %185 = vmatprep.subr.mxu0 0.0
  %186 = vmatpush2.msra.mxu0 0.0
  %187 = vmatprep.subr.mxu0 0.0
  %188 = vmatpush2.msra.mxu0 0.0
  %189 = vmatprep.subr.mxu0 0.0
  %190 = vmatpush2.msra.mxu0 0.0
  %191 = vmatprep.subr.mxu0 0.0
  %192 = vmatpush2.msra.mxu0 0.0
  %193 = vmatprep.subr.mxu0 0.0
  %194 = vmatpush2.msra.mxu0 0.0
  %195 = vmatprep.subr.mxu0 0.0
  %196 = vmatpush2.msra.mxu0 0.0
  %197 = vmatprep.subr.mxu0 0.0
  %198 = vmatpush2.msra.mxu0 0.0
  %199 = vmatprep.subr.mxu0 0.0
  %200 = vmatpush2.msra.mxu0 0.0
  %201 = vmatprep.subr.mxu0 0.0
  %202 = vmatpush2.msra.mxu0 0.0
  %203 = vmatprep.subr.mxu0 0.0
  %204 = vmatpush2.msra.mxu0 0.0
  %205 = vmatprep.subr.mxu0 0.0
  %206 = vmatpush2.msra.mxu0 0.0
  %207 = vmatprep.mubr.f32.mxu0 0.0
  %v208 = vand.u32 %v29, 4294901760
  %209 = vmatmul.mubr.f32.gmra.mxu0 %v208
  %v210 = vpop.f32.mrf.mxu0
  %v211 = vadd.f32 %v110, %v210
  %v212 = vpop.f32.mrf.mxu0
  %213 = vmatprep.mubr.f32.mxu0 0.0
  %v214 = vand.u32 %v32, 4294901760
  %215 = vmatmul.mubr.f32.gmra.mxu0 %v214
  %v216 = vpop.f32.mrf.mxu0
  %v217 = vadd.f32 %v120, %v216
  %v218 = vpop.f32.mrf.mxu0
  %219 = vdwg.mxu0
  %220 = vmatprep.subr.mxu0 0.0
  %221 = vmatpush1.msra.mxu0 0.0
  %222 = vmatprep.subr.mxu0 0.0
  %223 = vmatpush1.msra.mxu0 0.0
  %224 = vmatprep.subr.mxu0 0.0
  %225 = vmatpush1.msra.mxu0 0.0
  %226 = vmatprep.subr.mxu0 0.0
  %227 = vmatpush1.msra.mxu0 0.0
  %228 = vmatprep.subr.mxu0 0.0
  %229 = vmatpush1.msra.mxu0 0.0
  %230 = vmatprep.subr.mxu0 0.0
  %231 = vmatpush1.msra.mxu0 0.0
  %232 = vmatprep.subr.mxu0 0.0
  %233 = vmatpush1.msra.mxu0 0.0
  %234 = vmatprep.subr.mxu0 0.0
  %235 = vmatpush1.msra.mxu0 0.0
  %236 = vmatprep.subr.mxu0 0.0
  %237 = vmatpush1.msra.mxu0 0.0
  %238 = vmatprep.subr.mxu0 0.0
  %239 = vmatpush1.msra.mxu0 0.0
  %240 = vmatprep.subr.mxu0 0.0
  %241 = vmatpush1.msra.mxu0 0.0
  %242 = vmatprep.subr.mxu0 0.0
  %243 = vmatpush1.msra.mxu0 0.0
  %244 = vmatprep.subr.mxu0 0.0
  %v245 = vand.u32 %v19, 4294901760
  %v246 = vsub.f32 %v19, %v245
  %247 = vmatpush1.msra.mxu0 %v246
  %248 = vmatprep.subr.mxu0 0.0
  %v249 = vand.u32 %v18, 4294901760
  %v250 = vsub.f32 %v18, %v249
  %251 = vmatpush1.msra.mxu0 %v250
  %252 = vmatprep.subr.mxu0 0.0
  %v253 = vand.u32 %v17, 4294901760
  %v254 = vsub.f32 %v17, %v253
  %255 = vmatpush1.msra.mxu0 %v254
  %256 = vmatprep.subr.mxu0 0.0
  %v257 = vand.u32 %v16, 4294901760
  %v258 = vsub.f32 %v16, %v257
  %259 = vmatpush1.msra.mxu0 %v258
  %260 = vmatprep.subr.mxu0 0.0
  %261 = vmatpush2.msra.mxu0 0.0
  %262 = vmatprep.subr.mxu0 0.0
  %263 = vmatpush2.msra.mxu0 0.0
  %264 = vmatprep.subr.mxu0 0.0
  %265 = vmatpush2.msra.mxu0 0.0
  %266 = vmatprep.subr.mxu0 0.0
  %267 = vmatpush2.msra.mxu0 0.0
  %268 = vmatprep.subr.mxu0 0.0
  %269 = vmatpush2.msra.mxu0 0.0
  %270 = vmatprep.subr.mxu0 0.0
  %271 = vmatpush2.msra.mxu0 0.0
  %272 = vmatprep.subr.mxu0 0.0
  %273 = vmatpush2.msra.mxu0 0.0
  %274 = vmatprep.subr.mxu0 0.0
  %275 = vmatpush2.msra.mxu0 0.0
  %276 = vmatprep.subr.mxu0 0.0
  %277 = vmatpush2.msra.mxu0 0.0
  %278 = vmatprep.subr.mxu0 0.0
  %279 = vmatpush2.msra.mxu0 0.0
  %280 = vmatprep.subr.mxu0 0.0
  %281 = vmatpush2.msra.mxu0 0.0
  %282 = vmatprep.subr.mxu0 0.0
  %283 = vmatpush2.msra.mxu0 0.0
  %284 = vmatprep.subr.mxu0 0.0
  %285 = vmatpush2.msra.mxu0 0.0
  %286 = vmatprep.subr.mxu0 0.0
  %287 = vmatpush2.msra.mxu0 0.0
  %288 = vmatprep.subr.mxu0 0.0
  %289 = vmatpush2.msra.mxu0 0.0
  %290 = vmatprep.subr.mxu0 0.0
  %291 = vmatpush2.msra.mxu0 0.0
  %292 = vmatprep.mubr.f32.mxu0 0.0
  %v293 = vand.u32 %v29, 4294901760
  %v294 = vsub.f32 %v29, %v293
  %295 = vmatmul.mubr.f32.gmra.mxu0 %v294
  %v296 = vpop.f32.mrf.mxu0
  %v297 = vadd.f32 %v211, %v296
  %v298 = vpop.f32.mrf.mxu0
  %299 = vmatprep.mubr.f32.mxu0 0.0
  %v300 = vand.u32 %v32, 4294901760
  %v301 = vsub.f32 %v32, %v300
  %302 = vmatmul.mubr.f32.gmra.mxu0 %v301
  %v303 = vpop.f32.mrf.mxu0
  %v304 = vadd.f32 %v217, %v303
  %v305 = vpop.f32.mrf.mxu0
  %306 = vdwg.mxu0
  %307 = vmatprep.subr.mxu0 0.0
  %308 = vmatpush1.msra.mxu0 0.0
  %309 = vmatprep.subr.mxu0 0.0
  %310 = vmatpush1.msra.mxu0 0.0
  %311 = vmatprep.subr.mxu0 0.0
  %312 = vmatpush1.msra.mxu0 0.0
  %313 = vmatprep.subr.mxu0 0.0
  %314 = vmatpush1.msra.mxu0 0.0
  %315 = vmatprep.subr.mxu0 0.0
  %316 = vmatpush1.msra.mxu0 0.0
  %317 = vmatprep.subr.mxu0 0.0
  %318 = vmatpush1.msra.mxu0 0.0
  %319 = vmatprep.subr.mxu0 0.0
  %320 = vmatpush1.msra.mxu0 0.0
  %321 = vmatprep.subr.mxu0 0.0
  %322 = vmatpush1.msra.mxu0 0.0
  %323 = vmatprep.subr.mxu0 0.0
  %324 = vmatpush1.msra.mxu0 0.0
  %325 = vmatprep.subr.mxu0 0.0
  %326 = vmatpush1.msra.mxu0 0.0
  %327 = vmatprep.subr.mxu0 0.0
  %328 = vmatpush1.msra.mxu0 0.0
  %329 = vmatprep.subr.mxu0 0.0
  %330 = vmatpush1.msra.mxu0 0.0
  %331 = vmatprep.subr.mxu0 0.0
  %v332 = vand.u32 %v19, 4294901760
  %333 = vmatpush1.msra.mxu0 %v332
  %334 = vmatprep.subr.mxu0 0.0
  %v335 = vand.u32 %v18, 4294901760
  %336 = vmatpush1.msra.mxu0 %v335
  %337 = vmatprep.subr.mxu0 0.0
  %v338 = vand.u32 %v17, 4294901760
  %339 = vmatpush1.msra.mxu0 %v338
  %340 = vmatprep.subr.mxu0 0.0
  %v341 = vand.u32 %v16, 4294901760
  %342 = vmatpush1.msra.mxu0 %v341
  %343 = vmatprep.subr.mxu0 0.0
  %344 = vmatpush2.msra.mxu0 0.0
  %345 = vmatprep.subr.mxu0 0.0
  %346 = vmatpush2.msra.mxu0 0.0
  %347 = vmatprep.subr.mxu0 0.0
  %348 = vmatpush2.msra.mxu0 0.0
  %349 = vmatprep.subr.mxu0 0.0
  %350 = vmatpush2.msra.mxu0 0.0
  %351 = vmatprep.subr.mxu0 0.0
  %352 = vmatpush2.msra.mxu0 0.0
  %353 = vmatprep.subr.mxu0 0.0
  %354 = vmatpush2.msra.mxu0 0.0
  %355 = vmatprep.subr.mxu0 0.0
  %356 = vmatpush2.msra.mxu0 0.0
  %357 = vmatprep.subr.mxu0 0.0
  %358 = vmatpush2.msra.mxu0 0.0
  %359 = vmatprep.subr.mxu0 0.0
  %360 = vmatpush2.msra.mxu0 0.0
  %361 = vmatprep.subr.mxu0 0.0
  %362 = vmatpush2.msra.mxu0 0.0
  %363 = vmatprep.subr.mxu0 0.0
  %364 = vmatpush2.msra.mxu0 0.0
  %365 = vmatprep.subr.mxu0 0.0
  %366 = vmatpush2.msra.mxu0 0.0
  %367 = vmatprep.subr.mxu0 0.0
  %368 = vmatpush2.msra.mxu0 0.0
  %369 = vmatprep.subr.mxu0 0.0
  %370 = vmatpush2.msra.mxu0 0.0
  %371 = vmatprep.subr.mxu0 0.0
  %372 = vmatpush2.msra.mxu0 0.0
  %373 = vmatprep.subr.mxu0 0.0
  %374 = vmatpush2.msra.mxu0 0.0
  %375 = vmatprep.mubr.f32.mxu0 0.0
  %v376 = vand.u32 %v29, 4294901760
  %v377 = vsub.f32 %v29, %v376
  %v378 = vand.u32 %v377, 4294901760
  %379 = vmatmul.mubr.f32.gmra.mxu0 %v378
  %v380 = vpop.f32.mrf.mxu0
  %v381 = vadd.f32 %v297, %v380
  %v382 = vpop.f32.mrf.mxu0
  %383 = vmatprep.mubr.f32.mxu0 0.0
  %v384 = vand.u32 %v32, 4294901760
  %v385 = vsub.f32 %v32, %v384
  %v386 = vand.u32 %v385, 4294901760
  %387 = vmatmul.mubr.f32.gmra.mxu0 %v386
  %v388 = vpop.f32.mrf.mxu0
  %v389 = vadd.f32 %v304, %v388
  %v390 = vpop.f32.mrf.mxu0
  %391 = vdwg.mxu0
  %392 = vmatprep.subr.mxu0 0.0
  %393 = vmatpush1.msra.mxu0 0.0
  %394 = vmatprep.subr.mxu0 0.0
  %395 = vmatpush1.msra.mxu0 0.0
  %396 = vmatprep.subr.mxu0 0.0
  %397 = vmatpush1.msra.mxu0 0.0
  %398 = vmatprep.subr.mxu0 0.0
  %399 = vmatpush1.msra.mxu0 0.0
  %400 = vmatprep.subr.mxu0 0.0
  %401 = vmatpush1.msra.mxu0 0.0
  %402 = vmatprep.subr.mxu0 0.0
  %403 = vmatpush1.msra.mxu0 0.0
  %404 = vmatprep.subr.mxu0 0.0
  %405 = vmatpush1.msra.mxu0 0.0
  %406 = vmatprep.subr.mxu0 0.0
  %407 = vmatpush1.msra.mxu0 0.0
  %408 = vmatprep.subr.mxu0 0.0
  %409 = vmatpush1.msra.mxu0 0.0
  %410 = vmatprep.subr.mxu0 0.0
  %411 = vmatpush1.msra.mxu0 0.0
  %412 = vmatprep.subr.mxu0 0.0
  %413 = vmatpush1.msra.mxu0 0.0
  %414 = vmatprep.subr.mxu0 0.0
  %415 = vmatpush1.msra.mxu0 0.0
  %416 = vmatprep.subr.mxu0 0.0
  %v417 = vand.u32 %v19, 4294901760
  %v418 = vsub.f32 %v19, %v417
  %v419 = vand.u32 %v418, 4294901760
  %420 = vmatpush1.msra.mxu0 %v419
  %421 = vmatprep.subr.mxu0 0.0
  %v422 = vand.u32 %v18, 4294901760
  %v423 = vsub.f32 %v18, %v422
  %v424 = vand.u32 %v423, 4294901760
  %425 = vmatpush1.msra.mxu0 %v424
  %426 = vmatprep.subr.mxu0 0.0
  %v427 = vand.u32 %v17, 4294901760
  %v428 = vsub.f32 %v17, %v427
  %v429 = vand.u32 %v428, 4294901760
  %430 = vmatpush1.msra.mxu0 %v429
  %431 = vmatprep.subr.mxu0 0.0
  %v432 = vand.u32 %v16, 4294901760
  %v433 = vsub.f32 %v16, %v432
  %v434 = vand.u32 %v433, 4294901760
  %435 = vmatpush1.msra.mxu0 %v434
  %436 = vmatprep.subr.mxu0 0.0
  %437 = vmatpush2.msra.mxu0 0.0
  %438 = vmatprep.subr.mxu0 0.0
  %439 = vmatpush2.msra.mxu0 0.0
  %440 = vmatprep.subr.mxu0 0.0
  %441 = vmatpush2.msra.mxu0 0.0
  %442 = vmatprep.subr.mxu0 0.0
  %443 = vmatpush2.msra.mxu0 0.0
  %444 = vmatprep.subr.mxu0 0.0
  %445 = vmatpush2.msra.mxu0 0.0
  %446 = vmatprep.subr.mxu0 0.0
  %447 = vmatpush2.msra.mxu0 0.0
  %448 = vmatprep.subr.mxu0 0.0
  %449 = vmatpush2.msra.mxu0 0.0
  %450 = vmatprep.subr.mxu0 0.0
  %451 = vmatpush2.msra.mxu0 0.0
  %452 = vmatprep.subr.mxu0 0.0
  %453 = vmatpush2.msra.mxu0 0.0
  %454 = vmatprep.subr.mxu0 0.0
  %455 = vmatpush2.msra.mxu0 0.0
  %456 = vmatprep.subr.mxu0 0.0
  %457 = vmatpush2.msra.mxu0 0.0
  %458 = vmatprep.subr.mxu0 0.0
  %459 = vmatpush2.msra.mxu0 0.0
  %460 = vmatprep.subr.mxu0 0.0
  %461 = vmatpush2.msra.mxu0 0.0
  %462 = vmatprep.subr.mxu0 0.0
  %463 = vmatpush2.msra.mxu0 0.0
  %464 = vmatprep.subr.mxu0 0.0
  %465 = vmatpush2.msra.mxu0 0.0
  %466 = vmatprep.subr.mxu0 0.0
  %467 = vmatpush2.msra.mxu0 0.0
  %468 = vmatprep.mubr.f32.mxu0 0.0
  %v469 = vand.u32 %v29, 4294901760
  %470 = vmatmul.mubr.f32.gmra.mxu0 %v469
  %v471 = vpop.f32.mrf.mxu0
  %v472 = vadd.f32 %v381, %v471
  %v473 = vpop.f32.mrf.mxu0
  %474 = vmatprep.mubr.f32.mxu0 0.0
  %v475 = vand.u32 %v32, 4294901760
  %476 = vmatmul.mubr.f32.gmra.mxu0 %v475
  %v477 = vpop.f32.mrf.mxu0
  %v478 = vadd.f32 %v389, %v477
  %v479 = vpop.f32.mrf.mxu0
  %480 = vdwg.mxu0
  %481 = vmatprep.subr.mxu0 0.0
  %482 = vmatpush1.msra.mxu0 0.0
  %483 = vmatprep.subr.mxu0 0.0
  %484 = vmatpush1.msra.mxu0 0.0
  %485 = vmatprep.subr.mxu0 0.0
  %486 = vmatpush1.msra.mxu0 0.0
  %487 = vmatprep.subr.mxu0 0.0
  %488 = vmatpush1.msra.mxu0 0.0
  %489 = vmatprep.subr.mxu0 0.0
  %490 = vmatpush1.msra.mxu0 0.0
  %491 = vmatprep.subr.mxu0 0.0
  %492 = vmatpush1.msra.mxu0 0.0
  %493 = vmatprep.subr.mxu0 0.0
  %494 = vmatpush1.msra.mxu0 0.0
  %495 = vmatprep.subr.mxu0 0.0
  %496 = vmatpush1.msra.mxu0 0.0
  %497 = vmatprep.subr.mxu0 0.0
  %498 = vmatpush1.msra.mxu0 0.0
  %499 = vmatprep.subr.mxu0 0.0
  %500 = vmatpush1.msra.mxu0 0.0
  %501 = vmatprep.subr.mxu0 0.0
  %502 = vmatpush1.msra.mxu0 0.0
  %503 = vmatprep.subr.mxu0 0.0
  %504 = vmatpush1.msra.mxu0 0.0
  %505 = vmatprep.subr.mxu0 0.0
  %v506 = vand.u32 %v19, 4294901760
  %507 = vmatpush1.msra.mxu0 %v506
  %508 = vmatprep.subr.mxu0 0.0
  %v509 = vand.u32 %v18, 4294901760
  %510 = vmatpush1.msra.mxu0 %v509
  %511 = vmatprep.subr.mxu0 0.0
  %v512 = vand.u32 %v17, 4294901760
  %513 = vmatpush1.msra.mxu0 %v512
  %514 = vmatprep.subr.mxu0 0.0
  %v515 = vand.u32 %v16, 4294901760
  %516 = vmatpush1.msra.mxu0 %v515
  %517 = vmatprep.subr.mxu0 0.0
  %518 = vmatpush2.msra.mxu0 0.0
  %519 = vmatprep.subr.mxu0 0.0
  %520 = vmatpush2.msra.mxu0 0.0
  %521 = vmatprep.subr.mxu0 0.0
  %522 = vmatpush2.msra.mxu0 0.0
  %523 = vmatprep.subr.mxu0 0.0
  %524 = vmatpush2.msra.mxu0 0.0
  %525 = vmatprep.subr.mxu0 0.0
  %526 = vmatpush2.msra.mxu0 0.0
  %527 = vmatprep.subr.mxu0 0.0
  %528 = vmatpush2.msra.mxu0 0.0
  %529 = vmatprep.subr.mxu0 0.0
  %530 = vmatpush2.msra.mxu0 0.0
  %531 = vmatprep.subr.mxu0 0.0
  %532 = vmatpush2.msra.mxu0 0.0
  %533 = vmatprep.subr.mxu0 0.0
  %534 = vmatpush2.msra.mxu0 0.0
  %535 = vmatprep.subr.mxu0 0.0
  %536 = vmatpush2.msra.mxu0 0.0
  %537 = vmatprep.subr.mxu0 0.0
  %538 = vmatpush2.msra.mxu0 0.0
  %539 = vmatprep.subr.mxu0 0.0
  %540 = vmatpush2.msra.mxu0 0.0
  %541 = vmatprep.subr.mxu0 0.0
  %542 = vmatpush2.msra.mxu0 0.0
  %543 = vmatprep.subr.mxu0 0.0
  %544 = vmatpush2.msra.mxu0 0.0
  %545 = vmatprep.subr.mxu0 0.0
  %546 = vmatpush2.msra.mxu0 0.0
  %547 = vmatprep.subr.mxu0 0.0
  %548 = vmatpush2.msra.mxu0 0.0
  %549 = vmatprep.mubr.f32.mxu0 0.0
  %v550 = vand.u32 %v29, 4294901760
  %551 = vmatmul.mubr.f32.gmra.mxu0 %v550
  %v552 = vpop.f32.mrf.mxu0
  %v553 = vadd.f32 %v472, %v552
  %v554 = vpop.f32.mrf.mxu0
  %555 = vmatprep.mubr.f32.mxu0 0.0
  %v556 = vand.u32 %v32, 4294901760
  %557 = vmatmul.mubr.f32.gmra.mxu0 %v556
  %v558 = vpop.f32.mrf.mxu0
  %v559 = vadd.f32 %v478, %v558
  %v560 = vpop.f32.mrf.mxu0
  %561 = vdwg.mxu0
  %v562 = vmax.f32 %v553, 0.0
  %v563 = vmax.f32 %v559, 0.0
  %564 = vst.msk [vmem:[%s3] sm:$0xff] %vm27, %v562
  %565 = vst.msk [vmem:[%s3 + $0x8] sm:$0xff] %vm27, %v563
  // Predicated region
  $region14: #{bcn_forward.6} parent=0 // pred_check
    _
  $region15: #{bcn_forward.6} parent=0 // pred_check_branch
    %567 = sbr.rel (0) target = $region17
  $region16: #{bcn_forward.6} parent=0 // pred_region
    _
  $region17: #{bcn_forward.6} parent=0 // pred_fallthru
    _
  // Predicated region
  $region18: #{bcn_forward.6} parent=0 // pred_check
    _
  $region19: #{bcn_forward.6} parent=0 // pred_check_branch
    %569 = sbr.rel (0) target = $region21
  $region20: #{bcn_forward.6} parent=0 // pred_region
    _
  $region21: #{bcn_forward.6} parent=0 // pred_fallthru
    _

// kernel: bcn_forward.7
$region0: #{bcn_forward.7}
  #allocation0 [shape = 'u32[]', space=smem, size = 0x4, offset = 0x4, fixed_abs, tag = 'smem constant byte address 0x4 - core index']
  #allocation1 [shape = 'u32[144,128]{1,0:T(1,128)}', space=vmem, size = 0x12000, scoped, tag = 'internal scratch']
  #allocation2 [shape = 'f32[16,64]{1,0:T(8,128)}', space=vmem, size = 0x2000, scoped, tag = 'scratch operand']
  #allocation3 [shape = 'f32[2,16]{1,0:T(2,128)}', space=vmem, size = 0x400, scoped, tag = 'scratch operand']
  #allocation4 [shape = 'f32[2,16]{1,0:T(2,128)}', space=vmem, size = 0x400, scoped, tag = 'scratch operand']
  %s0 = inlined_call_operand.vmem [shape: f32[16,32], index: 0, kind: input, shape index: {}]
  %s1 = inlined_call_operand.vmem [shape: f32[2,32,64], index: 1, kind: input, shape index: {}]
  %s2 = inlined_call_operand.vmem [shape: f32[2,16,64], index: 2, kind: input, shape index: {}]
  %s3 = inlined_call_operand.vmem [shape: f32[2,1,64], index: 3, kind: input, shape index: {}]
  %s4 = inlined_call_operand.vmem [shape: f32[2,16,16], index: 4, kind: output, shape index: {}]
  %s5 = sld [smem:[#allocation0]]
  $region60: #{bcn_forward.7} parent=0
    _
  %s7 = ssub.s32 1, %s5
  %s8 = scalar_select 0, %s7, %s5
  loop: start=0, step=1, limit=4
  $region2: #{bcn_forward.7} parent=0 // loop_pre_header
    _
  $region3: #{bcn_forward.7} parent=0 // loop_header
    %s10 = sphi 0, %s14
    %p11 = scmp.ge.s32.totalorder %s10, 4
    %s17 = sphi 0, %s29
    %s18 = sphi 0, %s25
    %s19 = sphi 0, %s17
    %s20 = sphi 0, %s18
    %s21 = sphi 0, %s19
    %s22 = sphi 0, %s20
    %s40 = sphi 0, %s42
    %s43 = sphi 0, %s40
    %s44 = sphi 0, %s43
    %s60 = sphi 0, %s44
    %s66 = sphi 0, %s68
    %s69 = sphi 0, %s66
    %s70 = sphi 0, %s69
    %s86 = sphi 0, %s70
    %s92 = sphi 0, %s94
    %s95 = sphi 0, %s92
    %s96 = sphi 0, %s95
    %s112 = sphi 0, %s96
    %s118 = sphi 0, %s120
    %s121 = sphi 0, %s118
    %s122 = sphi 0, %s121
    %s138 = sphi 0, %s122
    %s154 = sphi 0, %s156
    %s157 = sphi 0, %s154
    %s158 = sphi 0, %s157
    %s174 = sphi 0, %s158
  $region4: #{bcn_forward.7} parent=0 // loop_header_branch
    %13 = sbr.rel (%p11) target = $region8
  $region5: #{bcn_forward.7} parent=0 // loop_body
    %s15 = ssub.s32 %s10, 1
    %s16 = ssub.s32 %s10, 2
    %s23 = sadd.s32 1, %s18
    %p24 = scmp.ge.s32.totalorder %s23, 1
    %s25 = scalar_select %p24, 0, %s23
    %s26 = sadd.s32 1, %s17
    %s27 = scalar_select %p24, %s26, %s17
    %p28 = scmp.ge.s32.totalorder %s27, 2
    %s29 = scalar_select %p28, 0, %s27
    %s30 = smul.u32 %s18, 2
    %s31 = ssub.s32 0, %s30
    %s32 = smul.u32 %s17, %s31
    %s33 = sadd.s32 %s18, %s32
    %s34 = smul.u32 %s25, 2
    %s35 = ssub.s32 0, %s34
    %s36 = smul.u32 %s29, %s35
    %s37 = sadd.s32 %s25, %s36
    %s38 = ssub.s32 %s33, %s37
    %p39 = scmp.eq.s32.totalorder %s38, 0
    %s41 = sadd.s32 %s40, 1
    %s42 = scalar_select %p39, %s40, %s41
    %p45 = pneg %p39
    %p46 = scmp.eq.s32.totalorder %s10, 1
    %p47 = por %p45, %p46
    %p48 = scmp.ne.s32.totalorder %s40, %s43
    %p49 = scmp.eq.s32.totalorder %s10, 0
    %p50 = por %p48, %p49
    %p51 = scmp.ne.s32.totalorder %s40, %s43
    %p52 = scmp.eq.s32.totalorder %s15, 1
    %p53 = por %p51, %p52
    %p54 = scmp.ne.s32.totalorder %s43, %s44
    %p55 = scmp.eq.s32.totalorder %s15, 0
    %p56 = por %p54, %p55
    %p57 = scmp.ne.s32.totalorder %s43, %s44
    %p58 = scmp.eq.s32.totalorder %s16, 1
    %p59 = por %p57, %p58
    %p61 = scmp.ne.s32.totalorder %s44, %s60
    %p62 = scmp.eq.s32.totalorder %s16, 0
    %p63 = por %p61, %p62
    %s64 = ssub.s32 %s17, %s29
    %p65 = scmp.eq.s32.totalorder %s64, 0
    %s67 = sadd.s32 %s66, 1
    %s68 = scalar_select %p65, %s66, %s67
    %p71 = pneg %p65
    %p72 = scmp.eq.s32.totalorder %s10, 1
    %p73 = por %p71, %p72
    %p74 = scmp.ne.s32.totalorder %s66, %s69
    %p75 = scmp.eq.s32.totalorder %s10, 0
    %p76 = por %p74, %p75
    %p77 = scmp.ne.s32.totalorder %s66, %s69
    %p78 = scmp.eq.s32.totalorder %s15, 1
    %p79 = por %p77, %p78
    %p80 = scmp.ne.s32.totalorder %s69, %s70
    %p81 = scmp.eq.s32.totalorder %s15, 0
    %p82 = por %p80, %p81
    %p83 = scmp.ne.s32.totalorder %s69, %s70
    %p84 = scmp.eq.s32.totalorder %s16, 1
    %p85 = por %p83, %p84
    %p87 = scmp.ne.s32.totalorder %s70, %s86
    %p88 = scmp.eq.s32.totalorder %s16, 0
    %p89 = por %p87, %p88
    %s90 = ssub.s32 %s17, %s29
    %p91 = scmp.eq.s32.totalorder %s90, 0
    %s93 = sadd.s32 %s92, 1
    %s94 = scalar_select %p91, %s92, %s93
    %p97 = pneg %p91
    %p98 = scmp.eq.s32.totalorder %s10, 1
    %p99 = por %p97, %p98
    %p100 = scmp.ne.s32.totalorder %s92, %s95
    %p101 = scmp.eq.s32.totalorder %s10, 0
    %p102 = por %p100, %p101
    %p103 = scmp.ne.s32.totalorder %s92, %s95
    %p104 = scmp.eq.s32.totalorder %s15, 1
    %p105 = por %p103, %p104
    %p106 = scmp.ne.s32.totalorder %s95, %s96
    %p107 = scmp.eq.s32.totalorder %s15, 0
    %p108 = por %p106, %p107
    %p109 = scmp.ne.s32.totalorder %s95, %s96
    %p110 = scmp.eq.s32.totalorder %s16, 1
    %p111 = por %p109, %p110
    %p113 = scmp.ne.s32.totalorder %s96, %s112
    %p114 = scmp.eq.s32.totalorder %s16, 0
    %p115 = por %p113, %p114
    %s116 = ssub.s32 %s17, %s29
    %p117 = scmp.eq.s32.totalorder %s116, 0
    %s119 = sadd.s32 %s118, 1
    %s120 = scalar_select %p117, %s118, %s119
    %p123 = pneg %p117
    %p124 = scmp.eq.s32.totalorder %s10, 1
    %p125 = por %p123, %p124
    %p126 = scmp.ne.s32.totalorder %s118, %s121
    %p127 = scmp.eq.s32.totalorder %s10, 0
    %p128 = por %p126, %p127
    %p129 = scmp.ne.s32.totalorder %s118, %s121
    %p130 = scmp.eq.s32.totalorder %s15, 1
    %p131 = por %p129, %p130
    %p132 = scmp.ne.s32.totalorder %s121, %s122
    %p133 = scmp.eq.s32.totalorder %s15, 0
    %p134 = por %p132, %p133
    %p135 = scmp.ne.s32.totalorder %s121, %s122
    %p136 = scmp.eq.s32.totalorder %s16, 1
    %p137 = por %p135, %p136
    %p139 = scmp.ne.s32.totalorder %s122, %s138
    %p140 = scmp.eq.s32.totalorder %s16, 0
    %p141 = por %p139, %p140
    %s142 = smul.u32 %s18, 2
    %s143 = ssub.s32 0, %s142
    %s144 = smul.u32 %s17, %s143
    %s145 = sadd.s32 %s18, %s144
    %s146 = smul.u32 %s25, 2
    %s147 = ssub.s32 0, %s146
    %s148 = smul.u32 %s29, %s147
    %s149 = sadd.s32 %s25, %s148
    %s150 = ssub.s32 %s17, %s29
    %s151 = ssub.s32 %s145, %s149
    %s152 = sor.u32 %s150, %s151
    %p153 = scmp.eq.s32.totalorder %s152, 0
    %s155 = sadd.s32 %s154, 1
    %s156 = scalar_select %p153, %s154, %s155
    %p159 = pneg %p153
    %p160 = scmp.eq.s32.totalorder %s10, 1
    %p161 = por %p159, %p160
    %p162 = scmp.ne.s32.totalorder %s154, %s157
    %p163 = scmp.eq.s32.totalorder %s10, 0
    %p164 = por %p162, %p163
    %p165 = scmp.ne.s32.totalorder %s154, %s157
    %p166 = scmp.eq.s32.totalorder %s15, 1
    %p167 = por %p165, %p166
    %p168 = scmp.ne.s32.totalorder %s157, %s158
    %p169 = scmp.eq.s32.totalorder %s15, 0
    %p170 = por %p168, %p169
    %p171 = scmp.ne.s32.totalorder %s157, %s158
    %p172 = scmp.eq.s32.totalorder %s16, 1
    %p173 = por %p171, %p172
    %p175 = scmp.ne.s32.totalorder %s158, %s174
    %p176 = scmp.eq.s32.totalorder %s16, 0
    %p177 = por %p175, %p176
    %p178 = scmp.le.s32.totalorder 1, %s10
    %p179 = scmp.lt.s32.totalorder %s10, 3
    %p180 = pnand %p178, %p179
    %p181 = pneg %p180
    // Predicated region
    $region9: #{bcn_forward.7} parent=5 // pred_check
      _
    $region10: #{bcn_forward.7} parent=5 // pred_check_branch
      %183 = sbr.rel (%p180) target = $region12
    $region11: #{bcn_forward.7} parent=5 // pred_region
      %s184 = ssub.s32 %s10, 1
    $region12: #{bcn_forward.7} parent=5 // pred_fallthru
      _
    %p185 = scmp.lt.s32.totalorder %s10, 2
    // Predicated region
    $region13: #{bcn_forward.7} parent=5 // pred_check
      %p186 = pneg %p185
    $region14: #{bcn_forward.7} parent=5 // pred_check_branch
      %188 = sbr.rel (%p186) target = $region16
    $region15: #{bcn_forward.7} parent=5 // pred_region
      // Predicated region
      $region17: #{bcn_forward.7} parent=15 // pred_check
        %p189 = pneg %p50
      $region18: #{bcn_forward.7} parent=15 // pred_check_branch
        %191 = sbr.rel (%p189) target = $region20
      $region19: #{bcn_forward.7} parent=15 // pred_region
        %s192 = smul.u32 %s18, 2
        %s193 = ssub.s32 0, %s192
        %s194 = smul.u32 %s17, %s193
        %s195 = sadd.s32 %s18, %s194
        %s196 = smul.u32 2, %s195
        %p197 = scmp.lt.s32.totalorder %s196, 1
        %s198 = scalar_select %p197, %s196, 1
        %s199 = smul.addr %s198, 8
        %s200 = scalar_lea.vmem %s0, %s199
        %s201 = smul.u32 %s18, 2
        %s202 = ssub.s32 0, %s201
        %s203 = smul.u32 %s17, %s202
        %s204 = sadd.s32 %s18, %s203
        %s205 = smul.u32 2, %s204
      $region20: #{bcn_forward.7} parent=15 // pred_fallthru
        _
      // Predicated region
      $region21: #{bcn_forward.7} parent=15 // pred_check
        %p206 = pneg %p76
      $region22: #{bcn_forward.7} parent=15 // pred_check_branch
        %208 = sbr.rel (%p206) target = $region24
      $region23: #{bcn_forward.7} parent=15 // pred_region
        %p209 = scmp.lt.s32.totalorder %s17, 1
        %s210 = scalar_select %p209, %s17, 1
        %s211 = smul.addr %s210, 4
        %s212 = smul.addr %s211, 8
        %s213 = scalar_lea.vmem %s1, %s212
      $region24: #{bcn_forward.7} parent=15 // pred_fallthru
        _
      // Predicated region
      $region25: #{bcn_forward.7} parent=15 // pred_check
        %p214 = pneg %p102
      $region26: #{bcn_forward.7} parent=15 // pred_check_branch
        %216 = sbr.rel (%p214) target = $region28
      $region27: #{bcn_forward.7} parent=15 // pred_region
        %p217 = scmp.lt.s32.totalorder %s17, 1
        %s218 = scalar_select %p217, %s17, 1
        %s219 = smul.addr %s218, 2
        %s220 = smul.addr %s219, 8
        %s221 = scalar_lea.vmem %s2, %s220
      $region28: #{bcn_forward.7} parent=15 // pred_fallthru
        _
      // Predicated region
      $region29: #{bcn_forward.7} parent=15 // pred_check
        %p222 = pneg %p128
      $region30: #{bcn_forward.7} parent=15 // pred_check_branch
        %224 = sbr.rel (%p222) target = $region32
      $region31: #{bcn_forward.7} parent=15 // pred_region
        %p225 = scmp.lt.s32.totalorder %s17, 1
        %s226 = scalar_select %p225, %s17, 1
        %s227 = scalar_lea.vmem %s3, %s226
      $region32: #{bcn_forward.7} parent=15 // pred_fallthru
        _
    $region16: #{bcn_forward.7} parent=5 // pred_fallthru
      _
    %p228 = scmp.le.s32.totalorder 1, %s10
    %p229 = scmp.lt.s32.totalorder %s10, 3
    %p230 = pnand %p228, %p229
    %p231 = pneg %p230
    // Predicated region
    $region33: #{bcn_forward.7} parent=5 // pred_check
      _
    $region34: #{bcn_forward.7} parent=5 // pred_check_branch
      %233 = sbr.rel (%p230) target = $region36
    $region35: #{bcn_forward.7} parent=5 // pred_region
      %s234 = ssub.s32 %s10, 1
      %s235 = smul.u32 %s20, 2
      %s236 = ssub.s32 0, %s235
      %s237 = smul.u32 %s19, %s236
      %s238 = sadd.s32 %s20, %s237
      %s239 = smul.u32 2, %s238
      %p240 = scmp.lt.s32.totalorder %s239, 1
      %s241 = scalar_select %p240, %s239, 1
      %s242 = smul.addr %s241, 8
      %s243 = scalar_lea.vmem %s0, %s242
      %p244 = pneg %p56
      %p245 = pneg %p53
      %p246 = scmp.lt.s32.totalorder %s19, 1
      %s247 = scalar_select %p246, %s19, 1
      %s248 = smul.addr %s247, 4
      %s249 = smul.addr %s248, 8
      %s250 = scalar_lea.vmem %s1, %s249
      %p251 = pneg %p82
      %p252 = pneg %p79
      %p253 = scmp.lt.s32.totalorder %s19, 1
      %s254 = scalar_select %p253, %s19, 1
      %s255 = smul.addr %s254, 2
      %s256 = smul.addr %s255, 8
      %s257 = scalar_lea.vmem %s2, %s256
      %p258 = pneg %p108
      %p259 = pneg %p105
      %p260 = scmp.lt.s32.totalorder %s19, 1
      %s261 = scalar_select %p260, %s19, 1
      %s262 = scalar_lea.vmem %s3, %s261
      %p263 = pneg %p134
      %p264 = pneg %p131
      %p265 = pneg %p170
      %p266 = pneg %p167
      %s267 = smul.u32 %s20, 2
      %s268 = ssub.s32 0, %s267
      %s269 = smul.u32 %s19, %s268
      %s270 = sadd.s32 %s20, %s269
      %s271 = smul.u32 2, %s270
      %p272 = scmp.lt.s32.totalorder %s19, 1
      %s273 = scalar_select %p272, %s19, 1
      %p274 = scmp.lt.s32.totalorder %s271, 1
      %s275 = scalar_select %p274, %s271, 1
      %s276 = smul.addr %s273, 2
      %s277 = sadd.s32 %s275, %s276
      %s278 = smul.addr %s277, 8
      %s279 = scalar_lea.vmem %s4, %s278
      %s280 = smul.u32 %s20, 2
      %s281 = ssub.s32 0, %s280
      %s282 = smul.u32 %s19, %s281
      %s283 = sadd.s32 %s20, %s282
      %s284 = smul.u32 2, %s283
      %p285 = scmp.lt.s32.totalorder %s284, 1
      %s286 = scalar_select %p285, %s284, 1
      %s287 = smul.addr %s286, 8
      %s288 = scalar_lea.vmem %s0, %s287
      %s289 = smul.u32 %s20, 2
      %s290 = ssub.s32 0, %s289
      %s291 = smul.u32 %s19, %s290
      %s292 = sadd.s32 %s20, %s291
      %s293 = smul.u32 2, %s292
      %p294 = scmp.lt.s32.totalorder %s19, 1
      %s295 = scalar_select %p294, %s19, 1
      %s296 = smul.addr %s295, 4
      %s297 = smul.addr %s296, 8
      %s298 = scalar_lea.vmem %s1, %s297
      %p299 = scmp.lt.s32.totalorder %s19, 1
      %s300 = scalar_select %p299, %s19, 1
      %s301 = smul.addr %s300, 2
      %s302 = smul.addr %s301, 8
      %s303 = scalar_lea.vmem %s2, %s302
      %p304 = scmp.lt.s32.totalorder %s19, 1
      %s305 = scalar_select %p304, %s19, 1
      %s306 = scalar_lea.vmem %s3, %s305
      %s307 = smul.u32 %s20, 2
      %s308 = ssub.s32 0, %s307
      %s309 = smul.u32 %s19, %s308
      %s310 = sadd.s32 %s20, %s309
      %s311 = smul.u32 2, %s310
      %p312 = scmp.lt.s32.totalorder %s19, 1
      %s313 = scalar_select %p312, %s19, 1
      %p314 = scmp.lt.s32.totalorder %s311, 1
      %s315 = scalar_select %p314, %s311, 1
      %s316 = smul.addr %s313, 2
      %s317 = sadd.s32 %s315, %s316
      %s318 = smul.addr %s317, 8
      %s319 = scalar_lea.vmem %s4, %s318
      %s320 = smul.u32 %s20, 2
      %s321 = ssub.s32 0, %s320
      %s322 = smul.u32 %s19, %s321
      %s323 = sadd.s32 %s20, %s322
      %s324 = smul.u32 2, %s323
      %p325 = scmp.eq.s32.totalorder %s20, 0
      // Predicated region
      $region37: #{bcn_forward.7} parent=35 // pred_check
        %p326 = pneg %p325
      $region38: #{bcn_forward.7} parent=35 // pred_check_branch
        %328 = sbr.rel (%p326) target = $region40
      $region39: #{bcn_forward.7} parent=35 // pred_region
        %vm329 = vcmask 123904
        %330 = vst.msk [vmem:[#allocation3] sm:$0x3] %vm329, 0.0
        %331 = vst.msk [vmem:[#allocation4] sm:$0x3] %vm329, 0.0
      $region40: #{bcn_forward.7} parent=35 // pred_fallthru
        _
      %v332 = vld [vmem:[%s288] sm:$0xff]
      %v333 = vld [vmem:[%s288 + $0x8] sm:$0xff]
      %v334 = vld [vmem:[%s298] sm:$0xff]
      %v335 = vld [vmem:[%s298 + $0x8] sm:$0xff]
      %v336 = vld [vmem:[%s298 + $0x10] sm:$0xff]
      %v337 = vld [vmem:[%s298 + $0x18] sm:$0xff]
      %v338 = vld [vmem:[%s306] sm:$0x1]
      %v340 = vlaneseq
      %v341 = vshrl.u32 %v340, 7
      %v342 = vsub.s32 0, %v341
      %v343 = vrot.slane %v338, %v342
      %vm345 = vcmask 261120
      %v347 = vsel %vm345, %v332, 0
      %v350 = vsel %vm345, %v333, 0
      %352 = vmatprep.subr.mxu0 0.0
      %353 = vmatpush1.msra.mxu0 0.0
      %354 = vmatprep.subr.mxu0 0.0
      %355 = vmatpush1.msra.mxu0 0.0
      %356 = vmatprep.subr.mxu0 0.0
      %357 = vmatpush1.msra.mxu0 0.0
      %358 = vmatprep.subr.mxu0 0.0
      %359 = vmatpush1.msra.mxu0 0.0
      %360 = vmatprep.subr.mxu0 0.0
      %361 = vmatpush1.msra.mxu0 0.0
      %362 = vmatprep.subr.mxu0 0.0
      %363 = vmatpush1.msra.mxu0 0.0
      %364 = vmatprep.subr.mxu0 0.0
      %365 = vmatpush1.msra.mxu0 0.0
      %366 = vmatprep.subr.mxu0 0.0
      %367 = vmatpush1.msra.mxu0 0.0
      %368 = vmatprep.subr.mxu0 0.0
      %369 = vmatpush1.msra.mxu0 0.0
      %370 = vmatprep.subr.mxu0 0.0
      %371 = vmatpush1.msra.mxu0 0.0
      %372 = vmatprep.subr.mxu0 0.0
      %373 = vmatpush1.msra.mxu0 0.0
      %374 = vmatprep.subr.mxu0 0.0
      %375 = vmatpush1.msra.mxu0 0.0
      %376 = vmatprep.subr.mxu0 0.0
      %v377 = vand.u32 %v337, 4294901760
      %378 = vmatpush1.msra.mxu0 %v377
      %379 = vmatprep.subr.mxu0 0.0
      %v380 = vand.u32 %v336, 4294901760
      %381 = vmatpush1.msra.mxu0 %v380
      %382 = vmatprep.subr.mxu0 0.0
      %v383 = vand.u32 %v335, 4294901760
      %384 = vmatpush1.msra.mxu0 %v383
      %385 = vmatprep.subr.mxu0 0.0
      %v386 = vand.u32 %v334, 4294901760
      %387 = vmatpush1.msra.mxu0 %v386
      %388 = vmatprep.subr.mxu0 0.0
      %389 = vmatpush2.msra.mxu0 0.0
      %390 = vmatprep.subr.mxu0 0.0
      %391 = vmatpush2.msra.mxu0 0.0
      %392 = vmatprep.subr.mxu0 0.0
      %393 = vmatpush2.msra.mxu0 0.0
      %394 = vmatprep.subr.mxu0 0.0
      %395 = vmatpush2.msra.mxu0 0.0
      %396 = vmatprep.subr.mxu0 0.0
      %397 = vmatpush2.msra.mxu0 0.0
      %398 = vmatprep.subr.mxu0 0.0
      %399 = vmatpush2.msra.mxu0 0.0
      %400 = vmatprep.subr.mxu0 0.0
      %401 = vmatpush2.msra.mxu0 0.0
      %402 = vmatprep.subr.mxu0 0.0
      %403 = vmatpush2.msra.mxu0 0.0
      %404 = vmatprep.subr.mxu0 0.0
      %405 = vmatpush2.msra.mxu0 0.0
      %406 = vmatprep.subr.mxu0 0.0
      %407 = vmatpush2.msra.mxu0 0.0
      %408 = vmatprep.subr.mxu0 0.0
      %409 = vmatpush2.msra.mxu0 0.0
      %410 = vmatprep.subr.mxu0 0.0
      %411 = vmatpush2.msra.mxu0 0.0
      %412 = vmatprep.subr.mxu0 0.0
      %413 = vmatpush2.msra.mxu0 0.0
      %414 = vmatprep.subr.mxu0 0.0
      %415 = vmatpush2.msra.mxu0 0.0
      %416 = vmatprep.subr.mxu0 0.0
      %417 = vmatpush2.msra.mxu0 0.0
      %418 = vmatprep.subr.mxu0 0.0
      %419 = vmatpush2.msra.mxu0 0.0
      %420 = vmatprep.mubr.f32.mxu0 0.0
      %v421 = vand.u32 %v347, 4294901760
      %v422 = vsub.f32 %v347, %v421
      %v423 = vand.u32 %v422, 4294901760
      %v424 = vsub.f32 %v422, %v423
      %v425 = vand.u32 %v424, 4294901760
      %426 = vmatmul.mubr.f32.gmra.mxu0 %v425
      %v427 = vpop.f32.mrf.mxu0
      %v428 = vadd.f32 %v343, %v427
      %v429 = vpop.f32.mrf.mxu0
      %430 = vmatprep.mubr.f32.mxu0 0.0
      %v431 = vand.u32 %v350, 4294901760
      %v432 = vsub.f32 %v350, %v431
      %v433 = vand.u32 %v432, 4294901760
      %v434 = vsub.f32 %v432, %v433
      %v435 = vand.u32 %v434, 4294901760
      %436 = vmatmul.mubr.f32.gmra.mxu0 %v435
      %v437 = vpop.f32.mrf.mxu0
      %v438 = vadd.f32 %v343, %v437
      %v439 = vpop.f32.mrf.mxu0
      %440 = vdwg.mxu0
      %441 = vmatprep.subr.mxu0 0.0
      %442 = vmatpush1.msra.mxu0 0.0
      %443 = vmatprep.subr.mxu0 0.0
      %444 = vmatpush1.msra.mxu0 0.0
      %445 = vmatprep.subr.mxu0 0.0
      %446 = vmatpush1.msra.mxu0 0.0
      %447 = vmatprep.subr.mxu0 0.0
      %448 = vmatpush1.msra.mxu0 0.0
      %449 = vmatprep.subr.mxu0 0.0
      %450 = vmatpush1.msra.mxu0 0.0
      %451 = vmatprep.subr.mxu0 0.0
      %452 = vmatpush1.msra.mxu0 0.0
      %453 = vmatprep.subr.mxu0 0.0
      %454 = vmatpush1.msra.mxu0 0.0
      %455 = vmatprep.subr.mxu0 0.0
      %456 = vmatpush1.msra.mxu0 0.0
      %457 = vmatprep.subr.mxu0 0.0
      %458 = vmatpush1.msra.mxu0 0.0
      %459 = vmatprep.subr.mxu0 0.0
      %460 = vmatpush1.msra.mxu0 0.0
      %461 = vmatprep.subr.mxu0 0.0
      %462 = vmatpush1.msra.mxu0 0.0
      %463 = vmatprep.subr.mxu0 0.0
      %464 = vmatpush1.msra.mxu0 0.0
      %465 = vmatprep.subr.mxu0 0.0
      %v466 = vand.u32 %v337, 4294901760
      %v467 = vsub.f32 %v337, %v466
      %v468 = vand.u32 %v467, 4294901760
      %v469 = vsub.f32 %v467, %v468
      %v470 = vand.u32 %v469, 4294901760
      %471 = vmatpush1.msra.mxu0 %v470
      %472 = vmatprep.subr.mxu0 0.0
      %v473 = vand.u32 %v336, 4294901760
      %v474 = vsub.f32 %v336, %v473
      %v475 = vand.u32 %v474, 4294901760
      %v476 = vsub.f32 %v474, %v475
      %v477 = vand.u32 %v476, 4294901760
      %478 = vmatpush1.msra.mxu0 %v477
      %479 = vmatprep.subr.mxu0 0.0
      %v480 = vand.u32 %v335, 4294901760
      %v481 = vsub.f32 %v335, %v480
      %v482 = vand.u32 %v481, 4294901760
      %v483 = vsub.f32 %v481, %v482
      %v484 = vand.u32 %v483, 4294901760
      %485 = vmatpush1.msra.mxu0 %v484
      %486 = vmatprep.subr.mxu0 0.0
      %v487 = vand.u32 %v334, 4294901760
      %v488 = vsub.f32 %v334, %v487
      %v489 = vand.u32 %v488, 4294901760
      %v490 = vsub.f32 %v488, %v489
      %v491 = vand.u32 %v490, 4294901760
      %492 = vmatpush1.msra.mxu0 %v491
      %493 = vmatprep.subr.mxu0 0.0
      %494 = vmatpush2.msra.mxu0 0.0
      %495 = vmatprep.subr.mxu0 0.0
      %496 = vmatpush2.msra.mxu0 0.0
      %497 = vmatprep.subr.mxu0 0.0
      %498 = vmatpush2.msra.mxu0 0.0
      %499 = vmatprep.subr.mxu0 0.0
      %500 = vmatpush2.msra.mxu0 0.0
      %501 = vmatprep.subr.mxu0 0.0
      %502 = vmatpush2.msra.mxu0 0.0
      %503 = vmatprep.subr.mxu0 0.0
      %504 = vmatpush2.msra.mxu0 0.0
      %505 = vmatprep.subr.mxu0 0.0
      %506 = vmatpush2.msra.mxu0 0.0
      %507 = vmatprep.subr.mxu0 0.0
      %508 = vmatpush2.msra.mxu0 0.0
      %509 = vmatprep.subr.mxu0 0.0
      %510 = vmatpush2.msra.mxu0 0.0
      %511 = vmatprep.subr.mxu0 0.0
      %512 = vmatpush2.msra.mxu0 0.0
      %513 = vmatprep.subr.mxu0 0.0
      %514 = vmatpush2.msra.mxu0 0.0
      %515 = vmatprep.subr.mxu0 0.0
      %516 = vmatpush2.msra.mxu0 0.0
      %517 = vmatprep.subr.mxu0 0.0
      %518 = vmatpush2.msra.mxu0 0.0
      %519 = vmatprep.subr.mxu0 0.0
      %520 = vmatpush2.msra.mxu0 0.0
      %521 = vmatprep.subr.mxu0 0.0
      %522 = vmatpush2.msra.mxu0 0.0
      %523 = vmatprep.subr.mxu0 0.0
      %524 = vmatpush2.msra.mxu0 0.0
      %525 = vmatprep.mubr.f32.mxu0 0.0
      %v526 = vand.u32 %v347, 4294901760
      %527 = vmatmul.mubr.f32.gmra.mxu0 %v526
      %v528 = vpop.f32.mrf.mxu0
      %v529 = vadd.f32 %v428, %v528
      %v530 = vpop.f32.mrf.mxu0
      %531 = vmatprep.mubr.f32.mxu0 0.0
      %v532 = vand.u32 %v350, 4294901760
      %533 = vmatmul.mubr.f32.gmra.mxu0 %v532
      %v534 = vpop.f32.mrf.mxu0
      %v535 = vadd.f32 %v438, %v534
      %v536 = vpop.f32.mrf.mxu0
      %537 = vdwg.mxu0
      %538 = vmatprep.subr.mxu0 0.0
      %539 = vmatpush1.msra.mxu0 0.0
      %540 = vmatprep.subr.mxu0 0.0
      %541 = vmatpush1.msra.mxu0 0.0
      %542 = vmatprep.subr.mxu0 0.0
      %543 = vmatpush1.msra.mxu0 0.0
      %544 = vmatprep.subr.mxu0 0.0
      %545 = vmatpush1.msra.mxu0 0.0
      %546 = vmatprep.subr.mxu0 0.0
      %547 = vmatpush1.msra.mxu0 0.0
      %548 = vmatprep.subr.mxu0 0.0
      %549 = vmatpush1.msra.mxu0 0.0
      %550 = vmatprep.subr.mxu0 0.0
      %551 = vmatpush1.msra.mxu0 0.0
      %552 = vmatprep.subr.mxu0 0.0
      %553 = vmatpush1.msra.mxu0 0.0
      %554 = vmatprep.subr.mxu0 0.0
      %555 = vmatpush1.msra.mxu0 0.0
      %556 = vmatprep.subr.mxu0 0.0
      %557 = vmatpush1.msra.mxu0 0.0
      %558 = vmatprep.subr.mxu0 0.0
      %559 = vmatpush1.msra.mxu0 0.0
      %560 = vmatprep.subr.mxu0 0.0
      %561 = vmatpush1.msra.mxu0 0.0
      %562 = vmatprep.subr.mxu0 0.0
      %v563 = vand.u32 %v337, 4294901760
      %v564 = vsub.f32 %v337, %v563
      %565 = vmatpush1.msra.mxu0 %v564
      %566 = vmatprep.subr.mxu0 0.0
      %v567 = vand.u32 %v336, 4294901760
      %v568 = vsub.f32 %v336, %v567
      %569 = vmatpush1.msra.mxu0 %v568
      %570 = vmatprep.subr.mxu0 0.0
      %v571 = vand.u32 %v335, 4294901760
      %v572 = vsub.f32 %v335, %v571
      %573 = vmatpush1.msra.mxu0 %v572
      %574 = vmatprep.subr.mxu0 0.0
      %v575 = vand.u32 %v334, 4294901760
      %v576 = vsub.f32 %v334, %v575
      %577 = vmatpush1.msra.mxu0 %v576
      %578 = vmatprep.subr.mxu0 0.0
      %579 = vmatpush2.msra.mxu0 0.0
      %580 = vmatprep.subr.mxu0 0.0
      %581 = vmatpush2.msra.mxu0 0.0
      %582 = vmatprep.subr.mxu0 0.0
      %583 = vmatpush2.msra.mxu0 0.0
      %584 = vmatprep.subr.mxu0 0.0
      %585 = vmatpush2.msra.mxu0 0.0
      %586 = vmatprep.subr.mxu0 0.0
      %587 = vmatpush2.msra.mxu0 0.0
      %588 = vmatprep.subr.mxu0 0.0
      %589 = vmatpush2.msra.mxu0 0.0
      %590 = vmatprep.subr.mxu0 0.0
      %591 = vmatpush2.msra.mxu0 0.0
      %592 = vmatprep.subr.mxu0 0.0
      %593 = vmatpush2.msra.mxu0 0.0
      %594 = vmatprep.subr.mxu0 0.0
      %595 = vmatpush2.msra.mxu0 0.0
      %596 = vmatprep.subr.mxu0 0.0
      %597 = vmatpush2.msra.mxu0 0.0
      %598 = vmatprep.subr.mxu0 0.0
      %599 = vmatpush2.msra.mxu0 0.0
      %600 = vmatprep.subr.mxu0 0.0
      %601 = vmatpush2.msra.mxu0 0.0
      %602 = vmatprep.subr.mxu0 0.0
      %603 = vmatpush2.msra.mxu0 0.0
      %604 = vmatprep.subr.mxu0 0.0
      %605 = vmatpush2.msra.mxu0 0.0
      %606 = vmatprep.subr.mxu0 0.0
      %607 = vmatpush2.msra.mxu0 0.0
      %608 = vmatprep.subr.mxu0 0.0
      %609 = vmatpush2.msra.mxu0 0.0
      %610 = vmatprep.mubr.f32.mxu0 0.0
      %v611 = vand.u32 %v347, 4294901760
      %v612 = vsub.f32 %v347, %v611
      %613 = vmatmul.mubr.f32.gmra.mxu0 %v612
      %v614 = vpop.f32.mrf.mxu0
      %v615 = vadd.f32 %v529, %v614
      %v616 = vpop.f32.mrf.mxu0
      %617 = vmatprep.mubr.f32.mxu0 0.0
      %v618 = vand.u32 %v350, 4294901760
      %v619 = vsub.f32 %v350, %v618
      %620 = vmatmul.mubr.f32.gmra.mxu0 %v619
      %v621 = vpop.f32.mrf.mxu0
      %v622 = vadd.f32 %v535, %v621
      %v623 = vpop.f32.mrf.mxu0
      %624 = vdwg.mxu0
      %625 = vmatprep.subr.mxu0 0.0
      %626 = vmatpush1.msra.mxu0 0.0
      %627 = vmatprep.subr.mxu0 0.0
      %628 = vmatpush1.msra.mxu0 0.0
      %629 = vmatprep.subr.mxu0 0.0
      %630 = vmatpush1.msra.mxu0 0.0
      %631 = vmatprep.subr.mxu0 0.0
      %632 = vmatpush1.msra.mxu0 0.0
      %633 = vmatprep.subr.mxu0 0.0
      %634 = vmatpush1.msra.mxu0 0.0
      %635 = vmatprep.subr.mxu0 0.0
      %636 = vmatpush1.msra.mxu0 0.0
      %637 = vmatprep.subr.mxu0 0.0
      %638 = vmatpush1.msra.mxu0 0.0
      %639 = vmatprep.subr.mxu0 0.0
      %640 = vmatpush1.msra.mxu0 0.0
      %641 = vmatprep.subr.mxu0 0.0
      %642 = vmatpush1.msra.mxu0 0.0
      %643 = vmatprep.subr.mxu0 0.0
      %644 = vmatpush1.msra.mxu0 0.0
      %645 = vmatprep.subr.mxu0 0.0
      %646 = vmatpush1.msra.mxu0 0.0
      %647 = vmatprep.subr.mxu0 0.0
      %648 = vmatpush1.msra.mxu0 0.0
      %649 = vmatprep.subr.mxu0 0.0
      %v650 = vand.u32 %v337, 4294901760
      %651 = vmatpush1.msra.mxu0 %v650
      %652 = vmatprep.subr.mxu0 0.0
      %v653 = vand.u32 %v336, 4294901760
      %654 = vmatpush1.msra.mxu0 %v653
      %655 = vmatprep.subr.mxu0 0.0
      %v656 = vand.u32 %v335, 4294901760
      %657 = vmatpush1.msra.mxu0 %v656
      %658 = vmatprep.subr.mxu0 0.0
      %v659 = vand.u32 %v334, 4294901760
      %660 = vmatpush1.msra.mxu0 %v659
      %661 = vmatprep.subr.mxu0 0.0
      %662 = vmatpush2.msra.mxu0 0.0
      %663 = vmatprep.subr.mxu0 0.0
      %664 = vmatpush2.msra.mxu0 0.0
      %665 = vmatprep.subr.mxu0 0.0
      %666 = vmatpush2.msra.mxu0 0.0
      %667 = vmatprep.subr.mxu0 0.0
      %668 = vmatpush2.msra.mxu0 0.0
      %669 = vmatprep.subr.mxu0 0.0
      %670 = vmatpush2.msra.mxu0 0.0
      %671 = vmatprep.subr.mxu0 0.0
      %672 = vmatpush2.msra.mxu0 0.0
      %673 = vmatprep.subr.mxu0 0.0
      %674 = vmatpush2.msra.mxu0 0.0
      %675 = vmatprep.subr.mxu0 0.0
      %676 = vmatpush2.msra.mxu0 0.0
      %677 = vmatprep.subr.mxu0 0.0
      %678 = vmatpush2.msra.mxu0 0.0
      %679 = vmatprep.subr.mxu0 0.0
      %680 = vmatpush2.msra.mxu0 0.0
      %681 = vmatprep.subr.mxu0 0.0
      %682 = vmatpush2.msra.mxu0 0.0
      %683 = vmatprep.subr.mxu0 0.0
      %684 = vmatpush2.msra.mxu0 0.0
      %685 = vmatprep.subr.mxu0 0.0
      %686 = vmatpush2.msra.mxu0 0.0
      %687 = vmatprep.subr.mxu0 0.0
      %688 = vmatpush2.msra.mxu0 0.0
      %689 = vmatprep.subr.mxu0 0.0
      %690 = vmatpush2.msra.mxu0 0.0
      %691 = vmatprep.subr.mxu0 0.0
      %692 = vmatpush2.msra.mxu0 0.0
      %693 = vmatprep.mubr.f32.mxu0 0.0
      %v694 = vand.u32 %v347, 4294901760
      %v695 = vsub.f32 %v347, %v694
      %v696 = vand.u32 %v695, 4294901760
      %697 = vmatmul.mubr.f32.gmra.mxu0 %v696
      %v698 = vpop.f32.mrf.mxu0
      %v699 = vadd.f32 %v615, %v698
      %v700 = vpop.f32.mrf.mxu0
      %701 = vmatprep.mubr.f32.mxu0 0.0
      %v702 = vand.u32 %v350, 4294901760
      %v703 = vsub.f32 %v350, %v702
      %v704 = vand.u32 %v703, 4294901760
      %705 = vmatmul.mubr.f32.gmra.mxu0 %v704
      %v706 = vpop.f32.mrf.mxu0
      %v707 = vadd.f32 %v622, %v706
      %v708 = vpop.f32.mrf.mxu0
      %709 = vdwg.mxu0
      %710 = vmatprep.subr.mxu0 0.0
      %711 = vmatpush1.msra.mxu0 0.0
      %712 = vmatprep.subr.mxu0 0.0
      %713 = vmatpush1.msra.mxu0 0.0
      %714 = vmatprep.subr.mxu0 0.0
      %715 = vmatpush1.msra.mxu0 0.0
      %716 = vmatprep.subr.mxu0 0.0
      %717 = vmatpush1.msra.mxu0 0.0
      %718 = vmatprep.subr.mxu0 0.0
      %719 = vmatpush1.msra.mxu0 0.0
      %720 = vmatprep.subr.mxu0 0.0
      %721 = vmatpush1.msra.mxu0 0.0
      %722 = vmatprep.subr.mxu0 0.0
      %723 = vmatpush1.msra.mxu0 0.0
      %724 = vmatprep.subr.mxu0 0.0
      %725 = vmatpush1.msra.mxu0 0.0
      %726 = vmatprep.subr.mxu0 0.0
      %727 = vmatpush1.msra.mxu0 0.0
      %728 = vmatprep.subr.mxu0 0.0
      %729 = vmatpush1.msra.mxu0 0.0
      %730 = vmatprep.subr.mxu0 0.0
      %731 = vmatpush1.msra.mxu0 0.0
      %732 = vmatprep.subr.mxu0 0.0
      %733 = vmatpush1.msra.mxu0 0.0
      %734 = vmatprep.subr.mxu0 0.0
      %v735 = vand.u32 %v337, 4294901760
      %v736 = vsub.f32 %v337, %v735
      %v737 = vand.u32 %v736, 4294901760
      %738 = vmatpush1.msra.mxu0 %v737
      %739 = vmatprep.subr.mxu0 0.0
      %v740 = vand.u32 %v336, 4294901760
      %v741 = vsub.f32 %v336, %v740
      %v742 = vand.u32 %v741, 4294901760
      %743 = vmatpush1.msra.mxu0 %v742
      %744 = vmatprep.subr.mxu0 0.0
      %v745 = vand.u32 %v335, 4294901760
      %v746 = vsub.f32 %v335, %v745
      %v747 = vand.u32 %v746, 4294901760
      %748 = vmatpush1.msra.mxu0 %v747
      %749 = vmatprep.subr.mxu0 0.0
      %v750 = vand.u32 %v334, 4294901760
      %v751 = vsub.f32 %v334, %v750
      %v752 = vand.u32 %v751, 4294901760
      %753 = vmatpush1.msra.mxu0 %v752
      %754 = vmatprep.subr.mxu0 0.0
      %755 = vmatpush2.msra.mxu0 0.0
      %756 = vmatprep.subr.mxu0 0.0
      %757 = vmatpush2.msra.mxu0 0.0
      %758 = vmatprep.subr.mxu0 0.0
      %759 = vmatpush2.msra.mxu0 0.0
      %760 = vmatprep.subr.mxu0 0.0
      %761 = vmatpush2.msra.mxu0 0.0
      %762 = vmatprep.subr.mxu0 0.0
      %763 = vmatpush2.msra.mxu0 0.0
      %764 = vmatprep.subr.mxu0 0.0
      %765 = vmatpush2.msra.mxu0 0.0
      %766 = vmatprep.subr.mxu0 0.0
      %767 = vmatpush2.msra.mxu0 0.0
      %768 = vmatprep.subr.mxu0 0.0
      %769 = vmatpush2.msra.mxu0 0.0
      %770 = vmatprep.subr.mxu0 0.0
      %771 = vmatpush2.msra.mxu0 0.0
      %772 = vmatprep.subr.mxu0 0.0
      %773 = vmatpush2.msra.mxu0 0.0
      %774 = vmatprep.subr.mxu0 0.0
      %775 = vmatpush2.msra.mxu0 0.0
      %776 = vmatprep.subr.mxu0 0.0
      %777 = vmatpush2.msra.mxu0 0.0
      %778 = vmatprep.subr.mxu0 0.0
      %779 = vmatpush2.msra.mxu0 0.0
      %780 = vmatprep.subr.mxu0 0.0
      %781 = vmatpush2.msra.mxu0 0.0
      %782 = vmatprep.subr.mxu0 0.0
      %783 = vmatpush2.msra.mxu0 0.0
      %784 = vmatprep.subr.mxu0 0.0
      %785 = vmatpush2.msra.mxu0 0.0
      %786 = vmatprep.mubr.f32.mxu0 0.0
      %v787 = vand.u32 %v347, 4294901760
      %788 = vmatmul.mubr.f32.gmra.mxu0 %v787
      %v789 = vpop.f32.mrf.mxu0
      %v790 = vadd.f32 %v699, %v789
      %v791 = vpop.f32.mrf.mxu0
      %792 = vmatprep.mubr.f32.mxu0 0.0
      %v793 = vand.u32 %v350, 4294901760
      %794 = vmatmul.mubr.f32.gmra.mxu0 %v793
      %v795 = vpop.f32.mrf.mxu0
      %v796 = vadd.f32 %v707, %v795
      %v797 = vpop.f32.mrf.mxu0
      %798 = vdwg.mxu0
      %799 = vmatprep.subr.mxu0 0.0
      %800 = vmatpush1.msra.mxu0 0.0
      %801 = vmatprep.subr.mxu0 0.0
      %802 = vmatpush1.msra.mxu0 0.0
      %803 = vmatprep.subr.mxu0 0.0
      %804 = vmatpush1.msra.mxu0 0.0
      %805 = vmatprep.subr.mxu0 0.0
      %806 = vmatpush1.msra.mxu0 0.0
      %807 = vmatprep.subr.mxu0 0.0
      %808 = vmatpush1.msra.mxu0 0.0
      %809 = vmatprep.subr.mxu0 0.0
      %810 = vmatpush1.msra.mxu0 0.0
      %811 = vmatprep.subr.mxu0 0.0
      %812 = vmatpush1.msra.mxu0 0.0
      %813 = vmatprep.subr.mxu0 0.0
      %814 = vmatpush1.msra.mxu0 0.0
      %815 = vmatprep.subr.mxu0 0.0
      %816 = vmatpush1.msra.mxu0 0.0
      %817 = vmatprep.subr.mxu0 0.0
      %818 = vmatpush1.msra.mxu0 0.0
      %819 = vmatprep.subr.mxu0 0.0
      %820 = vmatpush1.msra.mxu0 0.0
      %821 = vmatprep.subr.mxu0 0.0
      %822 = vmatpush1.msra.mxu0 0.0
      %823 = vmatprep.subr.mxu0 0.0
      %v824 = vand.u32 %v337, 4294901760
      %825 = vmatpush1.msra.mxu0 %v824
      %826 = vmatprep.subr.mxu0 0.0
      %v827 = vand.u32 %v336, 4294901760
      %828 = vmatpush1.msra.mxu0 %v827
      %829 = vmatprep.subr.mxu0 0.0
      %v830 = vand.u32 %v335, 4294901760
      %831 = vmatpush1.msra.mxu0 %v830
      %832 = vmatprep.subr.mxu0 0.0
      %v833 = vand.u32 %v334, 4294901760
      %834 = vmatpush1.msra.mxu0 %v833
      %835 = vmatprep.subr.mxu0 0.0
      %836 = vmatpush2.msra.mxu0 0.0
      %837 = vmatprep.subr.mxu0 0.0
      %838 = vmatpush2.msra.mxu0 0.0
      %839 = vmatprep.subr.mxu0 0.0
      %840 = vmatpush2.msra.mxu0 0.0
      %841 = vmatprep.subr.mxu0 0.0
      %842 = vmatpush2.msra.mxu0 0.0
      %843 = vmatprep.subr.mxu0 0.0
      %844 = vmatpush2.msra.mxu0 0.0
      %845 = vmatprep.subr.mxu0 0.0
      %846 = vmatpush2.msra.mxu0 0.0
      %847 = vmatprep.subr.mxu0 0.0
      %848 = vmatpush2.msra.mxu0 0.0
      %849 = vmatprep.subr.mxu0 0.0
      %850 = vmatpush2.msra.mxu0 0.0
      %851 = vmatprep.subr.mxu0 0.0
      %852 = vmatpush2.msra.mxu0 0.0
      %853 = vmatprep.subr.mxu0 0.0
      %854 = vmatpush2.msra.mxu0 0.0
      %855 = vmatprep.subr.mxu0 0.0
      %856 = vmatpush2.msra.mxu0 0.0
      %857 = vmatprep.subr.mxu0 0.0
      %858 = vmatpush2.msra.mxu0 0.0
      %859 = vmatprep.subr.mxu0 0.0
      %860 = vmatpush2.msra.mxu0 0.0
      %861 = vmatprep.subr.mxu0 0.0
      %862 = vmatpush2.msra.mxu0 0.0
      %863 = vmatprep.subr.mxu0 0.0
      %864 = vmatpush2.msra.mxu0 0.0
      %865 = vmatprep.subr.mxu0 0.0
      %866 = vmatpush2.msra.mxu0 0.0
      %867 = vmatprep.mubr.f32.mxu0 0.0
      %v868 = vand.u32 %v347, 4294901760
      %869 = vmatmul.mubr.f32.gmra.mxu0 %v868
      %v870 = vpop.f32.mrf.mxu0
      %v871 = vadd.f32 %v790, %v870
      %v872 = vpop.f32.mrf.mxu0
      %873 = vmatprep.mubr.f32.mxu0 0.0
      %v874 = vand.u32 %v350, 4294901760
      %875 = vmatmul.mubr.f32.gmra.mxu0 %v874
      %v876 = vpop.f32.mrf.mxu0
      %v877 = vadd.f32 %v796, %v876
      %v878 = vpop.f32.mrf.mxu0
      %879 = vdwg.mxu0
      %vm880 = vcmask 523264
      %881 = vst.msk [vmem:[#allocation2] sm:$0xff] %vm880, %v871
      %882 = vst.msk [vmem:[#allocation2 + $0x8] sm:$0xff] %vm880, %v877
      loop: start=0, step=1, limit=8
      $region41: #{bcn_forward.7} parent=35 // loop_pre_header
        _
      $region42: #{bcn_forward.7} parent=35 // loop_header
        %s884 = sphi 0, %s888
        %p885 = scmp.ge.s32.totalorder %s884, 8
      $region43: #{bcn_forward.7} parent=35 // loop_header_branch
        %887 = sbr.rel (%p885) target = $region47
      $region44: #{bcn_forward.7} parent=35 // loop_body
        %s889 = smul.u32 %s884, 2
        %s890 = ssub.s32 7, %s889
        %s891 = smul.u32 %s19, %s890
        %s892 = sadd.s32 %s884, %s891
        %s893 = smul.u32 %s892, 2
        %s894 = scalar_lea.vmem [#allocation2], %s893
        %v895 = vld [vmem:[%s894] sm:$0x3]
        %v896 = vld [vmem:[#allocation3] sm:$0x3]
        %v897 = vld [vmem:[%s303] sm:$0xff]
        %v898 = vld [vmem:[%s303 + $0x8] sm:$0xff]
        %vm899 = vcmask 130048
        %v901 = vsel %vm899, %v896, 0
        %903 = vmatprep.subr.mxu0 0.0
        %904 = vmatpush1.msra.mxu0 0.0
        %905 = vmatprep.subr.mxu0 0.0
        %906 = vmatpush1.msra.mxu0 0.0
        %907 = vmatprep.subr.mxu0 0.0
        %908 = vmatpush1.msra.mxu0 0.0
        %909 = vmatprep.subr.mxu0 0.0
        %910 = vmatpush1.msra.mxu0 0.0
        %911 = vmatprep.subr.mxu0 0.0
        %912 = vmatpush1.msra.mxu0 0.0
        %913 = vmatprep.subr.mxu0 0.0
        %914 = vmatpush1.msra.mxu0 0.0
        %915 = vmatprep.subr.mxu0 0.0
        %916 = vmatpush1.msra.mxu0 0.0
        %917 = vmatprep.subr.mxu0 0.0
        %918 = vmatpush1.msra.mxu0 0.0
        %919 = vmatprep.subr.mxu0 0.0
        %920 = vmatpush1.msra.mxu0 0.0
        %921 = vmatprep.subr.mxu0 0.0
        %922 = vmatpush1.msra.mxu0 0.0
        %923 = vmatprep.subr.mxu0 0.0
        %924 = vmatpush1.msra.mxu0 0.0
        %925 = vmatprep.subr.mxu0 0.0
        %926 = vmatpush1.msra.mxu0 0.0
        %927 = vmatprep.subr.mxu0 0.0
        %928 = vmatpush1.msra.mxu0 0.0
        %929 = vmatprep.subr.mxu0 0.0
        %930 = vmatpush1.msra.mxu0 0.0
        %931 = vmatprep.subr.mxu0 0.0
        %v932 = vand.u32 %v898, 4294901760
        %933 = vmatpush1.msra.mxu0 %v932
        %934 = vmatprep.subr.mxu0 0.0
        %v935 = vand.u32 %v897, 4294901760
        %936 = vmatpush1.msra.mxu0 %v935
        %937 = vmatprep.subr.mxu0 0.0
        %938 = vmatpush2.msra.mxu0 0.0
        %939 = vmatprep.subr.mxu0 0.0
        %940 = vmatpush2.msra.mxu0 0.0
        %941 = vmatprep.subr.mxu0 0.0
        %942 = vmatpush2.msra.mxu0 0.0
        %943 = vmatprep.subr.mxu0 0.0
        %944 = vmatpush2.msra.mxu0 0.0
        %945 = vmatprep.subr.mxu0 0.0
        %946 = vmatpush2.msra.mxu0 0.0
        %947 = vmatprep.subr.mxu0 0.0
        %948 = vmatpush2.msra.mxu0 0.0
        %949 = vmatprep.subr.mxu0 0.0
        %950 = vmatpush2.msra.mxu0 0.0
        %951 = vmatprep.subr.mxu0 0.0
        %952 = vmatpush2.msra.mxu0 0.0
        %953 = vmatprep.subr.mxu0 0.0
        %954 = vmatpush2.msra.mxu0 0.0
        %955 = vmatprep.subr.mxu0 0.0
        %956 = vmatpush2.msra.mxu0 0.0
        %957 = vmatprep.subr.mxu0 0.0
        %958 = vmatpush2.msra.mxu0 0.0
        %959 = vmatprep.subr.mxu0 0.0
        %960 = vmatpush2.msra.mxu0 0.0
        %961 = vmatprep.subr.mxu0 0.0
        %962 = vmatpush2.msra.mxu0 0.0
        %963 = vmatprep.subr.mxu0 0.0
        %964 = vmatpush2.msra.mxu0 0.0
        %965 = vmatprep.subr.mxu0 0.0
        %966 = vmatpush2.msra.mxu0 0.0
        %967 = vmatprep.subr.mxu0 0.0
        %968 = vmatpush2.msra.mxu0 0.0
        %969 = vmatprep.mubr.f32.mxu0 0.0
        %v970 = vand.u32 %v901, 4294901760
        %v971 = vsub.f32 %v901, %v970
        %v972 = vand.u32 %v971, 4294901760
        %v973 = vsub.f32 %v971, %v972
        %v974 = vand.u32 %v973, 4294901760
        %975 = vmatmul.mubr.f32.gmra.mxu0 %v974
        %v976 = vpop.f32.mrf.mxu0
        %v977 = vadd.f32 0.0, %v976
        %v978 = vpop.f32.mrf.mxu0
        %979 = vdwg.mxu0
        %980 = vmatprep.subr.mxu0 0.0
        %981 = vmatpush1.msra.mxu0 0.0
        %982 = vmatprep.subr.mxu0 0.0
        %983 = vmatpush1.msra.mxu0 0.0
        %984 = vmatprep.subr.mxu0 0.0
        %985 = vmatpush1.msra.mxu0 0.0
        %986 = vmatprep.subr.mxu0 0.0
        %987 = vmatpush1.msra.mxu0 0.0
        %988 = vmatprep.subr.mxu0 0.0
        %989 = vmatpush1.msra.mxu0 0.0
        %990 = vmatprep.subr.mxu0 0.0
        %991 = vmatpush1.msra.mxu0 0.0
        %992 = vmatprep.subr.mxu0 0.0
        %993 = vmatpush1.msra.mxu0 0.0
        %994 = vmatprep.subr.mxu0 0.0
        %995 = vmatpush1.msra.mxu0 0.0
        %996 = vmatprep.subr.mxu0 0.0
        %997 = vmatpush1.msra.mxu0 0.0
        %998 = vmatprep.subr.mxu0 0.0
        %999 = vmatpush1.msra.mxu0 0.0
        %1000 = vmatprep.subr.mxu0 0.0
        %1001 = vmatpush1.msra.mxu0 0.0
        %1002 = vmatprep.subr.mxu0 0.0
        %1003 = vmatpush1.msra.mxu0 0.0
        %1004 = vmatprep.subr.mxu0 0.0
        %1005 = vmatpush1.msra.mxu0 0.0
        %1006 = vmatprep.subr.mxu0 0.0
        %1007 = vmatpush1.msra.mxu0 0.0
        %1008 = vmatprep.subr.mxu0 0.0
        %v1009 = vand.u32 %v898, 4294901760
        %v1010 = vsub.f32 %v898, %v1009
        %v1011 = vand.u32 %v1010, 4294901760
        %v1012 = vsub.f32 %v1010, %v1011
        %v1013 = vand.u32 %v1012, 4294901760
        %1014 = vmatpush1.msra.mxu0 %v1013
        %1015 = vmatprep.subr.mxu0 0.0
        %v1016 = vand.u32 %v897, 4294901760
        %v1017 = vsub.f32 %v897, %v1016
        %v1018 = vand.u32 %v1017, 4294901760
        %v1019 = vsub.f32 %v1017, %v1018
        %v1020 = vand.u32 %v1019, 4294901760
        %1021 = vmatpush1.msra.mxu0 %v1020
        %1022 = vmatprep.subr.mxu0 0.0
        %1023 = vmatpush2.msra.mxu0 0.0
        %1024 = vmatprep.subr.mxu0 0.0
        %1025 = vmatpush2.msra.mxu0 0.0
        %1026 = vmatprep.subr.mxu0 0.0
        %1027 = vmatpush2.msra.mxu0 0.0
        %1028 = vmatprep.subr.mxu0 0.0
        %1029 = vmatpush2.msra.mxu0 0.0
        %1030 = vmatprep.subr.mxu0 0.0
        %1031 = vmatpush2.msra.mxu0 0.0
        %1032 = vmatprep.subr.mxu0 0.0
        %1033 = vmatpush2.msra.mxu0 0.0
        %1034 = vmatprep.subr.mxu0 0.0
        %1035 = vmatpush2.msra.mxu0 0.0
        %1036 = vmatprep.subr.mxu0 0.0
        %1037 = vmatpush2.msra.mxu0 0.0
        %1038 = vmatprep.subr.mxu0 0.0
        %1039 = vmatpush2.msra.mxu0 0.0
        %1040 = vmatprep.subr.mxu0 0.0
        %1041 = vmatpush2.msra.mxu0 0.0
        %1042 = vmatprep.subr.mxu0 0.0
        %1043 = vmatpush2.msra.mxu0 0.0
        %1044 = vmatprep.subr.mxu0 0.0
        %1045 = vmatpush2.msra.mxu0 0.0
        %1046 = vmatprep.subr.mxu0 0.0
        %1047 = vmatpush2.msra.mxu0 0.0
        %1048 = vmatprep.subr.mxu0 0.0
        %1049 = vmatpush2.msra.mxu0 0.0
        %1050 = vmatprep.subr.mxu0 0.0
        %1051 = vmatpush2.msra.mxu0 0.0
        %1052 = vmatprep.subr.mxu0 0.0
        %1053 = vmatpush2.msra.mxu0 0.0
        %1054 = vmatprep.mubr.f32.mxu0 0.0
        %v1055 = vand.u32 %v901, 4294901760
        %1056 = vmatmul.mubr.f32.gmra.mxu0 %v1055
        %v1057 = vpop.f32.mrf.mxu0
        %v1058 = vadd.f32 %v977, %v1057
        %v1059 = vpop.f32.mrf.mxu0
        %1060 = vdwg.mxu0
        %1061 = vmatprep.subr.mxu0 0.0
        %1062 = vmatpush1.msra.mxu0 0.0
        %1063 = vmatprep.subr.mxu0 0.0
        %1064 = vmatpush1.msra.mxu0 0.0
        %1065 = vmatprep.subr.mxu0 0.0
        %1066 = vmatpush1.msra.mxu0 0.0
        %1067 = vmatprep.subr.mxu0 0.0
        %1068 = vmatpush1.msra.mxu0 0.0
        %1069 = vmatprep.subr.mxu0 0.0
        %1070 = vmatpush1.msra.mxu0 0.0
        %1071 = vmatprep.subr.mxu0 0.0
        %1072 = vmatpush1.msra.mxu0 0.0
        %1073 = vmatprep.subr.mxu0 0.0
        %1074 = vmatpush1.msra.mxu0 0.0
        %1075 = vmatprep.subr.mxu0 0.0
        %1076 = vmatpush1.msra.mxu0 0.0
        %1077 = vmatprep.subr.mxu0 0.0
        %1078 = vmatpush1.msra.mxu0 0.0
        %1079 = vmatprep.subr.mxu0 0.0
        %1080 = vmatpush1.msra.mxu0 0.0
        %1081 = vmatprep.subr.mxu0 0.0
        %1082 = vmatpush1.msra.mxu0 0.0
        %1083 = vmatprep.subr.mxu0 0.0
        %1084 = vmatpush1.msra.mxu0 0.0
        %1085 = vmatprep.subr.mxu0 0.0
        %1086 = vmatpush1.msra.mxu0 0.0
        %1087 = vmatprep.subr.mxu0 0.0
        %1088 = vmatpush1.msra.mxu0 0.0
        %1089 = vmatprep.subr.mxu0 0.0
        %v1090 = vand.u32 %v898, 4294901760
        %v1091 = vsub.f32 %v898, %v1090
        %1092 = vmatpush1.msra.mxu0 %v1091
        %1093 = vmatprep.subr.mxu0 0.0
        %v1094 = vand.u32 %v897, 4294901760
        %v1095 = vsub.f32 %v897, %v1094
        %1096 = vmatpush1.msra.mxu0 %v1095
        %1097 = vmatprep.subr.mxu0 0.0
        %1098 = vmatpush2.msra.mxu0 0.0
        %1099 = vmatprep.subr.mxu0 0.0
        %1100 = vmatpush2.msra.mxu0 0.0
        %1101 = vmatprep.subr.mxu0 0.0
        %1102 = vmatpush2.msra.mxu0 0.0
        %1103 = vmatprep.subr.mxu0 0.0
        %1104 = vmatpush2.msra.mxu0 0.0
        %1105 = vmatprep.subr.mxu0 0.0
        %1106 = vmatpush2.msra.mxu0 0.0
        %1107 = vmatprep.subr.mxu0 0.0
        %1108 = vmatpush2.msra.mxu0 0.0
        %1109 = vmatprep.subr.mxu0 0.0
        %1110 = vmatpush2.msra.mxu0 0.0
        %1111 = vmatprep.subr.mxu0 0.0
        %1112 = vmatpush2.msra.mxu0 0.0
        %1113 = vmatprep.subr.mxu0 0.0
        %1114 = vmatpush2.msra.mxu0 0.0
        %1115 = vmatprep.subr.mxu0 0.0
        %1116 = vmatpush2.msra.mxu0 0.0
        %1117 = vmatprep.subr.mxu0 0.0
        %1118 = vmatpush2.msra.mxu0 0.0
        %1119 = vmatprep.subr.mxu0 0.0
        %1120 = vmatpush2.msra.mxu0 0.0
        %1121 = vmatprep.subr.mxu0 0.0
        %1122 = vmatpush2.msra.mxu0 0.0
        %1123 = vmatprep.subr.mxu0 0.0
        %1124 = vmatpush2.msra.mxu0 0.0
        %1125 = vmatprep.subr.mxu0 0.0
        %1126 = vmatpush2.msra.mxu0 0.0
        %1127 = vmatprep.subr.mxu0 0.0
        %1128 = vmatpush2.msra.mxu0 0.0
        %1129 = vmatprep.mubr.f32.mxu0 0.0
        %v1130 = vand.u32 %v901, 4294901760
        %v1131 = vsub.f32 %v901, %v1130
        %1132 = vmatmul.mubr.f32.gmra.mxu0 %v1131
        %v1133 = vpop.f32.mrf.mxu0
        %v1134 = vadd.f32 %v1058, %v1133
        %v1135 = vpop.f32.mrf.mxu0
        %1136 = vdwg.mxu0
        %1137 = vmatprep.subr.mxu0 0.0
        %1138 = vmatpush1.msra.mxu0 0.0
        %1139 = vmatprep.subr.mxu0 0.0
        %1140 = vmatpush1.msra.mxu0 0.0
        %1141 = vmatprep.subr.mxu0 0.0
        %1142 = vmatpush1.msra.mxu0 0.0
        %1143 = vmatprep.subr.mxu0 0.0
        %1144 = vmatpush1.msra.mxu0 0.0
        %1145 = vmatprep.subr.mxu0 0.0
        %1146 = vmatpush1.msra.mxu0 0.0
        %1147 = vmatprep.subr.mxu0 0.0
        %1148 = vmatpush1.msra.mxu0 0.0
        %1149 = vmatprep.subr.mxu0 0.0
        %1150 = vmatpush1.msra.mxu0 0.0
        %1151 = vmatprep.subr.mxu0 0.0
        %1152 = vmatpush1.msra.mxu0 0.0
        %1153 = vmatprep.subr.mxu0 0.0
        %1154 = vmatpush1.msra.mxu0 0.0
        %1155 = vmatprep.subr.mxu0 0.0
        %1156 = vmatpush1.msra.mxu0 0.0
        %1157 = vmatprep.subr.mxu0 0.0
        %1158 = vmatpush1.msra.mxu0 0.0
        %1159 = vmatprep.subr.mxu0 0.0
        %1160 = vmatpush1.msra.mxu0 0.0
        %1161 = vmatprep.subr.mxu0 0.0
        %1162 = vmatpush1.msra.mxu0 0.0
        %1163 = vmatprep.subr.mxu0 0.0
        %1164 = vmatpush1.msra.mxu0 0.0
        %1165 = vmatprep.subr.mxu0 0.0
        %v1166 = vand.u32 %v898, 4294901760
        %1167 = vmatpush1.msra.mxu0 %v1166
        %1168 = vmatprep.subr.mxu0 0.0
        %v1169 = vand.u32 %v897, 4294901760
        %1170 = vmatpush1.msra.mxu0 %v1169
        %1171 = vmatprep.subr.mxu0 0.0
        %1172 = vmatpush2.msra.mxu0 0.0
        %1173 = vmatprep.subr.mxu0 0.0
        %1174 = vmatpush2.msra.mxu0 0.0
        %1175 = vmatprep.subr.mxu0 0.0
        %1176 = vmatpush2.msra.mxu0 0.0
        %1177 = vmatprep.subr.mxu0 0.0
        %1178 = vmatpush2.msra.mxu0 0.0
        %1179 = vmatprep.subr.mxu0 0.0
        %1180 = vmatpush2.msra.mxu0 0.0
        %1181 = vmatprep.subr.mxu0 0.0
        %1182 = vmatpush2.msra.mxu0 0.0
        %1183 = vmatprep.subr.mxu0 0.0
        %1184 = vmatpush2.msra.mxu0 0.0
        %1185 = vmatprep.subr.mxu0 0.0
        %1186 = vmatpush2.msra.mxu0 0.0
        %1187 = vmatprep.subr.mxu0 0.0
        %1188 = vmatpush2.msra.mxu0 0.0
        %1189 = vmatprep.subr.mxu0 0.0
        %1190 = vmatpush2.msra.mxu0 0.0
        %1191 = vmatprep.subr.mxu0 0.0
        %1192 = vmatpush2.msra.mxu0 0.0
        %1193 = vmatprep.subr.mxu0 0.0
        %1194 = vmatpush2.msra.mxu0 0.0
        %1195 = vmatprep.subr.mxu0 0.0
        %1196 = vmatpush2.msra.mxu0 0.0
        %1197 = vmatprep.subr.mxu0 0.0
        %1198 = vmatpush2.msra.mxu0 0.0
        %1199 = vmatprep.subr.mxu0 0.0
        %1200 = vmatpush2.msra.mxu0 0.0
        %1201 = vmatprep.subr.mxu0 0.0
        %1202 = vmatpush2.msra.mxu0 0.0
        %1203 = vmatprep.mubr.f32.mxu0 0.0
        %v1204 = vand.u32 %v901, 4294901760
        %v1205 = vsub.f32 %v901, %v1204
        %v1206 = vand.u32 %v1205, 4294901760
        %1207 = vmatmul.mubr.f32.gmra.mxu0 %v1206
        %v1208 = vpop.f32.mrf.mxu0
        %v1209 = vadd.f32 %v1134, %v1208
        %v1210 = vpop.f32.mrf.mxu0
        %1211 = vdwg.mxu0
        %1212 = vmatprep.subr.mxu0 0.0
        %1213 = vmatpush1.msra.mxu0 0.0
        %1214 = vmatprep.subr.mxu0 0.0
        %1215 = vmatpush1.msra.mxu0 0.0
        %1216 = vmatprep.subr.mxu0 0.0
        %1217 = vmatpush1.msra.mxu0 0.0
        %1218 = vmatprep.subr.mxu0 0.0
        %1219 = vmatpush1.msra.mxu0 0.0
        %1220 = vmatprep.subr.mxu0 0.0
        %1221 = vmatpush1.msra.mxu0 0.0
        %1222 = vmatprep.subr.mxu0 0.0
        %1223 = vmatpush1.msra.mxu0 0.0
        %1224 = vmatprep.subr.mxu0 0.0
        %1225 = vmatpush1.msra.mxu0 0.0
        %1226 = vmatprep.subr.mxu0 0.0
        %1227 = vmatpush1.msra.mxu0 0.0
        %1228 = vmatprep.subr.mxu0 0.0
        %1229 = vmatpush1.msra.mxu0 0.0
        %1230 = vmatprep.subr.mxu0 0.0
        %1231 = vmatpush1.msra.mxu0 0.0
        %1232 = vmatprep.subr.mxu0 0.0
        %1233 = vmatpush1.msra.mxu0 0.0
        %1234 = vmatprep.subr.mxu0 0.0
        %1235 = vmatpush1.msra.mxu0 0.0
        %1236 = vmatprep.subr.mxu0 0.0
        %1237 = vmatpush1.msra.mxu0 0.0
        %1238 = vmatprep.subr.mxu0 0.0
        %1239 = vmatpush1.msra.mxu0 0.0
        %1240 = vmatprep.subr.mxu0 0.0
        %v1241 = vand.u32 %v898, 4294901760
        %v1242 = vsub.f32 %v898, %v1241
        %v1243 = vand.u32 %v1242, 4294901760
        %1244 = vmatpush1.msra.mxu0 %v1243
        %1245 = vmatprep.subr.mxu0 0.0
        %v1246 = vand.u32 %v897, 4294901760
        %v1247 = vsub.f32 %v897, %v1246
        %v1248 = vand.u32 %v1247, 4294901760
        %1249 = vmatpush1.msra.mxu0 %v1248
        %1250 = vmatprep.subr.mxu0 0.0
        %1251 = vmatpush2.msra.mxu0 0.0
        %1252 = vmatprep.subr.mxu0 0.0
        %1253 = vmatpush2.msra.mxu0 0.0
        %1254 = vmatprep.subr.mxu0 0.0
        %1255 = vmatpush2.msra.mxu0 0.0
        %1256 = vmatprep.subr.mxu0 0.0
        %1257 = vmatpush2.msra.mxu0 0.0
        %1258 = vmatprep.subr.mxu0 0.0
        %1259 = vmatpush2.msra.mxu0 0.0
        %1260 = vmatprep.subr.mxu0 0.0
        %1261 = vmatpush2.msra.mxu0 0.0
        %1262 = vmatprep.subr.mxu0 0.0
        %1263 = vmatpush2.msra.mxu0 0.0
        %1264 = vmatprep.subr.mxu0 0.0
        %1265 = vmatpush2.msra.mxu0 0.0
        %1266 = vmatprep.subr.mxu0 0.0
        %1267 = vmatpush2.msra.mxu0 0.0
        %1268 = vmatprep.subr.mxu0 0.0
        %1269 = vmatpush2.msra.mxu0 0.0
        %1270 = vmatprep.subr.mxu0 0.0
        %1271 = vmatpush2.msra.mxu0 0.0
        %1272 = vmatprep.subr.mxu0 0.0
        %1273 = vmatpush2.msra.mxu0 0.0
        %1274 = vmatprep.subr.mxu0 0.0
        %1275 = vmatpush2.msra.mxu0 0.0
        %1276 = vmatprep.subr.mxu0 0.0
        %1277 = vmatpush2.msra.mxu0 0.0
        %1278 = vmatprep.subr.mxu0 0.0
        %1279 = vmatpush2.msra.mxu0 0.0
        %1280 = vmatprep.subr.mxu0 0.0
        %1281 = vmatpush2.msra.mxu0 0.0
        %1282 = vmatprep.mubr.f32.mxu0 0.0
        %v1283 = vand.u32 %v901, 4294901760
        %1284 = vmatmul.mubr.f32.gmra.mxu0 %v1283
        %v1285 = vpop.f32.mrf.mxu0
        %v1286 = vadd.f32 %v1209, %v1285
        %v1287 = vpop.f32.mrf.mxu0
        %1288 = vdwg.mxu0
        %1289 = vmatprep.subr.mxu0 0.0
        %1290 = vmatpush1.msra.mxu0 0.0
        %1291 = vmatprep.subr.mxu0 0.0
        %1292 = vmatpush1.msra.mxu0 0.0
        %1293 = vmatprep.subr.mxu0 0.0
        %1294 = vmatpush1.msra.mxu0 0.0
        %1295 = vmatprep.subr.mxu0 0.0
        %1296 = vmatpush1.msra.mxu0 0.0
        %1297 = vmatprep.subr.mxu0 0.0
        %1298 = vmatpush1.msra.mxu0 0.0
        %1299 = vmatprep.subr.mxu0 0.0
        %1300 = vmatpush1.msra.mxu0 0.0
        %1301 = vmatprep.subr.mxu0 0.0
        %1302 = vmatpush1.msra.mxu0 0.0
        %1303 = vmatprep.subr.mxu0 0.0
        %1304 = vmatpush1.msra.mxu0 0.0
        %1305 = vmatprep.subr.mxu0 0.0
        %1306 = vmatpush1.msra.mxu0 0.0
        %1307 = vmatprep.subr.mxu0 0.0
        %1308 = vmatpush1.msra.mxu0 0.0
        %1309 = vmatprep.subr.mxu0 0.0
        %1310 = vmatpush1.msra.mxu0 0.0
        %1311 = vmatprep.subr.mxu0 0.0
        %1312 = vmatpush1.msra.mxu0 0.0
        %1313 = vmatprep.subr.mxu0 0.0
        %1314 = vmatpush1.msra.mxu0 0.0
        %1315 = vmatprep.subr.mxu0 0.0
        %1316 = vmatpush1.msra.mxu0 0.0
        %1317 = vmatprep.subr.mxu0 0.0
        %v1318 = vand.u32 %v898, 4294901760
        %1319 = vmatpush1.msra.mxu0 %v1318
        %1320 = vmatprep.subr.mxu0 0.0
        %v1321 = vand.u32 %v897, 4294901760
        %1322 = vmatpush1.msra.mxu0 %v1321
        %1323 = vmatprep.subr.mxu0 0.0
        %1324 = vmatpush2.msra.mxu0 0.0
        %1325 = vmatprep.subr.mxu0 0.0
        %1326 = vmatpush2.msra.mxu0 0.0
        %1327 = vmatprep.subr.mxu0 0.0
        %1328 = vmatpush2.msra.mxu0 0.0
        %1329 = vmatprep.subr.mxu0 0.0
        %1330 = vmatpush2.msra.mxu0 0.0
        %1331 = vmatprep.subr.mxu0 0.0
        %1332 = vmatpush2.msra.mxu0 0.0
        %1333 = vmatprep.subr.mxu0 0.0
        %1334 = vmatpush2.msra.mxu0 0.0
        %1335 = vmatprep.subr.mxu0 0.0
        %1336 = vmatpush2.msra.mxu0 0.0
        %1337 = vmatprep.subr.mxu0 0.0
        %1338 = vmatpush2.msra.mxu0 0.0
        %1339 = vmatprep.subr.mxu0 0.0
        %1340 = vmatpush2.msra.mxu0 0.0
        %1341 = vmatprep.subr.mxu0 0.0
        %1342 = vmatpush2.msra.mxu0 0.0
        %1343 = vmatprep.subr.mxu0 0.0
        %1344 = vmatpush2.msra.mxu0 0.0
        %1345 = vmatprep.subr.mxu0 0.0
        %1346 = vmatpush2.msra.mxu0 0.0
        %1347 = vmatprep.subr.mxu0 0.0
        %1348 = vmatpush2.msra.mxu0 0.0
        %1349 = vmatprep.subr.mxu0 0.0
        %1350 = vmatpush2.msra.mxu0 0.0
        %1351 = vmatprep.subr.mxu0 0.0
        %1352 = vmatpush2.msra.mxu0 0.0
        %1353 = vmatprep.subr.mxu0 0.0
        %1354 = vmatpush2.msra.mxu0 0.0
        %1355 = vmatprep.mubr.f32.mxu0 0.0
        %v1356 = vand.u32 %v901, 4294901760
        %1357 = vmatmul.mubr.f32.gmra.mxu0 %v1356
        %v1358 = vpop.f32.mrf.mxu0
        %v1359 = vadd.f32 %v1286, %v1358
        %v1360 = vpop.f32.mrf.mxu0
        %1361 = vdwg.mxu0
        %v1362 = vadd.f32 %v895, %v1359
        %v1363 = vmul.f32 %v1362, 0.5
        %v1364 = vtanh.pop %v1363
        %v1365 = vadd.f32 %v1364, 1.0
        %v1366 = vmul.f32 %v1365, 0.5
        %v1367 = vtanh.pop %v1362
        %v1368 = vld [vmem:[#allocation4] sm:$0x3]
        %1370 = vrot.lane.b32.xlu0 %v1368, 16
        %v1371 = vpop.permute.xlu0 %1370
        %v1373 = vmul.f32 %v1366, %v1371
        %1375 = vrot.lane.b32.xlu0 %v1367, 96
        %v1376 = vpop.permute.xlu0 %1375
        %v1378 = vmul.f32 %v1366, %v1376
        %1380 = vrot.lane.b32.xlu0 %v1378, 16
        %v1381 = vpop.permute.xlu0 %1380
        %v1383 = vadd.f32 %v1373, %v1381
        %v1384 = vtanh.pop %v1383
        %1386 = vrot.lane.b32.xlu0 %v1384, 32
        %v1387 = vpop.permute.xlu0 %1386
        %v1389 = vmul.f32 %v1366, %v1387
        %1391 = vrot.lane.b32.xlu0 %v1383, 112
        %v1392 = vpop.permute.xlu0 %1391
        %vm1394 = vcmask 123904
        %1395 = vst.msk [vmem:[#allocation4] sm:$0x3] %vm1394, %v1392
        %1397 = vrot.lane.b32.xlu0 %v1389, 80
        %v1398 = vpop.permute.xlu0 %1397
        %1400 = vst.msk [vmem:[#allocation3] sm:$0x3] %vm1394, %v1398
        %s1401 = scalar_lea.vmem %s319, %s893
        %1402 = vst.msk [vmem:[%s1401] sm:$0x3] %vm1394, %v1398
      $region45: #{bcn_forward.7} parent=35 // loop_footer
        %s888 = sadd.s32 1, %s884
      $region46: #{bcn_forward.7} parent=35 // loop_footer_branch
        %883 = sbr.rel target = $region42
      $region47: #{bcn_forward.7} parent=35 // loop_exit
        _
      %s1403 = smul.u32 %s20, 2
      %s1404 = ssub.s32 0, %s1403
      %s1405 = smul.u32 %s19, %s1404
      %s1406 = sadd.s32 %s20, %s1405
      %s1407 = smul.u32 2, %s1406
      %p1408 = scmp.lt.s32.totalorder %s19, 1
      %s1409 = scalar_select %p1408, %s19, 1
      %p1410 = scmp.lt.s32.totalorder %s1407, 1
      %s1411 = scalar_select %p1410, %s1407, 1
      %s1412 = smul.addr %s1409, 2
      %s1413 = sadd.s32 %s1411, %s1412
      %s1414 = smul.addr %s1413, 8
      %s1415 = scalar_lea.vmem %s4, %s1414
      // Predicated region
      $region48: #{bcn_forward.7} parent=35 // pred_check
        %p1416 = pneg %p167
      $region49: #{bcn_forward.7} parent=35 // pred_check_branch
        %1418 = sbr.rel (%p1416) target = $region51
      $region50: #{bcn_forward.7} parent=35 // pred_region
        %s1419 = smul.u32 %s20, 2
        %s1420 = ssub.s32 0, %s1419
        %s1421 = smul.u32 %s19, %s1420
        %s1422 = sadd.s32 %s20, %s1421
        %s1423 = smul.u32 2, %s1422
      $region51: #{bcn_forward.7} parent=35 // pred_fallthru
        _
    $region36: #{bcn_forward.7} parent=5 // pred_fallthru
      _
    %p1424 = scmp.le.s32.totalorder 2, %s10
    // Predicated region
    $region52: #{bcn_forward.7} parent=5 // pred_check
      %p1425 = pneg %p1424
    $region53: #{bcn_forward.7} parent=5 // pred_check_branch
      %1427 = sbr.rel (%p1425) target = $region55
    $region54: #{bcn_forward.7} parent=5 // pred_region
      %s1428 = ssub.s32 %s10, 2
      // Predicated region
      $region56: #{bcn_forward.7} parent=54 // pred_check
        %p1429 = pneg %p173
      $region57: #{bcn_forward.7} parent=54 // pred_check_branch
        %1431 = sbr.rel (%p1429) target = $region59
      $region58: #{bcn_forward.7} parent=54 // pred_region
        %s1432 = smul.u32 %s22, 2
        %s1433 = ssub.s32 0, %s1432
        %s1434 = smul.u32 %s21, %s1433
        %s1435 = sadd.s32 %s22, %s1434
        %s1436 = smul.u32 2, %s1435
        %p1437 = scmp.lt.s32.totalorder %s21, 1
        %s1438 = scalar_select %p1437, %s21, 1
        %p1439 = scmp.lt.s32.totalorder %s1436, 1
        %s1440 = scalar_select %p1439, %s1436, 1
        %s1441 = smul.addr %s1438, 2
        %s1442 = sadd.s32 %s1440, %s1441
        %s1443 = smul.addr %s1442, 8
        %s1444 = scalar_lea.vmem %s4, %s1443
      $region59: #{bcn_forward.7} parent=54 // pred_fallthru
        _
    $region55: #{bcn_forward.7} parent=5 // pred_fallthru
      _
  $region6: #{bcn_forward.7} parent=0 // loop_footer
    %s14 = sadd.s32 1, %s10
  $region7: #{bcn_forward.7} parent=0 // loop_footer_branch
    %9 = sbr.rel target = $region3
  $region8: #{bcn_forward.7} parent=0 // loop_exit
    _

// kernel: bcn_forward.8
$region0: #{bcn_forward.8}
  #allocation0 [shape = 'u32[]', space=smem, size = 0x4, offset = 0x4, fixed_abs, tag = 'smem constant byte address 0x4 - core index']
  #allocation1 [shape = 'u32[144,128]{1,0:T(1,128)}', space=vmem, size = 0x12000, scoped, tag = 'internal scratch']
  #allocation2 [shape = 'f32[8,32]{1,0:T(8,128)}', space=vmem, size = 0x1000, scoped, tag = 'scratch operand']
  %s0 = inlined_call_operand.vmem [shape: f32[2,8,32], index: 0, kind: input, shape index: {}]
  %s1 = inlined_call_operand.vmem [shape: f32[2,8,96], index: 1, kind: output, shape index: {}]
  %s2 = sld [smem:[#allocation0]]
  $region45: #{bcn_forward.8} parent=0
    _
  %s4 = ssub.s32 1, %s2
  %s5 = scalar_select 0, %s4, %s2
  loop: start=0, step=1, limit=4
  $region2: #{bcn_forward.8} parent=0 // loop_pre_header
    _
  $region3: #{bcn_forward.8} parent=0 // loop_header
    %s7 = sphi 0, %s11
    %p8 = scmp.ge.s32.totalorder %s7, 4
    %s14 = sphi 0, %s26
    %s15 = sphi 0, %s22
    %s16 = sphi 0, %s14
    %s17 = sphi 0, %s15
    %s18 = sphi 0, %s16
    %s19 = sphi 0, %s17
    %s29 = sphi 0, %s31
    %s32 = sphi 0, %s29
    %s33 = sphi 0, %s32
    %s49 = sphi 0, %s33
    %s55 = sphi 0, %s57
    %s58 = sphi 0, %s55
    %s59 = sphi 0, %s58
    %s75 = sphi 0, %s59
  $region4: #{bcn_forward.8} parent=0 // loop_header_branch
    %10 = sbr.rel (%p8) target = $region8
  $region5: #{bcn_forward.8} parent=0 // loop_body
    %s12 = ssub.s32 %s7, 1
    %s13 = ssub.s32 %s7, 2
    %s20 = sadd.s32 1, %s15
    %p21 = scmp.ge.s32.totalorder %s20, 1
    %s22 = scalar_select %p21, 0, %s20
    %s23 = sadd.s32 1, %s14
    %s24 = scalar_select %p21, %s23, %s14
    %p25 = scmp.ge.s32.totalorder %s24, 2
    %s26 = scalar_select %p25, 0, %s24
    %s27 = ssub.s32 %s14, %s26
    %p28 = scmp.eq.s32.totalorder %s27, 0
    %s30 = sadd.s32 %s29, 1
    %s31 = scalar_select %p28, %s29, %s30
    %p34 = pneg %p28
    %p35 = scmp.eq.s32.totalorder %s7, 1
    %p36 = por %p34, %p35
    %p37 = scmp.ne.s32.totalorder %s29, %s32
    %p38 = scmp.eq.s32.totalorder %s7, 0
    %p39 = por %p37, %p38
    %p40 = scmp.ne.s32.totalorder %s29, %s32
    %p41 = scmp.eq.s32.totalorder %s12, 1
    %p42 = por %p40, %p41
    %p43 = scmp.ne.s32.totalorder %s32, %s33
    %p44 = scmp.eq.s32.totalorder %s12, 0
    %p45 = por %p43, %p44
    %p46 = scmp.ne.s32.totalorder %s32, %s33
    %p47 = scmp.eq.s32.totalorder %s13, 1
    %p48 = por %p46, %p47
    %p50 = scmp.ne.s32.totalorder %s33, %s49
    %p51 = scmp.eq.s32.totalorder %s13, 0
    %p52 = por %p50, %p51
    %s53 = ssub.s32 %s14, %s26
    %p54 = scmp.eq.s32.totalorder %s53, 0
    %s56 = sadd.s32 %s55, 1
    %s57 = scalar_select %p54, %s55, %s56
    %p60 = pneg %p54
    %p61 = scmp.eq.s32.totalorder %s7, 1
    %p62 = por %p60, %p61
    %p63 = scmp.ne.s32.totalorder %s55, %s58
    %p64 = scmp.eq.s32.totalorder %s7, 0
    %p65 = por %p63, %p64
    %p66 = scmp.ne.s32.totalorder %s55, %s58
    %p67 = scmp.eq.s32.totalorder %s12, 1
    %p68 = por %p66, %p67
    %p69 = scmp.ne.s32.totalorder %s58, %s59
    %p70 = scmp.eq.s32.totalorder %s12, 0
    %p71 = por %p69, %p70
    %p72 = scmp.ne.s32.totalorder %s58, %s59
    %p73 = scmp.eq.s32.totalorder %s13, 1
    %p74 = por %p72, %p73
    %p76 = scmp.ne.s32.totalorder %s59, %s75
    %p77 = scmp.eq.s32.totalorder %s13, 0
    %p78 = por %p76, %p77
    %p79 = scmp.le.s32.totalorder 1, %s7
    %p80 = scmp.lt.s32.totalorder %s7, 3
    %p81 = pnand %p79, %p80
    %p82 = pneg %p81
    // Predicated region
    $region9: #{bcn_forward.8} parent=5 // pred_check
      _
    $region10: #{bcn_forward.8} parent=5 // pred_check_branch
      %84 = sbr.rel (%p81) target = $region12
    $region11: #{bcn_forward.8} parent=5 // pred_region
      %s85 = ssub.s32 %s7, 1
    $region12: #{bcn_forward.8} parent=5 // pred_fallthru
      _
    %p86 = scmp.lt.s32.totalorder %s7, 2
    // Predicated region
    $region13: #{bcn_forward.8} parent=5 // pred_check
      %p87 = pneg %p86
    $region14: #{bcn_forward.8} parent=5 // pred_check_branch
      %89 = sbr.rel (%p87) target = $region16
    $region15: #{bcn_forward.8} parent=5 // pred_region
      // Predicated region
      $region17: #{bcn_forward.8} parent=15 // pred_check
        %p90 = pneg %p39
      $region18: #{bcn_forward.8} parent=15 // pred_check_branch
        %92 = sbr.rel (%p90) target = $region20
      $region19: #{bcn_forward.8} parent=15 // pred_region
        %p93 = scmp.lt.s32.totalorder %s14, 1
        %s94 = scalar_select %p93, %s14, 1
        %s95 = smul.addr %s94, 8
        %s96 = scalar_lea.vmem %s0, %s95
      $region20: #{bcn_forward.8} parent=15 // pred_fallthru
        _
    $region16: #{bcn_forward.8} parent=5 // pred_fallthru
      _
    %p97 = scmp.le.s32.totalorder 1, %s7
    %p98 = scmp.lt.s32.totalorder %s7, 3
    %p99 = pnand %p97, %p98
    %p100 = pneg %p99
    // Predicated region
    $region21: #{bcn_forward.8} parent=5 // pred_check
      _
    $region22: #{bcn_forward.8} parent=5 // pred_check_branch
      %102 = sbr.rel (%p99) target = $region24
    $region23: #{bcn_forward.8} parent=5 // pred_region
      %s103 = ssub.s32 %s7, 1
      %p104 = scmp.lt.s32.totalorder %s16, 1
      %s105 = scalar_select %p104, %s16, 1
      %s106 = smul.addr %s105, 8
      %s107 = scalar_lea.vmem %s0, %s106
      %p108 = pneg %p45
      %p109 = pneg %p42
      %p110 = pneg %p71
      %p111 = pneg %p68
      %p112 = scmp.lt.s32.totalorder %s16, 1
      %s113 = scalar_select %p112, %s16, 1
      %s114 = smul.addr %s113, 8
      %s115 = scalar_lea.vmem %s1, %s114
      %p116 = scmp.lt.s32.totalorder %s16, 1
      %s117 = scalar_select %p116, %s16, 1
      %s118 = smul.addr %s117, 8
      %s119 = scalar_lea.vmem %s0, %s118
      %p120 = scmp.lt.s32.totalorder %s16, 1
      %s121 = scalar_select %p120, %s16, 1
      %s122 = smul.addr %s121, 8
      %s123 = scalar_lea.vmem %s1, %s122
      %p124 = scmp.eq.s32.totalorder %s17, 0
      // Predicated region
      $region25: #{bcn_forward.8} parent=23 // pred_check
        %p125 = pneg %p124
      $region26: #{bcn_forward.8} parent=23 // pred_check_branch
        %127 = sbr.rel (%p125) target = $region28
      $region27: #{bcn_forward.8} parent=23 // pred_region
        %vm128 = vcmask 261120
        %129 = vst.msk [vmem:[#allocation2] sm:$0xff] %vm128, 0.0
      $region28: #{bcn_forward.8} parent=23 // pred_fallthru
        _
      %v130 = vld [vmem:[%s119] sm:$0xff]
      %vm131 = vcmask 261120
      %v133 = vsel %vm131, %v130, 0
      %135 = vmatprep.subr.mxu0 0.0
      %136 = vmatpush1.xpose.msra.mxu0 0.0
      %137 = vmatprep.subr.mxu0 0.0
      %138 = vmatpush1.xpose.msra.mxu0 0.0
      %139 = vmatprep.subr.mxu0 0.0
      %140 = vmatpush1.xpose.msra.mxu0 0.0
      %141 = vmatprep.subr.mxu0 0.0
      %142 = vmatpush1.xpose.msra.mxu0 0.0
      %143 = vmatprep.subr.mxu0 0.0
      %144 = vmatpush1.xpose.msra.mxu0 0.0
      %145 = vmatprep.subr.mxu0 0.0
      %146 = vmatpush1.xpose.msra.mxu0 0.0
      %147 = vmatprep.subr.mxu0 0.0
      %148 = vmatpush1.xpose.msra.mxu0 0.0
      %149 = vmatprep.subr.mxu0 0.0
      %150 = vmatpush1.xpose.msra.mxu0 0.0
      %151 = vmatprep.subr.mxu0 0.0
      %152 = vmatpush1.xpose.msra.mxu0 0.0
      %153 = vmatprep.subr.mxu0 0.0
      %154 = vmatpush1.xpose.msra.mxu0 0.0
      %155 = vmatprep.subr.mxu0 0.0
      %156 = vmatpush1.xpose.msra.mxu0 0.0
      %157 = vmatprep.subr.mxu0 0.0
      %158 = vmatpush1.xpose.msra.mxu0 0.0
      %159 = vmatprep.subr.mxu0 0.0
      %160 = vmatpush1.xpose.msra.mxu0 0.0
      %161 = vmatprep.subr.mxu0 0.0
      %162 = vmatpush1.xpose.msra.mxu0 0.0
      %163 = vmatprep.subr.mxu0 0.0
      %164 = vmatpush1.xpose.msra.mxu0 0.0
      %165 = vmatprep.subr.mxu0 0.0
      %v166 = vand.u32 %v133, 4294901760
      %167 = vmatpush1.xpose.msra.mxu0 %v166
      %168 = vmatprep.subr.mxu0 0.0
      %169 = vmatpush2.xpose.msra.mxu0 0.0
      %170 = vmatprep.subr.mxu0 0.0
      %171 = vmatpush2.xpose.msra.mxu0 0.0
      %172 = vmatprep.subr.mxu0 0.0
      %173 = vmatpush2.xpose.msra.mxu0 0.0
      %174 = vmatprep.subr.mxu0 0.0
      %175 = vmatpush2.xpose.msra.mxu0 0.0
      %176 = vmatprep.subr.mxu0 0.0
      %177 = vmatpush2.xpose.msra.mxu0 0.0
      %178 = vmatprep.subr.mxu0 0.0
      %179 = vmatpush2.xpose.msra.mxu0 0.0
      %180 = vmatprep.subr.mxu0 0.0
      %181 = vmatpush2.xpose.msra.mxu0 0.0
      %182 = vmatprep.subr.mxu0 0.0
      %183 = vmatpush2.xpose.msra.mxu0 0.0
      %184 = vmatprep.subr.mxu0 0.0
      %185 = vmatpush2.xpose.msra.mxu0 0.0
      %186 = vmatprep.subr.mxu0 0.0
      %187 = vmatpush2.xpose.msra.mxu0 0.0
      %188 = vmatprep.subr.mxu0 0.0
      %189 = vmatpush2.xpose.msra.mxu0 0.0
      %190 = vmatprep.subr.mxu0 0.0
      %191 = vmatpush2.xpose.msra.mxu0 0.0
      %192 = vmatprep.subr.mxu0 0.0
      %193 = vmatpush2.xpose.msra.mxu0 0.0
      %194 = vmatprep.subr.mxu0 0.0
      %195 = vmatpush2.xpose.msra.mxu0 0.0
      %196 = vmatprep.subr.mxu0 0.0
      %197 = vmatpush2.xpose.msra.mxu0 0.0
      %198 = vmatprep.subr.mxu0 0.0
      %199 = vmatpush2.xpose.msra.mxu0 0.0
      %200 = vmatprep.mubr.f32.mxu0 0.0
      %v201 = vand.u32 %v133, 4294901760
      %v202 = vsub.f32 %v133, %v201
      %v203 = vand.u32 %v202, 4294901760
      %v204 = vsub.f32 %v202, %v203
      %v205 = vand.u32 %v204, 4294901760
      %206 = vmatmul.mubr.f32.gmra.mxu0 %v205
      %v207 = vpop.f32.mrf.mxu0
      %v208 = vadd.f32 0.0, %v207
      %v209 = vpop.f32.mrf.mxu0
      %210 = vdwg.mxu0
      %211 = vmatprep.subr.mxu0 0.0
      %212 = vmatpush1.xpose.msra.mxu0 0.0
      %213 = vmatprep.subr.mxu0 0.0
      %214 = vmatpush1.xpose.msra.mxu0 0.0
      %215 = vmatprep.subr.mxu0 0.0
      %216 = vmatpush1.xpose.msra.mxu0 0.0
      %217 = vmatprep.subr.mxu0 0.0
      %218 = vmatpush1.xpose.msra.mxu0 0.0
      %219 = vmatprep.subr.mxu0 0.0
      %220 = vmatpush1.xpose.msra.mxu0 0.0
      %221 = vmatprep.subr.mxu0 0.0
      %222 = vmatpush1.xpose.msra.mxu0 0.0
      %223 = vmatprep.subr.mxu0 0.0
      %224 = vmatpush1.xpose.msra.mxu0 0.0
      %225 = vmatprep.subr.mxu0 0.0
      %226 = vmatpush1.xpose.msra.mxu0 0.0
      %227 = vmatprep.subr.mxu0 0.0
      %228 = vmatpush1.xpose.msra.mxu0 0.0
      %229 = vmatprep.subr.mxu0 0.0
      %230 = vmatpush1.xpose.msra.mxu0 0.0
      %231 = vmatprep.subr.mxu0 0.0
      %232 = vmatpush1.xpose.msra.mxu0 0.0
      %233 = vmatprep.subr.mxu0 0.0
      %234 = vmatpush1.xpose.msra.mxu0 0.0
      %235 = vmatprep.subr.mxu0 0.0
      %236 = vmatpush1.xpose.msra.mxu0 0.0
      %237 = vmatprep.subr.mxu0 0.0
      %238 = vmatpush1.xpose.msra.mxu0 0.0
      %239 = vmatprep.subr.mxu0 0.0
      %240 = vmatpush1.xpose.msra.mxu0 0.0
      %241 = vmatprep.subr.mxu0 0.0
      %v242 = vand.u32 %v133, 4294901760
      %v243 = vsub.f32 %v133, %v242
      %v244 = vand.u32 %v243, 4294901760
      %v245 = vsub.f32 %v243, %v244
      %v246 = vand.u32 %v245, 4294901760
      %247 = vmatpush1.xpose.msra.mxu0 %v246
      %248 = vmatprep.subr.mxu0 0.0
      %249 = vmatpush2.xpose.msra.mxu0 0.0
      %250 = vmatprep.subr.mxu0 0.0
      %251 = vmatpush2.xpose.msra.mxu0 0.0
      %252 = vmatprep.subr.mxu0 0.0
      %253 = vmatpush2.xpose.msra.mxu0 0.0
      %254 = vmatprep.subr.mxu0 0.0
      %255 = vmatpush2.xpose.msra.mxu0 0.0
      %256 = vmatprep.subr.mxu0 0.0
      %257 = vmatpush2.xpose.msra.mxu0 0.0
      %258 = vmatprep.subr.mxu0 0.0
      %259 = vmatpush2.xpose.msra.mxu0 0.0
      %260 = vmatprep.subr.mxu0 0.0
      %261 = vmatpush2.xpose.msra.mxu0 0.0
      %262 = vmatprep.subr.mxu0 0.0
      %263 = vmatpush2.xpose.msra.mxu0 0.0
      %264 = vmatprep.subr.mxu0 0.0
      %265 = vmatpush2.xpose.msra.mxu0 0.0
      %266 = vmatprep.subr.mxu0 0.0
      %267 = vmatpush2.xpose.msra.mxu0 0.0
      %268 = vmatprep.subr.mxu0 0.0
      %269 = vmatpush2.xpose.msra.mxu0 0.0
      %270 = vmatprep.subr.mxu0 0.0
      %271 = vmatpush2.xpose.msra.mxu0 0.0
      %272 = vmatprep.subr.mxu0 0.0
      %273 = vmatpush2.xpose.msra.mxu0 0.0
      %274 = vmatprep.subr.mxu0 0.0
      %275 = vmatpush2.xpose.msra.mxu0 0.0
      %276 = vmatprep.subr.mxu0 0.0
      %277 = vmatpush2.xpose.msra.mxu0 0.0
      %278 = vmatprep.subr.mxu0 0.0
      %279 = vmatpush2.xpose.msra.mxu0 0.0
      %280 = vmatprep.mubr.f32.mxu0 0.0
      %v281 = vand.u32 %v133, 4294901760
      %282 = vmatmul.mubr.f32.gmra.mxu0 %v281
      %v283 = vpop.f32.mrf.mxu0
      %v284 = vadd.f32 %v208, %v283
      %v285 = vpop.f32.mrf.mxu0
      %286 = vdwg.mxu0
      %287 = vmatprep.subr.mxu0 0.0
      %288 = vmatpush1.xpose.msra.mxu0 0.0
      %289 = vmatprep.subr.mxu0 0.0
      %290 = vmatpush1.xpose.msra.mxu0 0.0
      %291 = vmatprep.subr.mxu0 0.0
      %292 = vmatpush1.xpose.msra.mxu0 0.0
      %293 = vmatprep.subr.mxu0 0.0
      %294 = vmatpush1.xpose.msra.mxu0 0.0
      %295 = vmatprep.subr.mxu0 0.0
      %296 = vmatpush1.xpose.msra.mxu0 0.0
      %297 = vmatprep.subr.mxu0 0.0
      %298 = vmatpush1.xpose.msra.mxu0 0.0
      %299 = vmatprep.subr.mxu0 0.0
      %300 = vmatpush1.xpose.msra.mxu0 0.0
      %301 = vmatprep.subr.mxu0 0.0
      %302 = vmatpush1.xpose.msra.mxu0 0.0
      %303 = vmatprep.subr.mxu0 0.0
      %304 = vmatpush1.xpose.msra.mxu0 0.0
      %305 = vmatprep.subr.mxu0 0.0
      %306 = vmatpush1.xpose.msra.mxu0 0.0
      %307 = vmatprep.subr.mxu0 0.0
      %308 = vmatpush1.xpose.msra.mxu0 0.0
      %309 = vmatprep.subr.mxu0 0.0
      %310 = vmatpush1.xpose.msra.mxu0 0.0
      %311 = vmatprep.subr.mxu0 0.0
      %312 = vmatpush1.xpose.msra.mxu0 0.0
      %313 = vmatprep.subr.mxu0 0.0
      %314 = vmatpush1.xpose.msra.mxu0 0.0
      %315 = vmatprep.subr.mxu0 0.0
      %316 = vmatpush1.xpose.msra.mxu0 0.0
      %317 = vmatprep.subr.mxu0 0.0
      %v318 = vand.u32 %v133, 4294901760
      %v319 = vsub.f32 %v133, %v318
      %320 = vmatpush1.xpose.msra.mxu0 %v319
      %321 = vmatprep.subr.mxu0 0.0
      %322 = vmatpush2.xpose.msra.mxu0 0.0
      %323 = vmatprep.subr.mxu0 0.0
      %324 = vmatpush2.xpose.msra.mxu0 0.0
      %325 = vmatprep.subr.mxu0 0.0
      %326 = vmatpush2.xpose.msra.mxu0 0.0
      %327 = vmatprep.subr.mxu0 0.0
      %328 = vmatpush2.xpose.msra.mxu0 0.0
      %329 = vmatprep.subr.mxu0 0.0
      %330 = vmatpush2.xpose.msra.mxu0 0.0
      %331 = vmatprep.subr.mxu0 0.0
      %332 = vmatpush2.xpose.msra.mxu0 0.0
      %333 = vmatprep.subr.mxu0 0.0
      %334 = vmatpush2.xpose.msra.mxu0 0.0
      %335 = vmatprep.subr.mxu0 0.0
      %336 = vmatpush2.xpose.msra.mxu0 0.0
      %337 = vmatprep.subr.mxu0 0.0
      %338 = vmatpush2.xpose.msra.mxu0 0.0
      %339 = vmatprep.subr.mxu0 0.0
      %340 = vmatpush2.xpose.msra.mxu0 0.0
      %341 = vmatprep.subr.mxu0 0.0
      %342 = vmatpush2.xpose.msra.mxu0 0.0
      %343 = vmatprep.subr.mxu0 0.0
      %344 = vmatpush2.xpose.msra.mxu0 0.0
      %345 = vmatprep.subr.mxu0 0.0
      %346 = vmatpush2.xpose.msra.mxu0 0.0
      %347 = vmatprep.subr.mxu0 0.0
      %348 = vmatpush2.xpose.msra.mxu0 0.0
      %349 = vmatprep.subr.mxu0 0.0
      %350 = vmatpush2.xpose.msra.mxu0 0.0
      %351 = vmatprep.subr.mxu0 0.0
      %352 = vmatpush2.xpose.msra.mxu0 0.0
      %353 = vmatprep.mubr.f32.mxu0 0.0
      %v354 = vand.u32 %v133, 4294901760
      %v355 = vsub.f32 %v133, %v354
      %356 = vmatmul.mubr.f32.gmra.mxu0 %v355
      %v357 = vpop.f32.mrf.mxu0
      %v358 = vadd.f32 %v284, %v357
      %v359 = vpop.f32.mrf.mxu0
      %360 = vdwg.mxu0
      %361 = vmatprep.subr.mxu0 0.0
      %362 = vmatpush1.xpose.msra.mxu0 0.0
      %363 = vmatprep.subr.mxu0 0.0
      %364 = vmatpush1.xpose.msra.mxu0 0.0
      %365 = vmatprep.subr.mxu0 0.0
      %366 = vmatpush1.xpose.msra.mxu0 0.0
      %367 = vmatprep.subr.mxu0 0.0
      %368 = vmatpush1.xpose.msra.mxu0 0.0
      %369 = vmatprep.subr.mxu0 0.0
      %370 = vmatpush1.xpose.msra.mxu0 0.0
      %371 = vmatprep.subr.mxu0 0.0
      %372 = vmatpush1.xpose.msra.mxu0 0.0
      %373 = vmatprep.subr.mxu0 0.0
      %374 = vmatpush1.xpose.msra.mxu0 0.0
      %375 = vmatprep.subr.mxu0 0.0
      %376 = vmatpush1.xpose.msra.mxu0 0.0
      %377 = vmatprep.subr.mxu0 0.0
      %378 = vmatpush1.xpose.msra.mxu0 0.0
      %379 = vmatprep.subr.mxu0 0.0
      %380 = vmatpush1.xpose.msra.mxu0 0.0
      %381 = vmatprep.subr.mxu0 0.0
      %382 = vmatpush1.xpose.msra.mxu0 0.0
      %383 = vmatprep.subr.mxu0 0.0
      %384 = vmatpush1.xpose.msra.mxu0 0.0
      %385 = vmatprep.subr.mxu0 0.0
      %386 = vmatpush1.xpose.msra.mxu0 0.0
      %387 = vmatprep.subr.mxu0 0.0
      %388 = vmatpush1.xpose.msra.mxu0 0.0
      %389 = vmatprep.subr.mxu0 0.0
      %390 = vmatpush1.xpose.msra.mxu0 0.0
      %391 = vmatprep.subr.mxu0 0.0
      %v392 = vand.u32 %v133, 4294901760
      %393 = vmatpush1.xpose.msra.mxu0 %v392
      %394 = vmatprep.subr.mxu0 0.0
      %395 = vmatpush2.xpose.msra.mxu0 0.0
      %396 = vmatprep.subr.mxu0 0.0
      %397 = vmatpush2.xpose.msra.mxu0 0.0
      %398 = vmatprep.subr.mxu0 0.0
      %399 = vmatpush2.xpose.msra.mxu0 0.0
      %400 = vmatprep.subr.mxu0 0.0
      %401 = vmatpush2.xpose.msra.mxu0 0.0
      %402 = vmatprep.subr.mxu0 0.0
      %403 = vmatpush2.xpose.msra.mxu0 0.0
      %404 = vmatprep.subr.mxu0 0.0
      %405 = vmatpush2.xpose.msra.mxu0 0.0
      %406 = vmatprep.subr.mxu0 0.0
      %407 = vmatpush2.xpose.msra.mxu0 0.0
      %408 = vmatprep.subr.mxu0 0.0
      %409 = vmatpush2.xpose.msra.mxu0 0.0
      %410 = vmatprep.subr.mxu0 0.0
      %411 = vmatpush2.xpose.msra.mxu0 0.0
      %412 = vmatprep.subr.mxu0 0.0
      %413 = vmatpush2.xpose.msra.mxu0 0.0
      %414 = vmatprep.subr.mxu0 0.0
      %415 = vmatpush2.xpose.msra.mxu0 0.0
      %416 = vmatprep.subr.mxu0 0.0
      %417 = vmatpush2.xpose.msra.mxu0 0.0
      %418 = vmatprep.subr.mxu0 0.0
      %419 = vmatpush2.xpose.msra.mxu0 0.0
      %420 = vmatprep.subr.mxu0 0.0
      %421 = vmatpush2.xpose.msra.mxu0 0.0
      %422 = vmatprep.subr.mxu0 0.0
      %423 = vmatpush2.xpose.msra.mxu0 0.0
      %424 = vmatprep.subr.mxu0 0.0
      %425 = vmatpush2.xpose.msra.mxu0 0.0
      %426 = vmatprep.mubr.f32.mxu0 0.0
      %v427 = vand.u32 %v133, 4294901760
      %v428 = vsub.f32 %v133, %v427
      %v429 = vand.u32 %v428, 4294901760
      %430 = vmatmul.mubr.f32.gmra.mxu0 %v429
      %v431 = vpop.f32.mrf.mxu0
      %v432 = vadd.f32 %v358, %v431
      %v433 = vpop.f32.mrf.mxu0
      %434 = vdwg.mxu0
      %435 = vmatprep.subr.mxu0 0.0
      %436 = vmatpush1.xpose.msra.mxu0 0.0
      %437 = vmatprep.subr.mxu0 0.0
      %438 = vmatpush1.xpose.msra.mxu0 0.0
      %439 = vmatprep.subr.mxu0 0.0
      %440 = vmatpush1.xpose.msra.mxu0 0.0
      %441 = vmatprep.subr.mxu0 0.0
      %442 = vmatpush1.xpose.msra.mxu0 0.0
      %443 = vmatprep.subr.mxu0 0.0
      %444 = vmatpush1.xpose.msra.mxu0 0.0
      %445 = vmatprep.subr.mxu0 0.0
      %446 = vmatpush1.xpose.msra.mxu0 0.0
      %447 = vmatprep.subr.mxu0 0.0
      %448 = vmatpush1.xpose.msra.mxu0 0.0
      %449 = vmatprep.subr.mxu0 0.0
      %450 = vmatpush1.xpose.msra.mxu0 0.0
      %451 = vmatprep.subr.mxu0 0.0
      %452 = vmatpush1.xpose.msra.mxu0 0.0
      %453 = vmatprep.subr.mxu0 0.0
      %454 = vmatpush1.xpose.msra.mxu0 0.0
      %455 = vmatprep.subr.mxu0 0.0
      %456 = vmatpush1.xpose.msra.mxu0 0.0
      %457 = vmatprep.subr.mxu0 0.0
      %458 = vmatpush1.xpose.msra.mxu0 0.0
      %459 = vmatprep.subr.mxu0 0.0
      %460 = vmatpush1.xpose.msra.mxu0 0.0
      %461 = vmatprep.subr.mxu0 0.0
      %462 = vmatpush1.xpose.msra.mxu0 0.0
      %463 = vmatprep.subr.mxu0 0.0
      %464 = vmatpush1.xpose.msra.mxu0 0.0
      %465 = vmatprep.subr.mxu0 0.0
      %v466 = vand.u32 %v133, 4294901760
      %v467 = vsub.f32 %v133, %v466
      %v468 = vand.u32 %v467, 4294901760
      %469 = vmatpush1.xpose.msra.mxu0 %v468
      %470 = vmatprep.subr.mxu0 0.0
      %471 = vmatpush2.xpose.msra.mxu0 0.0
      %472 = vmatprep.subr.mxu0 0.0
      %473 = vmatpush2.xpose.msra.mxu0 0.0
      %474 = vmatprep.subr.mxu0 0.0
      %475 = vmatpush2.xpose.msra.mxu0 0.0
      %476 = vmatprep.subr.mxu0 0.0
      %477 = vmatpush2.xpose.msra.mxu0 0.0
      %478 = vmatprep.subr.mxu0 0.0
      %479 = vmatpush2.xpose.msra.mxu0 0.0
      %480 = vmatprep.subr.mxu0 0.0
      %481 = vmatpush2.xpose.msra.mxu0 0.0
      %482 = vmatprep.subr.mxu0 0.0
      %483 = vmatpush2.xpose.msra.mxu0 0.0
      %484 = vmatprep.subr.mxu0 0.0
      %485 = vmatpush2.xpose.msra.mxu0 0.0
      %486 = vmatprep.subr.mxu0 0.0
      %487 = vmatpush2.xpose.msra.mxu0 0.0
      %488 = vmatprep.subr.mxu0 0.0
      %489 = vmatpush2.xpose.msra.mxu0 0.0
      %490 = vmatprep.subr.mxu0 0.0
      %491 = vmatpush2.xpose.msra.mxu0 0.0
      %492 = vmatprep.subr.mxu0 0.0
      %493 = vmatpush2.xpose.msra.mxu0 0.0
      %494 = vmatprep.subr.mxu0 0.0
      %495 = vmatpush2.xpose.msra.mxu0 0.0
      %496 = vmatprep.subr.mxu0 0.0
      %497 = vmatpush2.xpose.msra.mxu0 0.0
      %498 = vmatprep.subr.mxu0 0.0
      %499 = vmatpush2.xpose.msra.mxu0 0.0
      %500 = vmatprep.subr.mxu0 0.0
      %501 = vmatpush2.xpose.msra.mxu0 0.0
      %502 = vmatprep.mubr.f32.mxu0 0.0
      %v503 = vand.u32 %v133, 4294901760
      %504 = vmatmul.mubr.f32.gmra.mxu0 %v503
      %v505 = vpop.f32.mrf.mxu0
      %v506 = vadd.f32 %v432, %v505
      %v507 = vpop.f32.mrf.mxu0
      %508 = vdwg.mxu0
      %509 = vmatprep.subr.mxu0 0.0
      %510 = vmatpush1.xpose.msra.mxu0 0.0
      %511 = vmatprep.subr.mxu0 0.0
      %512 = vmatpush1.xpose.msra.mxu0 0.0
      %513 = vmatprep.subr.mxu0 0.0
      %514 = vmatpush1.xpose.msra.mxu0 0.0
      %515 = vmatprep.subr.mxu0 0.0
      %516 = vmatpush1.xpose.msra.mxu0 0.0
      %517 = vmatprep.subr.mxu0 0.0
      %518 = vmatpush1.xpose.msra.mxu0 0.0
      %519 = vmatprep.subr.mxu0 0.0
      %520 = vmatpush1.xpose.msra.mxu0 0.0
      %521 = vmatprep.subr.mxu0 0.0
      %522 = vmatpush1.xpose.msra.mxu0 0.0
      %523 = vmatprep.subr.mxu0 0.0
      %524 = vmatpush1.xpose.msra.mxu0 0.0
      %525 = vmatprep.subr.mxu0 0.0
      %526 = vmatpush1.xpose.msra.mxu0 0.0
      %527 = vmatprep.subr.mxu0 0.0
      %528 = vmatpush1.xpose.msra.mxu0 0.0
      %529 = vmatprep.subr.mxu0 0.0
      %530 = vmatpush1.xpose.msra.mxu0 0.0
      %531 = vmatprep.subr.mxu0 0.0
      %532 = vmatpush1.xpose.msra.mxu0 0.0
      %533 = vmatprep.subr.mxu0 0.0
      %534 = vmatpush1.xpose.msra.mxu0 0.0
      %535 = vmatprep.subr.mxu0 0.0
      %536 = vmatpush1.xpose.msra.mxu0 0.0
      %537 = vmatprep.subr.mxu0 0.0
      %538 = vmatpush1.xpose.msra.mxu0 0.0
      %539 = vmatprep.subr.mxu0 0.0
      %v540 = vand.u32 %v133, 4294901760
      %541 = vmatpush1.xpose.msra.mxu0 %v540
      %542 = vmatprep.subr.mxu0 0.0
      %543 = vmatpush2.xpose.msra.mxu0 0.0
      %544 = vmatprep.subr.mxu0 0.0
      %545 = vmatpush2.xpose.msra.mxu0 0.0
      %546 = vmatprep.subr.mxu0 0.0
      %547 = vmatpush2.xpose.msra.mxu0 0.0
      %548 = vmatprep.subr.mxu0 0.0
      %549 = vmatpush2.xpose.msra.mxu0 0.0
      %550 = vmatprep.subr.mxu0 0.0
      %551 = vmatpush2.xpose.msra.mxu0 0.0
      %552 = vmatprep.subr.mxu0 0.0
      %553 = vmatpush2.xpose.msra.mxu0 0.0
      %554 = vmatprep.subr.mxu0 0.0
      %555 = vmatpush2.xpose.msra.mxu0 0.0
      %556 = vmatprep.subr.mxu0 0.0
      %557 = vmatpush2.xpose.msra.mxu0 0.0
      %558 = vmatprep.subr.mxu0 0.0
      %559 = vmatpush2.xpose.msra.mxu0 0.0
      %560 = vmatprep.subr.mxu0 0.0
      %561 = vmatpush2.xpose.msra.mxu0 0.0
      %562 = vmatprep.subr.mxu0 0.0
      %563 = vmatpush2.xpose.msra.mxu0 0.0
      %564 = vmatprep.subr.mxu0 0.0
      %565 = vmatpush2.xpose.msra.mxu0 0.0
      %566 = vmatprep.subr.mxu0 0.0
      %567 = vmatpush2.xpose.msra.mxu0 0.0
      %568 = vmatprep.subr.mxu0 0.0
      %569 = vmatpush2.xpose.msra.mxu0 0.0
      %570 = vmatprep.subr.mxu0 0.0
      %571 = vmatpush2.xpose.msra.mxu0 0.0
      %572 = vmatprep.subr.mxu0 0.0
      %573 = vmatpush2.xpose.msra.mxu0 0.0
      %574 = vmatprep.mubr.f32.mxu0 0.0
      %v575 = vand.u32 %v133, 4294901760
      %576 = vmatmul.mubr.f32.gmra.mxu0 %v575
      %v577 = vpop.f32.mrf.mxu0
      %v578 = vadd.f32 %v506, %v577
      %v579 = vpop.f32.mrf.mxu0
      %580 = vdwg.mxu0
      %vm581 = vcmp.le.f32.partialorder %v578, 1e-07
      %v582 = vsel %vm581, 1, 0
      %v583 = vcvt.s32.f32 %v582
      %v584 = vmul.f32 %v583, -1e+32
      %v585 = vadd.f32 %v578, %v584
      %vm586 = vcmask 64512
      %v587 = vsel %vm586, %v585, -inf
      %588 = vmax.xlane.f32.xlu0 %v587
      %v589 = vpop.xlane.xlu0 %588
      %v590 = vsub.f32 %v585, %v589
      %v591 = vmul.f32 %v590, 1.442695
      %v592 = vpow.pop %v591
      %v593 = vsel %vm586, %v592, 0.0
      %594 = vadd.xlane.f32.xlu0 %v593
      %v595 = vpop.xlane.xlu0 %594
      %v596 = vrcp.pop %v595
      %v597 = vmul.f32 %v592, %v596
      %vm598 = vcmp.ge.f32.partialorder %v578, 1e-07
      %v599 = vsel %vm598, 1, 0
      %v600 = vcvt.s32.f32 %v599
      %v601 = vmul.f32 %v597, %v600
      %v602 = vld [vmem:[#allocation2] sm:$0xff]
      %603 = vxpose.xlu0.b32.start [1/16] %v601, 128
      %604 = vxpose.xlu0.b32.cont [2/16] 0.0, 128
      %605 = vxpose.xlu0.b32.cont [3/16] 0.0, 128
      %606 = vxpose.xlu0.b32.cont [4/16] 0.0, 128
      %607 = vxpose.xlu0.b32.cont [5/16] 0.0, 128
      %608 = vxpose.xlu0.b32.cont [6/16] 0.0, 128
      %609 = vxpose.xlu0.b32.cont [7/16] 0.0, 128
      %610 = vxpose.xlu0.b32.cont [8/16] 0.0, 128
      %611 = vxpose.xlu0.b32.cont [9/16] 0.0, 128
      %612 = vxpose.xlu0.b32.cont [10/16] 0.0, 128
      %613 = vxpose.xlu0.b32.cont [11/16] 0.0, 128
      %614 = vxpose.xlu0.b32.cont [12/16] 0.0, 128
      %615 = vxpose.xlu0.b32.cont [13/16] 0.0, 128
      %616 = vxpose.xlu0.b32.cont [14/16] 0.0, 128
      %617 = vxpose.xlu0.b32.cont [15/16] 0.0, 128
      %618 = vxpose.xlu0.b32.end [16/16] 0.0, 128
      %v619 = vpop.trf.xlu0
      %v620 = vpop.trf.xlu0
      %v621 = vpop.trf.xlu0
      %v622 = vpop.trf.xlu0
      %v623 = vpop.trf.xlu0
      %v624 = vpop.trf.xlu0
      %v625 = vpop.trf.xlu0
      %v626 = vpop.trf.xlu0
      %v627 = vpop.trf.xlu0
      %v628 = vpop.trf.xlu0
      %v629 = vpop.trf.xlu0
      %v630 = vpop.trf.xlu0
      %v631 = vpop.trf.xlu0
      %v632 = vpop.trf.xlu0
      %v633 = vpop.trf.xlu0
      %v634 = vpop.trf.xlu0
      %v636 = vsel %vm586, %v619, 0
      %638 = vmatprep.subr.mxu0 0.0
      %639 = vmatpush1.msra.mxu0 0.0
      %640 = vmatprep.subr.mxu0 0.0
      %641 = vmatpush1.msra.mxu0 0.0
      %642 = vmatprep.subr.mxu0 0.0
      %643 = vmatpush1.msra.mxu0 0.0
      %644 = vmatprep.subr.mxu0 0.0
      %645 = vmatpush1.msra.mxu0 0.0
      %646 = vmatprep.subr.mxu0 0.0
      %647 = vmatpush1.msra.mxu0 0.0
      %648 = vmatprep.subr.mxu0 0.0
      %649 = vmatpush1.msra.mxu0 0.0
      %650 = vmatprep.subr.mxu0 0.0
      %651 = vmatpush1.msra.mxu0 0.0
      %652 = vmatprep.subr.mxu0 0.0
      %653 = vmatpush1.msra.mxu0 0.0
      %654 = vmatprep.subr.mxu0 0.0
      %655 = vmatpush1.msra.mxu0 0.0
      %656 = vmatprep.subr.mxu0 0.0
      %657 = vmatpush1.msra.mxu0 0.0
      %658 = vmatprep.subr.mxu0 0.0
      %659 = vmatpush1.msra.mxu0 0.0
      %660 = vmatprep.subr.mxu0 0.0
      %661 = vmatpush1.msra.mxu0 0.0
      %662 = vmatprep.subr.mxu0 0.0
      %663 = vmatpush1.msra.mxu0 0.0
      %664 = vmatprep.subr.mxu0 0.0
      %665 = vmatpush1.msra.mxu0 0.0
      %666 = vmatprep.subr.mxu0 0.0
      %667 = vmatpush1.msra.mxu0 0.0
      %668 = vmatprep.subr.mxu0 0.0
      %v669 = vand.u32 %v130, 4294901760
      %670 = vmatpush1.msra.mxu0 %v669
      %671 = vmatprep.subr.mxu0 0.0
      %672 = vmatpush2.msra.mxu0 0.0
      %673 = vmatprep.subr.mxu0 0.0
      %674 = vmatpush2.msra.mxu0 0.0
      %675 = vmatprep.subr.mxu0 0.0
      %676 = vmatpush2.msra.mxu0 0.0
      %677 = vmatprep.subr.mxu0 0.0
      %678 = vmatpush2.msra.mxu0 0.0
      %679 = vmatprep.subr.mxu0 0.0
      %680 = vmatpush2.msra.mxu0 0.0
      %681 = vmatprep.subr.mxu0 0.0
      %682 = vmatpush2.msra.mxu0 0.0
      %683 = vmatprep.subr.mxu0 0.0
      %684 = vmatpush2.msra.mxu0 0.0
      %685 = vmatprep.subr.mxu0 0.0
      %686 = vmatpush2.msra.mxu0 0.0
      %687 = vmatprep.subr.mxu0 0.0
      %688 = vmatpush2.msra.mxu0 0.0
      %689 = vmatprep.subr.mxu0 0.0
      %690 = vmatpush2.msra.mxu0 0.0
      %691 = vmatprep.subr.mxu0 0.0
      %692 = vmatpush2.msra.mxu0 0.0
      %693 = vmatprep.subr.mxu0 0.0
      %694 = vmatpush2.msra.mxu0 0.0
      %695 = vmatprep.subr.mxu0 0.0
      %696 = vmatpush2.msra.mxu0 0.0
      %697 = vmatprep.subr.mxu0 0.0
      %698 = vmatpush2.msra.mxu0 0.0
      %699 = vmatprep.subr.mxu0 0.0
      %700 = vmatpush2.msra.mxu0 0.0
      %701 = vmatprep.subr.mxu0 0.0
      %702 = vmatpush2.msra.mxu0 0.0
      %703 = vmatprep.mubr.f32.mxu0 0.0
      %v704 = vand.u32 %v636, 4294901760
      %v705 = vsub.f32 %v636, %v704
      %v706 = vand.u32 %v705, 4294901760
      %v707 = vsub.f32 %v705, %v706
      %v708 = vand.u32 %v707, 4294901760
      %709 = vmatmul.mubr.f32.gmra.mxu0 %v708
      %v710 = vpop.f32.mrf.mxu0
      %v711 = vadd.f32 0.0, %v710
      %v712 = vpop.f32.mrf.mxu0
      %713 = vdwg.mxu0
      %714 = vmatprep.subr.mxu0 0.0
      %715 = vmatpush1.msra.mxu0 0.0
      %716 = vmatprep.subr.mxu0 0.0
      %717 = vmatpush1.msra.mxu0 0.0
      %718 = vmatprep.subr.mxu0 0.0
      %719 = vmatpush1.msra.mxu0 0.0
      %720 = vmatprep.subr.mxu0 0.0
      %721 = vmatpush1.msra.mxu0 0.0
      %722 = vmatprep.subr.mxu0 0.0
      %723 = vmatpush1.msra.mxu0 0.0
      %724 = vmatprep.subr.mxu0 0.0
      %725 = vmatpush1.msra.mxu0 0.0
      %726 = vmatprep.subr.mxu0 0.0
      %727 = vmatpush1.msra.mxu0 0.0
      %728 = vmatprep.subr.mxu0 0.0
      %729 = vmatpush1.msra.mxu0 0.0
      %730 = vmatprep.subr.mxu0 0.0
      %731 = vmatpush1.msra.mxu0 0.0
      %732 = vmatprep.subr.mxu0 0.0
      %733 = vmatpush1.msra.mxu0 0.0
      %734 = vmatprep.subr.mxu0 0.0
      %735 = vmatpush1.msra.mxu0 0.0
      %736 = vmatprep.subr.mxu0 0.0
      %737 = vmatpush1.msra.mxu0 0.0
      %738 = vmatprep.subr.mxu0 0.0
      %739 = vmatpush1.msra.mxu0 0.0
      %740 = vmatprep.subr.mxu0 0.0
      %741 = vmatpush1.msra.mxu0 0.0
      %742 = vmatprep.subr.mxu0 0.0
      %743 = vmatpush1.msra.mxu0 0.0
      %744 = vmatprep.subr.mxu0 0.0
      %v745 = vand.u32 %v130, 4294901760
      %v746 = vsub.f32 %v130, %v745
      %v747 = vand.u32 %v746, 4294901760
      %v748 = vsub.f32 %v746, %v747
      %v749 = vand.u32 %v748, 4294901760
      %750 = vmatpush1.msra.mxu0 %v749
      %751 = vmatprep.subr.mxu0 0.0
      %752 = vmatpush2.msra.mxu0 0.0
      %753 = vmatprep.subr.mxu0 0.0
      %754 = vmatpush2.msra.mxu0 0.0
      %755 = vmatprep.subr.mxu0 0.0
      %756 = vmatpush2.msra.mxu0 0.0
      %757 = vmatprep.subr.mxu0 0.0
      %758 = vmatpush2.msra.mxu0 0.0
      %759 = vmatprep.subr.mxu0 0.0
      %760 = vmatpush2.msra.mxu0 0.0
      %761 = vmatprep.subr.mxu0 0.0
      %762 = vmatpush2.msra.mxu0 0.0
      %763 = vmatprep.subr.mxu0 0.0
      %764 = vmatpush2.msra.mxu0 0.0
      %765 = vmatprep.subr.mxu0 0.0
      %766 = vmatpush2.msra.mxu0 0.0
      %767 = vmatprep.subr.mxu0 0.0
      %768 = vmatpush2.msra.mxu0 0.0
      %769 = vmatprep.subr.mxu0 0.0
      %770 = vmatpush2.msra.mxu0 0.0
      %771 = vmatprep.subr.mxu0 0.0
      %772 = vmatpush2.msra.mxu0 0.0
      %773 = vmatprep.subr.mxu0 0.0
      %774 = vmatpush2.msra.mxu0 0.0
      %775 = vmatprep.subr.mxu0 0.0
      %776 = vmatpush2.msra.mxu0 0.0
      %777 = vmatprep.subr.mxu0 0.0
      %778 = vmatpush2.msra.mxu0 0.0
      %779 = vmatprep.subr.mxu0 0.0
      %780 = vmatpush2.msra.mxu0 0.0
      %781 = vmatprep.subr.mxu0 0.0
      %782 = vmatpush2.msra.mxu0 0.0
      %783 = vmatprep.mubr.f32.mxu0 0.0
      %v784 = vand.u32 %v636, 4294901760
      %785 = vmatmul.mubr.f32.gmra.mxu0 %v784
      %v786 = vpop.f32.mrf.mxu0
      %v787 = vadd.f32 %v711, %v786
      %v788 = vpop.f32.mrf.mxu0
      %789 = vdwg.mxu0
      %790 = vmatprep.subr.mxu0 0.0
      %791 = vmatpush1.msra.mxu0 0.0
      %792 = vmatprep.subr.mxu0 0.0
      %793 = vmatpush1.msra.mxu0 0.0
      %794 = vmatprep.subr.mxu0 0.0
      %795 = vmatpush1.msra.mxu0 0.0
      %796 = vmatprep.subr.mxu0 0.0
      %797 = vmatpush1.msra.mxu0 0.0
      %798 = vmatprep.subr.mxu0 0.0
      %799 = vmatpush1.msra.mxu0 0.0
      %800 = vmatprep.subr.mxu0 0.0
      %801 = vmatpush1.msra.mxu0 0.0
      %802 = vmatprep.subr.mxu0 0.0
      %803 = vmatpush1.msra.mxu0 0.0
      %804 = vmatprep.subr.mxu0 0.0
      %805 = vmatpush1.msra.mxu0 0.0
      %806 = vmatprep.subr.mxu0 0.0
      %807 = vmatpush1.msra.mxu0 0.0
      %808 = vmatprep.subr.mxu0 0.0
      %809 = vmatpush1.msra.mxu0 0.0
      %810 = vmatprep.subr.mxu0 0.0
      %811 = vmatpush1.msra.mxu0 0.0
      %812 = vmatprep.subr.mxu0 0.0
      %813 = vmatpush1.msra.mxu0 0.0
      %814 = vmatprep.subr.mxu0 0.0
      %815 = vmatpush1.msra.mxu0 0.0
      %816 = vmatprep.subr.mxu0 0.0
      %817 = vmatpush1.msra.mxu0 0.0
      %818 = vmatprep.subr.mxu0 0.0
      %819 = vmatpush1.msra.mxu0 0.0
      %820 = vmatprep.subr.mxu0 0.0
      %v821 = vand.u32 %v130, 4294901760
      %v822 = vsub.f32 %v130, %v821
      %823 = vmatpush1.msra.mxu0 %v822
      %824 = vmatprep.subr.mxu0 0.0
      %825 = vmatpush2.msra.mxu0 0.0
      %826 = vmatprep.subr.mxu0 0.0
      %827 = vmatpush2.msra.mxu0 0.0
      %828 = vmatprep.subr.mxu0 0.0
      %829 = vmatpush2.msra.mxu0 0.0
      %830 = vmatprep.subr.mxu0 0.0
      %831 = vmatpush2.msra.mxu0 0.0
      %832 = vmatprep.subr.mxu0 0.0
      %833 = vmatpush2.msra.mxu0 0.0
      %834 = vmatprep.subr.mxu0 0.0
      %835 = vmatpush2.msra.mxu0 0.0
      %836 = vmatprep.subr.mxu0 0.0
      %837 = vmatpush2.msra.mxu0 0.0
      %838 = vmatprep.subr.mxu0 0.0
      %839 = vmatpush2.msra.mxu0 0.0
      %840 = vmatprep.subr.mxu0 0.0
      %841 = vmatpush2.msra.mxu0 0.0
      %842 = vmatprep.subr.mxu0 0.0
      %843 = vmatpush2.msra.mxu0 0.0
      %844 = vmatprep.subr.mxu0 0.0
      %845 = vmatpush2.msra.mxu0 0.0
      %846 = vmatprep.subr.mxu0 0.0
      %847 = vmatpush2.msra.mxu0 0.0
      %848 = vmatprep.subr.mxu0 0.0
      %849 = vmatpush2.msra.mxu0 0.0
      %850 = vmatprep.subr.mxu0 0.0
      %851 = vmatpush2.msra.mxu0 0.0
      %852 = vmatprep.subr.mxu0 0.0
      %853 = vmatpush2.msra.mxu0 0.0
      %854 = vmatprep.subr.mxu0 0.0
      %855 = vmatpush2.msra.mxu0 0.0
      %856 = vmatprep.mubr.f32.mxu0 0.0
      %v857 = vand.u32 %v636, 4294901760
      %v858 = vsub.f32 %v636, %v857
      %859 = vmatmul.mubr.f32.gmra.mxu0 %v858
      %v860 = vpop.f32.mrf.mxu0
      %v861 = vadd.f32 %v787, %v860
      %v862 = vpop.f32.mrf.mxu0
      %863 = vdwg.mxu0
      %864 = vmatprep.subr.mxu0 0.0
      %865 = vmatpush1.msra.mxu0 0.0
      %866 = vmatprep.subr.mxu0 0.0
      %867 = vmatpush1.msra.mxu0 0.0
      %868 = vmatprep.subr.mxu0 0.0
      %869 = vmatpush1.msra.mxu0 0.0
      %870 = vmatprep.subr.mxu0 0.0
      %871 = vmatpush1.msra.mxu0 0.0
      %872 = vmatprep.subr.mxu0 0.0
      %873 = vmatpush1.msra.mxu0 0.0
      %874 = vmatprep.subr.mxu0 0.0
      %875 = vmatpush1.msra.mxu0 0.0
      %876 = vmatprep.subr.mxu0 0.0
      %877 = vmatpush1.msra.mxu0 0.0
      %878 = vmatprep.subr.mxu0 0.0
      %879 = vmatpush1.msra.mxu0 0.0
      %880 = vmatprep.subr.mxu0 0.0
      %881 = vmatpush1.msra.mxu0 0.0
      %882 = vmatprep.subr.mxu0 0.0
      %883 = vmatpush1.msra.mxu0 0.0
      %884 = vmatprep.subr.mxu0 0.0
      %885 = vmatpush1.msra.mxu0 0.0
      %886 = vmatprep.subr.mxu0 0.0
      %887 = vmatpush1.msra.mxu0 0.0
      %888 = vmatprep.subr.mxu0 0.0
      %889 = vmatpush1.msra.mxu0 0.0
      %890 = vmatprep.subr.mxu0 0.0
      %891 = vmatpush1.msra.mxu0 0.0
      %892 = vmatprep.subr.mxu0 0.0
      %893 = vmatpush1.msra.mxu0 0.0
      %894 = vmatprep.subr.mxu0 0.0
      %v895 = vand.u32 %v130, 4294901760
      %896 = vmatpush1.msra.mxu0 %v895
      %897 = vmatprep.subr.mxu0 0.0
      %898 = vmatpush2.msra.mxu0 0.0
      %899 = vmatprep.subr.mxu0 0.0
      %900 = vmatpush2.msra.mxu0 0.0
      %901 = vmatprep.subr.mxu0 0.0
      %902 = vmatpush2.msra.mxu0 0.0
      %903 = vmatprep.subr.mxu0 0.0
      %904 = vmatpush2.msra.mxu0 0.0
      %905 = vmatprep.subr.mxu0 0.0
      %906 = vmatpush2.msra.mxu0 0.0
      %907 = vmatprep.subr.mxu0 0.0
      %908 = vmatpush2.msra.mxu0 0.0
      %909 = vmatprep.subr.mxu0 0.0
      %910 = vmatpush2.msra.mxu0 0.0
      %911 = vmatprep.subr.mxu0 0.0
      %912 = vmatpush2.msra.mxu0 0.0
      %913 = vmatprep.subr.mxu0 0.0
      %914 = vmatpush2.msra.mxu0 0.0
      %915 = vmatprep.subr.mxu0 0.0
      %916 = vmatpush2.msra.mxu0 0.0
      %917 = vmatprep.subr.mxu0 0.0
      %918 = vmatpush2.msra.mxu0 0.0
      %919 = vmatprep.subr.mxu0 0.0
      %920 = vmatpush2.msra.mxu0 0.0
      %921 = vmatprep.subr.mxu0 0.0
      %922 = vmatpush2.msra.mxu0 0.0
      %923 = vmatprep.subr.mxu0 0.0
      %924 = vmatpush2.msra.mxu0 0.0
      %925 = vmatprep.subr.mxu0 0.0
      %926 = vmatpush2.msra.mxu0 0.0
      %927 = vmatprep.subr.mxu0 0.0
      %928 = vmatpush2.msra.mxu0 0.0
      %929 = vmatprep.mubr.f32.mxu0 0.0
      %v930 = vand.u32 %v636, 4294901760
      %v931 = vsub.f32 %v636, %v930
      %v932 = vand.u32 %v931, 4294901760
      %933 = vmatmul.mubr.f32.gmra.mxu0 %v932
      %v934 = vpop.f32.mrf.mxu0
      %v935 = vadd.f32 %v861, %v934
      %v936 = vpop.f32.mrf.mxu0
      %937 = vdwg.mxu0
      %938 = vmatprep.subr.mxu0 0.0
      %939 = vmatpush1.msra.mxu0 0.0
      %940 = vmatprep.subr.mxu0 0.0
      %941 = vmatpush1.msra.mxu0 0.0
      %942 = vmatprep.subr.mxu0 0.0
      %943 = vmatpush1.msra.mxu0 0.0
      %944 = vmatprep.subr.mxu0 0.0
      %945 = vmatpush1.msra.mxu0 0.0
      %946 = vmatprep.subr.mxu0 0.0
      %947 = vmatpush1.msra.mxu0 0.0
      %948 = vmatprep.subr.mxu0 0.0
      %949 = vmatpush1.msra.mxu0 0.0
      %950 = vmatprep.subr.mxu0 0.0
      %951 = vmatpush1.msra.mxu0 0.0
      %952 = vmatprep.subr.mxu0 0.0
      %953 = vmatpush1.msra.mxu0 0.0
      %954 = vmatprep.subr.mxu0 0.0
      %955 = vmatpush1.msra.mxu0 0.0
      %956 = vmatprep.subr.mxu0 0.0
      %957 = vmatpush1.msra.mxu0 0.0
      %958 = vmatprep.subr.mxu0 0.0
      %959 = vmatpush1.msra.mxu0 0.0
      %960 = vmatprep.subr.mxu0 0.0
      %961 = vmatpush1.msra.mxu0 0.0
      %962 = vmatprep.subr.mxu0 0.0
      %963 = vmatpush1.msra.mxu0 0.0
      %964 = vmatprep.subr.mxu0 0.0
      %965 = vmatpush1.msra.mxu0 0.0
      %966 = vmatprep.subr.mxu0 0.0
      %967 = vmatpush1.msra.mxu0 0.0
      %968 = vmatprep.subr.mxu0 0.0
      %v969 = vand.u32 %v130, 4294901760
      %v970 = vsub.f32 %v130, %v969
      %v971 = vand.u32 %v970, 4294901760
      %972 = vmatpush1.msra.mxu0 %v971
      %973 = vmatprep.subr.mxu0 0.0
      %974 = vmatpush2.msra.mxu0 0.0
      %975 = vmatprep.subr.mxu0 0.0
      %976 = vmatpush2.msra.mxu0 0.0
      %977 = vmatprep.subr.mxu0 0.0
      %978 = vmatpush2.msra.mxu0 0.0
      %979 = vmatprep.subr.mxu0 0.0
      %980 = vmatpush2.msra.mxu0 0.0
      %981 = vmatprep.subr.mxu0 0.0
      %982 = vmatpush2.msra.mxu0 0.0
      %983 = vmatprep.subr.mxu0 0.0
      %984 = vmatpush2.msra.mxu0 0.0
      %985 = vmatprep.subr.mxu0 0.0
      %986 = vmatpush2.msra.mxu0 0.0
      %987 = vmatprep.subr.mxu0 0.0
      %988 = vmatpush2.msra.mxu0 0.0
      %989 = vmatprep.subr.mxu0 0.0
      %990 = vmatpush2.msra.mxu0 0.0
      %991 = vmatprep.subr.mxu0 0.0
      %992 = vmatpush2.msra.mxu0 0.0
      %993 = vmatprep.subr.mxu0 0.0
      %994 = vmatpush2.msra.mxu0 0.0
      %995 = vmatprep.subr.mxu0 0.0
      %996 = vmatpush2.msra.mxu0 0.0
      %997 = vmatprep.subr.mxu0 0.0
      %998 = vmatpush2.msra.mxu0 0.0
      %999 = vmatprep.subr.mxu0 0.0
      %1000 = vmatpush2.msra.mxu0 0.0
      %1001 = vmatprep.subr.mxu0 0.0
      %1002 = vmatpush2.msra.mxu0 0.0
      %1003 = vmatprep.subr.mxu0 0.0
      %1004 = vmatpush2.msra.mxu0 0.0
      %1005 = vmatprep.mubr.f32.mxu0 0.0
      %v1006 = vand.u32 %v636, 4294901760
      %1007 = vmatmul.mubr.f32.gmra.mxu0 %v1006
      %v1008 = vpop.f32.mrf.mxu0
      %v1009 = vadd.f32 %v935, %v1008
      %v1010 = vpop.f32.mrf.mxu0
      %1011 = vdwg.mxu0
      %1012 = vmatprep.subr.mxu0 0.0
      %1013 = vmatpush1.msra.mxu0 0.0
      %1014 = vmatprep.subr.mxu0 0.0
      %1015 = vmatpush1.msra.mxu0 0.0
      %1016 = vmatprep.subr.mxu0 0.0
      %1017 = vmatpush1.msra.mxu0 0.0
      %1018 = vmatprep.subr.mxu0 0.0
      %1019 = vmatpush1.msra.mxu0 0.0
      %1020 = vmatprep.subr.mxu0 0.0
      %1021 = vmatpush1.msra.mxu0 0.0
      %1022 = vmatprep.subr.mxu0 0.0
      %1023 = vmatpush1.msra.mxu0 0.0
      %1024 = vmatprep.subr.mxu0 0.0
      %1025 = vmatpush1.msra.mxu0 0.0
      %1026 = vmatprep.subr.mxu0 0.0
      %1027 = vmatpush1.msra.mxu0 0.0
      %1028 = vmatprep.subr.mxu0 0.0
      %1029 = vmatpush1.msra.mxu0 0.0
      %1030 = vmatprep.subr.mxu0 0.0
      %1031 = vmatpush1.msra.mxu0 0.0
      %1032 = vmatprep.subr.mxu0 0.0
      %1033 = vmatpush1.msra.mxu0 0.0
      %1034 = vmatprep.subr.mxu0 0.0
      %1035 = vmatpush1.msra.mxu0 0.0
      %1036 = vmatprep.subr.mxu0 0.0
      %1037 = vmatpush1.msra.mxu0 0.0
      %1038 = vmatprep.subr.mxu0 0.0
      %1039 = vmatpush1.msra.mxu0 0.0
      %1040 = vmatprep.subr.mxu0 0.0
      %1041 = vmatpush1.msra.mxu0 0.0
      %1042 = vmatprep.subr.mxu0 0.0
      %v1043 = vand.u32 %v130, 4294901760
      %1044 = vmatpush1.msra.mxu0 %v1043
      %1045 = vmatprep.subr.mxu0 0.0
      %1046 = vmatpush2.msra.mxu0 0.0
      %1047 = vmatprep.subr.mxu0 0.0
      %1048 = vmatpush2.msra.mxu0 0.0
      %1049 = vmatprep.subr.mxu0 0.0
      %1050 = vmatpush2.msra.mxu0 0.0
      %1051 = vmatprep.subr.mxu0 0.0
      %1052 = vmatpush2.msra.mxu0 0.0
      %1053 = vmatprep.subr.mxu0 0.0
      %1054 = vmatpush2.msra.mxu0 0.0
      %1055 = vmatprep.subr.mxu0 0.0
      %1056 = vmatpush2.msra.mxu0 0.0
      %1057 = vmatprep.subr.mxu0 0.0
      %1058 = vmatpush2.msra.mxu0 0.0
      %1059 = vmatprep.subr.mxu0 0.0
      %1060 = vmatpush2.msra.mxu0 0.0
      %1061 = vmatprep.subr.mxu0 0.0
      %1062 = vmatpush2.msra.mxu0 0.0
      %1063 = vmatprep.subr.mxu0 0.0
      %1064 = vmatpush2.msra.mxu0 0.0
      %1065 = vmatprep.subr.mxu0 0.0
      %1066 = vmatpush2.msra.mxu0 0.0
      %1067 = vmatprep.subr.mxu0 0.0
      %1068 = vmatpush2.msra.mxu0 0.0
      %1069 = vmatprep.subr.mxu0 0.0
      %1070 = vmatpush2.msra.mxu0 0.0
      %1071 = vmatprep.subr.mxu0 0.0
      %1072 = vmatpush2.msra.mxu0 0.0
      %1073 = vmatprep.subr.mxu0 0.0
      %1074 = vmatpush2.msra.mxu0 0.0
      %1075 = vmatprep.subr.mxu0 0.0
      %1076 = vmatpush2.msra.mxu0 0.0
      %1077 = vmatprep.mubr.f32.mxu0 0.0
      %v1078 = vand.u32 %v636, 4294901760
      %1079 = vmatmul.mubr.f32.gmra.mxu0 %v1078
      %v1080 = vpop.f32.mrf.mxu0
      %v1081 = vadd.f32 %v1009, %v1080
      %v1082 = vpop.f32.mrf.mxu0
      %1083 = vdwg.mxu0
      %v1084 = vadd.f32 %v602, %v1081
      %1085 = vst.msk [vmem:[#allocation2] sm:$0xff] %vm131, %v1084
      // Predicated region
      $region29: #{bcn_forward.8} parent=23 // pred_check
        %p1086 = pneg %p124
      $region30: #{bcn_forward.8} parent=23 // pred_check_branch
        %1088 = sbr.rel (%p1086) target = $region32
      $region31: #{bcn_forward.8} parent=23 // pred_region
        %v1089 = vld [vmem:[#allocation2] sm:$0xff]
        %v1090 = vsub.f32 %v130, %v1089
        %v1091 = vmul.f32 %v130, %v1089
        %1093 = vrot.lane.b32.xlu0 %v1090, 32
        %v1094 = vpop.permute.xlu0 %1093
        %1097 = vrot.lane.b32.xlu0 %v1091, 64
        %v1098 = vpop.permute.xlu0 %1097
        %v1100 = vsel %vm131, %v130, %v1094
        %vm1101 = vcmask 523264
        %v1102 = vsel %vm1101, %v1100, %v1098
        %vm1103 = vcmask 785408
        %1104 = vst.msk [vmem:[%s123] sm:$0xff] %vm1103, %v1102
      $region32: #{bcn_forward.8} parent=23 // pred_fallthru
        _
      %p1105 = scmp.lt.s32.totalorder %s16, 1
      %s1106 = scalar_select %p1105, %s16, 1
      %s1107 = smul.addr %s1106, 8
      %s1108 = scalar_lea.vmem %s1, %s1107
      // Predicated region
      $region33: #{bcn_forward.8} parent=23 // pred_check
        %p1109 = pneg %p68
      $region34: #{bcn_forward.8} parent=23 // pred_check_branch
        %1111 = sbr.rel (%p1109) target = $region36
      $region35: #{bcn_forward.8} parent=23 // pred_region
        _
      $region36: #{bcn_forward.8} parent=23 // pred_fallthru
        _
    $region24: #{bcn_forward.8} parent=5 // pred_fallthru
      _
    %p1112 = scmp.le.s32.totalorder 2, %s7
    // Predicated region
    $region37: #{bcn_forward.8} parent=5 // pred_check
      %p1113 = pneg %p1112
    $region38: #{bcn_forward.8} parent=5 // pred_check_branch
      %1115 = sbr.rel (%p1113) target = $region40
    $region39: #{bcn_forward.8} parent=5 // pred_region
      %s1116 = ssub.s32 %s7, 2
      // Predicated region
      $region41: #{bcn_forward.8} parent=39 // pred_check
        %p1117 = pneg %p74
      $region42: #{bcn_forward.8} parent=39 // pred_check_branch
        %1119 = sbr.rel (%p1117) target = $region44
      $region43: #{bcn_forward.8} parent=39 // pred_region
        %p1120 = scmp.lt.s32.totalorder %s18, 1
        %s1121 = scalar_select %p1120, %s18, 1
        %s1122 = smul.addr %s1121, 8
        %s1123 = scalar_lea.vmem %s1, %s1122
      $region44: #{bcn_forward.8} parent=39 // pred_fallthru
        _
    $region40: #{bcn_forward.8} parent=5 // pred_fallthru
      _
  $region6: #{bcn_forward.8} parent=0 // loop_footer
    %s11 = sadd.s32 1, %s7
  $region7: #{bcn_forward.8} parent=0 // loop_footer_branch
    %6 = sbr.rel target = $region3
  $region8: #{bcn_forward.8} parent=0 // loop_exit
    _

// kernel: bcn_forward.9
$region0: #{bcn_forward.9}
  #allocation0 [shape = 'u32[]', space=smem, size = 0x4, offset = 0x4, fixed_abs, tag = 'smem constant byte address 0x4 - core index']
  #allocation1 [shape = 'u32[144,128]{1,0:T(1,128)}', space=vmem, size = 0x12000, scoped, tag = 'internal scratch']
  #allocation2 [shape = 'f32[16,64]{1,0:T(8,128)}', space=vmem, size = 0x2000, scoped, tag = 'scratch operand']
  #allocation3 [shape = 'f32[2,16]{1,0:T(2,128)}', space=vmem, size = 0x400, scoped, tag = 'scratch operand']
  #allocation4 [shape = 'f32[2,16]{1,0:T(2,128)}', space=vmem, size = 0x400, scoped, tag = 'scratch operand']
  %s0 = inlined_call_operand.vmem [shape: f32[16,96], index: 0, kind: input, shape index: {}]
  %s1 = inlined_call_operand.vmem [shape: f32[2,96,64], index: 1, kind: input, shape index: {}]
  %s2 = inlined_call_operand.vmem [shape: f32[2,16,64], index: 2, kind: input, shape index: {}]
  %s3 = inlined_call_operand.vmem [shape: f32[2,1,64], index: 3, kind: input, shape index: {}]
  %s4 = inlined_call_operand.vmem [shape: f32[2,16,16], index: 4, kind: output, shape index: {}]
  %s5 = sld [smem:[#allocation0]]
  $region60: #{bcn_forward.9} parent=0
    _
  %s7 = ssub.s32 1, %s5
  %s8 = scalar_select 0, %s7, %s5
  loop: start=0, step=1, limit=4
  $region2: #{bcn_forward.9} parent=0 // loop_pre_header
    _
  $region3: #{bcn_forward.9} parent=0 // loop_header
    %s10 = sphi 0, %s14
    %p11 = scmp.ge.s32.totalorder %s10, 4
    %s17 = sphi 0, %s29
    %s18 = sphi 0, %s25
    %s19 = sphi 0, %s17
    %s20 = sphi 0, %s18
    %s21 = sphi 0, %s19
    %s22 = sphi 0, %s20
    %s40 = sphi 0, %s42
    %s43 = sphi 0, %s40
    %s44 = sphi 0, %s43
    %s60 = sphi 0, %s44
    %s66 = sphi 0, %s68
    %s69 = sphi 0, %s66
    %s70 = sphi 0, %s69
    %s86 = sphi 0, %s70
    %s92 = sphi 0, %s94
    %s95 = sphi 0, %s92
    %s96 = sphi 0, %s95
    %s112 = sphi 0, %s96
    %s118 = sphi 0, %s120
    %s121 = sphi 0, %s118
    %s122 = sphi 0, %s121
    %s138 = sphi 0, %s122
    %s154 = sphi 0, %s156
    %s157 = sphi 0, %s154
    %s158 = sphi 0, %s157
    %s174 = sphi 0, %s158
  $region4: #{bcn_forward.9} parent=0 // loop_header_branch
    %13 = sbr.rel (%p11) target = $region8
  $region5: #{bcn_forward.9} parent=0 // loop_body
    %s15 = ssub.s32 %s10, 1
    %s16 = ssub.s32 %s10, 2
    %s23 = sadd.s32 1, %s18
    %p24 = scmp.ge.s32.totalorder %s23, 1
    %s25 = scalar_select %p24, 0, %s23
    %s26 = sadd.s32 1, %s17
    %s27 = scalar_select %p24, %s26, %s17
    %p28 = scmp.ge.s32.totalorder %s27, 2
    %s29 = scalar_select %p28, 0, %s27
    %s30 = smul.u32 %s18, 2
    %s31 = ssub.s32 0, %s30
    %s32 = smul.u32 %s17, %s31
    %s33 = sadd.s32 %s18, %s32
    %s34 = smul.u32 %s25, 2
    %s35 = ssub.s32 0, %s34
    %s36 = smul.u32 %s29, %s35
    %s37 = sadd.s32 %s25, %s36
    %s38 = ssub.s32 %s33, %s37
    %p39 = scmp.eq.s32.totalorder %s38, 0
    %s41 = sadd.s32 %s40, 1
    %s42 = scalar_select %p39, %s40, %s41
    %p45 = pneg %p39
    %p46 = scmp.eq.s32.totalorder %s10, 1
    %p47 = por %p45, %p46
    %p48 = scmp.ne.s32.totalorder %s40, %s43
    %p49 = scmp.eq.s32.totalorder %s10, 0
    %p50 = por %p48, %p49
    %p51 = scmp.ne.s32.totalorder %s40, %s43
    %p52 = scmp.eq.s32.totalorder %s15, 1
    %p53 = por %p51, %p52
    %p54 = scmp.ne.s32.totalorder %s43, %s44
    %p55 = scmp.eq.s32.totalorder %s15, 0
    %p56 = por %p54, %p55
    %p57 = scmp.ne.s32.totalorder %s43, %s44
    %p58 = scmp.eq.s32.totalorder %s16, 1
    %p59 = por %p57, %p58
    %p61 = scmp.ne.s32.totalorder %s44, %s60
    %p62 = scmp.eq.s32.totalorder %s16, 0
    %p63 = por %p61, %p62
    %s64 = ssub.s32 %s17, %s29
    %p65 = scmp.eq.s32.totalorder %s64, 0
    %s67 = sadd.s32 %s66, 1
    %s68 = scalar_select %p65, %s66, %s67
    %p71 = pneg %p65
    %p72 = scmp.eq.s32.totalorder %s10, 1
    %p73 = por %p71, %p72
    %p74 = scmp.ne.s32.totalorder %s66, %s69
    %p75 = scmp.eq.s32.totalorder %s10, 0
    %p76 = por %p74, %p75
    %p77 = scmp.ne.s32.totalorder %s66, %s69
    %p78 = scmp.eq.s32.totalorder %s15, 1
    %p79 = por %p77, %p78
    %p80 = scmp.ne.s32.totalorder %s69, %s70
    %p81 = scmp.eq.s32.totalorder %s15, 0
    %p82 = por %p80, %p81
    %p83 = scmp.ne.s32.totalorder %s69, %s70
    %p84 = scmp.eq.s32.totalorder %s16, 1
    %p85 = por %p83, %p84
    %p87 = scmp.ne.s32.totalorder %s70, %s86
    %p88 = scmp.eq.s32.totalorder %s16, 0
    %p89 = por %p87, %p88
    %s90 = ssub.s32 %s17, %s29
    %p91 = scmp.eq.s32.totalorder %s90, 0
    %s93 = sadd.s32 %s92, 1
    %s94 = scalar_select %p91, %s92, %s93
    %p97 = pneg %p91
    %p98 = scmp.eq.s32.totalorder %s10, 1
    %p99 = por %p97, %p98
    %p100 = scmp.ne.s32.totalorder %s92, %s95
    %p101 = scmp.eq.s32.totalorder %s10, 0
    %p102 = por %p100, %p101
    %p103 = scmp.ne.s32.totalorder %s92, %s95
    %p104 = scmp.eq.s32.totalorder %s15, 1
    %p105 = por %p103, %p104
    %p106 = scmp.ne.s32.totalorder %s95, %s96
    %p107 = scmp.eq.s32.totalorder %s15, 0
    %p108 = por %p106, %p107
    %p109 = scmp.ne.s32.totalorder %s95, %s96
    %p110 = scmp.eq.s32.totalorder %s16, 1
    %p111 = por %p109, %p110
    %p113 = scmp.ne.s32.totalorder %s96, %s112
    %p114 = scmp.eq.s32.totalorder %s16, 0
    %p115 = por %p113, %p114
    %s116 = ssub.s32 %s17, %s29
    %p117 = scmp.eq.s32.totalorder %s116, 0
    %s119 = sadd.s32 %s118, 1
    %s120 = scalar_select %p117, %s118, %s119
    %p123 = pneg %p117
    %p124 = scmp.eq.s32.totalorder %s10, 1
    %p125 = por %p123, %p124
    %p126 = scmp.ne.s32.totalorder %s118, %s121
    %p127 = scmp.eq.s32.totalorder %s10, 0
    %p128 = por %p126, %p127
    %p129 = scmp.ne.s32.totalorder %s118, %s121
    %p130 = scmp.eq.s32.totalorder %s15, 1
    %p131 = por %p129, %p130
    %p132 = scmp.ne.s32.totalorder %s121, %s122
    %p133 = scmp.eq.s32.totalorder %s15, 0
    %p134 = por %p132, %p133
    %p135 = scmp.ne.s32.totalorder %s121, %s122
    %p136 = scmp.eq.s32.totalorder %s16, 1
    %p137 = por %p135, %p136
    %p139 = scmp.ne.s32.totalorder %s122, %s138
    %p140 = scmp.eq.s32.totalorder %s16, 0
    %p141 = por %p139, %p140
    %s142 = smul.u32 %s18, 2
    %s143 = ssub.s32 0, %s142
    %s144 = smul.u32 %s17, %s143
    %s145 = sadd.s32 %s18, %s144
    %s146 = smul.u32 %s25, 2
    %s147 = ssub.s32 0, %s146
    %s148 = smul.u32 %s29, %s147
    %s149 = sadd.s32 %s25, %s148
    %s150 = ssub.s32 %s17, %s29
    %s151 = ssub.s32 %s145, %s149
    %s152 = sor.u32 %s150, %s151
    %p153 = scmp.eq.s32.totalorder %s152, 0
    %s155 = sadd.s32 %s154, 1
    %s156 = scalar_select %p153, %s154, %s155
    %p159 = pneg %p153
    %p160 = scmp.eq.s32.totalorder %s10, 1
    %p161 = por %p159, %p160
    %p162 = scmp.ne.s32.totalorder %s154, %s157
    %p163 = scmp.eq.s32.totalorder %s10, 0
    %p164 = por %p162, %p163
    %p165 = scmp.ne.s32.totalorder %s154, %s157
    %p166 = scmp.eq.s32.totalorder %s15, 1
    %p167 = por %p165, %p166
    %p168 = scmp.ne.s32.totalorder %s157, %s158
    %p169 = scmp.eq.s32.totalorder %s15, 0
    %p170 = por %p168, %p169
    %p171 = scmp.ne.s32.totalorder %s157, %s158
    %p172 = scmp.eq.s32.totalorder %s16, 1
    %p173 = por %p171, %p172
    %p175 = scmp.ne.s32.totalorder %s158, %s174
    %p176 = scmp.eq.s32.totalorder %s16, 0
    %p177 = por %p175, %p176
    %p178 = scmp.le.s32.totalorder 1, %s10
    %p179 = scmp.lt.s32.totalorder %s10, 3
    %p180 = pnand %p178, %p179
    %p181 = pneg %p180
    // Predicated region
    $region9: #{bcn_forward.9} parent=5 // pred_check
      _
    $region10: #{bcn_forward.9} parent=5 // pred_check_branch
      %183 = sbr.rel (%p180) target = $region12
    $region11: #{bcn_forward.9} parent=5 // pred_region
      %s184 = ssub.s32 %s10, 1
    $region12: #{bcn_forward.9} parent=5 // pred_fallthru
      _
    %p185 = scmp.lt.s32.totalorder %s10, 2
    // Predicated region
    $region13: #{bcn_forward.9} parent=5 // pred_check
      %p186 = pneg %p185
    $region14: #{bcn_forward.9} parent=5 // pred_check_branch
      %188 = sbr.rel (%p186) target = $region16
    $region15: #{bcn_forward.9} parent=5 // pred_region
      // Predicated region
      $region17: #{bcn_forward.9} parent=15 // pred_check
        %p189 = pneg %p50
      $region18: #{bcn_forward.9} parent=15 // pred_check_branch
        %191 = sbr.rel (%p189) target = $region20
      $region19: #{bcn_forward.9} parent=15 // pred_region
        %s192 = smul.u32 %s18, 2
        %s193 = ssub.s32 0, %s192
        %s194 = smul.u32 %s17, %s193
        %s195 = sadd.s32 %s18, %s194
        %s196 = smul.u32 2, %s195
        %p197 = scmp.lt.s32.totalorder %s196, 1
        %s198 = scalar_select %p197, %s196, 1
        %s199 = smul.addr %s198, 8
        %s200 = scalar_lea.vmem %s0, %s199
        %s201 = smul.u32 %s18, 2
        %s202 = ssub.s32 0, %s201
        %s203 = smul.u32 %s17, %s202
        %s204 = sadd.s32 %s18, %s203
        %s205 = smul.u32 2, %s204
      $region20: #{bcn_forward.9} parent=15 // pred_fallthru
        _
      // Predicated region
      $region21: #{bcn_forward.9} parent=15 // pred_check
        %p206 = pneg %p76
      $region22: #{bcn_forward.9} parent=15 // pred_check_branch
        %208 = sbr.rel (%p206) target = $region24
      $region23: #{bcn_forward.9} parent=15 // pred_region
        %p209 = scmp.lt.s32.totalorder %s17, 1
        %s210 = scalar_select %p209, %s17, 1
        %s211 = smul.addr %s210, 12
        %s212 = smul.addr %s211, 8
        %s213 = scalar_lea.vmem %s1, %s212
      $region24: #{bcn_forward.9} parent=15 // pred_fallthru
        _
      // Predicated region
      $region25: #{bcn_forward.9} parent=15 // pred_check
        %p214 = pneg %p102
      $region26: #{bcn_forward.9} parent=15 // pred_check_branch
        %216 = sbr.rel (%p214) target = $region28
      $region27: #{bcn_forward.9} parent=15 // pred_region
        %p217 = scmp.lt.s32.totalorder %s17, 1
        %s218 = scalar_select %p217, %s17, 1
        %s219 = smul.addr %s218, 2
        %s220 = smul.addr %s219, 8
        %s221 = scalar_lea.vmem %s2, %s220
      $region28: #{bcn_forward.9} parent=15 // pred_fallthru
        _
      // Predicated region
      $region29: #{bcn_forward.9} parent=15 // pred_check
        %p222 = pneg %p128
      $region30: #{bcn_forward.9} parent=15 // pred_check_branch
        %224 = sbr.rel (%p222) target = $region32
      $region31: #{bcn_forward.9} parent=15 // pred_region
        %p225 = scmp.lt.s32.totalorder %s17, 1
        %s226 = scalar_select %p225, %s17, 1
        %s227 = scalar_lea.vmem %s3, %s226
      $region32: #{bcn_forward.9} parent=15 // pred_fallthru
        _
    $region16: #{bcn_forward.9} parent=5 // pred_fallthru
      _
    %p228 = scmp.le.s32.totalorder 1, %s10
    %p229 = scmp.lt.s32.totalorder %s10, 3
    %p230 = pnand %p228, %p229
    %p231 = pneg %p230
    // Predicated region
    $region33: #{bcn_forward.9} parent=5 // pred_check
      _
    $region34: #{bcn_forward.9} parent=5 // pred_check_branch
      %233 = sbr.rel (%p230) target = $region36
    $region35: #{bcn_forward.9} parent=5 // pred_region
      %s234 = ssub.s32 %s10, 1
      %s235 = smul.u32 %s20, 2
      %s236 = ssub.s32 0, %s235
      %s237 = smul.u32 %s19, %s236
      %s238 = sadd.s32 %s20, %s237
      %s239 = smul.u32 2, %s238
      %p240 = scmp.lt.s32.totalorder %s239, 1
      %s241 = scalar_select %p240, %s239, 1
      %s242 = smul.addr %s241, 8
      %s243 = scalar_lea.vmem %s0, %s242
      %p244 = pneg %p56
      %p245 = pneg %p53
      %p246 = scmp.lt.s32.totalorder %s19, 1
      %s247 = scalar_select %p246, %s19, 1
      %s248 = smul.addr %s247, 12
      %s249 = smul.addr %s248, 8
      %s250 = scalar_lea.vmem %s1, %s249
      %p251 = pneg %p82
      %p252 = pneg %p79
      %p253 = scmp.lt.s32.totalorder %s19, 1
      %s254 = scalar_select %p253, %s19, 1
      %s255 = smul.addr %s254, 2
      %s256 = smul.addr %s255, 8
      %s257 = scalar_lea.vmem %s2, %s256
      %p258 = pneg %p108
      %p259 = pneg %p105
      %p260 = scmp.lt.s32.totalorder %s19, 1
      %s261 = scalar_select %p260, %s19, 1
      %s262 = scalar_lea.vmem %s3, %s261
      %p263 = pneg %p134
      %p264 = pneg %p131
      %p265 = pneg %p170
      %p266 = pneg %p167
      %s267 = smul.u32 %s20, 2
      %s268 = ssub.s32 0, %s267
      %s269 = smul.u32 %s19, %s268
      %s270 = sadd.s32 %s20, %s269
      %s271 = smul.u32 2, %s270
      %p272 = scmp.lt.s32.totalorder %s19, 1
      %s273 = scalar_select %p272, %s19, 1
      %p274 = scmp.lt.s32.totalorder %s271, 1
      %s275 = scalar_select %p274, %s271, 1
      %s276 = smul.addr %s273, 2
      %s277 = sadd.s32 %s275, %s276
      %s278 = smul.addr %s277, 8
      %s279 = scalar_lea.vmem %s4, %s278
      %s280 = smul.u32 %s20, 2
      %s281 = ssub.s32 0, %s280
      %s282 = smul.u32 %s19, %s281
      %s283 = sadd.s32 %s20, %s282
      %s284 = smul.u32 2, %s283
      %p285 = scmp.lt.s32.totalorder %s284, 1
      %s286 = scalar_select %p285, %s284, 1
      %s287 = smul.addr %s286, 8
      %s288 = scalar_lea.vmem %s0, %s287
      %s289 = smul.u32 %s20, 2
      %s290 = ssub.s32 0, %s289
      %s291 = smul.u32 %s19, %s290
      %s292 = sadd.s32 %s20, %s291
      %s293 = smul.u32 2, %s292
      %p294 = scmp.lt.s32.totalorder %s19, 1
      %s295 = scalar_select %p294, %s19, 1
      %s296 = smul.addr %s295, 12
      %s297 = smul.addr %s296, 8
      %s298 = scalar_lea.vmem %s1, %s297
      %p299 = scmp.lt.s32.totalorder %s19, 1
      %s300 = scalar_select %p299, %s19, 1
      %s301 = smul.addr %s300, 2
      %s302 = smul.addr %s301, 8
      %s303 = scalar_lea.vmem %s2, %s302
      %p304 = scmp.lt.s32.totalorder %s19, 1
      %s305 = scalar_select %p304, %s19, 1
      %s306 = scalar_lea.vmem %s3, %s305
      %s307 = smul.u32 %s20, 2
      %s308 = ssub.s32 0, %s307
      %s309 = smul.u32 %s19, %s308
      %s310 = sadd.s32 %s20, %s309
      %s311 = smul.u32 2, %s310
      %p312 = scmp.lt.s32.totalorder %s19, 1
      %s313 = scalar_select %p312, %s19, 1
      %p314 = scmp.lt.s32.totalorder %s311, 1
      %s315 = scalar_select %p314, %s311, 1
      %s316 = smul.addr %s313, 2
      %s317 = sadd.s32 %s315, %s316
      %s318 = smul.addr %s317, 8
      %s319 = scalar_lea.vmem %s4, %s318
      %s320 = smul.u32 %s20, 2
      %s321 = ssub.s32 0, %s320
      %s322 = smul.u32 %s19, %s321
      %s323 = sadd.s32 %s20, %s322
      %s324 = smul.u32 2, %s323
      %p325 = scmp.eq.s32.totalorder %s20, 0
      // Predicated region
      $region37: #{bcn_forward.9} parent=35 // pred_check
        %p326 = pneg %p325
      $region38: #{bcn_forward.9} parent=35 // pred_check_branch
        %328 = sbr.rel (%p326) target = $region40
      $region39: #{bcn_forward.9} parent=35 // pred_region
        %vm329 = vcmask 123904
        %330 = vst.msk [vmem:[#allocation3] sm:$0x3] %vm329, 0.0
        %331 = vst.msk [vmem:[#allocation4] sm:$0x3] %vm329, 0.0
      $region40: #{bcn_forward.9} parent=35 // pred_fallthru
        _
      %v332 = vld [vmem:[%s288] sm:$0xff]
      %v333 = vld [vmem:[%s288 + $0x8] sm:$0xff]
      %v334 = vld [vmem:[%s298] sm:$0xff]
      %v335 = vld [vmem:[%s298 + $0x8] sm:$0xff]
      %v336 = vld [vmem:[%s298 + $0x10] sm:$0xff]
      %v337 = vld [vmem:[%s298 + $0x18] sm:$0xff]
      %v338 = vld [vmem:[%s298 + $0x20] sm:$0xff]
      %v339 = vld [vmem:[%s298 + $0x28] sm:$0xff]
      %v340 = vld [vmem:[%s298 + $0x30] sm:$0xff]
      %v341 = vld [vmem:[%s298 + $0x38] sm:$0xff]
      %v342 = vld [vmem:[%s298 + $0x40] sm:$0xff]
      %v343 = vld [vmem:[%s298 + $0x48] sm:$0xff]
      %v344 = vld [vmem:[%s298 + $0x50] sm:$0xff]
      %v345 = vld [vmem:[%s298 + $0x58] sm:$0xff]
      %v346 = vld [vmem:[%s306] sm:$0x1]
      %v348 = vlaneseq
      %v349 = vshrl.u32 %v348, 7
      %v350 = vsub.s32 0, %v349
      %v351 = vrot.slane %v346, %v350
      %vm353 = vcmask 785408
      %v355 = vsel %vm353, %v332, 0
      %v358 = vsel %vm353, %v333, 0
      %360 = vmatprep.subr.mxu0 0.0
      %361 = vmatpush1.msra.mxu0 0.0
      %362 = vmatprep.subr.mxu0 0.0
      %363 = vmatpush1.msra.mxu0 0.0
      %364 = vmatprep.subr.mxu0 0.0
      %365 = vmatpush1.msra.mxu0 0.0
      %366 = vmatprep.subr.mxu0 0.0
      %367 = vmatpush1.msra.mxu0 0.0
      %368 = vmatprep.subr.mxu0 0.0
      %v369 = vand.u32 %v345, 4294901760
      %370 = vmatpush1.msra.mxu0 %v369
      %371 = vmatprep.subr.mxu0 0.0
      %v372 = vand.u32 %v344, 4294901760
      %373 = vmatpush1.msra.mxu0 %v372
      %374 = vmatprep.subr.mxu0 0.0
      %v375 = vand.u32 %v343, 4294901760
      %376 = vmatpush1.msra.mxu0 %v375
      %377 = vmatprep.subr.mxu0 0.0
      %v378 = vand.u32 %v342, 4294901760
      %379 = vmatpush1.msra.mxu0 %v378
      %380 = vmatprep.subr.mxu0 0.0
      %v381 = vand.u32 %v341, 4294901760
      %382 = vmatpush1.msra.mxu0 %v381
      %383 = vmatprep.subr.mxu0 0.0
      %v384 = vand.u32 %v340, 4294901760
      %385 = vmatpush1.msra.mxu0 %v384
      %386 = vmatprep.subr.mxu0 0.0
      %v387 = vand.u32 %v339, 4294901760
      %388 = vmatpush1.msra.mxu0 %v387
      %389 = vmatprep.subr.mxu0 0.0
      %v390 = vand.u32 %v338, 4294901760
      %391 = vmatpush1.msra.mxu0 %v390
      %392 = vmatprep.subr.mxu0 0.0
      %v393 = vand.u32 %v337, 4294901760
      %394 = vmatpush1.msra.mxu0 %v393
      %395 = vmatprep.subr.mxu0 0.0
      %v396 = vand.u32 %v336, 4294901760
      %397 = vmatpush1.msra.mxu0 %v396
      %398 = vmatprep.subr.mxu0 0.0
      %v399 = vand.u32 %v335, 4294901760
      %400 = vmatpush1.msra.mxu0 %v399
      %401 = vmatprep.subr.mxu0 0.0
      %v402 = vand.u32 %v334, 4294901760
      %403 = vmatpush1.msra.mxu0 %v402
      %404 = vmatprep.subr.mxu0 0.0
      %405 = vmatpush2.msra.mxu0 0.0
      %406 = vmatprep.subr.mxu0 0.0
      %407 = vmatpush2.msra.mxu0 0.0
      %408 = vmatprep.subr.mxu0 0.0
      %409 = vmatpush2.msra.mxu0 0.0
      %410 = vmatprep.subr.mxu0 0.0
      %411 = vmatpush2.msra.mxu0 0.0
      %412 = vmatprep.subr.mxu0 0.0
      %413 = vmatpush2.msra.mxu0 0.0
      %414 = vmatprep.subr.mxu0 0.0
      %415 = vmatpush2.msra.mxu0 0.0
      %416 = vmatprep.subr.mxu0 0.0
      %417 = vmatpush2.msra.mxu0 0.0
      %418 = vmatprep.subr.mxu0 0.0
      %419 = vmatpush2.msra.mxu0 0.0
      %420 = vmatprep.subr.mxu0 0.0
      %421 = vmatpush2.msra.mxu0 0.0
      %422 = vmatprep.subr.mxu0 0.0
      %423 = vmatpush2.msra.mxu0 0.0
      %424 = vmatprep.subr.mxu0 0.0
      %425 = vmatpush2.msra.mxu0 0.0
      %426 = vmatprep.subr.mxu0 0.0
      %427 = vmatpush2.msra.mxu0 0.0
      %428 = vmatprep.subr.mxu0 0.0
      %429 = vmatpush2.msra.mxu0 0.0
      %430 = vmatprep.subr.mxu0 0.0
      %431 = vmatpush2.msra.mxu0 0.0
      %432 = vmatprep.subr.mxu0 0.0
      %433 = vmatpush2.msra.mxu0 0.0
      %434 = vmatprep.subr.mxu0 0.0
      %435 = vmatpush2.msra.mxu0 0.0
      %436 = vmatprep.mubr.f32.mxu0 0.0
      %v437 = vand.u32 %v355, 4294901760
      %v438 = vsub.f32 %v355, %v437
      %v439 = vand.u32 %v438, 4294901760
      %v440 = vsub.f32 %v438, %v439
      %v441 = vand.u32 %v440, 4294901760
      %442 = vmatmul.mubr.f32.gmra.mxu0 %v441
      %v443 = vpop.f32.mrf.mxu0
      %v444 = vadd.f32 %v351, %v443
      %v445 = vpop.f32.mrf.mxu0
      %446 = vmatprep.mubr.f32.mxu0 0.0
      %v447 = vand.u32 %v358, 4294901760
      %v448 = vsub.f32 %v358, %v447
      %v449 = vand.u32 %v448, 4294901760
      %v450 = vsub.f32 %v448, %v449
      %v451 = vand.u32 %v450, 4294901760
      %452 = vmatmul.mubr.f32.gmra.mxu0 %v451
      %v453 = vpop.f32.mrf.mxu0
      %v454 = vadd.f32 %v351, %v453
      %v455 = vpop.f32.mrf.mxu0
      %456 = vdwg.mxu0
      %457 = vmatprep.subr.mxu0 0.0
      %458 = vmatpush1.msra.mxu0 0.0
      %459 = vmatprep.subr.mxu0 0.0
      %460 = vmatpush1.msra.mxu0 0.0
      %461 = vmatprep.subr.mxu0 0.0
      %462 = vmatpush1.msra.mxu0 0.0
      %463 = vmatprep.subr.mxu0 0.0
      %464 = vmatpush1.msra.mxu0 0.0
      %465 = vmatprep.subr.mxu0 0.0
      %v466 = vand.u32 %v345, 4294901760
      %v467 = vsub.f32 %v345, %v466
      %v468 = vand.u32 %v467, 4294901760
      %v469 = vsub.f32 %v467, %v468
      %v470 = vand.u32 %v469, 4294901760
      %471 = vmatpush1.msra.mxu0 %v470
      %472 = vmatprep.subr.mxu0 0.0
      %v473 = vand.u32 %v344, 4294901760
      %v474 = vsub.f32 %v344, %v473
      %v475 = vand.u32 %v474, 4294901760
      %v476 = vsub.f32 %v474, %v475
      %v477 = vand.u32 %v476, 4294901760
      %478 = vmatpush1.msra.mxu0 %v477
      %479 = vmatprep.subr.mxu0 0.0
      %v480 = vand.u32 %v343, 4294901760
      %v481 = vsub.f32 %v343, %v480
      %v482 = vand.u32 %v481, 4294901760
      %v483 = vsub.f32 %v481, %v482
      %v484 = vand.u32 %v483, 4294901760
      %485 = vmatpush1.msra.mxu0 %v484
      %486 = vmatprep.subr.mxu0 0.0
      %v487 = vand.u32 %v342, 4294901760
      %v488 = vsub.f32 %v342, %v487
      %v489 = vand.u32 %v488, 4294901760
      %v490 = vsub.f32 %v488, %v489
      %v491 = vand.u32 %v490, 4294901760
      %492 = vmatpush1.msra.mxu0 %v491
      %493 = vmatprep.subr.mxu0 0.0
      %v494 = vand.u32 %v341, 4294901760
      %v495 = vsub.f32 %v341, %v494
      %v496 = vand.u32 %v495, 4294901760
      %v497 = vsub.f32 %v495, %v496
      %v498 = vand.u32 %v497, 4294901760
      %499 = vmatpush1.msra.mxu0 %v498
      %500 = vmatprep.subr.mxu0 0.0
      %v501 = vand.u32 %v340, 4294901760
      %v502 = vsub.f32 %v340, %v501
      %v503 = vand.u32 %v502, 4294901760
      %v504 = vsub.f32 %v502, %v503
      %v505 = vand.u32 %v504, 4294901760
      %506 = vmatpush1.msra.mxu0 %v505
      %507 = vmatprep.subr.mxu0 0.0
      %v508 = vand.u32 %v339, 4294901760
      %v509 = vsub.f32 %v339, %v508
      %v510 = vand.u32 %v509, 4294901760
      %v511 = vsub.f32 %v509, %v510
      %v512 = vand.u32 %v511, 4294901760
      %513 = vmatpush1.msra.mxu0 %v512
      %514 = vmatprep.subr.mxu0 0.0
      %v515 = vand.u32 %v338, 4294901760
      %v516 = vsub.f32 %v338, %v515
      %v517 = vand.u32 %v516, 4294901760
      %v518 = vsub.f32 %v516, %v517
      %v519 = vand.u32 %v518, 4294901760
      %520 = vmatpush1.msra.mxu0 %v519
      %521 = vmatprep.subr.mxu0 0.0
      %v522 = vand.u32 %v337, 4294901760
      %v523 = vsub.f32 %v337, %v522
      %v524 = vand.u32 %v523, 4294901760
      %v525 = vsub.f32 %v523, %v524
      %v526 = vand.u32 %v525, 4294901760
      %527 = vmatpush1.msra.mxu0 %v526
      %528 = vmatprep.subr.mxu0 0.0
      %v529 = vand.u32 %v336, 4294901760
      %v530 = vsub.f32 %v336, %v529
      %v531 = vand.u32 %v530, 4294901760
      %v532 = vsub.f32 %v530, %v531
      %v533 = vand.u32 %v532, 4294901760
      %534 = vmatpush1.msra.mxu0 %v533
      %535 = vmatprep.subr.mxu0 0.0
      %v536 = vand.u32 %v335, 4294901760
      %v537 = vsub.f32 %v335, %v536
      %v538 = vand.u32 %v537, 4294901760
      %v539 = vsub.f32 %v537, %v538
      %v540 = vand.u32 %v539, 4294901760
      %541 = vmatpush1.msra.mxu0 %v540
      %542 = vmatprep.subr.mxu0 0.0
      %v543 = vand.u32 %v334, 4294901760
      %v544 = vsub.f32 %v334, %v543
      %v545 = vand.u32 %v544, 4294901760
      %v546 = vsub.f32 %v544, %v545
      %v547 = vand.u32 %v546, 4294901760
      %548 = vmatpush1.msra.mxu0 %v547
      %549 = vmatprep.subr.mxu0 0.0
      %550 = vmatpush2.msra.mxu0 0.0
      %551 = vmatprep.subr.mxu0 0.0
      %552 = vmatpush2.msra.mxu0 0.0
      %553 = vmatprep.subr.mxu0 0.0
      %554 = vmatpush2.msra.mxu0 0.0
      %555 = vmatprep.subr.mxu0 0.0
      %556 = vmatpush2.msra.mxu0 0.0
      %557 = vmatprep.subr.mxu0 0.0
      %558 = vmatpush2.msra.mxu0 0.0
      %559 = vmatprep.subr.mxu0 0.0
      %560 = vmatpush2.msra.mxu0 0.0
      %561 = vmatprep.subr.mxu0 0.0
      %562 = vmatpush2.msra.mxu0 0.0
      %563 = vmatprep.subr.mxu0 0.0
      %564 = vmatpush2.msra.mxu0 0.0
      %565 = vmatprep.subr.mxu0 0.0
      %566 = vmatpush2.msra.mxu0 0.0
      %567 = vmatprep.subr.mxu0 0.0
      %568 = vmatpush2.msra.mxu0 0.0
      %569 = vmatprep.subr.mxu0 0.0
      %570 = vmatpush2.msra.mxu0 0.0
      %571 = vmatprep.subr.mxu0 0.0
      %572 = vmatpush2.msra.mxu0 0.0
      %573 = vmatprep.subr.mxu0 0.0
      %574 = vmatpush2.msra.mxu0 0.0
      %575 = vmatprep.subr.mxu0 0.0
      %576 = vmatpush2.msra.mxu0 0.0
      %577 = vmatprep.subr.mxu0 0.0
      %578 = vmatpush2.msra.mxu0 0.0
      %579 = vmatprep.subr.mxu0 0.0
      %580 = vmatpush2.msra.mxu0 0.0
      %581 = vmatprep.mubr.f32.mxu0 0.0
      %v582 = vand.u32 %v355, 4294901760
      %583 = vmatmul.mubr.f32.gmra.mxu0 %v582
      %v584 = vpop.f32.mrf.mxu0
      %v585 = vadd.f32 %v444, %v584
      %v586 = vpop.f32.mrf.mxu0
      %587 = vmatprep.mubr.f32.mxu0 0.0
      %v588 = vand.u32 %v358, 4294901760
      %589 = vmatmul.mubr.f32.gmra.mxu0 %v588
      %v590 = vpop.f32.mrf.mxu0
      %v591 = vadd.f32 %v454, %v590
      %v592 = vpop.f32.mrf.mxu0
      %593 = vdwg.mxu0
      %594 = vmatprep.subr.mxu0 0.0
      %595 = vmatpush1.msra.mxu0 0.0
      %596 = vmatprep.subr.mxu0 0.0
      %597 = vmatpush1.msra.mxu0 0.0
      %598 = vmatprep.subr.mxu0 0.0
      %599 = vmatpush1.msra.mxu0 0.0
      %600 = vmatprep.subr.mxu0 0.0
      %601 = vmatpush1.msra.mxu0 0.0
      %602 = vmatprep.subr.mxu0 0.0
      %v603 = vand.u32 %v345, 4294901760
      %v604 = vsub.f32 %v345, %v603
      %605 = vmatpush1.msra.mxu0 %v604
      %606 = vmatprep.subr.mxu0 0.0
      %v607 = vand.u32 %v344, 4294901760
      %v608 = vsub.f32 %v344, %v607
      %609 = vmatpush1.msra.mxu0 %v608
      %610 = vmatprep.subr.mxu0 0.0
      %v611 = vand.u32 %v343, 4294901760
      %v612 = vsub.f32 %v343, %v611
      %613 = vmatpush1.msra.mxu0 %v612
      %614 = vmatprep.subr.mxu0 0.0
      %v615 = vand.u32 %v342, 4294901760
      %v616 = vsub.f32 %v342, %v615
      %617 = vmatpush1.msra.mxu0 %v616
      %618 = vmatprep.subr.mxu0 0.0
      %v619 = vand.u32 %v341, 4294901760
      %v620 = vsub.f32 %v341, %v619
      %621 = vmatpush1.msra.mxu0 %v620
      %622 = vmatprep.subr.mxu0 0.0
      %v623 = vand.u32 %v340, 4294901760
      %v624 = vsub.f32 %v340, %v623
      %625 = vmatpush1.msra.mxu0 %v624
      %626 = vmatprep.subr.mxu0 0.0
      %v627 = vand.u32 %v339, 4294901760
      %v628 = vsub.f32 %v339, %v627
      %629 = vmatpush1.msra.mxu0 %v628
      %630 = vmatprep.subr.mxu0 0.0
      %v631 = vand.u32 %v338, 4294901760
      %v632 = vsub.f32 %v338, %v631
      %633 = vmatpush1.msra.mxu0 %v632
      %634 = vmatprep.subr.mxu0 0.0
      %v635 = vand.u32 %v337, 4294901760
      %v636 = vsub.f32 %v337, %v635
      %637 = vmatpush1.msra.mxu0 %v636
      %638 = vmatprep.subr.mxu0 0.0
      %v639 = vand.u32 %v336, 4294901760
      %v640 = vsub.f32 %v336, %v639
      %641 = vmatpush1.msra.mxu0 %v640
      %642 = vmatprep.subr.mxu0 0.0
      %v643 = vand.u32 %v335, 4294901760
      %v644 = vsub.f32 %v335, %v643
      %645 = vmatpush1.msra.mxu0 %v644
      %646 = vmatprep.subr.mxu0 0.0
      %v647 = vand.u32 %v334, 4294901760
      %v648 = vsub.f32 %v334, %v647
      %649 = vmatpush1.msra.mxu0 %v648
      %650 = vmatprep.subr.mxu0 0.0
      %651 = vmatpush2.msra.mxu0 0.0
      %652 = vmatprep.subr.mxu0 0.0
      %653 = vmatpush2.msra.mxu0 0.0
      %654 = vmatprep.subr.mxu0 0.0
      %655 = vmatpush2.msra.mxu0 0.0
      %656 = vmatprep.subr.mxu0 0.0
      %657 = vmatpush2.msra.mxu0 0.0
      %658 = vmatprep.subr.mxu0 0.0
      %659 = vmatpush2.msra.mxu0 0.0
      %660 = vmatprep.subr.mxu0 0.0
      %661 = vmatpush2.msra.mxu0 0.0
      %662 = vmatprep.subr.mxu0 0.0
      %663 = vmatpush2.msra.mxu0 0.0
      %664 = vmatprep.subr.mxu0 0.0
      %665 = vmatpush2.msra.mxu0 0.0
      %666 = vmatprep.subr.mxu0 0.0
      %667 = vmatpush2.msra.mxu0 0.0
      %668 = vmatprep.subr.mxu0 0.0
      %669 = vmatpush2.msra.mxu0 0.0
      %670 = vmatprep.subr.mxu0 0.0
      %671 = vmatpush2.msra.mxu0 0.0
      %672 = vmatprep.subr.mxu0 0.0
      %673 = vmatpush2.msra.mxu0 0.0
      %674 = vmatprep.subr.mxu0 0.0
      %675 = vmatpush2.msra.mxu0 0.0
      %676 = vmatprep.subr.mxu0 0.0
      %677 = vmatpush2.msra.mxu0 0.0
      %678 = vmatprep.subr.mxu0 0.0
      %679 = vmatpush2.msra.mxu0 0.0
      %680 = vmatprep.subr.mxu0 0.0
      %681 = vmatpush2.msra.mxu0 0.0
      %682 = vmatprep.mubr.f32.mxu0 0.0
      %v683 = vand.u32 %v355, 4294901760
      %v684 = vsub.f32 %v355, %v683
      %685 = vmatmul.mubr.f32.gmra.mxu0 %v684
      %v686 = vpop.f32.mrf.mxu0
      %v687 = vadd.f32 %v585, %v686
      %v688 = vpop.f32.mrf.mxu0
      %689 = vmatprep.mubr.f32.mxu0 0.0
      %v690 = vand.u32 %v358, 4294901760
      %v691 = vsub.f32 %v358, %v690
      %692 = vmatmul.mubr.f32.gmra.mxu0 %v691
      %v693 = vpop.f32.mrf.mxu0
      %v694 = vadd.f32 %v591, %v693
      %v695 = vpop.f32.mrf.mxu0
      %696 = vdwg.mxu0
      %697 = vmatprep.subr.mxu0 0.0
      %698 = vmatpush1.msra.mxu0 0.0
      %699 = vmatprep.subr.mxu0 0.0
      %700 = vmatpush1.msra.mxu0 0.0
      %701 = vmatprep.subr.mxu0 0.0
      %702 = vmatpush1.msra.mxu0 0.0
      %703 = vmatprep.subr.mxu0 0.0
      %704 = vmatpush1.msra.mxu0 0.0
      %705 = vmatprep.subr.mxu0 0.0
      %v706 = vand.u32 %v345, 4294901760
      %707 = vmatpush1.msra.mxu0 %v706
      %708 = vmatprep.subr.mxu0 0.0
      %v709 = vand.u32 %v344, 4294901760
      %710 = vmatpush1.msra.mxu0 %v709
      %711 = vmatprep.subr.mxu0 0.0
      %v712 = vand.u32 %v343, 4294901760
      %713 = vmatpush1.msra.mxu0 %v712
      %714 = vmatprep.subr.mxu0 0.0
      %v715 = vand.u32 %v342, 4294901760
      %716 = vmatpush1.msra.mxu0 %v715
      %717 = vmatprep.subr.mxu0 0.0
      %v718 = vand.u32 %v341, 4294901760
      %719 = vmatpush1.msra.mxu0 %v718
      %720 = vmatprep.subr.mxu0 0.0
      %v721 = vand.u32 %v340, 4294901760
      %722 = vmatpush1.msra.mxu0 %v721
      %723 = vmatprep.subr.mxu0 0.0
      %v724 = vand.u32 %v339, 4294901760
      %725 = vmatpush1.msra.mxu0 %v724
      %726 = vmatprep.subr.mxu0 0.0
      %v727 = vand.u32 %v338, 4294901760
      %728 = vmatpush1.msra.mxu0 %v727
      %729 = vmatprep.subr.mxu0 0.0
      %v730 = vand.u32 %v337, 4294901760
      %731 = vmatpush1.msra.mxu0 %v730
      %732 = vmatprep.subr.mxu0 0.0
      %v733 = vand.u32 %v336, 4294901760
      %734 = vmatpush1.msra.mxu0 %v733
      %735 = vmatprep.subr.mxu0 0.0
      %v736 = vand.u32 %v335, 4294901760
      %737 = vmatpush1.msra.mxu0 %v736
      %738 = vmatprep.subr.mxu0 0.0
      %v739 = vand.u32 %v334, 4294901760
      %740 = vmatpush1.msra.mxu0 %v739
      %741 = vmatprep.subr.mxu0 0.0
      %742 = vmatpush2.msra.mxu0 0.0
      %743 = vmatprep.subr.mxu0 0.0
      %744 = vmatpush2.msra.mxu0 0.0
      %745 = vmatprep.subr.mxu0 0.0
      %746 = vmatpush2.msra.mxu0 0.0
      %747 = vmatprep.subr.mxu0 0.0
      %748 = vmatpush2.msra.mxu0 0.0
      %749 = vmatprep.subr.mxu0 0.0
      %750 = vmatpush2.msra.mxu0 0.0
      %751 = vmatprep.subr.mxu0 0.0
      %752 = vmatpush2.msra.mxu0 0.0
      %753 = vmatprep.subr.mxu0 0.0
      %754 = vmatpush2.msra.mxu0 0.0
      %755 = vmatprep.subr.mxu0 0.0
      %756 = vmatpush2.msra.mxu0 0.0
      %757 = vmatprep.subr.mxu0 0.0
      %758 = vmatpush2.msra.mxu0 0.0
      %759 = vmatprep.subr.mxu0 0.0
      %760 = vmatpush2.msra.mxu0 0.0
      %761 = vmatprep.subr.mxu0 0.0
      %762 = vmatpush2.msra.mxu0 0.0
      %763 = vmatprep.subr.mxu0 0.0
      %764 = vmatpush2.msra.mxu0 0.0
      %765 = vmatprep.subr.mxu0 0.0
      %766 = vmatpush2.msra.mxu0 0.0
      %767 = vmatprep.subr.mxu0 0.0
      %768 = vmatpush2.msra.mxu0 0.0
      %769 = vmatprep.subr.mxu0 0.0
      %770 = vmatpush2.msra.mxu0 0.0
      %771 = vmatprep.subr.mxu0 0.0
      %772 = vmatpush2.msra.mxu0 0.0
      %773 = vmatprep.mubr.f32.mxu0 0.0
      %v774 = vand.u32 %v355, 4294901760
      %v775 = vsub.f32 %v355, %v774
      %v776 = vand.u32 %v775, 4294901760
      %777 = vmatmul.mubr.f32.gmra.mxu0 %v776
      %v778 = vpop.f32.mrf.mxu0
      %v779 = vadd.f32 %v687, %v778
      %v780 = vpop.f32.mrf.mxu0
      %781 = vmatprep.mubr.f32.mxu0 0.0
      %v782 = vand.u32 %v358, 4294901760
      %v783 = vsub.f32 %v358, %v782
      %v784 = vand.u32 %v783, 4294901760
      %785 = vmatmul.mubr.f32.gmra.mxu0 %v784
      %v786 = vpop.f32.mrf.mxu0
      %v787 = vadd.f32 %v694, %v786
      %v788 = vpop.f32.mrf.mxu0
      %789 = vdwg.mxu0
      %790 = vmatprep.subr.mxu0 0.0
      %791 = vmatpush1.msra.mxu0 0.0
      %792 = vmatprep.subr.mxu0 0.0
      %793 = vmatpush1.msra.mxu0 0.0
      %794 = vmatprep.subr.mxu0 0.0
      %795 = vmatpush1.msra.mxu0 0.0
      %796 = vmatprep.subr.mxu0 0.0
      %797 = vmatpush1.msra.mxu0 0.0
      %798 = vmatprep.subr.mxu0 0.0
      %v799 = vand.u32 %v345, 4294901760
      %v800 = vsub.f32 %v345, %v799
      %v801 = vand.u32 %v800, 4294901760
      %802 = vmatpush1.msra.mxu0 %v801
      %803 = vmatprep.subr.mxu0 0.0
      %v804 = vand.u32 %v344, 4294901760
      %v805 = vsub.f32 %v344, %v804
      %v806 = vand.u32 %v805, 4294901760
      %807 = vmatpush1.msra.mxu0 %v806
      %808 = vmatprep.subr.mxu0 0.0
      %v809 = vand.u32 %v343, 4294901760
      %v810 = vsub.f32 %v343, %v809
      %v811 = vand.u32 %v810, 4294901760
      %812 = vmatpush1.msra.mxu0 %v811
      %813 = vmatprep.subr.mxu0 0.0
      %v814 = vand.u32 %v342, 4294901760
      %v815 = vsub.f32 %v342, %v814
      %v816 = vand.u32 %v815, 4294901760
      %817 = vmatpush1.msra.mxu0 %v816
      %818 = vmatprep.subr.mxu0 0.0
      %v819 = vand.u32 %v341, 4294901760
      %v820 = vsub.f32 %v341, %v819
      %v821 = vand.u32 %v820, 4294901760
      %822 = vmatpush1.msra.mxu0 %v821
      %823 = vmatprep.subr.mxu0 0.0
      %v824 = vand.u32 %v340, 4294901760
      %v825 = vsub.f32 %v340, %v824
      %v826 = vand.u32 %v825, 4294901760
      %827 = vmatpush1.msra.mxu0 %v826
      %828 = vmatprep.subr.mxu0 0.0
      %v829 = vand.u32 %v339, 4294901760
      %v830 = vsub.f32 %v339, %v829
      %v831 = vand.u32 %v830, 4294901760
      %832 = vmatpush1.msra.mxu0 %v831
      %833 = vmatprep.subr.mxu0 0.0
      %v834 = vand.u32 %v338, 4294901760
      %v835 = vsub.f32 %v338, %v834
      %v836 = vand.u32 %v835, 4294901760
      %837 = vmatpush1.msra.mxu0 %v836
      %838 = vmatprep.subr.mxu0 0.0
      %v839 = vand.u32 %v337, 4294901760
      %v840 = vsub.f32 %v337, %v839
      %v841 = vand.u32 %v840, 4294901760
      %842 = vmatpush1.msra.mxu0 %v841
      %843 = vmatprep.subr.mxu0 0.0
      %v844 = vand.u32 %v336, 4294901760
      %v845 = vsub.f32 %v336, %v844
      %v846 = vand.u32 %v845, 4294901760
      %847 = vmatpush1.msra.mxu0 %v846
      %848 = vmatprep.subr.mxu0 0.0
      %v849 = vand.u32 %v335, 4294901760
      %v850 = vsub.f32 %v335, %v849
      %v851 = vand.u32 %v850, 4294901760
      %852 = vmatpush1.msra.mxu0 %v851
      %853 = vmatprep.subr.mxu0 0.0
      %v854 = vand.u32 %v334, 4294901760
      %v855 = vsub.f32 %v334, %v854
      %v856 = vand.u32 %v855, 4294901760
      %857 = vmatpush1.msra.mxu0 %v856
      %858 = vmatprep.subr.mxu0 0.0
      %859 = vmatpush2.msra.mxu0 0.0
      %860 = vmatprep.subr.mxu0 0.0
      %861 = vmatpush2.msra.mxu0 0.0
      %862 = vmatprep.subr.mxu0 0.0
      %863 = vmatpush2.msra.mxu0 0.0
      %864 = vmatprep.subr.mxu0 0.0
      %865 = vmatpush2.msra.mxu0 0.0
      %866 = vmatprep.subr.mxu0 0.0
      %867 = vmatpush2.msra.mxu0 0.0
      %868 = vmatprep.subr.mxu0 0.0
      %869 = vmatpush2.msra.mxu0 0.0
      %870 = vmatprep.subr.mxu0 0.0
      %871 = vmatpush2.msra.mxu0 0.0
      %872 = vmatprep.subr.mxu0 0.0
      %873 = vmatpush2.msra.mxu0 0.0
      %874 = vmatprep.subr.mxu0 0.0
      %875 = vmatpush2.msra.mxu0 0.0
      %876 = vmatprep.subr.mxu0 0.0
      %877 = vmatpush2.msra.mxu0 0.0
      %878 = vmatprep.subr.mxu0 0.0
      %879 = vmatpush2.msra.mxu0 0.0
      %880 = vmatprep.subr.mxu0 0.0
      %881 = vmatpush2.msra.mxu0 0.0
      %882 = vmatprep.subr.mxu0 0.0
      %883 = vmatpush2.msra.mxu0 0.0
      %884 = vmatprep.subr.mxu0 0.0
      %885 = vmatpush2.msra.mxu0 0.0
      %886 = vmatprep.subr.mxu0 0.0
      %887 = vmatpush2.msra.mxu0 0.0
      %888 = vmatprep.subr.mxu0 0.0
      %889 = vmatpush2.msra.mxu0 0.0
      %890 = vmatprep.mubr.f32.mxu0 0.0
      %v891 = vand.u32 %v355, 4294901760
      %892 = vmatmul.mubr.f32.gmra.mxu0 %v891
      %v893 = vpop.f32.mrf.mxu0
      %v894 = vadd.f32 %v779, %v893
      %v895 = vpop.f32.mrf.mxu0
      %896 = vmatprep.mubr.f32.mxu0 0.0
      %v897 = vand.u32 %v358, 4294901760
      %898 = vmatmul.mubr.f32.gmra.mxu0 %v897
      %v899 = vpop.f32.mrf.mxu0
      %v900 = vadd.f32 %v787, %v899
      %v901 = vpop.f32.mrf.mxu0
      %902 = vdwg.mxu0
      %903 = vmatprep.subr.mxu0 0.0
      %904 = vmatpush1.msra.mxu0 0.0
      %905 = vmatprep.subr.mxu0 0.0
      %906 = vmatpush1.msra.mxu0 0.0
      %907 = vmatprep.subr.mxu0 0.0
      %908 = vmatpush1.msra.mxu0 0.0
      %909 = vmatprep.subr.mxu0 0.0
      %910 = vmatpush1.msra.mxu0 0.0
      %911 = vmatprep.subr.mxu0 0.0
      %v912 = vand.u32 %v345, 4294901760
      %913 = vmatpush1.msra.mxu0 %v912
      %914 = vmatprep.subr.mxu0 0.0
      %v915 = vand.u32 %v344, 4294901760
      %916 = vmatpush1.msra.mxu0 %v915
      %917 = vmatprep.subr.mxu0 0.0
      %v918 = vand.u32 %v343, 4294901760
      %919 = vmatpush1.msra.mxu0 %v918
      %920 = vmatprep.subr.mxu0 0.0
      %v921 = vand.u32 %v342, 4294901760
      %922 = vmatpush1.msra.mxu0 %v921
      %923 = vmatprep.subr.mxu0 0.0
      %v924 = vand.u32 %v341, 4294901760
      %925 = vmatpush1.msra.mxu0 %v924
      %926 = vmatprep.subr.mxu0 0.0
      %v927 = vand.u32 %v340, 4294901760
      %928 = vmatpush1.msra.mxu0 %v927
      %929 = vmatprep.subr.mxu0 0.0
      %v930 = vand.u32 %v339, 4294901760
      %931 = vmatpush1.msra.mxu0 %v930
      %932 = vmatprep.subr.mxu0 0.0
      %v933 = vand.u32 %v338, 4294901760
      %934 = vmatpush1.msra.mxu0 %v933
      %935 = vmatprep.subr.mxu0 0.0
      %v936 = vand.u32 %v337, 4294901760
      %937 = vmatpush1.msra.mxu0 %v936
      %938 = vmatprep.subr.mxu0 0.0
      %v939 = vand.u32 %v336, 4294901760
      %940 = vmatpush1.msra.mxu0 %v939
      %941 = vmatprep.subr.mxu0 0.0
      %v942 = vand.u32 %v335, 4294901760
      %943 = vmatpush1.msra.mxu0 %v942
      %944 = vmatprep.subr.mxu0 0.0
      %v945 = vand.u32 %v334, 4294901760
      %946 = vmatpush1.msra.mxu0 %v945
      %947 = vmatprep.subr.mxu0 0.0
      %948 = vmatpush2.msra.mxu0 0.0
      %949 = vmatprep.subr.mxu0 0.0
      %950 = vmatpush2.msra.mxu0 0.0
      %951 = vmatprep.subr.mxu0 0.0
      %952 = vmatpush2.msra.mxu0 0.0
      %953 = vmatprep.subr.mxu0 0.0
      %954 = vmatpush2.msra.mxu0 0.0
      %955 = vmatprep.subr.mxu0 0.0
      %956 = vmatpush2.msra.mxu0 0.0
      %957 = vmatprep.subr.mxu0 0.0
      %958 = vmatpush2.msra.mxu0 0.0
      %959 = vmatprep.subr.mxu0 0.0
      %960 = vmatpush2.msra.mxu0 0.0
      %961 = vmatprep.subr.mxu0 0.0
      %962 = vmatpush2.msra.mxu0 0.0
      %963 = vmatprep.subr.mxu0 0.0
      %964 = vmatpush2.msra.mxu0 0.0
      %965 = vmatprep.subr.mxu0 0.0
      %966 = vmatpush2.msra.mxu0 0.0
      %967 = vmatprep.subr.mxu0 0.0
      %968 = vmatpush2.msra.mxu0 0.0
      %969 = vmatprep.subr.mxu0 0.0
      %970 = vmatpush2.msra.mxu0 0.0
      %971 = vmatprep.subr.mxu0 0.0
      %972 = vmatpush2.msra.mxu0 0.0
      %973 = vmatprep.subr.mxu0 0.0
      %974 = vmatpush2.msra.mxu0 0.0
      %975 = vmatprep.subr.mxu0 0.0
      %976 = vmatpush2.msra.mxu0 0.0
      %977 = vmatprep.subr.mxu0 0.0
      %978 = vmatpush2.msra.mxu0 0.0
      %979 = vmatprep.mubr.f32.mxu0 0.0
      %v980 = vand.u32 %v355, 4294901760
      %981 = vmatmul.mubr.f32.gmra.mxu0 %v980
      %v982 = vpop.f32.mrf.mxu0
      %v983 = vadd.f32 %v894, %v982
      %v984 = vpop.f32.mrf.mxu0
      %985 = vmatprep.mubr.f32.mxu0 0.0
      %v986 = vand.u32 %v358, 4294901760
      %987 = vmatmul.mubr.f32.gmra.mxu0 %v986
      %v988 = vpop.f32.mrf.mxu0
      %v989 = vadd.f32 %v900, %v988
      %v990 = vpop.f32.mrf.mxu0
      %991 = vdwg.mxu0
      %vm992 = vcmask 523264
      %993 = vst.msk [vmem:[#allocation2] sm:$0xff] %vm992, %v983
      %994 = vst.msk [vmem:[#allocation2 + $0x8] sm:$0xff] %vm992, %v989
      loop: start=0, step=1, limit=8
      $region41: #{bcn_forward.9} parent=35 // loop_pre_header
        _
      $region42: #{bcn_forward.9} parent=35 // loop_header
        %s996 = sphi 0, %s1000
        %p997 = scmp.ge.s32.totalorder %s996, 8
      $region43: #{bcn_forward.9} parent=35 // loop_header_branch
        %999 = sbr.rel (%p997) target = $region47
      $region44: #{bcn_forward.9} parent=35 // loop_body
        %s1001 = smul.u32 %s996, 2
        %s1002 = ssub.s32 7, %s1001
        %s1003 = smul.u32 %s19, %s1002
        %s1004 = sadd.s32 %s996, %s1003
        %s1005 = smul.u32 %s1004, 2
        %s1006 = scalar_lea.vmem [#allocation2], %s1005
        %v1007 = vld [vmem:[%s1006] sm:$0x3]
        %v1008 = vld [vmem:[#allocation3] sm:$0x3]
        %v1009 = vld [vmem:[%s303] sm:$0xff]
        %v1010 = vld [vmem:[%s303 + $0x8] sm:$0xff]
        %vm1011 = vcmask 130048
        %v1013 = vsel %vm1011, %v1008, 0
        %1015 = vmatprep.subr.mxu0 0.0
        %1016 = vmatpush1.msra.mxu0 0.0
        %1017 = vmatprep.subr.mxu0 0.0
        %1018 = vmatpush1.msra.mxu0 0.0
        %1019 = vmatprep.subr.mxu0 0.0
        %1020 = vmatpush1.msra.mxu0 0.0
        %1021 = vmatprep.subr.mxu0 0.0
        %1022 = vmatpush1.msra.mxu0 0.0
        %1023 = vmatprep.subr.mxu0 0.0
        %1024 = vmatpush1.msra.mxu0 0.0
        %1025 = vmatprep.subr.mxu0 0.0
        %1026 = vmatpush1.msra.mxu0 0.0
        %1027 = vmatprep.subr.mxu0 0.0
        %1028 = vmatpush1.msra.mxu0 0.0
        %1029 = vmatprep.subr.mxu0 0.0
        %1030 = vmatpush1.msra.mxu0 0.0
        %1031 = vmatprep.subr.mxu0 0.0
        %1032 = vmatpush1.msra.mxu0 0.0
        %1033 = vmatprep.subr.mxu0 0.0
        %1034 = vmatpush1.msra.mxu0 0.0
        %1035 = vmatprep.subr.mxu0 0.0
        %1036 = vmatpush1.msra.mxu0 0.0
        %1037 = vmatprep.subr.mxu0 0.0
        %1038 = vmatpush1.msra.mxu0 0.0
        %1039 = vmatprep.subr.mxu0 0.0
        %1040 = vmatpush1.msra.mxu0 0.0
        %1041 = vmatprep.subr.mxu0 0.0
        %1042 = vmatpush1.msra.mxu0 0.0
        %1043 = vmatprep.subr.mxu0 0.0
        %v1044 = vand.u32 %v1010, 4294901760
        %1045 = vmatpush1.msra.mxu0 %v1044
        %1046 = vmatprep.subr.mxu0 0.0
        %v1047 = vand.u32 %v1009, 4294901760
        %1048 = vmatpush1.msra.mxu0 %v1047
        %1049 = vmatprep.subr.mxu0 0.0
        %1050 = vmatpush2.msra.mxu0 0.0
        %1051 = vmatprep.subr.mxu0 0.0
        %1052 = vmatpush2.msra.mxu0 0.0
        %1053 = vmatprep.subr.mxu0 0.0
        %1054 = vmatpush2.msra.mxu0 0.0
        %1055 = vmatprep.subr.mxu0 0.0
        %1056 = vmatpush2.msra.mxu0 0.0
        %1057 = vmatprep.subr.mxu0 0.0
        %1058 = vmatpush2.msra.mxu0 0.0
        %1059 = vmatprep.subr.mxu0 0.0
        %1060 = vmatpush2.msra.mxu0 0.0
        %1061 = vmatprep.subr.mxu0 0.0
        %1062 = vmatpush2.msra.mxu0 0.0
        %1063 = vmatprep.subr.mxu0 0.0
        %1064 = vmatpush2.msra.mxu0 0.0
        %1065 = vmatprep.subr.mxu0 0.0
        %1066 = vmatpush2.msra.mxu0 0.0
        %1067 = vmatprep.subr.mxu0 0.0
        %1068 = vmatpush2.msra.mxu0 0.0
        %1069 = vmatprep.subr.mxu0 0.0
        %1070 = vmatpush2.msra.mxu0 0.0
        %1071 = vmatprep.subr.mxu0 0.0
        %1072 = vmatpush2.msra.mxu0 0.0
        %1073 = vmatprep.subr.mxu0 0.0
        %1074 = vmatpush2.msra.mxu0 0.0
        %1075 = vmatprep.subr.mxu0 0.0
        %1076 = vmatpush2.msra.mxu0 0.0
        %1077 = vmatprep.subr.mxu0 0.0
        %1078 = vmatpush2.msra.mxu0 0.0
        %1079 = vmatprep.subr.mxu0 0.0
        %1080 = vmatpush2.msra.mxu0 0.0
        %1081 = vmatprep.mubr.f32.mxu0 0.0
        %v1082 = vand.u32 %v1013, 4294901760
        %v1083 = vsub.f32 %v1013, %v1082
        %v1084 = vand.u32 %v1083, 4294901760
        %v1085 = vsub.f32 %v1083, %v1084
        %v1086 = vand.u32 %v1085, 4294901760
        %1087 = vmatmul.mubr.f32.gmra.mxu0 %v1086
        %v1088 = vpop.f32.mrf.mxu0
        %v1089 = vadd.f32 0.0, %v1088
        %v1090 = vpop.f32.mrf.mxu0
        %1091 = vdwg.mxu0
        %1092 = vmatprep.subr.mxu0 0.0
        %1093 = vmatpush1.msra.mxu0 0.0
        %1094 = vmatprep.subr.mxu0 0.0
        %1095 = vmatpush1.msra.mxu0 0.0
        %1096 = vmatprep.subr.mxu0 0.0
        %1097 = vmatpush1.msra.mxu0 0.0
        %1098 = vmatprep.subr.mxu0 0.0
        %1099 = vmatpush1.msra.mxu0 0.0
        %1100 = vmatprep.subr.mxu0 0.0
        %1101 = vmatpush1.msra.mxu0 0.0
        %1102 = vmatprep.subr.mxu0 0.0
        %1103 = vmatpush1.msra.mxu0 0.0
        %1104 = vmatprep.subr.mxu0 0.0
        %1105 = vmatpush1.msra.mxu0 0.0
        %1106 = vmatprep.subr.mxu0 0.0
        %1107 = vmatpush1.msra.mxu0 0.0
        %1108 = vmatprep.subr.mxu0 0.0
        %1109 = vmatpush1.msra.mxu0 0.0
        %1110 = vmatprep.subr.mxu0 0.0
        %1111 = vmatpush1.msra.mxu0 0.0
        %1112 = vmatprep.subr.mxu0 0.0
        %1113 = vmatpush1.msra.mxu0 0.0
        %1114 = vmatprep.subr.mxu0 0.0
        %1115 = vmatpush1.msra.mxu0 0.0
        %1116 = vmatprep.subr.mxu0 0.0
        %1117 = vmatpush1.msra.mxu0 0.0
        %1118 = vmatprep.subr.mxu0 0.0
        %1119 = vmatpush1.msra.mxu0 0.0
        %1120 = vmatprep.subr.mxu0 0.0
        %v1121 = vand.u32 %v1010, 4294901760
        %v1122 = vsub.f32 %v1010, %v1121
        %v1123 = vand.u32 %v1122, 4294901760
        %v1124 = vsub.f32 %v1122, %v1123
        %v1125 = vand.u32 %v1124, 4294901760
        %1126 = vmatpush1.msra.mxu0 %v1125
        %1127 = vmatprep.subr.mxu0 0.0
        %v1128 = vand.u32 %v1009, 4294901760
        %v1129 = vsub.f32 %v1009, %v1128
        %v1130 = vand.u32 %v1129, 4294901760
        %v1131 = vsub.f32 %v1129, %v1130
        %v1132 = vand.u32 %v1131, 4294901760
        %1133 = vmatpush1.msra.mxu0 %v1132
        %1134 = vmatprep.subr.mxu0 0.0
        %1135 = vmatpush2.msra.mxu0 0.0
        %1136 = vmatprep.subr.mxu0 0.0
        %1137 = vmatpush2.msra.mxu0 0.0
        %1138 = vmatprep.subr.mxu0 0.0
        %1139 = vmatpush2.msra.mxu0 0.0
        %1140 = vmatprep.subr.mxu0 0.0
        %1141 = vmatpush2.msra.mxu0 0.0
        %1142 = vmatprep.subr.mxu0 0.0
        %1143 = vmatpush2.msra.mxu0 0.0
        %1144 = vmatprep.subr.mxu0 0.0
        %1145 = vmatpush2.msra.mxu0 0.0
        %1146 = vmatprep.subr.mxu0 0.0
        %1147 = vmatpush2.msra.mxu0 0.0
        %1148 = vmatprep.subr.mxu0 0.0
        %1149 = vmatpush2.msra.mxu0 0.0
        %1150 = vmatprep.subr.mxu0 0.0
        %1151 = vmatpush2.msra.mxu0 0.0
        %1152 = vmatprep.subr.mxu0 0.0
        %1153 = vmatpush2.msra.mxu0 0.0
        %1154 = vmatprep.subr.mxu0 0.0
        %1155 = vmatpush2.msra.mxu0 0.0
        %1156 = vmatprep.subr.mxu0 0.0
        %1157 = vmatpush2.msra.mxu0 0.0
        %1158 = vmatprep.subr.mxu0 0.0
        %1159 = vmatpush2.msra.mxu0 0.0
        %1160 = vmatprep.subr.mxu0 0.0
        %1161 = vmatpush2.msra.mxu0 0.0
        %1162 = vmatprep.subr.mxu0 0.0
        %1163 = vmatpush2.msra.mxu0 0.0
        %1164 = vmatprep.subr.mxu0 0.0
        %1165 = vmatpush2.msra.mxu0 0.0
        %1166 = vmatprep.mubr.f32.mxu0 0.0
        %v1167 = vand.u32 %v1013, 4294901760
        %1168 = vmatmul.mubr.f32.gmra.mxu0 %v1167
        %v1169 = vpop.f32.mrf.mxu0
        %v1170 = vadd.f32 %v1089, %v1169
        %v1171 = vpop.f32.mrf.mxu0
        %1172 = vdwg.mxu0
        %1173 = vmatprep.subr.mxu0 0.0
        %1174 = vmatpush1.msra.mxu0 0.0
        %1175 = vmatprep.subr.mxu0 0.0
        %1176 = vmatpush1.msra.mxu0 0.0
        %1177 = vmatprep.subr.mxu0 0.0
        %1178 = vmatpush1.msra.mxu0 0.0
        %1179 = vmatprep.subr.mxu0 0.0
        %1180 = vmatpush1.msra.mxu0 0.0
        %1181 = vmatprep.subr.mxu0 0.0
        %1182 = vmatpush1.msra.mxu0 0.0
        %1183 = vmatprep.subr.mxu0 0.0
        %1184 = vmatpush1.msra.mxu0 0.0
        %1185 = vmatprep.subr.mxu0 0.0
        %1186 = vmatpush1.msra.mxu0 0.0
        %1187 = vmatprep.subr.mxu0 0.0
        %1188 = vmatpush1.msra.mxu0 0.0
        %1189 = vmatprep.subr.mxu0 0.0
        %1190 = vmatpush1.msra.mxu0 0.0
        %1191 = vmatprep.subr.mxu0 0.0
        %1192 = vmatpush1.msra.mxu0 0.0
        %1193 = vmatprep.subr.mxu0 0.0
        %1194 = vmatpush1.msra.mxu0 0.0
        %1195 = vmatprep.subr.mxu0 0.0
        %1196 = vmatpush1.msra.mxu0 0.0
        %1197 = vmatprep.subr.mxu0 0.0
        %1198 = vmatpush1.msra.mxu0 0.0
        %1199 = vmatprep.subr.mxu0 0.0
        %1200 = vmatpush1.msra.mxu0 0.0
        %1201 = vmatprep.subr.mxu0 0.0
        %v1202 = vand.u32 %v1010, 4294901760
        %v1203 = vsub.f32 %v1010, %v1202
        %1204 = vmatpush1.msra.mxu0 %v1203
        %1205 = vmatprep.subr.mxu0 0.0
        %v1206 = vand.u32 %v1009, 4294901760
        %v1207 = vsub.f32 %v1009, %v1206
        %1208 = vmatpush1.msra.mxu0 %v1207
        %1209 = vmatprep.subr.mxu0 0.0
        %1210 = vmatpush2.msra.mxu0 0.0
        %1211 = vmatprep.subr.mxu0 0.0
        %1212 = vmatpush2.msra.mxu0 0.0
        %1213 = vmatprep.subr.mxu0 0.0
        %1214 = vmatpush2.msra.mxu0 0.0
        %1215 = vmatprep.subr.mxu0 0.0
        %1216 = vmatpush2.msra.mxu0 0.0
        %1217 = vmatprep.subr.mxu0 0.0
        %1218 = vmatpush2.msra.mxu0 0.0
        %1219 = vmatprep.subr.mxu0 0.0
        %1220 = vmatpush2.msra.mxu0 0.0
        %1221 = vmatprep.subr.mxu0 0.0
        %1222 = vmatpush2.msra.mxu0 0.0
        %1223 = vmatprep.subr.mxu0 0.0
        %1224 = vmatpush2.msra.mxu0 0.0
        %1225 = vmatprep.subr.mxu0 0.0
        %1226 = vmatpush2.msra.mxu0 0.0
        %1227 = vmatprep.subr.mxu0 0.0
        %1228 = vmatpush2.msra.mxu0 0.0
        %1229 = vmatprep.subr.mxu0 0.0
        %1230 = vmatpush2.msra.mxu0 0.0
        %1231 = vmatprep.subr.mxu0 0.0
        %1232 = vmatpush2.msra.mxu0 0.0
        %1233 = vmatprep.subr.mxu0 0.0
        %1234 = vmatpush2.msra.mxu0 0.0
        %1235 = vmatprep.subr.mxu0 0.0
        %1236 = vmatpush2.msra.mxu0 0.0
        %1237 = vmatprep.subr.mxu0 0.0
        %1238 = vmatpush2.msra.mxu0 0.0
        %1239 = vmatprep.subr.mxu0 0.0
        %1240 = vmatpush2.msra.mxu0 0.0
        %1241 = vmatprep.mubr.f32.mxu0 0.0
        %v1242 = vand.u32 %v1013, 4294901760
        %v1243 = vsub.f32 %v1013, %v1242
        %1244 = vmatmul.mubr.f32.gmra.mxu0 %v1243
        %v1245 = vpop.f32.mrf.mxu0
        %v1246 = vadd.f32 %v1170, %v1245
        %v1247 = vpop.f32.mrf.mxu0
        %1248 = vdwg.mxu0
        %1249 = vmatprep.subr.mxu0 0.0
        %1250 = vmatpush1.msra.mxu0 0.0
        %1251 = vmatprep.subr.mxu0 0.0
        %1252 = vmatpush1.msra.mxu0 0.0
        %1253 = vmatprep.subr.mxu0 0.0
        %1254 = vmatpush1.msra.mxu0 0.0
        %1255 = vmatprep.subr.mxu0 0.0
        %1256 = vmatpush1.msra.mxu0 0.0
        %1257 = vmatprep.subr.mxu0 0.0
        %1258 = vmatpush1.msra.mxu0 0.0
        %1259 = vmatprep.subr.mxu0 0.0
        %1260 = vmatpush1.msra.mxu0 0.0
        %1261 = vmatprep.subr.mxu0 0.0
        %1262 = vmatpush1.msra.mxu0 0.0
        %1263 = vmatprep.subr.mxu0 0.0
        %1264 = vmatpush1.msra.mxu0 0.0
        %1265 = vmatprep.subr.mxu0 0.0
        %1266 = vmatpush1.msra.mxu0 0.0
        %1267 = vmatprep.subr.mxu0 0.0
        %1268 = vmatpush1.msra.mxu0 0.0
        %1269 = vmatprep.subr.mxu0 0.0
        %1270 = vmatpush1.msra.mxu0 0.0
        %1271 = vmatprep.subr.mxu0 0.0
        %1272 = vmatpush1.msra.mxu0 0.0
        %1273 = vmatprep.subr.mxu0 0.0
        %1274 = vmatpush1.msra.mxu0 0.0
        %1275 = vmatprep.subr.mxu0 0.0
        %1276 = vmatpush1.msra.mxu0 0.0
        %1277 = vmatprep.subr.mxu0 0.0
        %v1278 = vand.u32 %v1010, 4294901760
        %1279 = vmatpush1.msra.mxu0 %v1278
        %1280 = vmatprep.subr.mxu0 0.0
        %v1281 = vand.u32 %v1009, 4294901760
        %1282 = vmatpush1.msra.mxu0 %v1281
        %1283 = vmatprep.subr.mxu0 0.0
        %1284 = vmatpush2.msra.mxu0 0.0
        %1285 = vmatprep.subr.mxu0 0.0
        %1286 = vmatpush2.msra.mxu0 0.0
        %1287 = vmatprep.subr.mxu0 0.0
        %1288 = vmatpush2.msra.mxu0 0.0
        %1289 = vmatprep.subr.mxu0 0.0
        %1290 = vmatpush2.msra.mxu0 0.0
        %1291 = vmatprep.subr.mxu0 0.0
        %1292 = vmatpush2.msra.mxu0 0.0
        %1293 = vmatprep.subr.mxu0 0.0
        %1294 = vmatpush2.msra.mxu0 0.0
        %1295 = vmatprep.subr.mxu0 0.0
        %1296 = vmatpush2.msra.mxu0 0.0
        %1297 = vmatprep.subr.mxu0 0.0
        %1298 = vmatpush2.msra.mxu0 0.0
        %1299 = vmatprep.subr.mxu0 0.0
        %1300 = vmatpush2.msra.mxu0 0.0
        %1301 = vmatprep.subr.mxu0 0.0
        %1302 = vmatpush2.msra.mxu0 0.0
        %1303 = vmatprep.subr.mxu0 0.0
        %1304 = vmatpush2.msra.mxu0 0.0
        %1305 = vmatprep.subr.mxu0 0.0
        %1306 = vmatpush2.msra.mxu0 0.0
        %1307 = vmatprep.subr.mxu0 0.0
        %1308 = vmatpush2.msra.mxu0 0.0
        %1309 = vmatprep.subr.mxu0 0.0
        %1310 = vmatpush2.msra.mxu0 0.0
        %1311 = vmatprep.subr.mxu0 0.0
        %1312 = vmatpush2.msra.mxu0 0.0
        %1313 = vmatprep.subr.mxu0 0.0
        %1314 = vmatpush2.msra.mxu0 0.0
        %1315 = vmatprep.mubr.f32.mxu0 0.0
        %v1316 = vand.u32 %v1013, 4294901760
        %v1317 = vsub.f32 %v1013, %v1316
        %v1318 = vand.u32 %v1317, 4294901760
        %1319 = vmatmul.mubr.f32.gmra.mxu0 %v1318
        %v1320 = vpop.f32.mrf.mxu0
        %v1321 = vadd.f32 %v1246, %v1320
        %v1322 = vpop.f32.mrf.mxu0
        %1323 = vdwg.mxu0
        %1324 = vmatprep.subr.mxu0 0.0
        %1325 = vmatpush1.msra.mxu0 0.0
        %1326 = vmatprep.subr.mxu0 0.0
        %1327 = vmatpush1.msra.mxu0 0.0
        %1328 = vmatprep.subr.mxu0 0.0
        %1329 = vmatpush1.msra.mxu0 0.0
        %1330 = vmatprep.subr.mxu0 0.0
        %1331 = vmatpush1.msra.mxu0 0.0
        %1332 = vmatprep.subr.mxu0 0.0
        %1333 = vmatpush1.msra.mxu0 0.0
        %1334 = vmatprep.subr.mxu0 0.0
        %1335 = vmatpush1.msra.mxu0 0.0
        %1336 = vmatprep.subr.mxu0 0.0
        %1337 = vmatpush1.msra.mxu0 0.0
        %1338 = vmatprep.subr.mxu0 0.0
        %1339 = vmatpush1.msra.mxu0 0.0
        %1340 = vmatprep.subr.mxu0 0.0
        %1341 = vmatpush1.msra.mxu0 0.0
        %1342 = vmatprep.subr.mxu0 0.0
        %1343 = vmatpush1.msra.mxu0 0.0
        %1344 = vmatprep.subr.mxu0 0.0
        %1345 = vmatpush1.msra.mxu0 0.0
        %1346 = vmatprep.subr.mxu0 0.0
        %1347 = vmatpush1.msra.mxu0 0.0
        %1348 = vmatprep.subr.mxu0 0.0
        %1349 = vmatpush1.msra.mxu0 0.0
        %1350 = vmatprep.subr.mxu0 0.0
        %1351 = vmatpush1.msra.mxu0 0.0
        %1352 = vmatprep.subr.mxu0 0.0
        %v1353 = vand.u32 %v1010, 4294901760
        %v1354 = vsub.f32 %v1010, %v1353
        %v1355 = vand.u32 %v1354, 4294901760
        %1356 = vmatpush1.msra.mxu0 %v1355
        %1357 = vmatprep.subr.mxu0 0.0
        %v1358 = vand.u32 %v1009, 4294901760
        %v1359 = vsub.f32 %v1009, %v1358
        %v1360 = vand.u32 %v1359, 4294901760
        %1361 = vmatpush1.msra.mxu0 %v1360
        %1362 = vmatprep.subr.mxu0 0.0
        %1363 = vmatpush2.msra.mxu0 0.0
        %1364 = vmatprep.subr.mxu0 0.0
        %1365 = vmatpush2.msra.mxu0 0.0
        %1366 = vmatprep.subr.mxu0 0.0
        %1367 = vmatpush2.msra.mxu0 0.0
        %1368 = vmatprep.subr.mxu0 0.0
        %1369 = vmatpush2.msra.mxu0 0.0
        %1370 = vmatprep.subr.mxu0 0.0
        %1371 = vmatpush2.msra.mxu0 0.0
        %1372 = vmatprep.subr.mxu0 0.0
        %1373 = vmatpush2.msra.mxu0 0.0
        %1374 = vmatprep.subr.mxu0 0.0
        %1375 = vmatpush2.msra.mxu0 0.0
        %1376 = vmatprep.subr.mxu0 0.0
        %1377 = vmatpush2.msra.mxu0 0.0
        %1378 = vmatprep.subr.mxu0 0.0
        %1379 = vmatpush2.msra.mxu0 0.0
        %1380 = vmatprep.subr.mxu0 0.0
        %1381 = vmatpush2.msra.mxu0 0.0
        %1382 = vmatprep.subr.mxu0 0.0
        %1383 = vmatpush2.msra.mxu0 0.0
        %1384 = vmatprep.subr.mxu0 0.0
        %1385 = vmatpush2.msra.mxu0 0.0
        %1386 = vmatprep.subr.mxu0 0.0
        %1387 = vmatpush2.msra.mxu0 0.0
        %1388 = vmatprep.subr.mxu0 0.0
        %1389 = vmatpush2.msra.mxu0 0.0
        %1390 = vmatprep.subr.mxu0 0.0
        %1391 = vmatpush2.msra.mxu0 0.0
        %1392 = vmatprep.subr.mxu0 0.0
        %1393 = vmatpush2.msra.mxu0 0.0
        %1394 = vmatprep.mubr.f32.mxu0 0.0
        %v1395 = vand.u32 %v1013, 4294901760
        %1396 = vmatmul.mubr.f32.gmra.mxu0 %v1395
        %v1397 = vpop.f32.mrf.mxu0
        %v1398 = vadd.f32 %v1321, %v1397
        %v1399 = vpop.f32.mrf.mxu0
        %1400 = vdwg.mxu0
        %1401 = vmatprep.subr.mxu0 0.0
        %1402 = vmatpush1.msra.mxu0 0.0
        %1403 = vmatprep.subr.mxu0 0.0
        %1404 = vmatpush1.msra.mxu0 0.0
        %1405 = vmatprep.subr.mxu0 0.0
        %1406 = vmatpush1.msra.mxu0 0.0
        %1407 = vmatprep.subr.mxu0 0.0
        %1408 = vmatpush1.msra.mxu0 0.0
        %1409 = vmatprep.subr.mxu0 0.0
        %1410 = vmatpush1.msra.mxu0 0.0
        %1411 = vmatprep.subr.mxu0 0.0
        %1412 = vmatpush1.msra.mxu0 0.0
        %1413 = vmatprep.subr.mxu0 0.0
        %1414 = vmatpush1.msra.mxu0 0.0
        %1415 = vmatprep.subr.mxu0 0.0
        %1416 = vmatpush1.msra.mxu0 0.0
        %1417 = vmatprep.subr.mxu0 0.0
        %1418 = vmatpush1.msra.mxu0 0.0
        %1419 = vmatprep.subr.mxu0 0.0
        %1420 = vmatpush1.msra.mxu0 0.0
        %1421 = vmatprep.subr.mxu0 0.0
        %1422 = vmatpush1.msra.mxu0 0.0
        %1423 = vmatprep.subr.mxu0 0.0
        %1424 = vmatpush1.msra.mxu0 0.0
        %1425 = vmatprep.subr.mxu0 0.0
        %1426 = vmatpush1.msra.mxu0 0.0
        %1427 = vmatprep.subr.mxu0 0.0
        %1428 = vmatpush1.msra.mxu0 0.0
        %1429 = vmatprep.subr.mxu0 0.0
        %v1430 = vand.u32 %v1010, 4294901760
        %1431 = vmatpush1.msra.mxu0 %v1430
        %1432 = vmatprep.subr.mxu0 0.0
        %v1433 = vand.u32 %v1009, 4294901760
        %1434 = vmatpush1.msra.mxu0 %v1433
        %1435 = vmatprep.subr.mxu0 0.0
        %1436 = vmatpush2.msra.mxu0 0.0
        %1437 = vmatprep.subr.mxu0 0.0
        %1438 = vmatpush2.msra.mxu0 0.0
        %1439 = vmatprep.subr.mxu0 0.0
        %1440 = vmatpush2.msra.mxu0 0.0
        %1441 = vmatprep.subr.mxu0 0.0
        %1442 = vmatpush2.msra.mxu0 0.0
        %1443 = vmatprep.subr.mxu0 0.0
        %1444 = vmatpush2.msra.mxu0 0.0
        %1445 = vmatprep.subr.mxu0 0.0
        %1446 = vmatpush2.msra.mxu0 0.0
        %1447 = vmatprep.subr.mxu0 0.0
        %1448 = vmatpush2.msra.mxu0 0.0
        %1449 = vmatprep.subr.mxu0 0.0
        %1450 = vmatpush2.msra.mxu0 0.0
        %1451 = vmatprep.subr.mxu0 0.0
        %1452 = vmatpush2.msra.mxu0 0.0
        %1453 = vmatprep.subr.mxu0 0.0
        %1454 = vmatpush2.msra.mxu0 0.0
        %1455 = vmatprep.subr.mxu0 0.0
        %1456 = vmatpush2.msra.mxu0 0.0
        %1457 = vmatprep.subr.mxu0 0.0
        %1458 = vmatpush2.msra.mxu0 0.0
        %1459 = vmatprep.subr.mxu0 0.0
        %1460 = vmatpush2.msra.mxu0 0.0
        %1461 = vmatprep.subr.mxu0 0.0
        %1462 = vmatpush2.msra.mxu0 0.0
        %1463 = vmatprep.subr.mxu0 0.0
        %1464 = vmatpush2.msra.mxu0 0.0
        %1465 = vmatprep.subr.mxu0 0.0
        %1466 = vmatpush2.msra.mxu0 0.0
        %1467 = vmatprep.mubr.f32.mxu0 0.0
        %v1468 = vand.u32 %v1013, 4294901760
        %1469 = vmatmul.mubr.f32.gmra.mxu0 %v1468
        %v1470 = vpop.f32.mrf.mxu0
        %v1471 = vadd.f32 %v1398, %v1470
        %v1472 = vpop.f32.mrf.mxu0
        %1473 = vdwg.mxu0
        %v1474 = vadd.f32 %v1007, %v1471
        %v1475 = vmul.f32 %v1474, 0.5
        %v1476 = vtanh.pop %v1475
        %v1477 = vadd.f32 %v1476, 1.0
        %v1478 = vmul.f32 %v1477, 0.5
        %v1479 = vtanh.pop %v1474
        %v1480 = vld [vmem:[#allocation4] sm:$0x3]
        %1482 = vrot.lane.b32.xlu0 %v1480, 16
        %v1483 = vpop.permute.xlu0 %1482
        %v1485 = vmul.f32 %v1478, %v1483
        %1487 = vrot.lane.b32.xlu0 %v1479, 96
        %v1488 = vpop.permute.xlu0 %1487
        %v1490 = vmul.f32 %v1478, %v1488
        %1492 = vrot.lane.b32.xlu0 %v1490, 16
        %v1493 = vpop.permute.xlu0 %1492
        %v1495 = vadd.f32 %v1485, %v1493
        %v1496 = vtanh.pop %v1495
        %1498 = vrot.lane.b32.xlu0 %v1496, 32
        %v1499 = vpop.permute.xlu0 %1498
        %v1501 = vmul.f32 %v1478, %v1499
        %1503 = vrot.lane.b32.xlu0 %v1495, 112
        %v1504 = vpop.permute.xlu0 %1503
        %vm1506 = vcmask 123904
        %1507 = vst.msk [vmem:[#allocation4] sm:$0x3] %vm1506, %v1504
        %1509 = vrot.lane.b32.xlu0 %v1501, 80
        %v1510 = vpop.permute.xlu0 %1509
        %1512 = vst.msk [vmem:[#allocation3] sm:$0x3] %vm1506, %v1510
        %s1513 = scalar_lea.vmem %s319, %s1005
        %1514 = vst.msk [vmem:[%s1513] sm:$0x3] %vm1506, %v1510
      $region45: #{bcn_forward.9} parent=35 // loop_footer
        %s1000 = sadd.s32 1, %s996
      $region46: #{bcn_forward.9} parent=35 // loop_footer_branch
        %995 = sbr.rel target = $region42
      $region47: #{bcn_forward.9} parent=35 // loop_exit
        _
      %s1515 = smul.u32 %s20, 2
      %s1516 = ssub.s32 0, %s1515
      %s1517 = smul.u32 %s19, %s1516
      %s1518 = sadd.s32 %s20, %s1517
      %s1519 = smul.u32 2, %s1518
      %p1520 = scmp.lt.s32.totalorder %s19, 1
      %s1521 = scalar_select %p1520, %s19, 1
      %p1522 = scmp.lt.s32.totalorder %s1519, 1
      %s1523 = scalar_select %p1522, %s1519, 1
      %s1524 = smul.addr %s1521, 2
      %s1525 = sadd.s32 %s1523, %s1524
      %s1526 = smul.addr %s1525, 8
      %s1527 = scalar_lea.vmem %s4, %s1526
      // Predicated region
      $region48: #{bcn_forward.9} parent=35 // pred_check
        %p1528 = pneg %p167
      $region49: #{bcn_forward.9} parent=35 // pred_check_branch
        %1530 = sbr.rel (%p1528) target = $region51
      $region50: #{bcn_forward.9} parent=35 // pred_region
        %s1531 = smul.u32 %s20, 2
        %s1532 = ssub.s32 0, %s1531
        %s1533 = smul.u32 %s19, %s1532
        %s1534 = sadd.s32 %s20, %s1533
        %s1535 = smul.u32 2, %s1534
      $region51: #{bcn_forward.9} parent=35 // pred_fallthru
        _
    $region36: #{bcn_forward.9} parent=5 // pred_fallthru
      _
    %p1536 = scmp.le.s32.totalorder 2, %s10
    // Predicated region
    $region52: #{bcn_forward.9} parent=5 // pred_check
      %p1537 = pneg %p1536
    $region53: #{bcn_forward.9} parent=5 // pred_check_branch
      %1539 = sbr.rel (%p1537) target = $region55
    $region54: #{bcn_forward.9} parent=5 // pred_region
      %s1540 = ssub.s32 %s10, 2
      // Predicated region
      $region56: #{bcn_forward.9} parent=54 // pred_check
        %p1541 = pneg %p173
      $region57: #{bcn_forward.9} parent=54 // pred_check_branch
        %1543 = sbr.rel (%p1541) target = $region59
      $region58: #{bcn_forward.9} parent=54 // pred_region
        %s1544 = smul.u32 %s22, 2
        %s1545 = ssub.s32 0, %s1544
        %s1546 = smul.u32 %s21, %s1545
        %s1547 = sadd.s32 %s22, %s1546
        %s1548 = smul.u32 2, %s1547
        %p1549 = scmp.lt.s32.totalorder %s21, 1
        %s1550 = scalar_select %p1549, %s21, 1
        %p1551 = scmp.lt.s32.totalorder %s1548, 1
        %s1552 = scalar_select %p1551, %s1548, 1
        %s1553 = smul.addr %s1550, 2
        %s1554 = sadd.s32 %s1552, %s1553
        %s1555 = smul.addr %s1554, 8
        %s1556 = scalar_lea.vmem %s4, %s1555
      $region59: #{bcn_forward.9} parent=54 // pred_fallthru
        _
    $region55: #{bcn_forward.9} parent=5 // pred_fallthru
      _
  $region6: #{bcn_forward.9} parent=0 // loop_footer
    %s14 = sadd.s32 1, %s10
  $region7: #{bcn_forward.9} parent=0 // loop_footer_branch
    %9 = sbr.rel target = $region3
  $region8: #{bcn_forward.9} parent=0 // loop_exit
    _

// kernel: bcn_forward.11
$region0: #{bcn_forward.11}
  #allocation0 [shape = 'u32[]', space=smem, size = 0x4, offset = 0x4, fixed_abs, tag = 'smem constant byte address 0x4 - core index']
  #allocation1 [shape = 'u32[144,128]{1,0:T(1,128)}', space=vmem, size = 0x12000, scoped, tag = 'internal scratch']
  %s0 = inlined_call_operand.vmem [shape: f32[2,128], index: 0, kind: input, shape index: {}]
  %s1 = inlined_call_operand.vmem [shape: f32[128,128], index: 1, kind: input, shape index: {}]
  %s2 = inlined_call_operand.vmem [shape: f32[1,128], index: 2, kind: input, shape index: {}]
  %s3 = inlined_call_operand.vmem [shape: f32[32,32], index: 3, kind: input, shape index: {}]
  %s4 = inlined_call_operand.vmem [shape: f32[1,32], index: 4, kind: input, shape index: {}]
  %s5 = inlined_call_operand.vmem [shape: f32[8,3], index: 5, kind: input, shape index: {}]
  %s6 = inlined_call_operand.vmem [shape: f32[1,3], index: 6, kind: input, shape index: {}]
  %s7 = inlined_call_operand.hbm [shape: f32[2,3], index: 7, kind: output, shape index: {0}]
  %s8 = inlined_call_operand.hbm [shape: f32[2,3], index: 8, kind: output, shape index: {1}]
  %9 = xla_tuple %s7, %s8
  %s10 = sld [smem:[#allocation0]]
  $region46: #{bcn_forward.11} parent=0
    _
  %s12 = ssub.s32 1, %s10
  %s13 = scalar_select 0, %s12, %s10
  $region1: #{bcn_forward.11} parent=0
    #allocation2 [shape = 'u8[1024]{0}', space=vmem, size = 0x400, scoped, tag = 'output window, operand 0, single buffered']
    #allocation3 [shape = 's32[1]{0}', space=sflag, size = 0x4, scoped, tag = 'scoped memory for bcn_forward.11']
    #allocation4 [shape = 'u8[1024]{0}', space=vmem, size = 0x400, scoped, tag = 'output window, operand 1, single buffered']
    #allocation5 [shape = 's32[1]{0}', space=sflag, size = 0x4, scoped, tag = 'scoped memory for bcn_forward.11']
    %14 = vsyncpa [#allocation3], 0
    %15 = vsyncpa [#allocation5], 0
    // Predicated region
    $region2: #{bcn_forward.11} parent=1 // pred_check
      _
    $region3: #{bcn_forward.11} parent=1 // pred_check_branch
      %17 = sbr.rel (0) target = $region5
    $region4: #{bcn_forward.11} parent=1 // pred_region
      _
    $region5: #{bcn_forward.11} parent=1 // pred_fallthru
      _
    // Predicated region
    $region6: #{bcn_forward.11} parent=1 // pred_check
      _
    $region7: #{bcn_forward.11} parent=1 // pred_check_branch
      %19 = sbr.rel (0) target = $region9
    $region8: #{bcn_forward.11} parent=1 // pred_region
      _
    $region9: #{bcn_forward.11} parent=1 // pred_fallthru
      _
    // Predicated region
    $region10: #{bcn_forward.11} parent=1 // pred_check
      _
    $region11: #{bcn_forward.11} parent=1 // pred_check_branch
      %21 = sbr.rel (0) target = $region13
    $region12: #{bcn_forward.11} parent=1 // pred_region
      _
    $region13: #{bcn_forward.11} parent=1 // pred_fallthru
      _
    // Predicated region
    $region14: #{bcn_forward.11} parent=1 // pred_check
      _
    $region15: #{bcn_forward.11} parent=1 // pred_check_branch
      %23 = sbr.rel (0) target = $region17
    $region16: #{bcn_forward.11} parent=1 // pred_region
      _
    $region17: #{bcn_forward.11} parent=1 // pred_fallthru
      _
    // Predicated region
    $region18: #{bcn_forward.11} parent=1 // pred_check
      _
    $region19: #{bcn_forward.11} parent=1 // pred_check_branch
      %25 = sbr.rel (0) target = $region21
    $region20: #{bcn_forward.11} parent=1 // pred_region
      _
    $region21: #{bcn_forward.11} parent=1 // pred_fallthru
      _
    // Predicated region
    $region22: #{bcn_forward.11} parent=1 // pred_check
      _
    $region23: #{bcn_forward.11} parent=1 // pred_check_branch
      %27 = sbr.rel (0) target = $region25
    $region24: #{bcn_forward.11} parent=1 // pred_region
      _
    $region25: #{bcn_forward.11} parent=1 // pred_fallthru
      _
    // Predicated region
    $region26: #{bcn_forward.11} parent=1 // pred_check
      _
    $region27: #{bcn_forward.11} parent=1 // pred_check_branch
      %29 = sbr.rel (0) target = $region29
    $region28: #{bcn_forward.11} parent=1 // pred_region
      _
    $region29: #{bcn_forward.11} parent=1 // pred_fallthru
      _
    %v30 = vld [vmem:[%s0] sm:$0x3]
    %v31 = vld [vmem:[%s1] sm:$0xff]
    %v32 = vld [vmem:[%s1 + $0x8] sm:$0xff]
    %v33 = vld [vmem:[%s1 + $0x10] sm:$0xff]
    %v34 = vld [vmem:[%s1 + $0x18] sm:$0xff]
    %v35 = vld [vmem:[%s1 + $0x20] sm:$0xff]
    %v36 = vld [vmem:[%s1 + $0x28] sm:$0xff]
    %v37 = vld [vmem:[%s1 + $0x30] sm:$0xff]
    %v38 = vld [vmem:[%s1 + $0x38] sm:$0xff]
    %v39 = vld [vmem:[%s1 + $0x40] sm:$0xff]
    %v40 = vld [vmem:[%s1 + $0x48] sm:$0xff]
    %v41 = vld [vmem:[%s1 + $0x50] sm:$0xff]
    %v42 = vld [vmem:[%s1 + $0x58] sm:$0xff]
    %v43 = vld [vmem:[%s1 + $0x60] sm:$0xff]
    %v44 = vld [vmem:[%s1 + $0x68] sm:$0xff]
    %v45 = vld [vmem:[%s1 + $0x70] sm:$0xff]
    %v46 = vld [vmem:[%s1 + $0x78] sm:$0xff]
    %v47 = vld [vmem:[%s2] sm:$0x1]
    %v49 = vlaneseq
    %v50 = vshrl.u32 %v49, 7
    %v51 = vsub.s32 0, %v50
    %v52 = vrot.slane %v47, %v51
    %54 = vmatprep.subr.mxu0 0.0
    %v55 = vand.u32 %v46, 4294901760
    %56 = vmatpush1.msra.mxu0 %v55
    %57 = vmatprep.subr.mxu0 0.0
    %v58 = vand.u32 %v45, 4294901760
    %59 = vmatpush1.msra.mxu0 %v58
    %60 = vmatprep.subr.mxu0 0.0
    %v61 = vand.u32 %v44, 4294901760
    %62 = vmatpush1.msra.mxu0 %v61
    %63 = vmatprep.subr.mxu0 0.0
    %v64 = vand.u32 %v43, 4294901760
    %65 = vmatpush1.msra.mxu0 %v64
    %66 = vmatprep.subr.mxu0 0.0
    %v67 = vand.u32 %v42, 4294901760
    %68 = vmatpush1.msra.mxu0 %v67
    %69 = vmatprep.subr.mxu0 0.0
    %v70 = vand.u32 %v41, 4294901760
    %71 = vmatpush1.msra.mxu0 %v70
    %72 = vmatprep.subr.mxu0 0.0
    %v73 = vand.u32 %v40, 4294901760
    %74 = vmatpush1.msra.mxu0 %v73
    %75 = vmatprep.subr.mxu0 0.0
    %v76 = vand.u32 %v39, 4294901760
    %77 = vmatpush1.msra.mxu0 %v76
    %78 = vmatprep.subr.mxu0 0.0
    %v79 = vand.u32 %v38, 4294901760
    %80 = vmatpush1.msra.mxu0 %v79
    %81 = vmatprep.subr.mxu0 0.0
    %v82 = vand.u32 %v37, 4294901760
    %83 = vmatpush1.msra.mxu0 %v82
    %84 = vmatprep.subr.mxu0 0.0
    %v85 = vand.u32 %v36, 4294901760
    %86 = vmatpush1.msra.mxu0 %v85
    %87 = vmatprep.subr.mxu0 0.0
    %v88 = vand.u32 %v35, 4294901760
    %89 = vmatpush1.msra.mxu0 %v88
    %90 = vmatprep.subr.mxu0 0.0
    %v91 = vand.u32 %v34, 4294901760
    %92 = vmatpush1.msra.mxu0 %v91
    %93 = vmatprep.subr.mxu0 0.0
    %v94 = vand.u32 %v33, 4294901760
    %95 = vmatpush1.msra.mxu0 %v94
    %96 = vmatprep.subr.mxu0 0.0
    %v97 = vand.u32 %v32, 4294901760
    %98 = vmatpush1.msra.mxu0 %v97
    %99 = vmatprep.subr.mxu0 0.0
    %v100 = vand.u32 %v31, 4294901760
    %101 = vmatpush1.msra.mxu0 %v100
    %102 = vmatprep.subr.mxu0 0.0
    %103 = vmatpush2.msra.mxu0 0.0
    %104 = vmatprep.subr.mxu0 0.0
    %105 = vmatpush2.msra.mxu0 0.0
    %106 = vmatprep.subr.mxu0 0.0
    %107 = vmatpush2.msra.mxu0 0.0
    %108 = vmatprep.subr.mxu0 0.0
    %109 = vmatpush2.msra.mxu0 0.0
    %110 = vmatprep.subr.mxu0 0.0
    %111 = vmatpush2.msra.mxu0 0.0
    %112 = vmatprep.subr.mxu0 0.0
    %113 = vmatpush2.msra.mxu0 0.0
    %114 = vmatprep.subr.mxu0 0.0
    %115 = vmatpush2.msra.mxu0 0.0
    %116 = vmatprep.subr.mxu0 0.0
    %117 = vmatpush2.msra.mxu0 0.0
    %118 = vmatprep.subr.mxu0 0.0
    %119 = vmatpush2.msra.mxu0 0.0
    %120 = vmatprep.subr.mxu0 0.0
    %121 = vmatpush2.msra.mxu0 0.0
    %122 = vmatprep.subr.mxu0 0.0
    %123 = vmatpush2.msra.mxu0 0.0
    %124 = vmatprep.subr.mxu0 0.0
    %125 = vmatpush2.msra.mxu0 0.0
    %126 = vmatprep.subr.mxu0 0.0
    %127 = vmatpush2.msra.mxu0 0.0
    %128 = vmatprep.subr.mxu0 0.0
    %129 = vmatpush2.msra.mxu0 0.0
    %130 = vmatprep.subr.mxu0 0.0
    %131 = vmatpush2.msra.mxu0 0.0
    %132 = vmatprep.subr.mxu0 0.0
    %133 = vmatpush2.msra.mxu0 0.0
    %134 = vmatprep.mubr.f32.mxu0 0.0
    %v135 = vand.u32 %v30, 4294901760
    %v136 = vsub.f32 %v30, %v135
    %v137 = vand.u32 %v136, 4294901760
    %v138 = vsub.f32 %v136, %v137
    %v139 = vand.u32 %v138, 4294901760
    %140 = vmatmul.mubr.f32.gmra.mxu0 %v139
    %v141 = vpop.f32.mrf.mxu0
    %v142 = vadd.f32 %v52, %v141
    %v143 = vpop.f32.mrf.mxu0
    %144 = vdwg.mxu0
    %145 = vmatprep.subr.mxu0 0.0
    %v146 = vand.u32 %v46, 4294901760
    %v147 = vsub.f32 %v46, %v146
    %v148 = vand.u32 %v147, 4294901760
    %v149 = vsub.f32 %v147, %v148
    %v150 = vand.u32 %v149, 4294901760
    %151 = vmatpush1.msra.mxu0 %v150
    %152 = vmatprep.subr.mxu0 0.0
    %v153 = vand.u32 %v45, 4294901760
    %v154 = vsub.f32 %v45, %v153
    %v155 = vand.u32 %v154, 4294901760
    %v156 = vsub.f32 %v154, %v155
    %v157 = vand.u32 %v156, 4294901760
    %158 = vmatpush1.msra.mxu0 %v157
    %159 = vmatprep.subr.mxu0 0.0
    %v160 = vand.u32 %v44, 4294901760
    %v161 = vsub.f32 %v44, %v160
    %v162 = vand.u32 %v161, 4294901760
    %v163 = vsub.f32 %v161, %v162
    %v164 = vand.u32 %v163, 4294901760
    %165 = vmatpush1.msra.mxu0 %v164
    %166 = vmatprep.subr.mxu0 0.0
    %v167 = vand.u32 %v43, 4294901760
    %v168 = vsub.f32 %v43, %v167
    %v169 = vand.u32 %v168, 4294901760
    %v170 = vsub.f32 %v168, %v169
    %v171 = vand.u32 %v170, 4294901760
    %172 = vmatpush1.msra.mxu0 %v171
    %173 = vmatprep.subr.mxu0 0.0
    %v174 = vand.u32 %v42, 4294901760
    %v175 = vsub.f32 %v42, %v174
    %v176 = vand.u32 %v175, 4294901760
    %v177 = vsub.f32 %v175, %v176
    %v178 = vand.u32 %v177, 4294901760
    %179 = vmatpush1.msra.mxu0 %v178
    %180 = vmatprep.subr.mxu0 0.0
    %v181 = vand.u32 %v41, 4294901760
    %v182 = vsub.f32 %v41, %v181
    %v183 = vand.u32 %v182, 4294901760
    %v184 = vsub.f32 %v182, %v183
    %v185 = vand.u32 %v184, 4294901760
    %186 = vmatpush1.msra.mxu0 %v185
    %187 = vmatprep.subr.mxu0 0.0
    %v188 = vand.u32 %v40, 4294901760
    %v189 = vsub.f32 %v40, %v188
    %v190 = vand.u32 %v189, 4294901760
    %v191 = vsub.f32 %v189, %v190
    %v192 = vand.u32 %v191, 4294901760
    %193 = vmatpush1.msra.mxu0 %v192
    %194 = vmatprep.subr.mxu0 0.0
    %v195 = vand.u32 %v39, 4294901760
    %v196 = vsub.f32 %v39, %v195
    %v197 = vand.u32 %v196, 4294901760
    %v198 = vsub.f32 %v196, %v197
    %v199 = vand.u32 %v198, 4294901760
    %200 = vmatpush1.msra.mxu0 %v199
    %201 = vmatprep.subr.mxu0 0.0
    %v202 = vand.u32 %v38, 4294901760
    %v203 = vsub.f32 %v38, %v202
    %v204 = vand.u32 %v203, 4294901760
    %v205 = vsub.f32 %v203, %v204
    %v206 = vand.u32 %v205, 4294901760
    %207 = vmatpush1.msra.mxu0 %v206
    %208 = vmatprep.subr.mxu0 0.0
    %v209 = vand.u32 %v37, 4294901760
    %v210 = vsub.f32 %v37, %v209
    %v211 = vand.u32 %v210, 4294901760
    %v212 = vsub.f32 %v210, %v211
    %v213 = vand.u32 %v212, 4294901760
    %214 = vmatpush1.msra.mxu0 %v213
    %215 = vmatprep.subr.mxu0 0.0
    %v216 = vand.u32 %v36, 4294901760
    %v217 = vsub.f32 %v36, %v216
    %v218 = vand.u32 %v217, 4294901760
    %v219 = vsub.f32 %v217, %v218
    %v220 = vand.u32 %v219, 4294901760
    %221 = vmatpush1.msra.mxu0 %v220
    %222 = vmatprep.subr.mxu0 0.0
    %v223 = vand.u32 %v35, 4294901760
    %v224 = vsub.f32 %v35, %v223
    %v225 = vand.u32 %v224, 4294901760
    %v226 = vsub.f32 %v224, %v225
    %v227 = vand.u32 %v226, 4294901760
    %228 = vmatpush1.msra.mxu0 %v227
    %229 = vmatprep.subr.mxu0 0.0
    %v230 = vand.u32 %v34, 4294901760
    %v231 = vsub.f32 %v34, %v230
    %v232 = vand.u32 %v231, 4294901760
    %v233 = vsub.f32 %v231, %v232
    %v234 = vand.u32 %v233, 4294901760
    %235 = vmatpush1.msra.mxu0 %v234
    %236 = vmatprep.subr.mxu0 0.0
    %v237 = vand.u32 %v33, 4294901760
    %v238 = vsub.f32 %v33, %v237
    %v239 = vand.u32 %v238, 4294901760
    %v240 = vsub.f32 %v238, %v239
    %v241 = vand.u32 %v240, 4294901760
    %242 = vmatpush1.msra.mxu0 %v241
    %243 = vmatprep.subr.mxu0 0.0
    %v244 = vand.u32 %v32, 4294901760
    %v245 = vsub.f32 %v32, %v244
    %v246 = vand.u32 %v245, 4294901760
    %v247 = vsub.f32 %v245, %v246
    %v248 = vand.u32 %v247, 4294901760
    %249 = vmatpush1.msra.mxu0 %v248
    %250 = vmatprep.subr.mxu0 0.0
    %v251 = vand.u32 %v31, 4294901760
    %v252 = vsub.f32 %v31, %v251
    %v253 = vand.u32 %v252, 4294901760
    %v254 = vsub.f32 %v252, %v253
    %v255 = vand.u32 %v254, 4294901760
    %256 = vmatpush1.msra.mxu0 %v255
    %257 = vmatprep.subr.mxu0 0.0
    %258 = vmatpush2.msra.mxu0 0.0
    %259 = vmatprep.subr.mxu0 0.0
    %260 = vmatpush2.msra.mxu0 0.0
    %261 = vmatprep.subr.mxu0 0.0
    %262 = vmatpush2.msra.mxu0 0.0
    %263 = vmatprep.subr.mxu0 0.0
    %264 = vmatpush2.msra.mxu0 0.0
    %265 = vmatprep.subr.mxu0 0.0
    %266 = vmatpush2.msra.mxu0 0.0
    %267 = vmatprep.subr.mxu0 0.0
    %268 = vmatpush2.msra.mxu0 0.0
    %269 = vmatprep.subr.mxu0 0.0
    %270 = vmatpush2.msra.mxu0 0.0
    %271 = vmatprep.subr.mxu0 0.0
    %272 = vmatpush2.msra.mxu0 0.0
    %273 = vmatprep.subr.mxu0 0.0
    %274 = vmatpush2.msra.mxu0 0.0
    %275 = vmatprep.subr.mxu0 0.0
    %276 = vmatpush2.msra.mxu0 0.0
    %277 = vmatprep.subr.mxu0 0.0
    %278 = vmatpush2.msra.mxu0 0.0
    %279 = vmatprep.subr.mxu0 0.0
    %280 = vmatpush2.msra.mxu0 0.0
    %281 = vmatprep.subr.mxu0 0.0
    %282 = vmatpush2.msra.mxu0 0.0
    %283 = vmatprep.subr.mxu0 0.0
    %284 = vmatpush2.msra.mxu0 0.0
    %285 = vmatprep.subr.mxu0 0.0
    %286 = vmatpush2.msra.mxu0 0.0
    %287 = vmatprep.subr.mxu0 0.0
    %288 = vmatpush2.msra.mxu0 0.0
    %289 = vmatprep.mubr.f32.mxu0 0.0
    %v290 = vand.u32 %v30, 4294901760
    %291 = vmatmul.mubr.f32.gmra.mxu0 %v290
    %v292 = vpop.f32.mrf.mxu0
    %v293 = vadd.f32 %v142, %v292
    %v294 = vpop.f32.mrf.mxu0
    %295 = vdwg.mxu0
    %296 = vmatprep.subr.mxu0 0.0
    %v297 = vand.u32 %v46, 4294901760
    %v298 = vsub.f32 %v46, %v297
    %299 = vmatpush1.msra.mxu0 %v298
    %300 = vmatprep.subr.mxu0 0.0
    %v301 = vand.u32 %v45, 4294901760
    %v302 = vsub.f32 %v45, %v301
    %303 = vmatpush1.msra.mxu0 %v302
    %304 = vmatprep.subr.mxu0 0.0
    %v305 = vand.u32 %v44, 4294901760
    %v306 = vsub.f32 %v44, %v305
    %307 = vmatpush1.msra.mxu0 %v306
    %308 = vmatprep.subr.mxu0 0.0
    %v309 = vand.u32 %v43, 4294901760
    %v310 = vsub.f32 %v43, %v309
    %311 = vmatpush1.msra.mxu0 %v310
    %312 = vmatprep.subr.mxu0 0.0
    %v313 = vand.u32 %v42, 4294901760
    %v314 = vsub.f32 %v42, %v313
    %315 = vmatpush1.msra.mxu0 %v314
    %316 = vmatprep.subr.mxu0 0.0
    %v317 = vand.u32 %v41, 4294901760
    %v318 = vsub.f32 %v41, %v317
    %319 = vmatpush1.msra.mxu0 %v318
    %320 = vmatprep.subr.mxu0 0.0
    %v321 = vand.u32 %v40, 4294901760
    %v322 = vsub.f32 %v40, %v321
    %323 = vmatpush1.msra.mxu0 %v322
    %324 = vmatprep.subr.mxu0 0.0
    %v325 = vand.u32 %v39, 4294901760
    %v326 = vsub.f32 %v39, %v325
    %327 = vmatpush1.msra.mxu0 %v326
    %328 = vmatprep.subr.mxu0 0.0
    %v329 = vand.u32 %v38, 4294901760
    %v330 = vsub.f32 %v38, %v329
    %331 = vmatpush1.msra.mxu0 %v330
    %332 = vmatprep.subr.mxu0 0.0
    %v333 = vand.u32 %v37, 4294901760
    %v334 = vsub.f32 %v37, %v333
    %335 = vmatpush1.msra.mxu0 %v334
    %336 = vmatprep.subr.mxu0 0.0
    %v337 = vand.u32 %v36, 4294901760
    %v338 = vsub.f32 %v36, %v337
    %339 = vmatpush1.msra.mxu0 %v338
    %340 = vmatprep.subr.mxu0 0.0
    %v341 = vand.u32 %v35, 4294901760
    %v342 = vsub.f32 %v35, %v341
    %343 = vmatpush1.msra.mxu0 %v342
    %344 = vmatprep.subr.mxu0 0.0
    %v345 = vand.u32 %v34, 4294901760
    %v346 = vsub.f32 %v34, %v345
    %347 = vmatpush1.msra.mxu0 %v346
    %348 = vmatprep.subr.mxu0 0.0
    %v349 = vand.u32 %v33, 4294901760
    %v350 = vsub.f32 %v33, %v349
    %351 = vmatpush1.msra.mxu0 %v350
    %352 = vmatprep.subr.mxu0 0.0
    %v353 = vand.u32 %v32, 4294901760
    %v354 = vsub.f32 %v32, %v353
    %355 = vmatpush1.msra.mxu0 %v354
    %356 = vmatprep.subr.mxu0 0.0
    %v357 = vand.u32 %v31, 4294901760
    %v358 = vsub.f32 %v31, %v357
    %359 = vmatpush1.msra.mxu0 %v358
    %360 = vmatprep.subr.mxu0 0.0
    %361 = vmatpush2.msra.mxu0 0.0
    %362 = vmatprep.subr.mxu0 0.0
    %363 = vmatpush2.msra.mxu0 0.0
    %364 = vmatprep.subr.mxu0 0.0
    %365 = vmatpush2.msra.mxu0 0.0
    %366 = vmatprep.subr.mxu0 0.0
    %367 = vmatpush2.msra.mxu0 0.0
    %368 = vmatprep.subr.mxu0 0.0
    %369 = vmatpush2.msra.mxu0 0.0
    %370 = vmatprep.subr.mxu0 0.0
    %371 = vmatpush2.msra.mxu0 0.0
    %372 = vmatprep.subr.mxu0 0.0
    %373 = vmatpush2.msra.mxu0 0.0
    %374 = vmatprep.subr.mxu0 0.0
    %375 = vmatpush2.msra.mxu0 0.0
    %376 = vmatprep.subr.mxu0 0.0
    %377 = vmatpush2.msra.mxu0 0.0
    %378 = vmatprep.subr.mxu0 0.0
    %379 = vmatpush2.msra.mxu0 0.0
    %380 = vmatprep.subr.mxu0 0.0
    %381 = vmatpush2.msra.mxu0 0.0
    %382 = vmatprep.subr.mxu0 0.0
    %383 = vmatpush2.msra.mxu0 0.0
    %384 = vmatprep.subr.mxu0 0.0
    %385 = vmatpush2.msra.mxu0 0.0
    %386 = vmatprep.subr.mxu0 0.0
    %387 = vmatpush2.msra.mxu0 0.0
    %388 = vmatprep.subr.mxu0 0.0
    %389 = vmatpush2.msra.mxu0 0.0
    %390 = vmatprep.subr.mxu0 0.0
    %391 = vmatpush2.msra.mxu0 0.0
    %392 = vmatprep.mubr.f32.mxu0 0.0
    %v393 = vand.u32 %v30, 4294901760
    %v394 = vsub.f32 %v30, %v393
    %395 = vmatmul.mubr.f32.gmra.mxu0 %v394
    %v396 = vpop.f32.mrf.mxu0
    %v397 = vadd.f32 %v293, %v396
    %v398 = vpop.f32.mrf.mxu0
    %399 = vdwg.mxu0
    %400 = vmatprep.subr.mxu0 0.0
    %v401 = vand.u32 %v46, 4294901760
    %402 = vmatpush1.msra.mxu0 %v401
    %403 = vmatprep.subr.mxu0 0.0
    %v404 = vand.u32 %v45, 4294901760
    %405 = vmatpush1.msra.mxu0 %v404
    %406 = vmatprep.subr.mxu0 0.0
    %v407 = vand.u32 %v44, 4294901760
    %408 = vmatpush1.msra.mxu0 %v407
    %409 = vmatprep.subr.mxu0 0.0
    %v410 = vand.u32 %v43, 4294901760
    %411 = vmatpush1.msra.mxu0 %v410
    %412 = vmatprep.subr.mxu0 0.0
    %v413 = vand.u32 %v42, 4294901760
    %414 = vmatpush1.msra.mxu0 %v413
    %415 = vmatprep.subr.mxu0 0.0
    %v416 = vand.u32 %v41, 4294901760
    %417 = vmatpush1.msra.mxu0 %v416
    %418 = vmatprep.subr.mxu0 0.0
    %v419 = vand.u32 %v40, 4294901760
    %420 = vmatpush1.msra.mxu0 %v419
    %421 = vmatprep.subr.mxu0 0.0
    %v422 = vand.u32 %v39, 4294901760
    %423 = vmatpush1.msra.mxu0 %v422
    %424 = vmatprep.subr.mxu0 0.0
    %v425 = vand.u32 %v38, 4294901760
    %426 = vmatpush1.msra.mxu0 %v425
    %427 = vmatprep.subr.mxu0 0.0
    %v428 = vand.u32 %v37, 4294901760
    %429 = vmatpush1.msra.mxu0 %v428
    %430 = vmatprep.subr.mxu0 0.0
    %v431 = vand.u32 %v36, 4294901760
    %432 = vmatpush1.msra.mxu0 %v431
    %433 = vmatprep.subr.mxu0 0.0
    %v434 = vand.u32 %v35, 4294901760
    %435 = vmatpush1.msra.mxu0 %v434
    %436 = vmatprep.subr.mxu0 0.0
    %v437 = vand.u32 %v34, 4294901760
    %438 = vmatpush1.msra.mxu0 %v437
    %439 = vmatprep.subr.mxu0 0.0
    %v440 = vand.u32 %v33, 4294901760
    %441 = vmatpush1.msra.mxu0 %v440
    %442 = vmatprep.subr.mxu0 0.0
    %v443 = vand.u32 %v32, 4294901760
    %444 = vmatpush1.msra.mxu0 %v443
    %445 = vmatprep.subr.mxu0 0.0
    %v446 = vand.u32 %v31, 4294901760
    %447 = vmatpush1.msra.mxu0 %v446
    %448 = vmatprep.subr.mxu0 0.0
    %449 = vmatpush2.msra.mxu0 0.0
    %450 = vmatprep.subr.mxu0 0.0
    %451 = vmatpush2.msra.mxu0 0.0
    %452 = vmatprep.subr.mxu0 0.0
    %453 = vmatpush2.msra.mxu0 0.0
    %454 = vmatprep.subr.mxu0 0.0
    %455 = vmatpush2.msra.mxu0 0.0
    %456 = vmatprep.subr.mxu0 0.0
    %457 = vmatpush2.msra.mxu0 0.0
    %458 = vmatprep.subr.mxu0 0.0
    %459 = vmatpush2.msra.mxu0 0.0
    %460 = vmatprep.subr.mxu0 0.0
    %461 = vmatpush2.msra.mxu0 0.0
    %462 = vmatprep.subr.mxu0 0.0
    %463 = vmatpush2.msra.mxu0 0.0
    %464 = vmatprep.subr.mxu0 0.0
    %465 = vmatpush2.msra.mxu0 0.0
    %466 = vmatprep.subr.mxu0 0.0
    %467 = vmatpush2.msra.mxu0 0.0
    %468 = vmatprep.subr.mxu0 0.0
    %469 = vmatpush2.msra.mxu0 0.0
    %470 = vmatprep.subr.mxu0 0.0
    %471 = vmatpush2.msra.mxu0 0.0
    %472 = vmatprep.subr.mxu0 0.0
    %473 = vmatpush2.msra.mxu0 0.0
    %474 = vmatprep.subr.mxu0 0.0
    %475 = vmatpush2.msra.mxu0 0.0
    %476 = vmatprep.subr.mxu0 0.0
    %477 = vmatpush2.msra.mxu0 0.0
    %478 = vmatprep.subr.mxu0 0.0
    %479 = vmatpush2.msra.mxu0 0.0
    %480 = vmatprep.mubr.f32.mxu0 0.0
    %v481 = vand.u32 %v30, 4294901760
    %v482 = vsub.f32 %v30, %v481
    %v483 = vand.u32 %v482, 4294901760
    %484 = vmatmul.mubr.f32.gmra.mxu0 %v483
    %v485 = vpop.f32.mrf.mxu0
    %v486 = vadd.f32 %v397, %v485
    %v487 = vpop.f32.mrf.mxu0
    %488 = vdwg.mxu0
    %489 = vmatprep.subr.mxu0 0.0
    %v490 = vand.u32 %v46, 4294901760
    %v491 = vsub.f32 %v46, %v490
    %v492 = vand.u32 %v491, 4294901760
    %493 = vmatpush1.msra.mxu0 %v492
    %494 = vmatprep.subr.mxu0 0.0
    %v495 = vand.u32 %v45, 4294901760
    %v496 = vsub.f32 %v45, %v495
    %v497 = vand.u32 %v496, 4294901760
    %498 = vmatpush1.msra.mxu0 %v497
    %499 = vmatprep.subr.mxu0 0.0
    %v500 = vand.u32 %v44, 4294901760
    %v501 = vsub.f32 %v44, %v500
    %v502 = vand.u32 %v501, 4294901760
    %503 = vmatpush1.msra.mxu0 %v502
    %504 = vmatprep.subr.mxu0 0.0
    %v505 = vand.u32 %v43, 4294901760
    %v506 = vsub.f32 %v43, %v505
    %v507 = vand.u32 %v506, 4294901760
    %508 = vmatpush1.msra.mxu0 %v507
    %509 = vmatprep.subr.mxu0 0.0
    %v510 = vand.u32 %v42, 4294901760
    %v511 = vsub.f32 %v42, %v510
    %v512 = vand.u32 %v511, 4294901760
    %513 = vmatpush1.msra.mxu0 %v512
    %514 = vmatprep.subr.mxu0 0.0
    %v515 = vand.u32 %v41, 4294901760
    %v516 = vsub.f32 %v41, %v515
    %v517 = vand.u32 %v516, 4294901760
    %518 = vmatpush1.msra.mxu0 %v517
    %519 = vmatprep.subr.mxu0 0.0
    %v520 = vand.u32 %v40, 4294901760
    %v521 = vsub.f32 %v40, %v520
    %v522 = vand.u32 %v521, 4294901760
    %523 = vmatpush1.msra.mxu0 %v522
    %524 = vmatprep.subr.mxu0 0.0
    %v525 = vand.u32 %v39, 4294901760
    %v526 = vsub.f32 %v39, %v525
    %v527 = vand.u32 %v526, 4294901760
    %528 = vmatpush1.msra.mxu0 %v527
    %529 = vmatprep.subr.mxu0 0.0
    %v530 = vand.u32 %v38, 4294901760
    %v531 = vsub.f32 %v38, %v530
    %v532 = vand.u32 %v531, 4294901760
    %533 = vmatpush1.msra.mxu0 %v532
    %534 = vmatprep.subr.mxu0 0.0
    %v535 = vand.u32 %v37, 4294901760
    %v536 = vsub.f32 %v37, %v535
    %v537 = vand.u32 %v536, 4294901760
    %538 = vmatpush1.msra.mxu0 %v537
    %539 = vmatprep.subr.mxu0 0.0
    %v540 = vand.u32 %v36, 4294901760
    %v541 = vsub.f32 %v36, %v540
    %v542 = vand.u32 %v541, 4294901760
    %543 = vmatpush1.msra.mxu0 %v542
    %544 = vmatprep.subr.mxu0 0.0
    %v545 = vand.u32 %v35, 4294901760
    %v546 = vsub.f32 %v35, %v545
    %v547 = vand.u32 %v546, 4294901760
    %548 = vmatpush1.msra.mxu0 %v547
    %549 = vmatprep.subr.mxu0 0.0
    %v550 = vand.u32 %v34, 4294901760
    %v551 = vsub.f32 %v34, %v550
    %v552 = vand.u32 %v551, 4294901760
    %553 = vmatpush1.msra.mxu0 %v552
    %554 = vmatprep.subr.mxu0 0.0
    %v555 = vand.u32 %v33, 4294901760
    %v556 = vsub.f32 %v33, %v555
    %v557 = vand.u32 %v556, 4294901760
    %558 = vmatpush1.msra.mxu0 %v557
    %559 = vmatprep.subr.mxu0 0.0
    %v560 = vand.u32 %v32, 4294901760
    %v561 = vsub.f32 %v32, %v560
    %v562 = vand.u32 %v561, 4294901760
    %563 = vmatpush1.msra.mxu0 %v562
    %564 = vmatprep.subr.mxu0 0.0
    %v565 = vand.u32 %v31, 4294901760
    %v566 = vsub.f32 %v31, %v565
    %v567 = vand.u32 %v566, 4294901760
    %568 = vmatpush1.msra.mxu0 %v567
    %569 = vmatprep.subr.mxu0 0.0
    %570 = vmatpush2.msra.mxu0 0.0
    %571 = vmatprep.subr.mxu0 0.0
    %572 = vmatpush2.msra.mxu0 0.0
    %573 = vmatprep.subr.mxu0 0.0
    %574 = vmatpush2.msra.mxu0 0.0
    %575 = vmatprep.subr.mxu0 0.0
    %576 = vmatpush2.msra.mxu0 0.0
    %577 = vmatprep.subr.mxu0 0.0
    %578 = vmatpush2.msra.mxu0 0.0
    %579 = vmatprep.subr.mxu0 0.0
    %580 = vmatpush2.msra.mxu0 0.0
    %581 = vmatprep.subr.mxu0 0.0
    %582 = vmatpush2.msra.mxu0 0.0
    %583 = vmatprep.subr.mxu0 0.0
    %584 = vmatpush2.msra.mxu0 0.0
    %585 = vmatprep.subr.mxu0 0.0
    %586 = vmatpush2.msra.mxu0 0.0
    %587 = vmatprep.subr.mxu0 0.0
    %588 = vmatpush2.msra.mxu0 0.0
    %589 = vmatprep.subr.mxu0 0.0
    %590 = vmatpush2.msra.mxu0 0.0
    %591 = vmatprep.subr.mxu0 0.0
    %592 = vmatpush2.msra.mxu0 0.0
    %593 = vmatprep.subr.mxu0 0.0
    %594 = vmatpush2.msra.mxu0 0.0
    %595 = vmatprep.subr.mxu0 0.0
    %596 = vmatpush2.msra.mxu0 0.0
    %597 = vmatprep.subr.mxu0 0.0
    %598 = vmatpush2.msra.mxu0 0.0
    %599 = vmatprep.subr.mxu0 0.0
    %600 = vmatpush2.msra.mxu0 0.0
    %601 = vmatprep.mubr.f32.mxu0 0.0
    %v602 = vand.u32 %v30, 4294901760
    %603 = vmatmul.mubr.f32.gmra.mxu0 %v602
    %v604 = vpop.f32.mrf.mxu0
    %v605 = vadd.f32 %v486, %v604
    %v606 = vpop.f32.mrf.mxu0
    %607 = vdwg.mxu0
    %608 = vmatprep.subr.mxu0 0.0
    %v609 = vand.u32 %v46, 4294901760
    %610 = vmatpush1.msra.mxu0 %v609
    %611 = vmatprep.subr.mxu0 0.0
    %v612 = vand.u32 %v45, 4294901760
    %613 = vmatpush1.msra.mxu0 %v612
    %614 = vmatprep.subr.mxu0 0.0
    %v615 = vand.u32 %v44, 4294901760
    %616 = vmatpush1.msra.mxu0 %v615
    %617 = vmatprep.subr.mxu0 0.0
    %v618 = vand.u32 %v43, 4294901760
    %619 = vmatpush1.msra.mxu0 %v618
    %620 = vmatprep.subr.mxu0 0.0
    %v621 = vand.u32 %v42, 4294901760
    %622 = vmatpush1.msra.mxu0 %v621
    %623 = vmatprep.subr.mxu0 0.0
    %v624 = vand.u32 %v41, 4294901760
    %625 = vmatpush1.msra.mxu0 %v624
    %626 = vmatprep.subr.mxu0 0.0
    %v627 = vand.u32 %v40, 4294901760
    %628 = vmatpush1.msra.mxu0 %v627
    %629 = vmatprep.subr.mxu0 0.0
    %v630 = vand.u32 %v39, 4294901760
    %631 = vmatpush1.msra.mxu0 %v630
    %632 = vmatprep.subr.mxu0 0.0
    %v633 = vand.u32 %v38, 4294901760
    %634 = vmatpush1.msra.mxu0 %v633
    %635 = vmatprep.subr.mxu0 0.0
    %v636 = vand.u32 %v37, 4294901760
    %637 = vmatpush1.msra.mxu0 %v636
    %638 = vmatprep.subr.mxu0 0.0
    %v639 = vand.u32 %v36, 4294901760
    %640 = vmatpush1.msra.mxu0 %v639
    %641 = vmatprep.subr.mxu0 0.0
    %v642 = vand.u32 %v35, 4294901760
    %643 = vmatpush1.msra.mxu0 %v642
    %644 = vmatprep.subr.mxu0 0.0
    %v645 = vand.u32 %v34, 4294901760
    %646 = vmatpush1.msra.mxu0 %v645
    %647 = vmatprep.subr.mxu0 0.0
    %v648 = vand.u32 %v33, 4294901760
    %649 = vmatpush1.msra.mxu0 %v648
    %650 = vmatprep.subr.mxu0 0.0
    %v651 = vand.u32 %v32, 4294901760
    %652 = vmatpush1.msra.mxu0 %v651
    %653 = vmatprep.subr.mxu0 0.0
    %v654 = vand.u32 %v31, 4294901760
    %655 = vmatpush1.msra.mxu0 %v654
    %656 = vmatprep.subr.mxu0 0.0
    %657 = vmatpush2.msra.mxu0 0.0
    %658 = vmatprep.subr.mxu0 0.0
    %659 = vmatpush2.msra.mxu0 0.0
    %660 = vmatprep.subr.mxu0 0.0
    %661 = vmatpush2.msra.mxu0 0.0
    %662 = vmatprep.subr.mxu0 0.0
    %663 = vmatpush2.msra.mxu0 0.0
    %664 = vmatprep.subr.mxu0 0.0
    %665 = vmatpush2.msra.mxu0 0.0
    %666 = vmatprep.subr.mxu0 0.0
    %667 = vmatpush2.msra.mxu0 0.0
    %668 = vmatprep.subr.mxu0 0.0
    %669 = vmatpush2.msra.mxu0 0.0
    %670 = vmatprep.subr.mxu0 0.0
    %671 = vmatpush2.msra.mxu0 0.0
    %672 = vmatprep.subr.mxu0 0.0
    %673 = vmatpush2.msra.mxu0 0.0
    %674 = vmatprep.subr.mxu0 0.0
    %675 = vmatpush2.msra.mxu0 0.0
    %676 = vmatprep.subr.mxu0 0.0
    %677 = vmatpush2.msra.mxu0 0.0
    %678 = vmatprep.subr.mxu0 0.0
    %679 = vmatpush2.msra.mxu0 0.0
    %680 = vmatprep.subr.mxu0 0.0
    %681 = vmatpush2.msra.mxu0 0.0
    %682 = vmatprep.subr.mxu0 0.0
    %683 = vmatpush2.msra.mxu0 0.0
    %684 = vmatprep.subr.mxu0 0.0
    %685 = vmatpush2.msra.mxu0 0.0
    %686 = vmatprep.subr.mxu0 0.0
    %687 = vmatpush2.msra.mxu0 0.0
    %688 = vmatprep.mubr.f32.mxu0 0.0
    %v689 = vand.u32 %v30, 4294901760
    %690 = vmatmul.mubr.f32.gmra.mxu0 %v689
    %v691 = vpop.f32.mrf.mxu0
    %v692 = vadd.f32 %v605, %v691
    %v693 = vpop.f32.mrf.mxu0
    %694 = vdwg.mxu0
    %696 = vrot.lane.b32.xlu0 %v692, 96
    %v697 = vpop.permute.xlu0 %696
    %v699 = vmax.f32 %v692, %v697
    %700 = vrot.lane.b32.xlu0 %v692, 64
    %v701 = vpop.permute.xlu0 %700
    %v703 = vmax.f32 %v699, %v701
    %704 = vrot.lane.b32.xlu0 %v692, 32
    %v705 = vpop.permute.xlu0 %704
    %v707 = vmax.f32 %v703, %v705
    %v708 = vld [vmem:[%s3] sm:$0xff]
    %v709 = vld [vmem:[%s3 + $0x8] sm:$0xff]
    %v710 = vld [vmem:[%s3 + $0x10] sm:$0xff]
    %v711 = vld [vmem:[%s3 + $0x18] sm:$0xff]
    %v712 = vld [vmem:[%s4] sm:$0x1]
    %v714 = vlaneseq
    %v715 = vshrl.u32 %v714, 7
    %v716 = vsub.s32 0, %v715
    %v717 = vrot.slane %v712, %v716
    %vm719 = vcmask 261120
    %v721 = vsel %vm719, %v707, 0
    %723 = vmatprep.subr.mxu0 0.0
    %724 = vmatpush1.msra.mxu0 0.0
    %725 = vmatprep.subr.mxu0 0.0
    %726 = vmatpush1.msra.mxu0 0.0
    %727 = vmatprep.subr.mxu0 0.0
    %728 = vmatpush1.msra.mxu0 0.0
    %729 = vmatprep.subr.mxu0 0.0
    %730 = vmatpush1.msra.mxu0 0.0
    %731 = vmatprep.subr.mxu0 0.0
    %732 = vmatpush1.msra.mxu0 0.0
    %733 = vmatprep.subr.mxu0 0.0
    %734 = vmatpush1.msra.mxu0 0.0
    %735 = vmatprep.subr.mxu0 0.0
    %736 = vmatpush1.msra.mxu0 0.0
    %737 = vmatprep.subr.mxu0 0.0
    %738 = vmatpush1.msra.mxu0 0.0
    %739 = vmatprep.subr.mxu0 0.0
    %740 = vmatpush1.msra.mxu0 0.0
    %741 = vmatprep.subr.mxu0 0.0
    %742 = vmatpush1.msra.mxu0 0.0
    %743 = vmatprep.subr.mxu0 0.0
    %744 = vmatpush1.msra.mxu0 0.0
    %745 = vmatprep.subr.mxu0 0.0
    %746 = vmatpush1.msra.mxu0 0.0
    %747 = vmatprep.subr.mxu0 0.0
    %v748 = vand.u32 %v711, 4294901760
    %749 = vmatpush1.msra.mxu0 %v748
    %750 = vmatprep.subr.mxu0 0.0
    %v751 = vand.u32 %v710, 4294901760
    %752 = vmatpush1.msra.mxu0 %v751
    %753 = vmatprep.subr.mxu0 0.0
    %v754 = vand.u32 %v709, 4294901760
    %755 = vmatpush1.msra.mxu0 %v754
    %756 = vmatprep.subr.mxu0 0.0
    %v757 = vand.u32 %v708, 4294901760
    %758 = vmatpush1.msra.mxu0 %v757
    %759 = vmatprep.subr.mxu0 0.0
    %760 = vmatpush2.msra.mxu0 0.0
    %761 = vmatprep.subr.mxu0 0.0
    %762 = vmatpush2.msra.mxu0 0.0
    %763 = vmatprep.subr.mxu0 0.0
    %764 = vmatpush2.msra.mxu0 0.0
    %765 = vmatprep.subr.mxu0 0.0
    %766 = vmatpush2.msra.mxu0 0.0
    %767 = vmatprep.subr.mxu0 0.0
    %768 = vmatpush2.msra.mxu0 0.0
    %769 = vmatprep.subr.mxu0 0.0
    %770 = vmatpush2.msra.mxu0 0.0
    %771 = vmatprep.subr.mxu0 0.0
    %772 = vmatpush2.msra.mxu0 0.0
    %773 = vmatprep.subr.mxu0 0.0
    %774 = vmatpush2.msra.mxu0 0.0
    %775 = vmatprep.subr.mxu0 0.0
    %776 = vmatpush2.msra.mxu0 0.0
    %777 = vmatprep.subr.mxu0 0.0
    %778 = vmatpush2.msra.mxu0 0.0
    %779 = vmatprep.subr.mxu0 0.0
    %780 = vmatpush2.msra.mxu0 0.0
    %781 = vmatprep.subr.mxu0 0.0
    %782 = vmatpush2.msra.mxu0 0.0
    %783 = vmatprep.subr.mxu0 0.0
    %784 = vmatpush2.msra.mxu0 0.0
    %785 = vmatprep.subr.mxu0 0.0
    %786 = vmatpush2.msra.mxu0 0.0
    %787 = vmatprep.subr.mxu0 0.0
    %788 = vmatpush2.msra.mxu0 0.0
    %789 = vmatprep.subr.mxu0 0.0
    %790 = vmatpush2.msra.mxu0 0.0
    %791 = vmatprep.mubr.f32.mxu0 0.0
    %v792 = vand.u32 %v721, 4294901760
    %v793 = vsub.f32 %v721, %v792
    %v794 = vand.u32 %v793, 4294901760
    %v795 = vsub.f32 %v793, %v794
    %v796 = vand.u32 %v795, 4294901760
    %797 = vmatmul.mubr.f32.gmra.mxu0 %v796
    %v798 = vpop.f32.mrf.mxu0
    %v799 = vadd.f32 %v717, %v798
    %v800 = vpop.f32.mrf.mxu0
    %801 = vdwg.mxu0
    %802 = vmatprep.subr.mxu0 0.0
    %803 = vmatpush1.msra.mxu0 0.0
    %804 = vmatprep.subr.mxu0 0.0
    %805 = vmatpush1.msra.mxu0 0.0
    %806 = vmatprep.subr.mxu0 0.0
    %807 = vmatpush1.msra.mxu0 0.0
    %808 = vmatprep.subr.mxu0 0.0
    %809 = vmatpush1.msra.mxu0 0.0
    %810 = vmatprep.subr.mxu0 0.0
    %811 = vmatpush1.msra.mxu0 0.0
    %812 = vmatprep.subr.mxu0 0.0
    %813 = vmatpush1.msra.mxu0 0.0
    %814 = vmatprep.subr.mxu0 0.0
    %815 = vmatpush1.msra.mxu0 0.0
    %816 = vmatprep.subr.mxu0 0.0
    %817 = vmatpush1.msra.mxu0 0.0
    %818 = vmatprep.subr.mxu0 0.0
    %819 = vmatpush1.msra.mxu0 0.0
    %820 = vmatprep.subr.mxu0 0.0
    %821 = vmatpush1.msra.mxu0 0.0
    %822 = vmatprep.subr.mxu0 0.0
    %823 = vmatpush1.msra.mxu0 0.0
    %824 = vmatprep.subr.mxu0 0.0
    %825 = vmatpush1.msra.mxu0 0.0
    %826 = vmatprep.subr.mxu0 0.0
    %v827 = vand.u32 %v711, 4294901760
    %v828 = vsub.f32 %v711, %v827
    %v829 = vand.u32 %v828, 4294901760
    %v830 = vsub.f32 %v828, %v829
    %v831 = vand.u32 %v830, 4294901760
    %832 = vmatpush1.msra.mxu0 %v831
    %833 = vmatprep.subr.mxu0 0.0
    %v834 = vand.u32 %v710, 4294901760
    %v835 = vsub.f32 %v710, %v834
    %v836 = vand.u32 %v835, 4294901760
    %v837 = vsub.f32 %v835, %v836
    %v838 = vand.u32 %v837, 4294901760
    %839 = vmatpush1.msra.mxu0 %v838
    %840 = vmatprep.subr.mxu0 0.0
    %v841 = vand.u32 %v709, 4294901760
    %v842 = vsub.f32 %v709, %v841
    %v843 = vand.u32 %v842, 4294901760
    %v844 = vsub.f32 %v842, %v843
    %v845 = vand.u32 %v844, 4294901760
    %846 = vmatpush1.msra.mxu0 %v845
    %847 = vmatprep.subr.mxu0 0.0
    %v848 = vand.u32 %v708, 4294901760
    %v849 = vsub.f32 %v708, %v848
    %v850 = vand.u32 %v849, 4294901760
    %v851 = vsub.f32 %v849, %v850
    %v852 = vand.u32 %v851, 4294901760
    %853 = vmatpush1.msra.mxu0 %v852
    %854 = vmatprep.subr.mxu0 0.0
    %855 = vmatpush2.msra.mxu0 0.0
    %856 = vmatprep.subr.mxu0 0.0
    %857 = vmatpush2.msra.mxu0 0.0
    %858 = vmatprep.subr.mxu0 0.0
    %859 = vmatpush2.msra.mxu0 0.0
    %860 = vmatprep.subr.mxu0 0.0
    %861 = vmatpush2.msra.mxu0 0.0
    %862 = vmatprep.subr.mxu0 0.0
    %863 = vmatpush2.msra.mxu0 0.0
    %864 = vmatprep.subr.mxu0 0.0
    %865 = vmatpush2.msra.mxu0 0.0
    %866 = vmatprep.subr.mxu0 0.0
    %867 = vmatpush2.msra.mxu0 0.0
    %868 = vmatprep.subr.mxu0 0.0
    %869 = vmatpush2.msra.mxu0 0.0
    %870 = vmatprep.subr.mxu0 0.0
    %871 = vmatpush2.msra.mxu0 0.0
    %872 = vmatprep.subr.mxu0 0.0
    %873 = vmatpush2.msra.mxu0 0.0
    %874 = vmatprep.subr.mxu0 0.0
    %875 = vmatpush2.msra.mxu0 0.0
    %876 = vmatprep.subr.mxu0 0.0
    %877 = vmatpush2.msra.mxu0 0.0
    %878 = vmatprep.subr.mxu0 0.0
    %879 = vmatpush2.msra.mxu0 0.0
    %880 = vmatprep.subr.mxu0 0.0
    %881 = vmatpush2.msra.mxu0 0.0
    %882 = vmatprep.subr.mxu0 0.0
    %883 = vmatpush2.msra.mxu0 0.0
    %884 = vmatprep.subr.mxu0 0.0
    %885 = vmatpush2.msra.mxu0 0.0
    %886 = vmatprep.mubr.f32.mxu0 0.0
    %v887 = vand.u32 %v721, 4294901760
    %888 = vmatmul.mubr.f32.gmra.mxu0 %v887
    %v889 = vpop.f32.mrf.mxu0
    %v890 = vadd.f32 %v799, %v889
    %v891 = vpop.f32.mrf.mxu0
    %892 = vdwg.mxu0
    %893 = vmatprep.subr.mxu0 0.0
    %894 = vmatpush1.msra.mxu0 0.0
    %895 = vmatprep.subr.mxu0 0.0
    %896 = vmatpush1.msra.mxu0 0.0
    %897 = vmatprep.subr.mxu0 0.0
    %898 = vmatpush1.msra.mxu0 0.0
    %899 = vmatprep.subr.mxu0 0.0
    %900 = vmatpush1.msra.mxu0 0.0
    %901 = vmatprep.subr.mxu0 0.0
    %902 = vmatpush1.msra.mxu0 0.0
    %903 = vmatprep.subr.mxu0 0.0
    %904 = vmatpush1.msra.mxu0 0.0
    %905 = vmatprep.subr.mxu0 0.0
    %906 = vmatpush1.msra.mxu0 0.0
    %907 = vmatprep.subr.mxu0 0.0
    %908 = vmatpush1.msra.mxu0 0.0
    %909 = vmatprep.subr.mxu0 0.0
    %910 = vmatpush1.msra.mxu0 0.0
    %911 = vmatprep.subr.mxu0 0.0
    %912 = vmatpush1.msra.mxu0 0.0
    %913 = vmatprep.subr.mxu0 0.0
    %914 = vmatpush1.msra.mxu0 0.0
    %915 = vmatprep.subr.mxu0 0.0
    %916 = vmatpush1.msra.mxu0 0.0
    %917 = vmatprep.subr.mxu0 0.0
    %v918 = vand.u32 %v711, 4294901760
    %v919 = vsub.f32 %v711, %v918
    %920 = vmatpush1.msra.mxu0 %v919
    %921 = vmatprep.subr.mxu0 0.0
    %v922 = vand.u32 %v710, 4294901760
    %v923 = vsub.f32 %v710, %v922
    %924 = vmatpush1.msra.mxu0 %v923
    %925 = vmatprep.subr.mxu0 0.0
    %v926 = vand.u32 %v709, 4294901760
    %v927 = vsub.f32 %v709, %v926
    %928 = vmatpush1.msra.mxu0 %v927
    %929 = vmatprep.subr.mxu0 0.0
    %v930 = vand.u32 %v708, 4294901760
    %v931 = vsub.f32 %v708, %v930
    %932 = vmatpush1.msra.mxu0 %v931
    %933 = vmatprep.subr.mxu0 0.0
    %934 = vmatpush2.msra.mxu0 0.0
    %935 = vmatprep.subr.mxu0 0.0
    %936 = vmatpush2.msra.mxu0 0.0
    %937 = vmatprep.subr.mxu0 0.0
    %938 = vmatpush2.msra.mxu0 0.0
    %939 = vmatprep.subr.mxu0 0.0
    %940 = vmatpush2.msra.mxu0 0.0
    %941 = vmatprep.subr.mxu0 0.0
    %942 = vmatpush2.msra.mxu0 0.0
    %943 = vmatprep.subr.mxu0 0.0
    %944 = vmatpush2.msra.mxu0 0.0
    %945 = vmatprep.subr.mxu0 0.0
    %946 = vmatpush2.msra.mxu0 0.0
    %947 = vmatprep.subr.mxu0 0.0
    %948 = vmatpush2.msra.mxu0 0.0
    %949 = vmatprep.subr.mxu0 0.0
    %950 = vmatpush2.msra.mxu0 0.0
    %951 = vmatprep.subr.mxu0 0.0
    %952 = vmatpush2.msra.mxu0 0.0
    %953 = vmatprep.subr.mxu0 0.0
    %954 = vmatpush2.msra.mxu0 0.0
    %955 = vmatprep.subr.mxu0 0.0
    %956 = vmatpush2.msra.mxu0 0.0
    %957 = vmatprep.subr.mxu0 0.0
    %958 = vmatpush2.msra.mxu0 0.0
    %959 = vmatprep.subr.mxu0 0.0
    %960 = vmatpush2.msra.mxu0 0.0
    %961 = vmatprep.subr.mxu0 0.0
    %962 = vmatpush2.msra.mxu0 0.0
    %963 = vmatprep.subr.mxu0 0.0
    %964 = vmatpush2.msra.mxu0 0.0
    %965 = vmatprep.mubr.f32.mxu0 0.0
    %v966 = vand.u32 %v721, 4294901760
    %v967 = vsub.f32 %v721, %v966
    %968 = vmatmul.mubr.f32.gmra.mxu0 %v967
    %v969 = vpop.f32.mrf.mxu0
    %v970 = vadd.f32 %v890, %v969
    %v971 = vpop.f32.mrf.mxu0
    %972 = vdwg.mxu0
    %973 = vmatprep.subr.mxu0 0.0
    %974 = vmatpush1.msra.mxu0 0.0
    %975 = vmatprep.subr.mxu0 0.0
    %976 = vmatpush1.msra.mxu0 0.0
    %977 = vmatprep.subr.mxu0 0.0
    %978 = vmatpush1.msra.mxu0 0.0
    %979 = vmatprep.subr.mxu0 0.0
    %980 = vmatpush1.msra.mxu0 0.0
    %981 = vmatprep.subr.mxu0 0.0
    %982 = vmatpush1.msra.mxu0 0.0
    %983 = vmatprep.subr.mxu0 0.0
    %984 = vmatpush1.msra.mxu0 0.0
    %985 = vmatprep.subr.mxu0 0.0
    %986 = vmatpush1.msra.mxu0 0.0
    %987 = vmatprep.subr.mxu0 0.0
    %988 = vmatpush1.msra.mxu0 0.0
    %989 = vmatprep.subr.mxu0 0.0
    %990 = vmatpush1.msra.mxu0 0.0
    %991 = vmatprep.subr.mxu0 0.0
    %992 = vmatpush1.msra.mxu0 0.0
    %993 = vmatprep.subr.mxu0 0.0
    %994 = vmatpush1.msra.mxu0 0.0
    %995 = vmatprep.subr.mxu0 0.0
    %996 = vmatpush1.msra.mxu0 0.0
    %997 = vmatprep.subr.mxu0 0.0
    %v998 = vand.u32 %v711, 4294901760
    %999 = vmatpush1.msra.mxu0 %v998
    %1000 = vmatprep.subr.mxu0 0.0
    %v1001 = vand.u32 %v710, 4294901760
    %1002 = vmatpush1.msra.mxu0 %v1001
    %1003 = vmatprep.subr.mxu0 0.0
    %v1004 = vand.u32 %v709, 4294901760
    %1005 = vmatpush1.msra.mxu0 %v1004
    %1006 = vmatprep.subr.mxu0 0.0
    %v1007 = vand.u32 %v708, 4294901760
    %1008 = vmatpush1.msra.mxu0 %v1007
    %1009 = vmatprep.subr.mxu0 0.0
    %1010 = vmatpush2.msra.mxu0 0.0
    %1011 = vmatprep.subr.mxu0 0.0
    %1012 = vmatpush2.msra.mxu0 0.0
    %1013 = vmatprep.subr.mxu0 0.0
    %1014 = vmatpush2.msra.mxu0 0.0
    %1015 = vmatprep.subr.mxu0 0.0
    %1016 = vmatpush2.msra.mxu0 0.0
    %1017 = vmatprep.subr.mxu0 0.0
    %1018 = vmatpush2.msra.mxu0 0.0
    %1019 = vmatprep.subr.mxu0 0.0
    %1020 = vmatpush2.msra.mxu0 0.0
    %1021 = vmatprep.subr.mxu0 0.0
    %1022 = vmatpush2.msra.mxu0 0.0
    %1023 = vmatprep.subr.mxu0 0.0
    %1024 = vmatpush2.msra.mxu0 0.0
    %1025 = vmatprep.subr.mxu0 0.0
    %1026 = vmatpush2.msra.mxu0 0.0
    %1027 = vmatprep.subr.mxu0 0.0
    %1028 = vmatpush2.msra.mxu0 0.0
    %1029 = vmatprep.subr.mxu0 0.0
    %1030 = vmatpush2.msra.mxu0 0.0
    %1031 = vmatprep.subr.mxu0 0.0
    %1032 = vmatpush2.msra.mxu0 0.0
    %1033 = vmatprep.subr.mxu0 0.0
    %1034 = vmatpush2.msra.mxu0 0.0
    %1035 = vmatprep.subr.mxu0 0.0
    %1036 = vmatpush2.msra.mxu0 0.0
    %1037 = vmatprep.subr.mxu0 0.0
    %1038 = vmatpush2.msra.mxu0 0.0
    %1039 = vmatprep.subr.mxu0 0.0
    %1040 = vmatpush2.msra.mxu0 0.0
    %1041 = vmatprep.mubr.f32.mxu0 0.0
    %v1042 = vand.u32 %v721, 4294901760
    %v1043 = vsub.f32 %v721, %v1042
    %v1044 = vand.u32 %v1043, 4294901760
    %1045 = vmatmul.mubr.f32.gmra.mxu0 %v1044
    %v1046 = vpop.f32.mrf.mxu0
    %v1047 = vadd.f32 %v970, %v1046
    %v1048 = vpop.f32.mrf.mxu0
    %1049 = vdwg.mxu0
    %1050 = vmatprep.subr.mxu0 0.0
    %1051 = vmatpush1.msra.mxu0 0.0
    %1052 = vmatprep.subr.mxu0 0.0
    %1053 = vmatpush1.msra.mxu0 0.0
    %1054 = vmatprep.subr.mxu0 0.0
    %1055 = vmatpush1.msra.mxu0 0.0
    %1056 = vmatprep.subr.mxu0 0.0
    %1057 = vmatpush1.msra.mxu0 0.0
    %1058 = vmatprep.subr.mxu0 0.0
    %1059 = vmatpush1.msra.mxu0 0.0
    %1060 = vmatprep.subr.mxu0 0.0
    %1061 = vmatpush1.msra.mxu0 0.0
    %1062 = vmatprep.subr.mxu0 0.0
    %1063 = vmatpush1.msra.mxu0 0.0
    %1064 = vmatprep.subr.mxu0 0.0
    %1065 = vmatpush1.msra.mxu0 0.0
    %1066 = vmatprep.subr.mxu0 0.0
    %1067 = vmatpush1.msra.mxu0 0.0
    %1068 = vmatprep.subr.mxu0 0.0
    %1069 = vmatpush1.msra.mxu0 0.0
    %1070 = vmatprep.subr.mxu0 0.0
    %1071 = vmatpush1.msra.mxu0 0.0
    %1072 = vmatprep.subr.mxu0 0.0
    %1073 = vmatpush1.msra.mxu0 0.0
    %1074 = vmatprep.subr.mxu0 0.0
    %v1075 = vand.u32 %v711, 4294901760
    %v1076 = vsub.f32 %v711, %v1075
    %v1077 = vand.u32 %v1076, 4294901760
    %1078 = vmatpush1.msra.mxu0 %v1077
    %1079 = vmatprep.subr.mxu0 0.0
    %v1080 = vand.u32 %v710, 4294901760
    %v1081 = vsub.f32 %v710, %v1080
    %v1082 = vand.u32 %v1081, 4294901760
    %1083 = vmatpush1.msra.mxu0 %v1082
    %1084 = vmatprep.subr.mxu0 0.0
    %v1085 = vand.u32 %v709, 4294901760
    %v1086 = vsub.f32 %v709, %v1085
    %v1087 = vand.u32 %v1086, 4294901760
    %1088 = vmatpush1.msra.mxu0 %v1087
    %1089 = vmatprep.subr.mxu0 0.0
    %v1090 = vand.u32 %v708, 4294901760
    %v1091 = vsub.f32 %v708, %v1090
    %v1092 = vand.u32 %v1091, 4294901760
    %1093 = vmatpush1.msra.mxu0 %v1092
    %1094 = vmatprep.subr.mxu0 0.0
    %1095 = vmatpush2.msra.mxu0 0.0
    %1096 = vmatprep.subr.mxu0 0.0
    %1097 = vmatpush2.msra.mxu0 0.0
    %1098 = vmatprep.subr.mxu0 0.0
    %1099 = vmatpush2.msra.mxu0 0.0
    %1100 = vmatprep.subr.mxu0 0.0
    %1101 = vmatpush2.msra.mxu0 0.0
    %1102 = vmatprep.subr.mxu0 0.0
    %1103 = vmatpush2.msra.mxu0 0.0
    %1104 = vmatprep.subr.mxu0 0.0
    %1105 = vmatpush2.msra.mxu0 0.0
    %1106 = vmatprep.subr.mxu0 0.0
    %1107 = vmatpush2.msra.mxu0 0.0
    %1108 = vmatprep.subr.mxu0 0.0
    %1109 = vmatpush2.msra.mxu0 0.0
    %1110 = vmatprep.subr.mxu0 0.0
    %1111 = vmatpush2.msra.mxu0 0.0
    %1112 = vmatprep.subr.mxu0 0.0
    %1113 = vmatpush2.msra.mxu0 0.0
    %1114 = vmatprep.subr.mxu0 0.0
    %1115 = vmatpush2.msra.mxu0 0.0
    %1116 = vmatprep.subr.mxu0 0.0
    %1117 = vmatpush2.msra.mxu0 0.0
    %1118 = vmatprep.subr.mxu0 0.0
    %1119 = vmatpush2.msra.mxu0 0.0
    %1120 = vmatprep.subr.mxu0 0.0
    %1121 = vmatpush2.msra.mxu0 0.0
    %1122 = vmatprep.subr.mxu0 0.0
    %1123 = vmatpush2.msra.mxu0 0.0
    %1124 = vmatprep.subr.mxu0 0.0
    %1125 = vmatpush2.msra.mxu0 0.0
    %1126 = vmatprep.mubr.f32.mxu0 0.0
    %v1127 = vand.u32 %v721, 4294901760
    %1128 = vmatmul.mubr.f32.gmra.mxu0 %v1127
    %v1129 = vpop.f32.mrf.mxu0
    %v1130 = vadd.f32 %v1047, %v1129
    %v1131 = vpop.f32.mrf.mxu0
    %1132 = vdwg.mxu0
    %1133 = vmatprep.subr.mxu0 0.0
    %1134 = vmatpush1.msra.mxu0 0.0
    %1135 = vmatprep.subr.mxu0 0.0
    %1136 = vmatpush1.msra.mxu0 0.0
    %1137 = vmatprep.subr.mxu0 0.0
    %1138 = vmatpush1.msra.mxu0 0.0
    %1139 = vmatprep.subr.mxu0 0.0
    %1140 = vmatpush1.msra.mxu0 0.0
    %1141 = vmatprep.subr.mxu0 0.0
    %1142 = vmatpush1.msra.mxu0 0.0
    %1143 = vmatprep.subr.mxu0 0.0
    %1144 = vmatpush1.msra.mxu0 0.0
    %1145 = vmatprep.subr.mxu0 0.0
    %1146 = vmatpush1.msra.mxu0 0.0
    %1147 = vmatprep.subr.mxu0 0.0
    %1148 = vmatpush1.msra.mxu0 0.0
    %1149 = vmatprep.subr.mxu0 0.0
    %1150 = vmatpush1.msra.mxu0 0.0
    %1151 = vmatprep.subr.mxu0 0.0
    %1152 = vmatpush1.msra.mxu0 0.0
    %1153 = vmatprep.subr.mxu0 0.0
    %1154 = vmatpush1.msra.mxu0 0.0
    %1155 = vmatprep.subr.mxu0 0.0
    %1156 = vmatpush1.msra.mxu0 0.0
    %1157 = vmatprep.subr.mxu0 0.0
    %v1158 = vand.u32 %v711, 4294901760
    %1159 = vmatpush1.msra.mxu0 %v1158
    %1160 = vmatprep.subr.mxu0 0.0
    %v1161 = vand.u32 %v710, 4294901760
    %1162 = vmatpush1.msra.mxu0 %v1161
    %1163 = vmatprep.subr.mxu0 0.0
    %v1164 = vand.u32 %v709, 4294901760
    %1165 = vmatpush1.msra.mxu0 %v1164
    %1166 = vmatprep.subr.mxu0 0.0
    %v1167 = vand.u32 %v708, 4294901760
    %1168 = vmatpush1.msra.mxu0 %v1167
    %1169 = vmatprep.subr.mxu0 0.0
    %1170 = vmatpush2.msra.mxu0 0.0
    %1171 = vmatprep.subr.mxu0 0.0
    %1172 = vmatpush2.msra.mxu0 0.0
    %1173 = vmatprep.subr.mxu0 0.0
    %1174 = vmatpush2.msra.mxu0 0.0
    %1175 = vmatprep.subr.mxu0 0.0
    %1176 = vmatpush2.msra.mxu0 0.0
    %1177 = vmatprep.subr.mxu0 0.0
    %1178 = vmatpush2.msra.mxu0 0.0
    %1179 = vmatprep.subr.mxu0 0.0
    %1180 = vmatpush2.msra.mxu0 0.0
    %1181 = vmatprep.subr.mxu0 0.0
    %1182 = vmatpush2.msra.mxu0 0.0
    %1183 = vmatprep.subr.mxu0 0.0
    %1184 = vmatpush2.msra.mxu0 0.0
    %1185 = vmatprep.subr.mxu0 0.0
    %1186 = vmatpush2.msra.mxu0 0.0
    %1187 = vmatprep.subr.mxu0 0.0
    %1188 = vmatpush2.msra.mxu0 0.0
    %1189 = vmatprep.subr.mxu0 0.0
    %1190 = vmatpush2.msra.mxu0 0.0
    %1191 = vmatprep.subr.mxu0 0.0
    %1192 = vmatpush2.msra.mxu0 0.0
    %1193 = vmatprep.subr.mxu0 0.0
    %1194 = vmatpush2.msra.mxu0 0.0
    %1195 = vmatprep.subr.mxu0 0.0
    %1196 = vmatpush2.msra.mxu0 0.0
    %1197 = vmatprep.subr.mxu0 0.0
    %1198 = vmatpush2.msra.mxu0 0.0
    %1199 = vmatprep.subr.mxu0 0.0
    %1200 = vmatpush2.msra.mxu0 0.0
    %1201 = vmatprep.mubr.f32.mxu0 0.0
    %v1202 = vand.u32 %v721, 4294901760
    %1203 = vmatmul.mubr.f32.gmra.mxu0 %v1202
    %v1204 = vpop.f32.mrf.mxu0
    %v1205 = vadd.f32 %v1130, %v1204
    %v1206 = vpop.f32.mrf.mxu0
    %1207 = vdwg.mxu0
    %1209 = vrot.lane.b32.xlu0 %v1205, 120
    %v1210 = vpop.permute.xlu0 %1209
    %v1212 = vmax.f32 %v1205, %v1210
    %1213 = vrot.lane.b32.xlu0 %v1205, 112
    %v1214 = vpop.permute.xlu0 %1213
    %v1216 = vmax.f32 %v1212, %v1214
    %1217 = vrot.lane.b32.xlu0 %v1205, 104
    %v1218 = vpop.permute.xlu0 %1217
    %v1220 = vmax.f32 %v1216, %v1218
    %v1221 = vld [vmem:[%s5] sm:$0xff]
    %v1222 = vld [vmem:[%s6] sm:$0x1]
    %v1224 = vlaneseq
    %v1225 = vshrl.u32 %v1224, 7
    %v1226 = vsub.s32 0, %v1225
    %v1227 = vrot.slane %v1222, %v1226
    %vm1229 = vcmask 64512
    %v1231 = vsel %vm1229, %v1220, 0
    %1233 = vmatprep.subr.mxu0 0.0
    %1234 = vmatpush1.msra.mxu0 0.0
    %1235 = vmatprep.subr.mxu0 0.0
    %1236 = vmatpush1.msra.mxu0 0.0
    %1237 = vmatprep.subr.mxu0 0.0
    %1238 = vmatpush1.msra.mxu0 0.0
    %1239 = vmatprep.subr.mxu0 0.0
    %1240 = vmatpush1.msra.mxu0 0.0
    %1241 = vmatprep.subr.mxu0 0.0
    %1242 = vmatpush1.msra.mxu0 0.0
    %1243 = vmatprep.subr.mxu0 0.0
    %1244 = vmatpush1.msra.mxu0 0.0
    %1245 = vmatprep.subr.mxu0 0.0
    %1246 = vmatpush1.msra.mxu0 0.0
    %1247 = vmatprep.subr.mxu0 0.0
    %1248 = vmatpush1.msra.mxu0 0.0
    %1249 = vmatprep.subr.mxu0 0.0
    %1250 = vmatpush1.msra.mxu0 0.0
    %1251 = vmatprep.subr.mxu0 0.0
    %1252 = vmatpush1.msra.mxu0 0.0
    %1253 = vmatprep.subr.mxu0 0.0
    %1254 = vmatpush1.msra.mxu0 0.0
    %1255 = vmatprep.subr.mxu0 0.0
    %1256 = vmatpush1.msra.mxu0 0.0
    %1257 = vmatprep.subr.mxu0 0.0
    %1258 = vmatpush1.msra.mxu0 0.0
    %1259 = vmatprep.subr.mxu0 0.0
    %1260 = vmatpush1.msra.mxu0 0.0
    %1261 = vmatprep.subr.mxu0 0.0
    %1262 = vmatpush1.msra.mxu0 0.0
    %1263 = vmatprep.subr.mxu0 0.0
    %v1264 = vand.u32 %v1221, 4294901760
    %1265 = vmatpush1.msra.mxu0 %v1264
    %1266 = vmatprep.subr.mxu0 0.0
    %1267 = vmatpush2.msra.mxu0 0.0
    %1268 = vmatprep.subr.mxu0 0.0
    %1269 = vmatpush2.msra.mxu0 0.0
    %1270 = vmatprep.subr.mxu0 0.0
    %1271 = vmatpush2.msra.mxu0 0.0
    %1272 = vmatprep.subr.mxu0 0.0
    %1273 = vmatpush2.msra.mxu0 0.0
    %1274 = vmatprep.subr.mxu0 0.0
    %1275 = vmatpush2.msra.mxu0 0.0
    %1276 = vmatprep.subr.mxu0 0.0
    %1277 = vmatpush2.msra.mxu0 0.0
    %1278 = vmatprep.subr.mxu0 0.0
    %1279 = vmatpush2.msra.mxu0 0.0
    %1280 = vmatprep.subr.mxu0 0.0
    %1281 = vmatpush2.msra.mxu0 0.0
    %1282 = vmatprep.subr.mxu0 0.0
    %1283 = vmatpush2.msra.mxu0 0.0
    %1284 = vmatprep.subr.mxu0 0.0
    %1285 = vmatpush2.msra.mxu0 0.0
    %1286 = vmatprep.subr.mxu0 0.0
    %1287 = vmatpush2.msra.mxu0 0.0
    %1288 = vmatprep.subr.mxu0 0.0
    %1289 = vmatpush2.msra.mxu0 0.0
    %1290 = vmatprep.subr.mxu0 0.0
    %1291 = vmatpush2.msra.mxu0 0.0
    %1292 = vmatprep.subr.mxu0 0.0
    %1293 = vmatpush2.msra.mxu0 0.0
    %1294 = vmatprep.subr.mxu0 0.0
    %1295 = vmatpush2.msra.mxu0 0.0
    %1296 = vmatprep.subr.mxu0 0.0
    %1297 = vmatpush2.msra.mxu0 0.0
    %1298 = vmatprep.mubr.f32.mxu0 0.0
    %v1299 = vand.u32 %v1231, 4294901760
    %v1300 = vsub.f32 %v1231, %v1299
    %v1301 = vand.u32 %v1300, 4294901760
    %v1302 = vsub.f32 %v1300, %v1301
    %v1303 = vand.u32 %v1302, 4294901760
    %1304 = vmatmul.mubr.f32.gmra.mxu0 %v1303
    %v1305 = vpop.f32.mrf.mxu0
    %v1306 = vadd.f32 %v1227, %v1305
    %v1307 = vpop.f32.mrf.mxu0
    %1308 = vdwg.mxu0
    %1309 = vmatprep.subr.mxu0 0.0
    %1310 = vmatpush1.msra.mxu0 0.0
    %1311 = vmatprep.subr.mxu0 0.0
    %1312 = vmatpush1.msra.mxu0 0.0
    %1313 = vmatprep.subr.mxu0 0.0
    %1314 = vmatpush1.msra.mxu0 0.0
    %1315 = vmatprep.subr.mxu0 0.0
    %1316 = vmatpush1.msra.mxu0 0.0
    %1317 = vmatprep.subr.mxu0 0.0
    %1318 = vmatpush1.msra.mxu0 0.0
    %1319 = vmatprep.subr.mxu0 0.0
    %1320 = vmatpush1.msra.mxu0 0.0
    %1321 = vmatprep.subr.mxu0 0.0
    %1322 = vmatpush1.msra.mxu0 0.0
    %1323 = vmatprep.subr.mxu0 0.0
    %1324 = vmatpush1.msra.mxu0 0.0
    %1325 = vmatprep.subr.mxu0 0.0
    %1326 = vmatpush1.msra.mxu0 0.0
    %1327 = vmatprep.subr.mxu0 0.0
    %1328 = vmatpush1.msra.mxu0 0.0
    %1329 = vmatprep.subr.mxu0 0.0
    %1330 = vmatpush1.msra.mxu0 0.0
    %1331 = vmatprep.subr.mxu0 0.0
    %1332 = vmatpush1.msra.mxu0 0.0
    %1333 = vmatprep.subr.mxu0 0.0
    %1334 = vmatpush1.msra.mxu0 0.0
    %1335 = vmatprep.subr.mxu0 0.0
    %1336 = vmatpush1.msra.mxu0 0.0
    %1337 = vmatprep.subr.mxu0 0.0
    %1338 = vmatpush1.msra.mxu0 0.0
    %1339 = vmatprep.subr.mxu0 0.0
    %v1340 = vand.u32 %v1221, 4294901760
    %v1341 = vsub.f32 %v1221, %v1340
    %v1342 = vand.u32 %v1341, 4294901760
    %v1343 = vsub.f32 %v1341, %v1342
    %v1344 = vand.u32 %v1343, 4294901760
    %1345 = vmatpush1.msra.mxu0 %v1344
    %1346 = vmatprep.subr.mxu0 0.0
    %1347 = vmatpush2.msra.mxu0 0.0
    %1348 = vmatprep.subr.mxu0 0.0
    %1349 = vmatpush2.msra.mxu0 0.0
    %1350 = vmatprep.subr.mxu0 0.0
    %1351 = vmatpush2.msra.mxu0 0.0
    %1352 = vmatprep.subr.mxu0 0.0
    %1353 = vmatpush2.msra.mxu0 0.0
    %1354 = vmatprep.subr.mxu0 0.0
    %1355 = vmatpush2.msra.mxu0 0.0
    %1356 = vmatprep.subr.mxu0 0.0
    %1357 = vmatpush2.msra.mxu0 0.0
    %1358 = vmatprep.subr.mxu0 0.0
    %1359 = vmatpush2.msra.mxu0 0.0
    %1360 = vmatprep.subr.mxu0 0.0
    %1361 = vmatpush2.msra.mxu0 0.0
    %1362 = vmatprep.subr.mxu0 0.0
    %1363 = vmatpush2.msra.mxu0 0.0
    %1364 = vmatprep.subr.mxu0 0.0
    %1365 = vmatpush2.msra.mxu0 0.0
    %1366 = vmatprep.subr.mxu0 0.0
    %1367 = vmatpush2.msra.mxu0 0.0
    %1368 = vmatprep.subr.mxu0 0.0
    %1369 = vmatpush2.msra.mxu0 0.0
    %1370 = vmatprep.subr.mxu0 0.0
    %1371 = vmatpush2.msra.mxu0 0.0
    %1372 = vmatprep.subr.mxu0 0.0
    %1373 = vmatpush2.msra.mxu0 0.0
    %1374 = vmatprep.subr.mxu0 0.0
    %1375 = vmatpush2.msra.mxu0 0.0
    %1376 = vmatprep.subr.mxu0 0.0
    %1377 = vmatpush2.msra.mxu0 0.0
    %1378 = vmatprep.mubr.f32.mxu0 0.0
    %v1379 = vand.u32 %v1231, 4294901760
    %1380 = vmatmul.mubr.f32.gmra.mxu0 %v1379
    %v1381 = vpop.f32.mrf.mxu0
    %v1382 = vadd.f32 %v1306, %v1381
    %v1383 = vpop.f32.mrf.mxu0
    %1384 = vdwg.mxu0
    %1385 = vmatprep.subr.mxu0 0.0
    %1386 = vmatpush1.msra.mxu0 0.0
    %1387 = vmatprep.subr.mxu0 0.0
    %1388 = vmatpush1.msra.mxu0 0.0
    %1389 = vmatprep.subr.mxu0 0.0
    %1390 = vmatpush1.msra.mxu0 0.0
    %1391 = vmatprep.subr.mxu0 0.0
    %1392 = vmatpush1.msra.mxu0 0.0
    %1393 = vmatprep.subr.mxu0 0.0
    %1394 = vmatpush1.msra.mxu0 0.0
    %1395 = vmatprep.subr.mxu0 0.0
    %1396 = vmatpush1.msra.mxu0 0.0
    %1397 = vmatprep.subr.mxu0 0.0
    %1398 = vmatpush1.msra.mxu0 0.0
    %1399 = vmatprep.subr.mxu0 0.0
    %1400 = vmatpush1.msra.mxu0 0.0
    %1401 = vmatprep.subr.mxu0 0.0
    %1402 = vmatpush1.msra.mxu0 0.0
    %1403 = vmatprep.subr.mxu0 0.0
    %1404 = vmatpush1.msra.mxu0 0.0
    %1405 = vmatprep.subr.mxu0 0.0
    %1406 = vmatpush1.msra.mxu0 0.0
    %1407 = vmatprep.subr.mxu0 0.0
    %1408 = vmatpush1.msra.mxu0 0.0
    %1409 = vmatprep.subr.mxu0 0.0
    %1410 = vmatpush1.msra.mxu0 0.0
    %1411 = vmatprep.subr.mxu0 0.0
    %1412 = vmatpush1.msra.mxu0 0.0
    %1413 = vmatprep.subr.mxu0 0.0
    %1414 = vmatpush1.msra.mxu0 0.0
    %1415 = vmatprep.subr.mxu0 0.0
    %v1416 = vand.u32 %v1221, 4294901760
    %v1417 = vsub.f32 %v1221, %v1416
    %1418 = vmatpush1.msra.mxu0 %v1417
    %1419 = vmatprep.subr.mxu0 0.0
    %1420 = vmatpush2.msra.mxu0 0.0
    %1421 = vmatprep.subr.mxu0 0.0
    %1422 = vmatpush2.msra.mxu0 0.0
    %1423 = vmatprep.subr.mxu0 0.0
    %1424 = vmatpush2.msra.mxu0 0.0
    %1425 = vmatprep.subr.mxu0 0.0
    %1426 = vmatpush2.msra.mxu0 0.0
    %1427 = vmatprep.subr.mxu0 0.0
    %1428 = vmatpush2.msra.mxu0 0.0
    %1429 = vmatprep.subr.mxu0 0.0
    %1430 = vmatpush2.msra.mxu0 0.0
    %1431 = vmatprep.subr.mxu0 0.0
    %1432 = vmatpush2.msra.mxu0 0.0
    %1433 = vmatprep.subr.mxu0 0.0
    %1434 = vmatpush2.msra.mxu0 0.0
    %1435 = vmatprep.subr.mxu0 0.0
    %1436 = vmatpush2.msra.mxu0 0.0
    %1437 = vmatprep.subr.mxu0 0.0
    %1438 = vmatpush2.msra.mxu0 0.0
    %1439 = vmatprep.subr.mxu0 0.0
    %1440 = vmatpush2.msra.mxu0 0.0
    %1441 = vmatprep.subr.mxu0 0.0
    %1442 = vmatpush2.msra.mxu0 0.0
    %1443 = vmatprep.subr.mxu0 0.0
    %1444 = vmatpush2.msra.mxu0 0.0
    %1445 = vmatprep.subr.mxu0 0.0
    %1446 = vmatpush2.msra.mxu0 0.0
    %1447 = vmatprep.subr.mxu0 0.0
    %1448 = vmatpush2.msra.mxu0 0.0
    %1449 = vmatprep.subr.mxu0 0.0
    %1450 = vmatpush2.msra.mxu0 0.0
    %1451 = vmatprep.mubr.f32.mxu0 0.0
    %v1452 = vand.u32 %v1231, 4294901760
    %v1453 = vsub.f32 %v1231, %v1452
    %1454 = vmatmul.mubr.f32.gmra.mxu0 %v1453
    %v1455 = vpop.f32.mrf.mxu0
    %v1456 = vadd.f32 %v1382, %v1455
    %v1457 = vpop.f32.mrf.mxu0
    %1458 = vdwg.mxu0
    %1459 = vmatprep.subr.mxu0 0.0
    %1460 = vmatpush1.msra.mxu0 0.0
    %1461 = vmatprep.subr.mxu0 0.0
    %1462 = vmatpush1.msra.mxu0 0.0
    %1463 = vmatprep.subr.mxu0 0.0
    %1464 = vmatpush1.msra.mxu0 0.0
    %1465 = vmatprep.subr.mxu0 0.0
    %1466 = vmatpush1.msra.mxu0 0.0
    %1467 = vmatprep.subr.mxu0 0.0
    %1468 = vmatpush1.msra.mxu0 0.0
    %1469 = vmatprep.subr.mxu0 0.0
    %1470 = vmatpush1.msra.mxu0 0.0
    %1471 = vmatprep.subr.mxu0 0.0
    %1472 = vmatpush1.msra.mxu0 0.0
    %1473 = vmatprep.subr.mxu0 0.0
    %1474 = vmatpush1.msra.mxu0 0.0
    %1475 = vmatprep.subr.mxu0 0.0
    %1476 = vmatpush1.msra.mxu0 0.0
    %1477 = vmatprep.subr.mxu0 0.0
    %1478 = vmatpush1.msra.mxu0 0.0
    %1479 = vmatprep.subr.mxu0 0.0
    %1480 = vmatpush1.msra.mxu0 0.0
    %1481 = vmatprep.subr.mxu0 0.0
    %1482 = vmatpush1.msra.mxu0 0.0
    %1483 = vmatprep.subr.mxu0 0.0
    %1484 = vmatpush1.msra.mxu0 0.0
    %1485 = vmatprep.subr.mxu0 0.0
    %1486 = vmatpush1.msra.mxu0 0.0
    %1487 = vmatprep.subr.mxu0 0.0
    %1488 = vmatpush1.msra.mxu0 0.0
    %1489 = vmatprep.subr.mxu0 0.0
    %v1490 = vand.u32 %v1221, 4294901760
    %1491 = vmatpush1.msra.mxu0 %v1490
    %1492 = vmatprep.subr.mxu0 0.0
    %1493 = vmatpush2.msra.mxu0 0.0
    %1494 = vmatprep.subr.mxu0 0.0
    %1495 = vmatpush2.msra.mxu0 0.0
    %1496 = vmatprep.subr.mxu0 0.0
    %1497 = vmatpush2.msra.mxu0 0.0
    %1498 = vmatprep.subr.mxu0 0.0
    %1499 = vmatpush2.msra.mxu0 0.0
    %1500 = vmatprep.subr.mxu0 0.0
    %1501 = vmatpush2.msra.mxu0 0.0
    %1502 = vmatprep.subr.mxu0 0.0
    %1503 = vmatpush2.msra.mxu0 0.0
    %1504 = vmatprep.subr.mxu0 0.0
    %1505 = vmatpush2.msra.mxu0 0.0
    %1506 = vmatprep.subr.mxu0 0.0
    %1507 = vmatpush2.msra.mxu0 0.0
    %1508 = vmatprep.subr.mxu0 0.0
    %1509 = vmatpush2.msra.mxu0 0.0
    %1510 = vmatprep.subr.mxu0 0.0
    %1511 = vmatpush2.msra.mxu0 0.0
    %1512 = vmatprep.subr.mxu0 0.0
    %1513 = vmatpush2.msra.mxu0 0.0
    %1514 = vmatprep.subr.mxu0 0.0
    %1515 = vmatpush2.msra.mxu0 0.0
    %1516 = vmatprep.subr.mxu0 0.0
    %1517 = vmatpush2.msra.mxu0 0.0
    %1518 = vmatprep.subr.mxu0 0.0
    %1519 = vmatpush2.msra.mxu0 0.0
    %1520 = vmatprep.subr.mxu0 0.0
    %1521 = vmatpush2.msra.mxu0 0.0
    %1522 = vmatprep.subr.mxu0 0.0
    %1523 = vmatpush2.msra.mxu0 0.0
    %1524 = vmatprep.mubr.f32.mxu0 0.0
    %v1525 = vand.u32 %v1231, 4294901760
    %v1526 = vsub.f32 %v1231, %v1525
    %v1527 = vand.u32 %v1526, 4294901760
    %1528 = vmatmul.mubr.f32.gmra.mxu0 %v1527
    %v1529 = vpop.f32.mrf.mxu0
    %v1530 = vadd.f32 %v1456, %v1529
    %v1531 = vpop.f32.mrf.mxu0
    %1532 = vdwg.mxu0
    %1533 = vmatprep.subr.mxu0 0.0
    %1534 = vmatpush1.msra.mxu0 0.0
    %1535 = vmatprep.subr.mxu0 0.0
    %1536 = vmatpush1.msra.mxu0 0.0
    %1537 = vmatprep.subr.mxu0 0.0
    %1538 = vmatpush1.msra.mxu0 0.0
    %1539 = vmatprep.subr.mxu0 0.0
    %1540 = vmatpush1.msra.mxu0 0.0
    %1541 = vmatprep.subr.mxu0 0.0
    %1542 = vmatpush1.msra.mxu0 0.0
    %1543 = vmatprep.subr.mxu0 0.0
    %1544 = vmatpush1.msra.mxu0 0.0
    %1545 = vmatprep.subr.mxu0 0.0
    %1546 = vmatpush1.msra.mxu0 0.0
    %1547 = vmatprep.subr.mxu0 0.0
    %1548 = vmatpush1.msra.mxu0 0.0
    %1549 = vmatprep.subr.mxu0 0.0
    %1550 = vmatpush1.msra.mxu0 0.0
    %1551 = vmatprep.subr.mxu0 0.0
    %1552 = vmatpush1.msra.mxu0 0.0
    %1553 = vmatprep.subr.mxu0 0.0
    %1554 = vmatpush1.msra.mxu0 0.0
    %1555 = vmatprep.subr.mxu0 0.0
    %1556 = vmatpush1.msra.mxu0 0.0
    %1557 = vmatprep.subr.mxu0 0.0
    %1558 = vmatpush1.msra.mxu0 0.0
    %1559 = vmatprep.subr.mxu0 0.0
    %1560 = vmatpush1.msra.mxu0 0.0
    %1561 = vmatprep.subr.mxu0 0.0
    %1562 = vmatpush1.msra.mxu0 0.0
    %1563 = vmatprep.subr.mxu0 0.0
    %v1564 = vand.u32 %v1221, 4294901760
    %v1565 = vsub.f32 %v1221, %v1564
    %v1566 = vand.u32 %v1565, 4294901760
    %1567 = vmatpush1.msra.mxu0 %v1566
    %1568 = vmatprep.subr.mxu0 0.0
    %1569 = vmatpush2.msra.mxu0 0.0
    %1570 = vmatprep.subr.mxu0 0.0
    %1571 = vmatpush2.msra.mxu0 0.0
    %1572 = vmatprep.subr.mxu0 0.0
    %1573 = vmatpush2.msra.mxu0 0.0
    %1574 = vmatprep.subr.mxu0 0.0
    %1575 = vmatpush2.msra.mxu0 0.0
    %1576 = vmatprep.subr.mxu0 0.0
    %1577 = vmatpush2.msra.mxu0 0.0
    %1578 = vmatprep.subr.mxu0 0.0
    %1579 = vmatpush2.msra.mxu0 0.0
    %1580 = vmatprep.subr.mxu0 0.0
    %1581 = vmatpush2.msra.mxu0 0.0
    %1582 = vmatprep.subr.mxu0 0.0
    %1583 = vmatpush2.msra.mxu0 0.0
    %1584 = vmatprep.subr.mxu0 0.0
    %1585 = vmatpush2.msra.mxu0 0.0
    %1586 = vmatprep.subr.mxu0 0.0
    %1587 = vmatpush2.msra.mxu0 0.0
    %1588 = vmatprep.subr.mxu0 0.0
    %1589 = vmatpush2.msra.mxu0 0.0
    %1590 = vmatprep.subr.mxu0 0.0
    %1591 = vmatpush2.msra.mxu0 0.0
    %1592 = vmatprep.subr.mxu0 0.0
    %1593 = vmatpush2.msra.mxu0 0.0
    %1594 = vmatprep.subr.mxu0 0.0
    %1595 = vmatpush2.msra.mxu0 0.0
    %1596 = vmatprep.subr.mxu0 0.0
    %1597 = vmatpush2.msra.mxu0 0.0
    %1598 = vmatprep.subr.mxu0 0.0
    %1599 = vmatpush2.msra.mxu0 0.0
    %1600 = vmatprep.mubr.f32.mxu0 0.0
    %v1601 = vand.u32 %v1231, 4294901760
    %1602 = vmatmul.mubr.f32.gmra.mxu0 %v1601
    %v1603 = vpop.f32.mrf.mxu0
    %v1604 = vadd.f32 %v1530, %v1603
    %v1605 = vpop.f32.mrf.mxu0
    %1606 = vdwg.mxu0
    %1607 = vmatprep.subr.mxu0 0.0
    %1608 = vmatpush1.msra.mxu0 0.0
    %1609 = vmatprep.subr.mxu0 0.0
    %1610 = vmatpush1.msra.mxu0 0.0
    %1611 = vmatprep.subr.mxu0 0.0
    %1612 = vmatpush1.msra.mxu0 0.0
    %1613 = vmatprep.subr.mxu0 0.0
    %1614 = vmatpush1.msra.mxu0 0.0
    %1615 = vmatprep.subr.mxu0 0.0
    %1616 = vmatpush1.msra.mxu0 0.0
    %1617 = vmatprep.subr.mxu0 0.0
    %1618 = vmatpush1.msra.mxu0 0.0
    %1619 = vmatprep.subr.mxu0 0.0
    %1620 = vmatpush1.msra.mxu0 0.0
    %1621 = vmatprep.subr.mxu0 0.0
    %1622 = vmatpush1.msra.mxu0 0.0
    %1623 = vmatprep.subr.mxu0 0.0
    %1624 = vmatpush1.msra.mxu0 0.0
    %1625 = vmatprep.subr.mxu0 0.0
    %1626 = vmatpush1.msra.mxu0 0.0
    %1627 = vmatprep.subr.mxu0 0.0
    %1628 = vmatpush1.msra.mxu0 0.0
    %1629 = vmatprep.subr.mxu0 0.0
    %1630 = vmatpush1.msra.mxu0 0.0
    %1631 = vmatprep.subr.mxu0 0.0
    %1632 = vmatpush1.msra.mxu0 0.0
    %1633 = vmatprep.subr.mxu0 0.0
    %1634 = vmatpush1.msra.mxu0 0.0
    %1635 = vmatprep.subr.mxu0 0.0
    %1636 = vmatpush1.msra.mxu0 0.0
    %1637 = vmatprep.subr.mxu0 0.0
    %v1638 = vand.u32 %v1221, 4294901760
    %1639 = vmatpush1.msra.mxu0 %v1638
    %1640 = vmatprep.subr.mxu0 0.0
    %1641 = vmatpush2.msra.mxu0 0.0
    %1642 = vmatprep.subr.mxu0 0.0
    %1643 = vmatpush2.msra.mxu0 0.0
    %1644 = vmatprep.subr.mxu0 0.0
    %1645 = vmatpush2.msra.mxu0 0.0
    %1646 = vmatprep.subr.mxu0 0.0
    %1647 = vmatpush2.msra.mxu0 0.0
    %1648 = vmatprep.subr.mxu0 0.0
    %1649 = vmatpush2.msra.mxu0 0.0
    %1650 = vmatprep.subr.mxu0 0.0
    %1651 = vmatpush2.msra.mxu0 0.0
    %1652 = vmatprep.subr.mxu0 0.0
    %1653 = vmatpush2.msra.mxu0 0.0
    %1654 = vmatprep.subr.mxu0 0.0
    %1655 = vmatpush2.msra.mxu0 0.0
    %1656 = vmatprep.subr.mxu0 0.0
    %1657 = vmatpush2.msra.mxu0 0.0
    %1658 = vmatprep.subr.mxu0 0.0
    %1659 = vmatpush2.msra.mxu0 0.0
    %1660 = vmatprep.subr.mxu0 0.0
    %1661 = vmatpush2.msra.mxu0 0.0
    %1662 = vmatprep.subr.mxu0 0.0
    %1663 = vmatpush2.msra.mxu0 0.0
    %1664 = vmatprep.subr.mxu0 0.0
    %1665 = vmatpush2.msra.mxu0 0.0
    %1666 = vmatprep.subr.mxu0 0.0
    %1667 = vmatpush2.msra.mxu0 0.0
    %1668 = vmatprep.subr.mxu0 0.0
    %1669 = vmatpush2.msra.mxu0 0.0
    %1670 = vmatprep.subr.mxu0 0.0
    %1671 = vmatpush2.msra.mxu0 0.0
    %1672 = vmatprep.mubr.f32.mxu0 0.0
    %v1673 = vand.u32 %v1231, 4294901760
    %1674 = vmatmul.mubr.f32.gmra.mxu0 %v1673
    %v1675 = vpop.f32.mrf.mxu0
    %v1676 = vadd.f32 %v1604, %v1675
    %v1677 = vpop.f32.mrf.mxu0
    %1678 = vdwg.mxu0
    %vm1679 = vcmask 17408
    %v1680 = vsel %vm1679, %v1676, -inf
    %1681 = vmax.xlane.f32.xlu0 %v1680
    %v1682 = vpop.xlane.xlu0 %1681
    %v1683 = vsub.f32 %v1676, %v1682
    %v1684 = vmul.f32 %v1683, 1.442695
    %v1685 = vpow.pop %v1684
    %1686 = vst.msk [vmem:[#allocation2] sm:$0x3] %vm1679, %v1676
    %v1687 = vsel %vm1679, %v1685, 0.0
    %1688 = vadd.xlane.f32.xlu0 %v1687
    %v1689 = vpop.xlane.xlu0 %1688
    %v1690 = vrcp.pop %v1689
    %v1691 = vmul.f32 %v1685, %v1690
    %1692 = vst.msk [vmem:[#allocation4] sm:$0x3] %vm1679, %v1691
    // Predicated region
    $region30: #{bcn_forward.11} parent=1 // pred_check
      _
    $region31: #{bcn_forward.11} parent=1 // pred_check_branch
      %1694 = sbr.rel (0) target = $region33
    $region32: #{bcn_forward.11} parent=1 // pred_region
      %s1696 = ssub.s32 32, 32
      %1697 = vsyncadd [#allocation3], %s1696
      %s1699 = sshll.u32 [#allocation2], 4
      %s1700 = int_to_ptr.vmem [resolvable:$true] %s1699
      %1702 = dma.vmem_to_hbm [thread:$0]  %s1700, 32, %s7, [#allocation3]
    $region33: #{bcn_forward.11} parent=1 // pred_fallthru
      _
    // Predicated region
    $region34: #{bcn_forward.11} parent=1 // pred_check
      _
    $region35: #{bcn_forward.11} parent=1 // pred_check_branch
      %1704 = sbr.rel (0) target = $region37
    $region36: #{bcn_forward.11} parent=1 // pred_region
      %s1706 = ssub.s32 32, 32
      %1707 = vsyncadd [#allocation5], %s1706
      %s1709 = sshll.u32 [#allocation4], 4
      %s1710 = int_to_ptr.vmem [resolvable:$true] %s1709
      %1712 = dma.vmem_to_hbm [thread:$0]  %s1710, 32, %s8, [#allocation5]
    $region37: #{bcn_forward.11} parent=1 // pred_fallthru
      _
    // Predicated region
    $region38: #{bcn_forward.11} parent=1 // pred_check
      _
    $region39: #{bcn_forward.11} parent=1 // pred_check_branch
      %1714 = sbr.rel (0) target = $region41
    $region40: #{bcn_forward.11} parent=1 // pred_region
      %1715 = dma.done [#allocation3], 32
    $region41: #{bcn_forward.11} parent=1 // pred_fallthru
      _
    // Predicated region
    $region42: #{bcn_forward.11} parent=1 // pred_check
      _
    $region43: #{bcn_forward.11} parent=1 // pred_check_branch
      %1717 = sbr.rel (0) target = $region45
    $region44: #{bcn_forward.11} parent=1 // pred_region
      %1718 = dma.done [#allocation5], 32
    $region45: #{bcn_forward.11} parent=1 // pred_fallthru
      _
    %1719 = vsyncpa [#allocation3], 1
    %1720 = vsyncpa [#allocation5], 1

// kernel: bcn_forward.10
$region0: #{bcn_forward.10}
  #allocation0 [shape = 'u32[]', space=smem, size = 0x4, offset = 0x4, fixed_abs, tag = 'smem constant byte address 0x4 - core index']
  #allocation1 [shape = 'u32[144,128]{1,0:T(1,128)}', space=vmem, size = 0x12000, scoped, tag = 'internal scratch']
  #allocation2 [shape = 'f32[1,1,1]{2,1,0:T(1,128)S(1)}', space=vmem, size = 0x200, scoped, tag = 'scoped memory for bcn_forward.10']
  %s0 = inlined_call_operand.vmem [shape: f32[2,8,2,16], index: 0, kind: input, shape index: {}]
  %s1 = inlined_call_operand.vmem [shape: f32[8,2,1], index: 1, kind: input, shape index: {}]
  %s2 = inlined_call_operand.vmem [shape: f32[1,1,32], index: 2, kind: input, shape index: {}]
  %s3 = inlined_call_operand.<no memory space> [shape: f32[1,1,1], index: 3, kind: input, shape index: {}]
  %s4 = inlined_call_operand.vmem [shape: f32[2,128], index: 4, kind: output, shape index: {}]
  %s5 = sld [smem:[#allocation0]]
  $region26: #{bcn_forward.10} parent=0
    _
  %s7 = ssub.s32 1, %s5
  %s8 = scalar_select 0, %s7, %s5
  %v9 = vstv %s3
  %10 = vst [vmem:[#allocation2] sm:$0x1] %v9
  // Predicated region
  $region2: #{bcn_forward.10} parent=0 // pred_check
    _
  $region3: #{bcn_forward.10} parent=0 // pred_check_branch
    %12 = sbr.rel (0) target = $region5
  $region4: #{bcn_forward.10} parent=0 // pred_region
    _
  $region5: #{bcn_forward.10} parent=0 // pred_fallthru
    _
  // Predicated region
  $region6: #{bcn_forward.10} parent=0 // pred_check
    _
  $region7: #{bcn_forward.10} parent=0 // pred_check_branch
    %14 = sbr.rel (0) target = $region9
  $region8: #{bcn_forward.10} parent=0 // pred_region
    _
  $region9: #{bcn_forward.10} parent=0 // pred_fallthru
    _
  // Predicated region
  $region10: #{bcn_forward.10} parent=0 // pred_check
    _
  $region11: #{bcn_forward.10} parent=0 // pred_check_branch
    %16 = sbr.rel (0) target = $region13
  $region12: #{bcn_forward.10} parent=0 // pred_region
    _
  $region13: #{bcn_forward.10} parent=0 // pred_fallthru
    _
  // Predicated region
  $region14: #{bcn_forward.10} parent=0 // pred_check
    _
  $region15: #{bcn_forward.10} parent=0 // pred_check_branch
    %18 = sbr.rel (0) target = $region17
  $region16: #{bcn_forward.10} parent=0 // pred_region
    _
  $region17: #{bcn_forward.10} parent=0 // pred_fallthru
    _
  %v19 = vld [vmem:[%s1] sm:$0x3]
  %v20 = vld [vmem:[%s1 + $0x2] sm:$0x3]
  %v21 = vld [vmem:[%s1 + $0x4] sm:$0x3]
  %v22 = vld [vmem:[%s1 + $0x6] sm:$0x3]
  %v23 = vld [vmem:[%s1 + $0x8] sm:$0x3]
  %v24 = vld [vmem:[%s1 + $0xa] sm:$0x3]
  %v25 = vld [vmem:[%s1 + $0xc] sm:$0x3]
  %v26 = vld [vmem:[%s1 + $0xe] sm:$0x3]
  %v27 = vsub.f32 1.0, %v19
  %v28 = vsub.f32 1.0, %v20
  %v29 = vsub.f32 1.0, %v21
  %v30 = vsub.f32 1.0, %v22
  %v31 = vsub.f32 1.0, %v23
  %v32 = vsub.f32 1.0, %v24
  %v33 = vsub.f32 1.0, %v25
  %v34 = vsub.f32 1.0, %v26
  %v35 = vmul.f32 %v27, 10000000.0
  %v36 = vmul.f32 %v28, 10000000.0
  %v37 = vmul.f32 %v29, 10000000.0
  %v38 = vmul.f32 %v30, 10000000.0
  %v39 = vmul.f32 %v31, 10000000.0
  %v40 = vmul.f32 %v32, 10000000.0
  %v41 = vmul.f32 %v33, 10000000.0
  %v42 = vmul.f32 %v34, 10000000.0
  %v43 = vmul.f32 %v27, -1e+32
  %v44 = vmul.f32 %v28, -1e+32
  %v45 = vmul.f32 %v29, -1e+32
  %v46 = vmul.f32 %v30, -1e+32
  %v47 = vmul.f32 %v31, -1e+32
  %v48 = vmul.f32 %v32, -1e+32
  %v49 = vmul.f32 %v33, -1e+32
  %v50 = vmul.f32 %v34, -1e+32
  %vm51 = vcmask 1024
  %v52 = vsel %vm51, %v19, 0.0
  %v53 = vsel %vm51, %v20, 0.0
  %v54 = vadd.f32 %v52, %v53
  %v55 = vsel %vm51, %v21, 0.0
  %v56 = vadd.f32 %v54, %v55
  %v57 = vsel %vm51, %v22, 0.0
  %v58 = vadd.f32 %v56, %v57
  %v59 = vsel %vm51, %v23, 0.0
  %v60 = vadd.f32 %v58, %v59
  %v61 = vsel %vm51, %v24, 0.0
  %v62 = vadd.f32 %v60, %v61
  %v63 = vsel %vm51, %v25, 0.0
  %v64 = vadd.f32 %v62, %v63
  %v65 = vsel %vm51, %v26, 0.0
  %v66 = vadd.f32 %v64, %v65
  %v67 = vld [vmem:[%s0] sm:$0x3]
  %v68 = vld [vmem:[%s0 + $0x2] sm:$0x3]
  %v69 = vld [vmem:[%s0 + $0x4] sm:$0x3]
  %v70 = vld [vmem:[%s0 + $0x6] sm:$0x3]
  %v71 = vld [vmem:[%s0 + $0x8] sm:$0x3]
  %v72 = vld [vmem:[%s0 + $0xa] sm:$0x3]
  %v73 = vld [vmem:[%s0 + $0xc] sm:$0x3]
  %v74 = vld [vmem:[%s0 + $0xe] sm:$0x3]
  %s75 = scalar_lea.vmem %s0, 16
  %v76 = vld [vmem:[%s75] sm:$0x3]
  %v77 = vld [vmem:[%s75 + $0x2] sm:$0x3]
  %v78 = vld [vmem:[%s75 + $0x4] sm:$0x3]
  %v79 = vld [vmem:[%s75 + $0x6] sm:$0x3]
  %v80 = vld [vmem:[%s75 + $0x8] sm:$0x3]
  %v81 = vld [vmem:[%s75 + $0xa] sm:$0x3]
  %v82 = vld [vmem:[%s75 + $0xc] sm:$0x3]
  %v83 = vld [vmem:[%s75 + $0xe] sm:$0x3]
  %v84 = vld [vmem:[%s2] sm:$0x1]
  %v86 = vlaneseq
  %v87 = vshrl.u32 %v86, 7
  %v88 = vsub.s32 0, %v87
  %v89 = vrot.slane %v84, %v88
  %v91 = vmul.f32 %v67, %v89
  %v92 = vmul.f32 %v68, %v89
  %v93 = vmul.f32 %v69, %v89
  %v94 = vmul.f32 %v70, %v89
  %v95 = vmul.f32 %v71, %v89
  %v96 = vmul.f32 %v72, %v89
  %v97 = vmul.f32 %v73, %v89
  %v98 = vmul.f32 %v74, %v89
  %vm99 = vcmask 123904
  %v100 = vsel %vm99, %v91, 0.0
  %101 = vadd.xlane.f32.xlu0 %v100
  %v102 = vpop.xlane.xlu0 %101
  %v103 = vsel %vm99, %v92, 0.0
  %104 = vadd.xlane.f32.xlu0 %v103
  %v105 = vpop.xlane.xlu0 %104
  %v106 = vsel %vm99, %v93, 0.0
  %107 = vadd.xlane.f32.xlu0 %v106
  %v108 = vpop.xlane.xlu0 %107
  %v109 = vsel %vm99, %v94, 0.0
  %110 = vadd.xlane.f32.xlu0 %v109
  %v111 = vpop.xlane.xlu0 %110
  %v112 = vsel %vm99, %v95, 0.0
  %113 = vadd.xlane.f32.xlu0 %v112
  %v114 = vpop.xlane.xlu0 %113
  %v115 = vsel %vm99, %v96, 0.0
  %116 = vadd.xlane.f32.xlu0 %v115
  %v117 = vpop.xlane.xlu0 %116
  %v118 = vsel %vm99, %v97, 0.0
  %119 = vadd.xlane.f32.xlu0 %v118
  %v120 = vpop.xlane.xlu0 %119
  %v121 = vsel %vm99, %v98, 0.0
  %122 = vadd.xlane.f32.xlu0 %v121
  %v123 = vpop.xlane.xlu0 %122
  %124 = vrot.lane.b32.xlu0 %v89, 112
  %v125 = vpop.permute.xlu0 %124
  %v127 = vmul.f32 %v76, %v125
  %v128 = vmul.f32 %v77, %v125
  %v129 = vmul.f32 %v78, %v125
  %v130 = vmul.f32 %v79, %v125
  %v131 = vmul.f32 %v80, %v125
  %v132 = vmul.f32 %v81, %v125
  %v133 = vmul.f32 %v82, %v125
  %v134 = vmul.f32 %v83, %v125
  %v135 = vsel %vm99, %v127, 0.0
  %136 = vadd.xlane.f32.xlu0 %v135
  %v137 = vpop.xlane.xlu0 %136
  %v138 = vsel %vm99, %v128, 0.0
  %139 = vadd.xlane.f32.xlu0 %v138
  %v140 = vpop.xlane.xlu0 %139
  %v141 = vsel %vm99, %v129, 0.0
  %142 = vadd.xlane.f32.xlu0 %v141
  %v143 = vpop.xlane.xlu0 %142
  %v144 = vsel %vm99, %v130, 0.0
  %145 = vadd.xlane.f32.xlu0 %v144
  %v146 = vpop.xlane.xlu0 %145
  %v147 = vsel %vm99, %v131, 0.0
  %148 = vadd.xlane.f32.xlu0 %v147
  %v149 = vpop.xlane.xlu0 %148
  %v150 = vsel %vm99, %v132, 0.0
  %151 = vadd.xlane.f32.xlu0 %v150
  %v152 = vpop.xlane.xlu0 %151
  %v153 = vsel %vm99, %v133, 0.0
  %154 = vadd.xlane.f32.xlu0 %v153
  %v155 = vpop.xlane.xlu0 %154
  %v156 = vsel %vm99, %v134, 0.0
  %157 = vadd.xlane.f32.xlu0 %v156
  %v158 = vpop.xlane.xlu0 %157
  %v159 = vadd.f32 %v102, %v137
  %v160 = vadd.f32 %v105, %v140
  %v161 = vadd.f32 %v108, %v143
  %v162 = vadd.f32 %v111, %v146
  %v163 = vadd.f32 %v114, %v149
  %v164 = vadd.f32 %v117, %v152
  %v165 = vadd.f32 %v120, %v155
  %v166 = vadd.f32 %v123, %v158
  %v167 = vld [vmem:[#allocation2] sm:$0x1]
  %v169 = vlaneseq
  %v170 = vshrl.u32 %v169, 7
  %v171 = vsub.s32 0, %v170
  %v172 = vrot.slane %v167, %v171
  %v174 = vadd.f32 %v159, %v172
  %v175 = vadd.f32 %v160, %v172
  %v176 = vadd.f32 %v161, %v172
  %v177 = vadd.f32 %v162, %v172
  %v178 = vadd.f32 %v163, %v172
  %v179 = vadd.f32 %v164, %v172
  %v180 = vadd.f32 %v165, %v172
  %v181 = vadd.f32 %v166, %v172
  %v182 = vadd.f32 %v174, %v43
  %v183 = vadd.f32 %v175, %v44
  %v184 = vadd.f32 %v176, %v45
  %v185 = vadd.f32 %v177, %v46
  %v186 = vadd.f32 %v178, %v47
  %v187 = vadd.f32 %v179, %v48
  %v188 = vadd.f32 %v180, %v49
  %v189 = vadd.f32 %v181, %v50
  %v190 = vsel %vm51, %v182, -inf
  %v191 = vsel %vm51, %v183, -inf
  %v192 = vsel %vm51, %v184, -inf
  %v193 = vsel %vm51, %v185, -inf
  %v194 = vsel %vm51, %v186, -inf
  %v195 = vmax.f32 %v190, %v194
  %v196 = vsel %vm51, %v187, -inf
  %v197 = vmax.f32 %v191, %v196
  %v198 = vsel %vm51, %v188, -inf
  %v199 = vmax.f32 %v192, %v198
  %v200 = vsel %vm51, %v189, -inf
  %v201 = vmax.f32 %v193, %v200
  %v202 = vmax.f32 %v195, %v197
  %v203 = vmax.f32 %v199, %v201
  %v204 = vmax.f32 %v202, %v203
  %v205 = vsub.f32 %v182, %v204
  %v206 = vsub.f32 %v183, %v204
  %v207 = vsub.f32 %v184, %v204
  %v208 = vsub.f32 %v185, %v204
  %v209 = vsub.f32 %v186, %v204
  %v210 = vsub.f32 %v187, %v204
  %v211 = vsub.f32 %v188, %v204
  %v212 = vsub.f32 %v189, %v204
  %v213 = vmul.f32 %v205, 1.442695
  %v214 = vpow.pop %v213
  %v215 = vmul.f32 %v206, 1.442695
  %v216 = vpow.pop %v215
  %v217 = vmul.f32 %v207, 1.442695
  %v218 = vpow.pop %v217
  %v219 = vmul.f32 %v208, 1.442695
  %v220 = vpow.pop %v219
  %v221 = vmul.f32 %v209, 1.442695
  %v222 = vpow.pop %v221
  %v223 = vmul.f32 %v210, 1.442695
  %v224 = vpow.pop %v223
  %v225 = vmul.f32 %v211, 1.442695
  %v226 = vpow.pop %v225
  %v227 = vmul.f32 %v212, 1.442695
  %v228 = vpow.pop %v227
  %v229 = vsel %vm51, %v214, 0.0
  %v230 = vsel %vm51, %v216, 0.0
  %v231 = vadd.f32 %v229, %v230
  %v232 = vsel %vm51, %v218, 0.0
  %v233 = vadd.f32 %v231, %v232
  %v234 = vsel %vm51, %v220, 0.0
  %v235 = vadd.f32 %v233, %v234
  %v236 = vsel %vm51, %v222, 0.0
  %v237 = vadd.f32 %v235, %v236
  %v238 = vsel %vm51, %v224, 0.0
  %v239 = vadd.f32 %v237, %v238
  %v240 = vsel %vm51, %v226, 0.0
  %v241 = vadd.f32 %v239, %v240
  %v242 = vsel %vm51, %v228, 0.0
  %v243 = vadd.f32 %v241, %v242
  %v244 = vrcp.pop %v243
  %v245 = vmul.f32 %v214, %v244
  %v246 = vmul.f32 %v216, %v244
  %v247 = vmul.f32 %v218, %v244
  %v248 = vmul.f32 %v220, %v244
  %v249 = vmul.f32 %v222, %v244
  %v250 = vmul.f32 %v224, %v244
  %v251 = vmul.f32 %v226, %v244
  %v252 = vmul.f32 %v228, %v244
  %254 = vset.pattern.permute.xlu0 0
  %255 = vperm.xlu0 %254, %v35
  %v256 = vpop.permute.xlu0 %255
  %259 = vset.pattern.permute.xlu0 0
  %260 = vperm.xlu0 %259, %v36
  %v261 = vpop.permute.xlu0 %260
  %264 = vset.pattern.permute.xlu0 0
  %265 = vperm.xlu0 %264, %v37
  %v266 = vpop.permute.xlu0 %265
  %269 = vset.pattern.permute.xlu0 0
  %270 = vperm.xlu0 %269, %v38
  %v271 = vpop.permute.xlu0 %270
  %274 = vset.pattern.permute.xlu0 0
  %275 = vperm.xlu0 %274, %v39
  %v276 = vpop.permute.xlu0 %275
  %279 = vset.pattern.permute.xlu0 0
  %280 = vperm.xlu0 %279, %v40
  %v281 = vpop.permute.xlu0 %280
  %284 = vset.pattern.permute.xlu0 0
  %285 = vperm.xlu0 %284, %v41
  %v286 = vpop.permute.xlu0 %285
  %289 = vset.pattern.permute.xlu0 0
  %290 = vperm.xlu0 %289, %v42
  %v291 = vpop.permute.xlu0 %290
  %v293 = vsub.f32 %v67, %v256
  %v294 = vsub.f32 %v68, %v261
  %v295 = vsub.f32 %v69, %v266
  %v296 = vsub.f32 %v70, %v271
  %v297 = vsub.f32 %v71, %v276
  %v298 = vsub.f32 %v72, %v281
  %v299 = vsub.f32 %v73, %v286
  %v300 = vsub.f32 %v74, %v291
  %v301 = vsel %vm99, %v293, -inf
  %v302 = vsel %vm99, %v294, -inf
  %v303 = vsel %vm99, %v295, -inf
  %v304 = vsel %vm99, %v296, -inf
  %v305 = vsel %vm99, %v297, -inf
  %v306 = vmax.f32 %v301, %v305
  %v307 = vsel %vm99, %v298, -inf
  %v308 = vmax.f32 %v302, %v307
  %v309 = vsel %vm99, %v299, -inf
  %v310 = vmax.f32 %v303, %v309
  %v311 = vsel %vm99, %v300, -inf
  %v312 = vmax.f32 %v304, %v311
  %v313 = vmax.f32 %v306, %v308
  %v314 = vmax.f32 %v310, %v312
  %v315 = vmax.f32 %v313, %v314
  %v316 = vsub.f32 %v76, %v256
  %v317 = vsub.f32 %v77, %v261
  %v318 = vsub.f32 %v78, %v266
  %v319 = vsub.f32 %v79, %v271
  %v320 = vsub.f32 %v80, %v276
  %v321 = vsub.f32 %v81, %v281
  %v322 = vsub.f32 %v82, %v286
  %v323 = vsub.f32 %v83, %v291
  %v324 = vsel %vm99, %v316, -inf
  %v325 = vsel %vm99, %v317, -inf
  %v326 = vsel %vm99, %v318, -inf
  %v327 = vsel %vm99, %v319, -inf
  %v328 = vsel %vm99, %v320, -inf
  %v329 = vmax.f32 %v324, %v328
  %v330 = vsel %vm99, %v321, -inf
  %v331 = vmax.f32 %v325, %v330
  %v332 = vsel %vm99, %v322, -inf
  %v333 = vmax.f32 %v326, %v332
  %v334 = vsel %vm99, %v323, -inf
  %v335 = vmax.f32 %v327, %v334
  %v336 = vmax.f32 %v329, %v331
  %v337 = vmax.f32 %v333, %v335
  %v338 = vmax.f32 %v336, %v337
  %v339 = vadd.f32 %v67, %v256
  %v340 = vadd.f32 %v68, %v261
  %v341 = vadd.f32 %v69, %v266
  %v342 = vadd.f32 %v70, %v271
  %v343 = vadd.f32 %v71, %v276
  %v344 = vadd.f32 %v72, %v281
  %v345 = vadd.f32 %v73, %v286
  %v346 = vadd.f32 %v74, %v291
  %v347 = vsel %vm99, %v339, inf
  %v348 = vsel %vm99, %v340, inf
  %v349 = vsel %vm99, %v341, inf
  %v350 = vsel %vm99, %v342, inf
  %v351 = vsel %vm99, %v343, inf
  %v352 = vmin.f32 %v347, %v351
  %v353 = vsel %vm99, %v344, inf
  %v354 = vmin.f32 %v348, %v353
  %v355 = vsel %vm99, %v345, inf
  %v356 = vmin.f32 %v349, %v355
  %v357 = vsel %vm99, %v346, inf
  %v358 = vmin.f32 %v350, %v357
  %v359 = vmin.f32 %v352, %v354
  %v360 = vmin.f32 %v356, %v358
  %v361 = vmin.f32 %v359, %v360
  %v362 = vadd.f32 %v76, %v256
  %v363 = vadd.f32 %v77, %v261
  %v364 = vadd.f32 %v78, %v266
  %v365 = vadd.f32 %v79, %v271
  %v366 = vadd.f32 %v80, %v276
  %v367 = vadd.f32 %v81, %v281
  %v368 = vadd.f32 %v82, %v286
  %v369 = vadd.f32 %v83, %v291
  %v370 = vsel %vm99, %v362, inf
  %v371 = vsel %vm99, %v363, inf
  %v372 = vsel %vm99, %v364, inf
  %v373 = vsel %vm99, %v365, inf
  %v374 = vsel %vm99, %v366, inf
  %v375 = vmin.f32 %v370, %v374
  %v376 = vsel %vm99, %v367, inf
  %v377 = vmin.f32 %v371, %v376
  %v378 = vsel %vm99, %v368, inf
  %v379 = vmin.f32 %v372, %v378
  %v380 = vsel %vm99, %v369, inf
  %v381 = vmin.f32 %v373, %v380
  %v382 = vmin.f32 %v375, %v377
  %v383 = vmin.f32 %v379, %v381
  %v384 = vmin.f32 %v382, %v383
  %v385 = vsel %vm99, %v67, 0.0
  %v386 = vsel %vm99, %v68, 0.0
  %v387 = vadd.f32 %v385, %v386
  %v388 = vsel %vm99, %v69, 0.0
  %v389 = vadd.f32 %v387, %v388
  %v390 = vsel %vm99, %v70, 0.0
  %v391 = vadd.f32 %v389, %v390
  %v392 = vsel %vm99, %v71, 0.0
  %v393 = vadd.f32 %v391, %v392
  %v394 = vsel %vm99, %v72, 0.0
  %v395 = vadd.f32 %v393, %v394
  %v396 = vsel %vm99, %v73, 0.0
  %v397 = vadd.f32 %v395, %v396
  %v398 = vsel %vm99, %v74, 0.0
  %v399 = vadd.f32 %v397, %v398
  %401 = vset.pattern.permute.xlu0 0
  %402 = vperm.xlu0 %401, %v66
  %v403 = vpop.permute.xlu0 %402
  %v405 = vrcp.pop %v403
  %v406 = vmul.f32 %v399, %v405
  %v407 = vsel %vm99, %v76, 0.0
  %v408 = vsel %vm99, %v77, 0.0
  %v409 = vadd.f32 %v407, %v408
  %v410 = vsel %vm99, %v78, 0.0
  %v411 = vadd.f32 %v409, %v410
  %v412 = vsel %vm99, %v79, 0.0
  %v413 = vadd.f32 %v411, %v412
  %v414 = vsel %vm99, %v80, 0.0
  %v415 = vadd.f32 %v413, %v414
  %v416 = vsel %vm99, %v81, 0.0
  %v417 = vadd.f32 %v415, %v416
  %v418 = vsel %vm99, %v82, 0.0
  %v419 = vadd.f32 %v417, %v418
  %v420 = vsel %vm99, %v83, 0.0
  %v421 = vadd.f32 %v419, %v420
  %v422 = vmul.f32 %v421, %v405
  %424 = vset.pattern.permute.xlu0 0
  %425 = vperm.xlu0 %424, %v245
  %v426 = vpop.permute.xlu0 %425
  %429 = vset.pattern.permute.xlu0 0
  %430 = vperm.xlu0 %429, %v246
  %v431 = vpop.permute.xlu0 %430
  %434 = vset.pattern.permute.xlu0 0
  %435 = vperm.xlu0 %434, %v247
  %v436 = vpop.permute.xlu0 %435
  %439 = vset.pattern.permute.xlu0 0
  %440 = vperm.xlu0 %439, %v248
  %v441 = vpop.permute.xlu0 %440
  %444 = vset.pattern.permute.xlu0 0
  %445 = vperm.xlu0 %444, %v249
  %v446 = vpop.permute.xlu0 %445
  %449 = vset.pattern.permute.xlu0 0
  %450 = vperm.xlu0 %449, %v250
  %v451 = vpop.permute.xlu0 %450
  %454 = vset.pattern.permute.xlu0 0
  %455 = vperm.xlu0 %454, %v251
  %v456 = vpop.permute.xlu0 %455
  %459 = vset.pattern.permute.xlu0 0
  %460 = vperm.xlu0 %459, %v252
  %v461 = vpop.permute.xlu0 %460
  %v463 = vmul.f32 %v426, %v67
  %v464 = vmul.f32 %v431, %v68
  %v465 = vmul.f32 %v436, %v69
  %v466 = vmul.f32 %v441, %v70
  %v467 = vmul.f32 %v446, %v71
  %v468 = vmul.f32 %v451, %v72
  %v469 = vmul.f32 %v456, %v73
  %v470 = vmul.f32 %v461, %v74
  %v471 = vsel %vm99, %v463, 0.0
  %v472 = vsel %vm99, %v464, 0.0
  %v473 = vadd.f32 %v471, %v472
  %v474 = vsel %vm99, %v465, 0.0
  %v475 = vadd.f32 %v473, %v474
  %v476 = vsel %vm99, %v466, 0.0
  %v477 = vadd.f32 %v475, %v476
  %v478 = vsel %vm99, %v467, 0.0
  %v479 = vadd.f32 %v477, %v478
  %v480 = vsel %vm99, %v468, 0.0
  %v481 = vadd.f32 %v479, %v480
  %v482 = vsel %vm99, %v469, 0.0
  %v483 = vadd.f32 %v481, %v482
  %v484 = vsel %vm99, %v470, 0.0
  %v485 = vadd.f32 %v483, %v484
  %v486 = vmul.f32 %v426, %v76
  %v487 = vmul.f32 %v431, %v77
  %v488 = vmul.f32 %v436, %v78
  %v489 = vmul.f32 %v441, %v79
  %v490 = vmul.f32 %v446, %v80
  %v491 = vmul.f32 %v451, %v81
  %v492 = vmul.f32 %v456, %v82
  %v493 = vmul.f32 %v461, %v83
  %v494 = vsel %vm99, %v486, 0.0
  %v495 = vsel %vm99, %v487, 0.0
  %v496 = vadd.f32 %v494, %v495
  %v497 = vsel %vm99, %v488, 0.0
  %v498 = vadd.f32 %v496, %v497
  %v499 = vsel %vm99, %v489, 0.0
  %v500 = vadd.f32 %v498, %v499
  %v501 = vsel %vm99, %v490, 0.0
  %v502 = vadd.f32 %v500, %v501
  %v503 = vsel %vm99, %v491, 0.0
  %v504 = vadd.f32 %v502, %v503
  %v505 = vsel %vm99, %v492, 0.0
  %v506 = vadd.f32 %v504, %v505
  %v507 = vsel %vm99, %v493, 0.0
  %v508 = vadd.f32 %v506, %v507
  %510 = vrot.lane.b32.xlu0 %v338, 16
  %v511 = vpop.permute.xlu0 %510
  %514 = vrot.lane.b32.xlu0 %v361, 32
  %v515 = vpop.permute.xlu0 %514
  %518 = vrot.lane.b32.xlu0 %v384, 48
  %v519 = vpop.permute.xlu0 %518
  %522 = vrot.lane.b32.xlu0 %v406, 64
  %v523 = vpop.permute.xlu0 %522
  %526 = vrot.lane.b32.xlu0 %v422, 80
  %v527 = vpop.permute.xlu0 %526
  %530 = vrot.lane.b32.xlu0 %v485, 96
  %v531 = vpop.permute.xlu0 %530
  %534 = vrot.lane.b32.xlu0 %v508, 112
  %v535 = vpop.permute.xlu0 %534
  %vm537 = vcmask 130048
  %v538 = vsel %vm537, %v315, %v511
  %vm539 = vcmask 261120
  %v540 = vsel %vm539, %v538, %v515
  %vm541 = vcmask 392192
  %v542 = vsel %vm541, %v540, %v519
  %vm543 = vcmask 523264
  %v544 = vsel %vm543, %v542, %v523
  %vm545 = vcmask 654336
  %v546 = vsel %vm545, %v544, %v527
  %vm547 = vcmask 785408
  %v548 = vsel %vm547, %v546, %v531
  %vm549 = vcmask 916480
  %v550 = vsel %vm549, %v548, %v535
  %551 = vst [vmem:[%s4] sm:$0x3] %v550
  // Predicated region
  $region18: #{bcn_forward.10} parent=0 // pred_check
    _
  $region19: #{bcn_forward.10} parent=0 // pred_check_branch
    %553 = sbr.rel (0) target = $region21
  $region20: #{bcn_forward.10} parent=0 // pred_region
    _
  $region21: #{bcn_forward.10} parent=0 // pred_fallthru
    _
  // Predicated region
  $region22: #{bcn_forward.10} parent=0 // pred_check
    _
  $region23: #{bcn_forward.10} parent=0 // pred_check_branch
    %555 = sbr.rel (0) target = $region25
  $region24: #{bcn_forward.10} parent=0 // pred_region
    _
  $region25: #{bcn_forward.10} parent=0 // pred_fallthru
    _

</llo_original>
